<compile_context>
chip_gen: v7x
topology: tpu7x:2x2x1
jax: 0.10.0
libtpu: 0.0.40
codegen_flags: <defaults>
</compile_context>

<pallas_src>
import functools
import math

import jax
import jax.numpy as jnp
from jax.experimental import pallas as pl
from jax.experimental.pallas import tpu as pltpu

_EPS = 1e-5            # torch.nn.InstanceNorm2d default
_LANE = 128
_TM = 256              # matmul M tile
_TK_TARGET = 512       # matmul K tile target
_VMEM_LIMIT = 48 * 1024 * 1024


def _round_up(x, m):
    return ((x + m - 1) // m) * m


# ---------------------------------------------------------------------------
# Pallas kernels
# ---------------------------------------------------------------------------
def _mm_kernel(p_ref, w_ref, o_ref, acc_ref):
    # p: (TM, TK) bf16, w: (TK, NP) bf16, acc: (TM, NP) f32
    @pl.when(pl.program_id(1) == 0)
    def _():
        acc_ref[...] = jnp.zeros_like(acc_ref)

    acc_ref[...] += jnp.dot(p_ref[...], w_ref[...],
                            preferred_element_type=jnp.float32)

    @pl.when(pl.program_id(1) == pl.num_programs(1) - 1)
    def _():
        o_ref[...] = acc_ref[...].astype(o_ref.dtype)


def _mm_bias_kernel(p_ref, w_ref, b_ref, o_ref, acc_ref):
    @pl.when(pl.program_id(1) == 0)
    def _():
        acc_ref[...] = jnp.zeros_like(acc_ref)

    acc_ref[...] += jnp.dot(p_ref[...], w_ref[...],
                            preferred_element_type=jnp.float32)

    @pl.when(pl.program_id(1) == pl.num_programs(1) - 1)
    def _():
        o_ref[...] = (acc_ref[...] + b_ref[...]).astype(o_ref.dtype)


def _instnorm_kernel(x_ref, g_ref, b_ref, o_ref, *, relu):
    # x: (1, HW, C); per (sample, channel) stats over HW, f32 math.
    x = x_ref[...].astype(jnp.float32)
    mean = jnp.mean(x, axis=1, keepdims=True)
    var = jnp.mean(jnp.square(x - mean), axis=1, keepdims=True)
    y = (x - mean) * jax.lax.rsqrt(var + _EPS) * g_ref[...] + b_ref[...]
    if relu:
        y = jnp.maximum(y, 0.0)
    o_ref[...] = y.astype(o_ref.dtype)


def _instnorm_res_kernel(x_ref, g_ref, b_ref, r_ref, o_ref):
    # InstanceNorm followed by residual add (ResidualBlock tail: no ReLU).
    x = x_ref[...].astype(jnp.float32)
    mean = jnp.mean(x, axis=1, keepdims=True)
    var = jnp.mean(jnp.square(x - mean), axis=1, keepdims=True)
    y = (x - mean) * jax.lax.rsqrt(var + _EPS) * g_ref[...] + b_ref[...]
    o_ref[...] = (y + r_ref[...].astype(jnp.float32)).astype(o_ref.dtype)


# ---------------------------------------------------------------------------
# Pallas call wrappers
# ---------------------------------------------------------------------------
def _matmul_bias(patches, w, bias, out_dtype):
    """patches: (M, K) bf16 ; w: (K, Cout) f32 ; bias: (Cout,) f32 or None."""
    M, K = patches.shape
    _, Cout = w.shape

    NP = _round_up(Cout, _LANE)                 # lane-dense output channels
    M_pad = _round_up(M, _TM)
    num_m = M_pad // _TM
    K_pad0 = _round_up(K, _LANE)
    num_k = -(-K_pad0 // _TK_TARGET)
    TK = _round_up(-(-K_pad0 // num_k), _LANE)
    K_pad = TK * num_k

    p = jnp.pad(patches, ((0, M_pad - M), (0, K_pad - K))).astype(jnp.bfloat16)
    wp = jnp.pad(w, ((0, K_pad - K), (0, NP - Cout))).astype(jnp.bfloat16)

    in_specs = [
        pl.BlockSpec((_TM, TK), lambda i, kk: (i, kk)),
        pl.BlockSpec((TK, NP), lambda i, kk: (kk, 0)),
    ]
    inputs = [p, wp]
    if bias is not None:
        bp = jnp.pad(bias.astype(jnp.float32).reshape(1, Cout),
                     ((0, 0), (0, NP - Cout)))
        in_specs.append(pl.BlockSpec((1, NP), lambda i, kk: (0, 0)))
        inputs.append(bp)
        kernel = _mm_bias_kernel
    else:
        kernel = _mm_kernel

    out = pl.pallas_call(
        kernel,
        out_shape=jax.ShapeDtypeStruct((M_pad, NP), out_dtype),
        grid_spec=pltpu.PrefetchScalarGridSpec(
            num_scalar_prefetch=0,
            grid=(num_m, num_k),
            in_specs=in_specs,
            out_specs=pl.BlockSpec((_TM, NP), lambda i, kk: (i, 0)),
            scratch_shapes=[pltpu.VMEM((_TM, NP), jnp.float32)],
        ),
        compiler_params=pltpu.CompilerParams(
            dimension_semantics=("parallel", "arbitrary"),
            vmem_limit_bytes=_VMEM_LIMIT),
    )(*inputs)
    return out[:M, :Cout]


def _instance_norm(x, gamma, beta, *, relu=False, residual=None):
    # x: (N, H, W, C) bf16 -> (N, H, W, C) bf16
    N, H, W, C = x.shape
    HW = H * W
    xf = x.reshape(N, HW, C)
    g = gamma.reshape(1, 1, C).astype(jnp.float32)
    bt = beta.reshape(1, 1, C).astype(jnp.float32)

    x_spec = pl.BlockSpec((1, HW, C), lambda n: (n, 0, 0))
    p_spec = pl.BlockSpec((1, 1, C), lambda n: (0, 0, 0))
    out_shape = jax.ShapeDtypeStruct((N, HW, C), jnp.bfloat16)
    cparams = pltpu.CompilerParams(
        dimension_semantics=("parallel",), vmem_limit_bytes=_VMEM_LIMIT)

    if residual is None:
        out = pl.pallas_call(
            functools.partial(_instnorm_kernel, relu=relu),
            out_shape=out_shape,
            grid=(N,),
            in_specs=[x_spec, p_spec, p_spec],
            out_specs=x_spec,
            compiler_params=cparams,
        )(xf, g, bt)
    else:
        rf = residual.reshape(N, HW, C).astype(jnp.bfloat16)
        out = pl.pallas_call(
            _instnorm_res_kernel,
            out_shape=out_shape,
            grid=(N,),
            in_specs=[x_spec, p_spec, p_spec, x_spec],
            out_specs=x_spec,
            compiler_params=cparams,
        )(xf, g, bt, rf)
    return out.reshape(N, H, W, C)


# ---------------------------------------------------------------------------
# JAX glue: padding / im2col / upsample
# ---------------------------------------------------------------------------
def _im2col(x, k, stride):
    # x: (N, H, W, C) already padded, bf16.
    # TODO(synk): stream the k*k taps through the matmul K-grid axis (manual
    # DMA of shifted row bands) instead of materializing the k^2-inflated
    # patches array in HBM.
    N, H, W, C = x.shape
    Ho = (H - k) // stride + 1
    Wo = (W - k) // stride + 1
    cols = []
    for di in range(k):
        for dj in range(k):
            cols.append(
                x[:, di:di + stride * Ho:stride, dj:dj + stride * Wo:stride, :]
            )
    patches = jnp.concatenate(cols, axis=-1)  # (N, Ho, Wo, k*k*C)
    return patches.reshape(N * Ho * Wo, k * k * C), Ho, Wo


def _conv2d(x, w, b, *, k, stride, pad_mode, out_dtype=jnp.bfloat16):
    # x: (N, H, W, Cin) bf16; w: (k*k*Cin, Cout) flattened in (kh, kw, cin) order
    N = x.shape[0]
    p = k // 2
    if pad_mode == "reflect":
        xp = jnp.pad(x, ((0, 0), (p, p), (p, p), (0, 0)), mode="reflect")
    else:  # zero padding (nn.Conv2d padding=1 in ResidualBlock)
        xp = jnp.pad(x, ((0, 0), (p, p), (p, p), (0, 0)))
    patches, Ho, Wo = _im2col(xp, k, stride)
    out = _matmul_bias(patches, w, b, out_dtype)
    return out.reshape(N, Ho, Wo, -1)


def _upsample_nearest2x(x):
    return jnp.repeat(jnp.repeat(x, 2, axis=1), 2, axis=2)


# ---------------------------------------------------------------------------
# Parameters (deterministic synthetic init, mimicking nn.Conv2d kaiming-uniform)
# ---------------------------------------------------------------------------
def _conv_params(key, cin, cout, k):
    kw, kb = jax.random.split(key)
    fan_in = cin * k * k
    bound = 1.0 / math.sqrt(fan_in)
    w = jax.random.uniform(kw, (k, k, cin, cout), jnp.float32, -bound, bound)
    b = jax.random.uniform(kb, (cout,), jnp.float32, -bound, bound)
    return w.reshape(k * k * cin, cout), b


def _in_params(c):
    # nn.InstanceNorm2d(affine=True): weight=1, bias=0
    return jnp.ones((c,), jnp.float32), jnp.zeros((c,), jnp.float32)


def init_genenet_params(seed=0):
    keys = jax.random.split(jax.random.PRNGKey(seed), 32)
    ki = iter(keys)
    p = {}
    p["conv1"] = _conv_params(next(ki), 3, 32, 9)
    p["in1"] = _in_params(32)
    p["conv2"] = _conv_params(next(ki), 32, 64, 3)
    p["in2"] = _in_params(64)
    p["conv3"] = _conv_params(next(ki), 64, 128, 3)
    p["in3"] = _in_params(128)
    for r in range(1, 6):
        p[f"res{r}"] = {
            "conv1": _conv_params(next(ki), 128, 128, 3),
            "in1": _in_params(128),
            "conv2": _conv_params(next(ki), 128, 128, 3),
            "in2": _in_params(128),
        }
    p["deconv1"] = _conv_params(next(ki), 128, 64, 3)
    p["in4"] = _in_params(64)
    p["deconv2"] = _conv_params(next(ki), 64, 32, 3)
    p["in5"] = _in_params(32)
    p["deconv3"] = _conv_params(next(ki), 32, 3, 9)
    return p


# ---------------------------------------------------------------------------
# geneNet forward
# ---------------------------------------------------------------------------
def _residual_block(x, rp):
    w1, _ = rp["conv1"]           # bias folded away (cancelled by InstanceNorm)
    g1, be1 = rp["in1"]
    w2, _ = rp["conv2"]
    g2, be2 = rp["in2"]
    y = _conv2d(x, w1, None, k=3, stride=1, pad_mode="zeros")
    y = _instance_norm(y, g1, be1, relu=True)
    y = _conv2d(y, w2, None, k=3, stride=1, pad_mode="zeros")
    y = _instance_norm(y, g2, be2, residual=x)
    return y


def genenet_forward(x_nchw, params):
    x = jnp.transpose(x_nchw, (0, 2, 3, 1)).astype(jnp.bfloat16)  # -> NHWC

    w, _ = params["conv1"]        # conv biases before InstanceNorm are folded away
    y = _conv2d(x, w, None, k=9, stride=1, pad_mode="reflect")
    y = _instance_norm(y, *params["in1"], relu=True)

    w, _ = params["conv2"]
    y = _conv2d(y, w, None, k=3, stride=2, pad_mode="reflect")
    y = _instance_norm(y, *params["in2"], relu=True)

    w, _ = params["conv3"]
    y = _conv2d(y, w, None, k=3, stride=2, pad_mode="reflect")
    y = _instance_norm(y, *params["in3"], relu=True)

    for r in range(1, 6):
        y = _residual_block(y, params[f"res{r}"])

    y = _upsample_nearest2x(y)
    w, _ = params["deconv1"]
    y = _conv2d(y, w, None, k=3, stride=1, pad_mode="reflect")
    y = _instance_norm(y, *params["in4"], relu=True)

    y = _upsample_nearest2x(y)
    w, _ = params["deconv2"]
    y = _conv2d(y, w, None, k=3, stride=1, pad_mode="reflect")
    y = _instance_norm(y, *params["in5"], relu=True)

    w, b = params["deconv3"]      # final conv: no InstanceNorm -> keep bias, f32 out
    y = _conv2d(y, w, b, k=9, stride=1, pad_mode="reflect", out_dtype=jnp.float32)

    return jnp.transpose(y, (0, 3, 1, 2)).astype(jnp.float32)  # -> NCHW


# ---------------------------------------------------------------------------
if __name__ == "__main__":
    params = init_genenet_params(seed=0)
    x = jax.random.normal(jax.random.PRNGKey(0), (2, 3, 16, 16), jnp.float32)

    fwd = jax.jit(genenet_forward)
    out = fwd(x, params)
    out = jax.block_until_ready(out)

    assert out.shape == (2, 3, 16, 16), out.shape
    assert out.dtype == jnp.float32
    assert bool(jnp.all(jnp.isfinite(out)))
    print("KERNEL_OK")
</pallas_src>

<mosaic_0001>
module attributes {stable_mosaic.version = 11 : i64} {
  func.func @_instnorm_kernel(%arg0: i32, %arg1: memref<1x256x32xbf16, #tpu.memory_space<vmem>>, %arg2: memref<1x1x32xf32, #tpu.memory_space<vmem>>, %arg3: memref<1x1x32xf32, #tpu.memory_space<vmem>>, %arg4: memref<1x256x32xbf16, #tpu.memory_space<vmem>>) attributes {dimension_semantics = [#tpu.dimension_semantics<parallel>], iteration_bounds = array<i64: 2>, scalar_prefetch = 0 : i64, scratch_operands = 0 : i64, tpu.core_type = #tpu.core_type<tc>, window_params = [{transform_indices = @transform_0, window_bounds = array<i64: 1, 256, 32>}, {pipeline_mode = #tpu.pipeline_mode<synchronous>, transform_indices = @transform_1, window_bounds = array<i64: 1, 1, 32>}, {pipeline_mode = #tpu.pipeline_mode<synchronous>, transform_indices = @transform_2, window_bounds = array<i64: 1, 1, 32>}, {transform_indices = @transform_3, window_bounds = array<i64: 1, 256, 32>}]} {
    %c0 = arith.constant 0 : index
    %c0_0 = arith.constant 0 : index
    %c0_1 = arith.constant 0 : index
    %0 = vector.load %arg1[%c0, %c0_0, %c0_1] : memref<1x256x32xbf16, #tpu.memory_space<vmem>>, vector<1x256x32xbf16>
    %1 = arith.extf %0 : vector<1x256x32xbf16> to vector<1x256x32xf32>
    %cst = arith.constant dense<0.000000e+00> : vector<1x32xf32>
    %2 = vector.multi_reduction <add>, %1, %cst [1] : vector<1x256x32xf32> to vector<1x32xf32>
    %3 = vector.shape_cast %2 : vector<1x32xf32> to vector<1x1x32xf32>
    %cst_2 = arith.constant 2.560000e+02 : f32
    %4 = vector.broadcast %cst_2 : f32 to vector<1x1x32xf32>
    %5 = arith.divf %3, %4 : vector<1x1x32xf32>
    %6 = vector.broadcast %5 : vector<1x1x32xf32> to vector<1x256x32xf32>
    %7 = arith.subf %1, %6 : vector<1x256x32xf32>
    %8 = arith.mulf %7, %7 : vector<1x256x32xf32>
    %cst_3 = arith.constant dense<0.000000e+00> : vector<1x32xf32>
    %9 = vector.multi_reduction <add>, %8, %cst_3 [1] : vector<1x256x32xf32> to vector<1x32xf32>
    %10 = vector.shape_cast %9 : vector<1x32xf32> to vector<1x1x32xf32>
    %cst_4 = arith.constant 2.560000e+02 : f32
    %11 = vector.broadcast %cst_4 : f32 to vector<1x1x32xf32>
    %12 = arith.divf %10, %11 : vector<1x1x32xf32>
    %13 = vector.broadcast %5 : vector<1x1x32xf32> to vector<1x256x32xf32>
    %14 = arith.subf %1, %13 : vector<1x256x32xf32>
    %cst_5 = arith.constant 9.99999974E-6 : f32
    %15 = vector.broadcast %cst_5 : f32 to vector<1x1x32xf32>
    %16 = arith.addf %12, %15 : vector<1x1x32xf32>
    %17 = math.rsqrt %16 : vector<1x1x32xf32>
    %18 = vector.broadcast %17 : vector<1x1x32xf32> to vector<1x256x32xf32>
    %19 = arith.mulf %14, %18 : vector<1x256x32xf32>
    %c0_6 = arith.constant 0 : index
    %c0_7 = arith.constant 0 : index
    %c0_8 = arith.constant 0 : index
    %20 = vector.load %arg2[%c0_6, %c0_7, %c0_8] : memref<1x1x32xf32, #tpu.memory_space<vmem>>, vector<1x1x32xf32>
    %21 = vector.broadcast %20 : vector<1x1x32xf32> to vector<1x256x32xf32>
    %22 = arith.mulf %19, %21 : vector<1x256x32xf32>
    %c0_9 = arith.constant 0 : index
    %c0_10 = arith.constant 0 : index
    %c0_11 = arith.constant 0 : index
    %23 = vector.load %arg3[%c0_9, %c0_10, %c0_11] : memref<1x1x32xf32, #tpu.memory_space<vmem>>, vector<1x1x32xf32>
    %24 = vector.broadcast %23 : vector<1x1x32xf32> to vector<1x256x32xf32>
    %25 = arith.addf %22, %24 : vector<1x256x32xf32>
    %cst_12 = arith.constant 0.000000e+00 : f32
    %26 = vector.broadcast %cst_12 : f32 to vector<1x256x32xf32>
    %27 = arith.maximumf %25, %26 : vector<1x256x32xf32>
    %28 = arith.truncf %27 : vector<1x256x32xf32> to vector<1x256x32xbf16>
    %c0_13 = arith.constant 0 : index
    %c0_14 = arith.constant 0 : index
    %c0_15 = arith.constant 0 : index
    %29 = vector.load %arg4[%c0_13, %c0_14, %c0_15] : memref<1x256x32xbf16, #tpu.memory_space<vmem>>, vector<1x256x32xbf16>
    tpu.vector_store %arg4[%c0_13, %c0_14, %c0_15], %28 {strides = array<i32>} : memref<1x256x32xbf16, #tpu.memory_space<vmem>>, vector<1x256x32xbf16>,
    return
  }
  func.func @transform_0(%arg0: i32) -> (i32, i32, i32) {
    %c0_i32 = arith.constant 0 : i32
    %c0_i32_0 = arith.constant 0 : i32
    %c0_i32_1 = arith.constant 0 : i32
    return %arg0, %c0_i32, %c0_i32_0 : i32, i32, i32
  }
  func.func @transform_1(%arg0: i32) -> (i32, i32, i32) {
    %c0_i32 = arith.constant 0 : i32
    %c0_i32_0 = arith.constant 0 : i32
    %c0_i32_1 = arith.constant 0 : i32
    %c0_i32_2 = arith.constant 0 : i32
    return %c0_i32, %c0_i32_0, %c0_i32_1 : i32, i32, i32
  }
  func.func @transform_2(%arg0: i32) -> (i32, i32, i32) {
    %c0_i32 = arith.constant 0 : i32
    %c0_i32_0 = arith.constant 0 : i32
    %c0_i32_1 = arith.constant 0 : i32
    %c0_i32_2 = arith.constant 0 : i32
    return %c0_i32, %c0_i32_0, %c0_i32_1 : i32, i32, i32
  }
  func.func @transform_3(%arg0: i32) -> (i32, i32, i32) {
    %c0_i32 = arith.constant 0 : i32
    %c0_i32_0 = arith.constant 0 : i32
    %c0_i32_1 = arith.constant 0 : i32
    return %arg0, %c0_i32, %c0_i32_0 : i32, i32, i32
  }
}

module attributes {stable_mosaic.version = 11 : i64} {
  func.func @_mm_kernel(%arg0: i32, %arg1: i32, %arg2: memref<256x256xbf16, #tpu.memory_space<vmem>>, %arg3: memref<256x128xbf16, #tpu.memory_space<vmem>>, %arg4: memref<256x128xbf16, #tpu.memory_space<vmem>>, %arg5: memref<256x128xf32, #tpu.memory_space<vmem>>) attributes {dimension_semantics = [#tpu.dimension_semantics<parallel>, #tpu.dimension_semantics<arbitrary>], iteration_bounds = array<i64: 2, 1>, scalar_prefetch = 0 : i64, scratch_operands = 1 : i64, tpu.core_type = #tpu.core_type<tc>, window_params = [{transform_indices = @transform_0, window_bounds = array<i64: 256, 256>}, {transform_indices = @transform_1, window_bounds = array<i64: 256, 128>}, {transform_indices = @transform_2, window_bounds = array<i64: 256, 128>}]} {
    %c0_i32 = arith.constant 0 : i32
    %0 = arith.cmpi eq, %arg1, %c0_i32 : i32
    %1 = arith.extui %0 : i1 to i32
    %c0_i32_0 = arith.constant 0 : i32
    %2 = arith.cmpi ne, %1, %c0_i32_0 : i32
    scf.if %2 {
      %cst_10 = arith.constant 0.000000e+00 : f32
      %12 = vector.broadcast %cst_10 : f32 to vector<256x128xf32>
      %c0_11 = arith.constant 0 : index
      %c0_12 = arith.constant 0 : index
      %13 = vector.load %arg5[%c0_11, %c0_12] : memref<256x128xf32, #tpu.memory_space<vmem>>, vector<256x128xf32>
      tpu.vector_store %arg5[%c0_11, %c0_12], %12 {strides = array<i32>} : memref<256x128xf32, #tpu.memory_space<vmem>>, vector<256x128xf32>,
    } else {
    }
    %c0 = arith.constant 0 : index
    %c0_1 = arith.constant 0 : index
    %3 = vector.load %arg5[%c0, %c0_1] : memref<256x128xf32, #tpu.memory_space<vmem>>, vector<256x128xf32>
    %c0_2 = arith.constant 0 : index
    %c0_3 = arith.constant 0 : index
    %4 = vector.load %arg2[%c0_2, %c0_3] : memref<256x256xbf16, #tpu.memory_space<vmem>>, vector<256x256xbf16>
    %c0_4 = arith.constant 0 : index
    %c0_5 = arith.constant 0 : index
    %5 = vector.load %arg3[%c0_4, %c0_5] : memref<256x128xbf16, #tpu.memory_space<vmem>>, vector<256x128xbf16>
    %cst = arith.constant dense<0.000000e+00> : vector<256x128xf32>
    %6 = tpu.matmul %4, %5, %cst {dimension_numbers = #tpu.dot_dimension_numbers<[1], [0], [0], [1], [0, 0, 1, 1], [], []>} : vector<256x256xbf16>, vector<256x128xbf16>, vector<256x128xf32> -> vector<256x128xf32>
    %7 = arith.addf %3, %6 : vector<256x128xf32>
    %c0_6 = arith.constant 0 : index
    %c0_7 = arith.constant 0 : index
    %8 = vector.load %arg5[%c0_6, %c0_7] : memref<256x128xf32, #tpu.memory_space<vmem>>, vector<256x128xf32>
    tpu.vector_store %arg5[%c0_6, %c0_7], %7 {strides = array<i32>} : memref<256x128xf32, #tpu.memory_space<vmem>>, vector<256x128xf32>,
    %c0_i32_8 = arith.constant 0 : i32
    %9 = arith.cmpi eq, %arg1, %c0_i32_8 : i32
    %10 = arith.extui %9 : i1 to i32
    %c0_i32_9 = arith.constant 0 : i32
    %11 = arith.cmpi ne, %10, %c0_i32_9 : i32
    scf.if %11 {
      %c0_10 = arith.constant 0 : index
      %c0_11 = arith.constant 0 : index
      %12 = vector.load %arg5[%c0_10, %c0_11] : memref<256x128xf32, #tpu.memory_space<vmem>>, vector<256x128xf32>
      %13 = arith.truncf %12 : vector<256x128xf32> to vector<256x128xbf16>
      %c0_12 = arith.constant 0 : index
      %c0_13 = arith.constant 0 : index
      %14 = vector.load %arg4[%c0_12, %c0_13] : memref<256x128xbf16, #tpu.memory_space<vmem>>, vector<256x128xbf16>
      tpu.vector_store %arg4[%c0_12, %c0_13], %13 {strides = array<i32>} : memref<256x128xbf16, #tpu.memory_space<vmem>>, vector<256x128xbf16>,
    } else {
    }
    return
  }
  func.func @transform_0(%arg0: i32, %arg1: i32) -> (i32, i32) {
    %c0_i32 = arith.constant 0 : i32
    return %arg0, %arg1 : i32, i32
  }
  func.func @transform_1(%arg0: i32, %arg1: i32) -> (i32, i32) {
    %c0_i32 = arith.constant 0 : i32
    %c0_i32_0 = arith.constant 0 : i32
    return %arg1, %c0_i32 : i32, i32
  }
  func.func @transform_2(%arg0: i32, %arg1: i32) -> (i32, i32) {
    %c0_i32 = arith.constant 0 : i32
    %c0_i32_0 = arith.constant 0 : i32
    return %arg0, %c0_i32 : i32, i32
  }
}

module attributes {stable_mosaic.version = 11 : i64} {
  func.func @_mm_kernel(%arg0: i32, %arg1: i32, %arg2: memref<256x384xbf16, #tpu.memory_space<vmem>>, %arg3: memref<384x128xbf16, #tpu.memory_space<vmem>>, %arg4: memref<256x128xbf16, #tpu.memory_space<vmem>>, %arg5: memref<256x128xf32, #tpu.memory_space<vmem>>) attributes {dimension_semantics = [#tpu.dimension_semantics<parallel>, #tpu.dimension_semantics<arbitrary>], iteration_bounds = array<i64: 1, 1>, scalar_prefetch = 0 : i64, scratch_operands = 1 : i64, tpu.core_type = #tpu.core_type<tc>, window_params = [{transform_indices = @transform_0, window_bounds = array<i64: 256, 384>}, {transform_indices = @transform_1, window_bounds = array<i64: 384, 128>}, {transform_indices = @transform_2, window_bounds = array<i64: 256, 128>}]} {
    %c0_i32 = arith.constant 0 : i32
    %0 = arith.cmpi eq, %arg1, %c0_i32 : i32
    %1 = arith.extui %0 : i1 to i32
    %c0_i32_0 = arith.constant 0 : i32
    %2 = arith.cmpi ne, %1, %c0_i32_0 : i32
    scf.if %2 {
      %cst_10 = arith.constant 0.000000e+00 : f32
      %12 = vector.broadcast %cst_10 : f32 to vector<256x128xf32>
      %c0_11 = arith.constant 0 : index
      %c0_12 = arith.constant 0 : index
      %13 = vector.load %arg5[%c0_11, %c0_12] : memref<256x128xf32, #tpu.memory_space<vmem>>, vector<256x128xf32>
      tpu.vector_store %arg5[%c0_11, %c0_12], %12 {strides = array<i32>} : memref<256x128xf32, #tpu.memory_space<vmem>>, vector<256x128xf32>,
    } else {
    }
    %c0 = arith.constant 0 : index
    %c0_1 = arith.constant 0 : index
    %3 = vector.load %arg5[%c0, %c0_1] : memref<256x128xf32, #tpu.memory_space<vmem>>, vector<256x128xf32>
    %c0_2 = arith.constant 0 : index
    %c0_3 = arith.constant 0 : index
    %4 = vector.load %arg2[%c0_2, %c0_3] : memref<256x384xbf16, #tpu.memory_space<vmem>>, vector<256x384xbf16>
    %c0_4 = arith.constant 0 : index
    %c0_5 = arith.constant 0 : index
    %5 = vector.load %arg3[%c0_4, %c0_5] : memref<384x128xbf16, #tpu.memory_space<vmem>>, vector<384x128xbf16>
    %cst = arith.constant dense<0.000000e+00> : vector<256x128xf32>
    %6 = tpu.matmul %4, %5, %cst {dimension_numbers = #tpu.dot_dimension_numbers<[1], [0], [0], [1], [0, 0, 1, 1], [], []>} : vector<256x384xbf16>, vector<384x128xbf16>, vector<256x128xf32> -> vector<256x128xf32>
    %7 = arith.addf %3, %6 : vector<256x128xf32>
    %c0_6 = arith.constant 0 : index
    %c0_7 = arith.constant 0 : index
    %8 = vector.load %arg5[%c0_6, %c0_7] : memref<256x128xf32, #tpu.memory_space<vmem>>, vector<256x128xf32>
    tpu.vector_store %arg5[%c0_6, %c0_7], %7 {strides = array<i32>} : memref<256x128xf32, #tpu.memory_space<vmem>>, vector<256x128xf32>,
    %c0_i32_8 = arith.constant 0 : i32
    %9 = arith.cmpi eq, %arg1, %c0_i32_8 : i32
    %10 = arith.extui %9 : i1 to i32
    %c0_i32_9 = arith.constant 0 : i32
    %11 = arith.cmpi ne, %10, %c0_i32_9 : i32
    scf.if %11 {
      %c0_10 = arith.constant 0 : index
      %c0_11 = arith.constant 0 : index
      %12 = vector.load %arg5[%c0_10, %c0_11] : memref<256x128xf32, #tpu.memory_space<vmem>>, vector<256x128xf32>
      %13 = arith.truncf %12 : vector<256x128xf32> to vector<256x128xbf16>
      %c0_12 = arith.constant 0 : index
      %c0_13 = arith.constant 0 : index
      %14 = vector.load %arg4[%c0_12, %c0_13] : memref<256x128xbf16, #tpu.memory_space<vmem>>, vector<256x128xbf16>
      tpu.vector_store %arg4[%c0_12, %c0_13], %13 {strides = array<i32>} : memref<256x128xbf16, #tpu.memory_space<vmem>>, vector<256x128xbf16>,
    } else {
    }
    return
  }
  func.func @transform_0(%arg0: i32, %arg1: i32) -> (i32, i32) {
    %c0_i32 = arith.constant 0 : i32
    return %arg0, %arg1 : i32, i32
  }
  func.func @transform_1(%arg0: i32, %arg1: i32) -> (i32, i32) {
    %c0_i32 = arith.constant 0 : i32
    %c0_i32_0 = arith.constant 0 : i32
    return %arg1, %c0_i32 : i32, i32
  }
  func.func @transform_2(%arg0: i32, %arg1: i32) -> (i32, i32) {
    %c0_i32 = arith.constant 0 : i32
    %c0_i32_0 = arith.constant 0 : i32
    return %arg0, %c0_i32 : i32, i32
  }
}

module attributes {stable_mosaic.version = 11 : i64} {
  func.func @_instnorm_kernel(%arg0: i32, %arg1: memref<1x64x64xbf16, #tpu.memory_space<vmem>>, %arg2: memref<1x1x64xf32, #tpu.memory_space<vmem>>, %arg3: memref<1x1x64xf32, #tpu.memory_space<vmem>>, %arg4: memref<1x64x64xbf16, #tpu.memory_space<vmem>>) attributes {dimension_semantics = [#tpu.dimension_semantics<parallel>], iteration_bounds = array<i64: 2>, scalar_prefetch = 0 : i64, scratch_operands = 0 : i64, tpu.core_type = #tpu.core_type<tc>, window_params = [{transform_indices = @transform_0, window_bounds = array<i64: 1, 64, 64>}, {pipeline_mode = #tpu.pipeline_mode<synchronous>, transform_indices = @transform_1, window_bounds = array<i64: 1, 1, 64>}, {pipeline_mode = #tpu.pipeline_mode<synchronous>, transform_indices = @transform_2, window_bounds = array<i64: 1, 1, 64>}, {transform_indices = @transform_3, window_bounds = array<i64: 1, 64, 64>}]} {
    %c0 = arith.constant 0 : index
    %c0_0 = arith.constant 0 : index
    %c0_1 = arith.constant 0 : index
    %0 = vector.load %arg1[%c0, %c0_0, %c0_1] : memref<1x64x64xbf16, #tpu.memory_space<vmem>>, vector<1x64x64xbf16>
    %1 = arith.extf %0 : vector<1x64x64xbf16> to vector<1x64x64xf32>
    %cst = arith.constant dense<0.000000e+00> : vector<1x64xf32>
    %2 = vector.multi_reduction <add>, %1, %cst [1] : vector<1x64x64xf32> to vector<1x64xf32>
    %3 = vector.shape_cast %2 : vector<1x64xf32> to vector<1x1x64xf32>
    %cst_2 = arith.constant 6.400000e+01 : f32
    %4 = vector.broadcast %cst_2 : f32 to vector<1x1x64xf32>
    %5 = arith.divf %3, %4 : vector<1x1x64xf32>
    %6 = vector.broadcast %5 : vector<1x1x64xf32> to vector<1x64x64xf32>
    %7 = arith.subf %1, %6 : vector<1x64x64xf32>
    %8 = arith.mulf %7, %7 : vector<1x64x64xf32>
    %cst_3 = arith.constant dense<0.000000e+00> : vector<1x64xf32>
    %9 = vector.multi_reduction <add>, %8, %cst_3 [1] : vector<1x64x64xf32> to vector<1x64xf32>
    %10 = vector.shape_cast %9 : vector<1x64xf32> to vector<1x1x64xf32>
    %cst_4 = arith.constant 6.400000e+01 : f32
    %11 = vector.broadcast %cst_4 : f32 to vector<1x1x64xf32>
    %12 = arith.divf %10, %11 : vector<1x1x64xf32>
    %13 = vector.broadcast %5 : vector<1x1x64xf32> to vector<1x64x64xf32>
    %14 = arith.subf %1, %13 : vector<1x64x64xf32>
    %cst_5 = arith.constant 9.99999974E-6 : f32
    %15 = vector.broadcast %cst_5 : f32 to vector<1x1x64xf32>
    %16 = arith.addf %12, %15 : vector<1x1x64xf32>
    %17 = math.rsqrt %16 : vector<1x1x64xf32>
    %18 = vector.broadcast %17 : vector<1x1x64xf32> to vector<1x64x64xf32>
    %19 = arith.mulf %14, %18 : vector<1x64x64xf32>
    %c0_6 = arith.constant 0 : index
    %c0_7 = arith.constant 0 : index
    %c0_8 = arith.constant 0 : index
    %20 = vector.load %arg2[%c0_6, %c0_7, %c0_8] : memref<1x1x64xf32, #tpu.memory_space<vmem>>, vector<1x1x64xf32>
    %21 = vector.broadcast %20 : vector<1x1x64xf32> to vector<1x64x64xf32>
    %22 = arith.mulf %19, %21 : vector<1x64x64xf32>
    %c0_9 = arith.constant 0 : index
    %c0_10 = arith.constant 0 : index
    %c0_11 = arith.constant 0 : index
    %23 = vector.load %arg3[%c0_9, %c0_10, %c0_11] : memref<1x1x64xf32, #tpu.memory_space<vmem>>, vector<1x1x64xf32>
    %24 = vector.broadcast %23 : vector<1x1x64xf32> to vector<1x64x64xf32>
    %25 = arith.addf %22, %24 : vector<1x64x64xf32>
    %cst_12 = arith.constant 0.000000e+00 : f32
    %26 = vector.broadcast %cst_12 : f32 to vector<1x64x64xf32>
    %27 = arith.maximumf %25, %26 : vector<1x64x64xf32>
    %28 = arith.truncf %27 : vector<1x64x64xf32> to vector<1x64x64xbf16>
    %c0_13 = arith.constant 0 : index
    %c0_14 = arith.constant 0 : index
    %c0_15 = arith.constant 0 : index
    %29 = vector.load %arg4[%c0_13, %c0_14, %c0_15] : memref<1x64x64xbf16, #tpu.memory_space<vmem>>, vector<1x64x64xbf16>
    tpu.vector_store %arg4[%c0_13, %c0_14, %c0_15], %28 {strides = array<i32>} : memref<1x64x64xbf16, #tpu.memory_space<vmem>>, vector<1x64x64xbf16>,
    return
  }
  func.func @transform_0(%arg0: i32) -> (i32, i32, i32) {
    %c0_i32 = arith.constant 0 : i32
    %c0_i32_0 = arith.constant 0 : i32
    %c0_i32_1 = arith.constant 0 : i32
    return %arg0, %c0_i32, %c0_i32_0 : i32, i32, i32
  }
  func.func @transform_1(%arg0: i32) -> (i32, i32, i32) {
    %c0_i32 = arith.constant 0 : i32
    %c0_i32_0 = arith.constant 0 : i32
    %c0_i32_1 = arith.constant 0 : i32
    %c0_i32_2 = arith.constant 0 : i32
    return %c0_i32, %c0_i32_0, %c0_i32_1 : i32, i32, i32
  }
  func.func @transform_2(%arg0: i32) -> (i32, i32, i32) {
    %c0_i32 = arith.constant 0 : i32
    %c0_i32_0 = arith.constant 0 : i32
    %c0_i32_1 = arith.constant 0 : i32
    %c0_i32_2 = arith.constant 0 : i32
    return %c0_i32, %c0_i32_0, %c0_i32_1 : i32, i32, i32
  }
  func.func @transform_3(%arg0: i32) -> (i32, i32, i32) {
    %c0_i32 = arith.constant 0 : i32
    %c0_i32_0 = arith.constant 0 : i32
    %c0_i32_1 = arith.constant 0 : i32
    return %arg0, %c0_i32, %c0_i32_0 : i32, i32, i32
  }
}

module attributes {stable_mosaic.version = 11 : i64} {
  func.func @_mm_kernel(%arg0: i32, %arg1: i32, %arg2: memref<256x384xbf16, #tpu.memory_space<vmem>>, %arg3: memref<384x128xbf16, #tpu.memory_space<vmem>>, %arg4: memref<256x128xbf16, #tpu.memory_space<vmem>>, %arg5: memref<256x128xf32, #tpu.memory_space<vmem>>) attributes {dimension_semantics = [#tpu.dimension_semantics<parallel>, #tpu.dimension_semantics<arbitrary>], iteration_bounds = array<i64: 1, 2>, scalar_prefetch = 0 : i64, scratch_operands = 1 : i64, tpu.core_type = #tpu.core_type<tc>, window_params = [{transform_indices = @transform_0, window_bounds = array<i64: 256, 384>}, {transform_indices = @transform_1, window_bounds = array<i64: 384, 128>}, {transform_indices = @transform_2, window_bounds = array<i64: 256, 128>}]} {
    %c0_i32 = arith.constant 0 : i32
    %0 = arith.cmpi eq, %arg1, %c0_i32 : i32
    %1 = arith.extui %0 : i1 to i32
    %c0_i32_0 = arith.constant 0 : i32
    %2 = arith.cmpi ne, %1, %c0_i32_0 : i32
    scf.if %2 {
      %cst_9 = arith.constant 0.000000e+00 : f32
      %12 = vector.broadcast %cst_9 : f32 to vector<256x128xf32>
      %c0_10 = arith.constant 0 : index
      %c0_11 = arith.constant 0 : index
      %13 = vector.load %arg5[%c0_10, %c0_11] : memref<256x128xf32, #tpu.memory_space<vmem>>, vector<256x128xf32>
      tpu.vector_store %arg5[%c0_10, %c0_11], %12 {strides = array<i32>} : memref<256x128xf32, #tpu.memory_space<vmem>>, vector<256x128xf32>,
    } else {
    }
    %c0 = arith.constant 0 : index
    %c0_1 = arith.constant 0 : index
    %3 = vector.load %arg5[%c0, %c0_1] : memref<256x128xf32, #tpu.memory_space<vmem>>, vector<256x128xf32>
    %c0_2 = arith.constant 0 : index
    %c0_3 = arith.constant 0 : index
    %4 = vector.load %arg2[%c0_2, %c0_3] : memref<256x384xbf16, #tpu.memory_space<vmem>>, vector<256x384xbf16>
    %c0_4 = arith.constant 0 : index
    %c0_5 = arith.constant 0 : index
    %5 = vector.load %arg3[%c0_4, %c0_5] : memref<384x128xbf16, #tpu.memory_space<vmem>>, vector<384x128xbf16>
    %cst = arith.constant dense<0.000000e+00> : vector<256x128xf32>
    %6 = tpu.matmul %4, %5, %cst {dimension_numbers = #tpu.dot_dimension_numbers<[1], [0], [0], [1], [0, 0, 1, 1], [], []>} : vector<256x384xbf16>, vector<384x128xbf16>, vector<256x128xf32> -> vector<256x128xf32>
    %7 = arith.addf %3, %6 : vector<256x128xf32>
    %c0_6 = arith.constant 0 : index
    %c0_7 = arith.constant 0 : index
    %8 = vector.load %arg5[%c0_6, %c0_7] : memref<256x128xf32, #tpu.memory_space<vmem>>, vector<256x128xf32>
    tpu.vector_store %arg5[%c0_6, %c0_7], %7 {strides = array<i32>} : memref<256x128xf32, #tpu.memory_space<vmem>>, vector<256x128xf32>,
    %c1_i32 = arith.constant 1 : i32
    %9 = arith.cmpi eq, %arg1, %c1_i32 : i32
    %10 = arith.extui %9 : i1 to i32
    %c0_i32_8 = arith.constant 0 : i32
    %11 = arith.cmpi ne, %10, %c0_i32_8 : i32
    scf.if %11 {
      %c0_9 = arith.constant 0 : index
      %c0_10 = arith.constant 0 : index
      %12 = vector.load %arg5[%c0_9, %c0_10] : memref<256x128xf32, #tpu.memory_space<vmem>>, vector<256x128xf32>
      %13 = arith.truncf %12 : vector<256x128xf32> to vector<256x128xbf16>
      %c0_11 = arith.constant 0 : index
      %c0_12 = arith.constant 0 : index
      %14 = vector.load %arg4[%c0_11, %c0_12] : memref<256x128xbf16, #tpu.memory_space<vmem>>, vector<256x128xbf16>
      tpu.vector_store %arg4[%c0_11, %c0_12], %13 {strides = array<i32>} : memref<256x128xbf16, #tpu.memory_space<vmem>>, vector<256x128xbf16>,
    } else {
    }
    return
  }
  func.func @transform_0(%arg0: i32, %arg1: i32) -> (i32, i32) {
    %c0_i32 = arith.constant 0 : i32
    return %arg0, %arg1 : i32, i32
  }
  func.func @transform_1(%arg0: i32, %arg1: i32) -> (i32, i32) {
    %c0_i32 = arith.constant 0 : i32
    %c0_i32_0 = arith.constant 0 : i32
    return %arg1, %c0_i32 : i32, i32
  }
  func.func @transform_2(%arg0: i32, %arg1: i32) -> (i32, i32) {
    %c0_i32 = arith.constant 0 : i32
    %c0_i32_0 = arith.constant 0 : i32
    return %arg0, %c0_i32 : i32, i32
  }
}

module attributes {stable_mosaic.version = 11 : i64} {
  func.func @_instnorm_kernel(%arg0: i32, %arg1: memref<1x16x128xbf16, #tpu.memory_space<vmem>>, %arg2: memref<1x1x128xf32, #tpu.memory_space<vmem>>, %arg3: memref<1x1x128xf32, #tpu.memory_space<vmem>>, %arg4: memref<1x16x128xbf16, #tpu.memory_space<vmem>>) attributes {dimension_semantics = [#tpu.dimension_semantics<parallel>], iteration_bounds = array<i64: 2>, scalar_prefetch = 0 : i64, scratch_operands = 0 : i64, tpu.core_type = #tpu.core_type<tc>, window_params = [{transform_indices = @transform_0, window_bounds = array<i64: 1, 16, 128>}, {pipeline_mode = #tpu.pipeline_mode<synchronous>, transform_indices = @transform_1, window_bounds = array<i64: 1, 1, 128>}, {pipeline_mode = #tpu.pipeline_mode<synchronous>, transform_indices = @transform_2, window_bounds = array<i64: 1, 1, 128>}, {transform_indices = @transform_3, window_bounds = array<i64: 1, 16, 128>}]} {
    %c0 = arith.constant 0 : index
    %c0_0 = arith.constant 0 : index
    %c0_1 = arith.constant 0 : index
    %0 = vector.load %arg1[%c0, %c0_0, %c0_1] : memref<1x16x128xbf16, #tpu.memory_space<vmem>>, vector<1x16x128xbf16>
    %1 = arith.extf %0 : vector<1x16x128xbf16> to vector<1x16x128xf32>
    %cst = arith.constant dense<0.000000e+00> : vector<1x128xf32>
    %2 = vector.multi_reduction <add>, %1, %cst [1] : vector<1x16x128xf32> to vector<1x128xf32>
    %3 = vector.shape_cast %2 : vector<1x128xf32> to vector<1x1x128xf32>
    %cst_2 = arith.constant 1.600000e+01 : f32
    %4 = vector.broadcast %cst_2 : f32 to vector<1x1x128xf32>
    %5 = arith.divf %3, %4 : vector<1x1x128xf32>
    %6 = vector.broadcast %5 : vector<1x1x128xf32> to vector<1x16x128xf32>
    %7 = arith.subf %1, %6 : vector<1x16x128xf32>
    %8 = arith.mulf %7, %7 : vector<1x16x128xf32>
    %cst_3 = arith.constant dense<0.000000e+00> : vector<1x128xf32>
    %9 = vector.multi_reduction <add>, %8, %cst_3 [1] : vector<1x16x128xf32> to vector<1x128xf32>
    %10 = vector.shape_cast %9 : vector<1x128xf32> to vector<1x1x128xf32>
    %cst_4 = arith.constant 1.600000e+01 : f32
    %11 = vector.broadcast %cst_4 : f32 to vector<1x1x128xf32>
    %12 = arith.divf %10, %11 : vector<1x1x128xf32>
    %13 = vector.broadcast %5 : vector<1x1x128xf32> to vector<1x16x128xf32>
    %14 = arith.subf %1, %13 : vector<1x16x128xf32>
    %cst_5 = arith.constant 9.99999974E-6 : f32
    %15 = vector.broadcast %cst_5 : f32 to vector<1x1x128xf32>
    %16 = arith.addf %12, %15 : vector<1x1x128xf32>
    %17 = math.rsqrt %16 : vector<1x1x128xf32>
    %18 = vector.broadcast %17 : vector<1x1x128xf32> to vector<1x16x128xf32>
    %19 = arith.mulf %14, %18 : vector<1x16x128xf32>
    %c0_6 = arith.constant 0 : index
    %c0_7 = arith.constant 0 : index
    %c0_8 = arith.constant 0 : index
    %20 = vector.load %arg2[%c0_6, %c0_7, %c0_8] : memref<1x1x128xf32, #tpu.memory_space<vmem>>, vector<1x1x128xf32>
    %21 = vector.broadcast %20 : vector<1x1x128xf32> to vector<1x16x128xf32>
    %22 = arith.mulf %19, %21 : vector<1x16x128xf32>
    %c0_9 = arith.constant 0 : index
    %c0_10 = arith.constant 0 : index
    %c0_11 = arith.constant 0 : index
    %23 = vector.load %arg3[%c0_9, %c0_10, %c0_11] : memref<1x1x128xf32, #tpu.memory_space<vmem>>, vector<1x1x128xf32>
    %24 = vector.broadcast %23 : vector<1x1x128xf32> to vector<1x16x128xf32>
    %25 = arith.addf %22, %24 : vector<1x16x128xf32>
    %cst_12 = arith.constant 0.000000e+00 : f32
    %26 = vector.broadcast %cst_12 : f32 to vector<1x16x128xf32>
    %27 = arith.maximumf %25, %26 : vector<1x16x128xf32>
    %28 = arith.truncf %27 : vector<1x16x128xf32> to vector<1x16x128xbf16>
    %c0_13 = arith.constant 0 : index
    %c0_14 = arith.constant 0 : index
    %c0_15 = arith.constant 0 : index
    %29 = vector.load %arg4[%c0_13, %c0_14, %c0_15] : memref<1x16x128xbf16, #tpu.memory_space<vmem>>, vector<1x16x128xbf16>
    tpu.vector_store %arg4[%c0_13, %c0_14, %c0_15], %28 {strides = array<i32>} : memref<1x16x128xbf16, #tpu.memory_space<vmem>>, vector<1x16x128xbf16>,
    return
  }
  func.func @transform_0(%arg0: i32) -> (i32, i32, i32) {
    %c0_i32 = arith.constant 0 : i32
    %c0_i32_0 = arith.constant 0 : i32
    %c0_i32_1 = arith.constant 0 : i32
    return %arg0, %c0_i32, %c0_i32_0 : i32, i32, i32
  }
  func.func @transform_1(%arg0: i32) -> (i32, i32, i32) {
    %c0_i32 = arith.constant 0 : i32
    %c0_i32_0 = arith.constant 0 : i32
    %c0_i32_1 = arith.constant 0 : i32
    %c0_i32_2 = arith.constant 0 : i32
    return %c0_i32, %c0_i32_0, %c0_i32_1 : i32, i32, i32
  }
  func.func @transform_2(%arg0: i32) -> (i32, i32, i32) {
    %c0_i32 = arith.constant 0 : i32
    %c0_i32_0 = arith.constant 0 : i32
    %c0_i32_1 = arith.constant 0 : i32
    %c0_i32_2 = arith.constant 0 : i32
    return %c0_i32, %c0_i32_0, %c0_i32_1 : i32, i32, i32
  }
  func.func @transform_3(%arg0: i32) -> (i32, i32, i32) {
    %c0_i32 = arith.constant 0 : i32
    %c0_i32_0 = arith.constant 0 : i32
    %c0_i32_1 = arith.constant 0 : i32
    return %arg0, %c0_i32, %c0_i32_0 : i32, i32, i32
  }
}

module attributes {stable_mosaic.version = 11 : i64} {
  func.func @_mm_kernel(%arg0: i32, %arg1: i32, %arg2: memref<256x384xbf16, #tpu.memory_space<vmem>>, %arg3: memref<384x128xbf16, #tpu.memory_space<vmem>>, %arg4: memref<256x128xbf16, #tpu.memory_space<vmem>>, %arg5: memref<256x128xf32, #tpu.memory_space<vmem>>) attributes {dimension_semantics = [#tpu.dimension_semantics<parallel>, #tpu.dimension_semantics<arbitrary>], iteration_bounds = array<i64: 1, 3>, scalar_prefetch = 0 : i64, scratch_operands = 1 : i64, tpu.core_type = #tpu.core_type<tc>, window_params = [{transform_indices = @transform_0, window_bounds = array<i64: 256, 384>}, {transform_indices = @transform_1, window_bounds = array<i64: 384, 128>}, {transform_indices = @transform_2, window_bounds = array<i64: 256, 128>}]} {
    %c0_i32 = arith.constant 0 : i32
    %0 = arith.cmpi eq, %arg1, %c0_i32 : i32
    %1 = arith.extui %0 : i1 to i32
    %c0_i32_0 = arith.constant 0 : i32
    %2 = arith.cmpi ne, %1, %c0_i32_0 : i32
    scf.if %2 {
      %cst_9 = arith.constant 0.000000e+00 : f32
      %12 = vector.broadcast %cst_9 : f32 to vector<256x128xf32>
      %c0_10 = arith.constant 0 : index
      %c0_11 = arith.constant 0 : index
      %13 = vector.load %arg5[%c0_10, %c0_11] : memref<256x128xf32, #tpu.memory_space<vmem>>, vector<256x128xf32>
      tpu.vector_store %arg5[%c0_10, %c0_11], %12 {strides = array<i32>} : memref<256x128xf32, #tpu.memory_space<vmem>>, vector<256x128xf32>,
    } else {
    }
    %c0 = arith.constant 0 : index
    %c0_1 = arith.constant 0 : index
    %3 = vector.load %arg5[%c0, %c0_1] : memref<256x128xf32, #tpu.memory_space<vmem>>, vector<256x128xf32>
    %c0_2 = arith.constant 0 : index
    %c0_3 = arith.constant 0 : index
    %4 = vector.load %arg2[%c0_2, %c0_3] : memref<256x384xbf16, #tpu.memory_space<vmem>>, vector<256x384xbf16>
    %c0_4 = arith.constant 0 : index
    %c0_5 = arith.constant 0 : index
    %5 = vector.load %arg3[%c0_4, %c0_5] : memref<384x128xbf16, #tpu.memory_space<vmem>>, vector<384x128xbf16>
    %cst = arith.constant dense<0.000000e+00> : vector<256x128xf32>
    %6 = tpu.matmul %4, %5, %cst {dimension_numbers = #tpu.dot_dimension_numbers<[1], [0], [0], [1], [0, 0, 1, 1], [], []>} : vector<256x384xbf16>, vector<384x128xbf16>, vector<256x128xf32> -> vector<256x128xf32>
    %7 = arith.addf %3, %6 : vector<256x128xf32>
    %c0_6 = arith.constant 0 : index
    %c0_7 = arith.constant 0 : index
    %8 = vector.load %arg5[%c0_6, %c0_7] : memref<256x128xf32, #tpu.memory_space<vmem>>, vector<256x128xf32>
    tpu.vector_store %arg5[%c0_6, %c0_7], %7 {strides = array<i32>} : memref<256x128xf32, #tpu.memory_space<vmem>>, vector<256x128xf32>,
    %c2_i32 = arith.constant 2 : i32
    %9 = arith.cmpi eq, %arg1, %c2_i32 : i32
    %10 = arith.extui %9 : i1 to i32
    %c0_i32_8 = arith.constant 0 : i32
    %11 = arith.cmpi ne, %10, %c0_i32_8 : i32
    scf.if %11 {
      %c0_9 = arith.constant 0 : index
      %c0_10 = arith.constant 0 : index
      %12 = vector.load %arg5[%c0_9, %c0_10] : memref<256x128xf32, #tpu.memory_space<vmem>>, vector<256x128xf32>
      %13 = arith.truncf %12 : vector<256x128xf32> to vector<256x128xbf16>
      %c0_11 = arith.constant 0 : index
      %c0_12 = arith.constant 0 : index
      %14 = vector.load %arg4[%c0_11, %c0_12] : memref<256x128xbf16, #tpu.memory_space<vmem>>, vector<256x128xbf16>
      tpu.vector_store %arg4[%c0_11, %c0_12], %13 {strides = array<i32>} : memref<256x128xbf16, #tpu.memory_space<vmem>>, vector<256x128xbf16>,
    } else {
    }
    return
  }
  func.func @transform_0(%arg0: i32, %arg1: i32) -> (i32, i32) {
    %c0_i32 = arith.constant 0 : i32
    return %arg0, %arg1 : i32, i32
  }
  func.func @transform_1(%arg0: i32, %arg1: i32) -> (i32, i32) {
    %c0_i32 = arith.constant 0 : i32
    %c0_i32_0 = arith.constant 0 : i32
    return %arg1, %c0_i32 : i32, i32
  }
  func.func @transform_2(%arg0: i32, %arg1: i32) -> (i32, i32) {
    %c0_i32 = arith.constant 0 : i32
    %c0_i32_0 = arith.constant 0 : i32
    return %arg0, %c0_i32 : i32, i32
  }
}

module attributes {stable_mosaic.version = 11 : i64} {
  func.func @_instnorm_res_kernel(%arg0: i32, %arg1: memref<1x16x128xbf16, #tpu.memory_space<vmem>>, %arg2: memref<1x1x128xf32, #tpu.memory_space<vmem>>, %arg3: memref<1x1x128xf32, #tpu.memory_space<vmem>>, %arg4: memref<1x16x128xbf16, #tpu.memory_space<vmem>>, %arg5: memref<1x16x128xbf16, #tpu.memory_space<vmem>>) attributes {dimension_semantics = [#tpu.dimension_semantics<parallel>], iteration_bounds = array<i64: 2>, scalar_prefetch = 0 : i64, scratch_operands = 0 : i64, tpu.core_type = #tpu.core_type<tc>, window_params = [{transform_indices = @transform_0, window_bounds = array<i64: 1, 16, 128>}, {pipeline_mode = #tpu.pipeline_mode<synchronous>, transform_indices = @transform_1, window_bounds = array<i64: 1, 1, 128>}, {pipeline_mode = #tpu.pipeline_mode<synchronous>, transform_indices = @transform_2, window_bounds = array<i64: 1, 1, 128>}, {transform_indices = @transform_3, window_bounds = array<i64: 1, 16, 128>}, {transform_indices = @transform_4, window_bounds = array<i64: 1, 16, 128>}]} {
    %c0 = arith.constant 0 : index
    %c0_0 = arith.constant 0 : index
    %c0_1 = arith.constant 0 : index
    %0 = vector.load %arg1[%c0, %c0_0, %c0_1] : memref<1x16x128xbf16, #tpu.memory_space<vmem>>, vector<1x16x128xbf16>
    %1 = arith.extf %0 : vector<1x16x128xbf16> to vector<1x16x128xf32>
    %cst = arith.constant dense<0.000000e+00> : vector<1x128xf32>
    %2 = vector.multi_reduction <add>, %1, %cst [1] : vector<1x16x128xf32> to vector<1x128xf32>
    %3 = vector.shape_cast %2 : vector<1x128xf32> to vector<1x1x128xf32>
    %cst_2 = arith.constant 1.600000e+01 : f32
    %4 = vector.broadcast %cst_2 : f32 to vector<1x1x128xf32>
    %5 = arith.divf %3, %4 : vector<1x1x128xf32>
    %6 = vector.broadcast %5 : vector<1x1x128xf32> to vector<1x16x128xf32>
    %7 = arith.subf %1, %6 : vector<1x16x128xf32>
    %8 = arith.mulf %7, %7 : vector<1x16x128xf32>
    %cst_3 = arith.constant dense<0.000000e+00> : vector<1x128xf32>
    %9 = vector.multi_reduction <add>, %8, %cst_3 [1] : vector<1x16x128xf32> to vector<1x128xf32>
    %10 = vector.shape_cast %9 : vector<1x128xf32> to vector<1x1x128xf32>
    %cst_4 = arith.constant 1.600000e+01 : f32
    %11 = vector.broadcast %cst_4 : f32 to vector<1x1x128xf32>
    %12 = arith.divf %10, %11 : vector<1x1x128xf32>
    %13 = vector.broadcast %5 : vector<1x1x128xf32> to vector<1x16x128xf32>
    %14 = arith.subf %1, %13 : vector<1x16x128xf32>
    %cst_5 = arith.constant 9.99999974E-6 : f32
    %15 = vector.broadcast %cst_5 : f32 to vector<1x1x128xf32>
    %16 = arith.addf %12, %15 : vector<1x1x128xf32>
    %17 = math.rsqrt %16 : vector<1x1x128xf32>
    %18 = vector.broadcast %17 : vector<1x1x128xf32> to vector<1x16x128xf32>
    %19 = arith.mulf %14, %18 : vector<1x16x128xf32>
    %c0_6 = arith.constant 0 : index
    %c0_7 = arith.constant 0 : index
    %c0_8 = arith.constant 0 : index
    %20 = vector.load %arg2[%c0_6, %c0_7, %c0_8] : memref<1x1x128xf32, #tpu.memory_space<vmem>>, vector<1x1x128xf32>
    %21 = vector.broadcast %20 : vector<1x1x128xf32> to vector<1x16x128xf32>
    %22 = arith.mulf %19, %21 : vector<1x16x128xf32>
    %c0_9 = arith.constant 0 : index
    %c0_10 = arith.constant 0 : index
    %c0_11 = arith.constant 0 : index
    %23 = vector.load %arg3[%c0_9, %c0_10, %c0_11] : memref<1x1x128xf32, #tpu.memory_space<vmem>>, vector<1x1x128xf32>
    %24 = vector.broadcast %23 : vector<1x1x128xf32> to vector<1x16x128xf32>
    %25 = arith.addf %22, %24 : vector<1x16x128xf32>
    %c0_12 = arith.constant 0 : index
    %c0_13 = arith.constant 0 : index
    %c0_14 = arith.constant 0 : index
    %26 = vector.load %arg4[%c0_12, %c0_13, %c0_14] : memref<1x16x128xbf16, #tpu.memory_space<vmem>>, vector<1x16x128xbf16>
    %27 = arith.extf %26 : vector<1x16x128xbf16> to vector<1x16x128xf32>
    %28 = arith.addf %25, %27 : vector<1x16x128xf32>
    %29 = arith.truncf %28 : vector<1x16x128xf32> to vector<1x16x128xbf16>
    %c0_15 = arith.constant 0 : index
    %c0_16 = arith.constant 0 : index
    %c0_17 = arith.constant 0 : index
    %30 = vector.load %arg5[%c0_15, %c0_16, %c0_17] : memref<1x16x128xbf16, #tpu.memory_space<vmem>>, vector<1x16x128xbf16>
    tpu.vector_store %arg5[%c0_15, %c0_16, %c0_17], %29 {strides = array<i32>} : memref<1x16x128xbf16, #tpu.memory_space<vmem>>, vector<1x16x128xbf16>,
    return
  }
  func.func @transform_0(%arg0: i32) -> (i32, i32, i32) {
    %c0_i32 = arith.constant 0 : i32
    %c0_i32_0 = arith.constant 0 : i32
    %c0_i32_1 = arith.constant 0 : i32
    return %arg0, %c0_i32, %c0_i32_0 : i32, i32, i32
  }
  func.func @transform_1(%arg0: i32) -> (i32, i32, i32) {
    %c0_i32 = arith.constant 0 : i32
    %c0_i32_0 = arith.constant 0 : i32
    %c0_i32_1 = arith.constant 0 : i32
    %c0_i32_2 = arith.constant 0 : i32
    return %c0_i32, %c0_i32_0, %c0_i32_1 : i32, i32, i32
  }
  func.func @transform_2(%arg0: i32) -> (i32, i32, i32) {
    %c0_i32 = arith.constant 0 : i32
    %c0_i32_0 = arith.constant 0 : i32
    %c0_i32_1 = arith.constant 0 : i32
    %c0_i32_2 = arith.constant 0 : i32
    return %c0_i32, %c0_i32_0, %c0_i32_1 : i32, i32, i32
  }
  func.func @transform_3(%arg0: i32) -> (i32, i32, i32) {
    %c0_i32 = arith.constant 0 : i32
    %c0_i32_0 = arith.constant 0 : i32
    %c0_i32_1 = arith.constant 0 : i32
    return %arg0, %c0_i32, %c0_i32_0 : i32, i32, i32
  }
  func.func @transform_4(%arg0: i32) -> (i32, i32, i32) {
    %c0_i32 = arith.constant 0 : i32
    %c0_i32_0 = arith.constant 0 : i32
    %c0_i32_1 = arith.constant 0 : i32
    return %arg0, %c0_i32, %c0_i32_0 : i32, i32, i32
  }
}

module attributes {stable_mosaic.version = 11 : i64} {
  func.func @_mm_kernel(%arg0: i32, %arg1: i32, %arg2: memref<256x384xbf16, #tpu.memory_space<vmem>>, %arg3: memref<384x128xbf16, #tpu.memory_space<vmem>>, %arg4: memref<256x128xbf16, #tpu.memory_space<vmem>>, %arg5: memref<256x128xf32, #tpu.memory_space<vmem>>) attributes {dimension_semantics = [#tpu.dimension_semantics<parallel>, #tpu.dimension_semantics<arbitrary>], iteration_bounds = array<i64: 2, 2>, scalar_prefetch = 0 : i64, scratch_operands = 1 : i64, tpu.core_type = #tpu.core_type<tc>, window_params = [{transform_indices = @transform_0, window_bounds = array<i64: 256, 384>}, {transform_indices = @transform_1, window_bounds = array<i64: 384, 128>}, {transform_indices = @transform_2, window_bounds = array<i64: 256, 128>}]} {
    %c0_i32 = arith.constant 0 : i32
    %0 = arith.cmpi eq, %arg1, %c0_i32 : i32
    %1 = arith.extui %0 : i1 to i32
    %c0_i32_0 = arith.constant 0 : i32
    %2 = arith.cmpi ne, %1, %c0_i32_0 : i32
    scf.if %2 {
      %cst_9 = arith.constant 0.000000e+00 : f32
      %12 = vector.broadcast %cst_9 : f32 to vector<256x128xf32>
      %c0_10 = arith.constant 0 : index
      %c0_11 = arith.constant 0 : index
      %13 = vector.load %arg5[%c0_10, %c0_11] : memref<256x128xf32, #tpu.memory_space<vmem>>, vector<256x128xf32>
      tpu.vector_store %arg5[%c0_10, %c0_11], %12 {strides = array<i32>} : memref<256x128xf32, #tpu.memory_space<vmem>>, vector<256x128xf32>,
    } else {
    }
    %c0 = arith.constant 0 : index
    %c0_1 = arith.constant 0 : index
    %3 = vector.load %arg5[%c0, %c0_1] : memref<256x128xf32, #tpu.memory_space<vmem>>, vector<256x128xf32>
    %c0_2 = arith.constant 0 : index
    %c0_3 = arith.constant 0 : index
    %4 = vector.load %arg2[%c0_2, %c0_3] : memref<256x384xbf16, #tpu.memory_space<vmem>>, vector<256x384xbf16>
    %c0_4 = arith.constant 0 : index
    %c0_5 = arith.constant 0 : index
    %5 = vector.load %arg3[%c0_4, %c0_5] : memref<384x128xbf16, #tpu.memory_space<vmem>>, vector<384x128xbf16>
    %cst = arith.constant dense<0.000000e+00> : vector<256x128xf32>
    %6 = tpu.matmul %4, %5, %cst {dimension_numbers = #tpu.dot_dimension_numbers<[1], [0], [0], [1], [0, 0, 1, 1], [], []>} : vector<256x384xbf16>, vector<384x128xbf16>, vector<256x128xf32> -> vector<256x128xf32>
    %7 = arith.addf %3, %6 : vector<256x128xf32>
    %c0_6 = arith.constant 0 : index
    %c0_7 = arith.constant 0 : index
    %8 = vector.load %arg5[%c0_6, %c0_7] : memref<256x128xf32, #tpu.memory_space<vmem>>, vector<256x128xf32>
    tpu.vector_store %arg5[%c0_6, %c0_7], %7 {strides = array<i32>} : memref<256x128xf32, #tpu.memory_space<vmem>>, vector<256x128xf32>,
    %c1_i32 = arith.constant 1 : i32
    %9 = arith.cmpi eq, %arg1, %c1_i32 : i32
    %10 = arith.extui %9 : i1 to i32
    %c0_i32_8 = arith.constant 0 : i32
    %11 = arith.cmpi ne, %10, %c0_i32_8 : i32
    scf.if %11 {
      %c0_9 = arith.constant 0 : index
      %c0_10 = arith.constant 0 : index
      %12 = vector.load %arg5[%c0_9, %c0_10] : memref<256x128xf32, #tpu.memory_space<vmem>>, vector<256x128xf32>
      %13 = arith.truncf %12 : vector<256x128xf32> to vector<256x128xbf16>
      %c0_11 = arith.constant 0 : index
      %c0_12 = arith.constant 0 : index
      %14 = vector.load %arg4[%c0_11, %c0_12] : memref<256x128xbf16, #tpu.memory_space<vmem>>, vector<256x128xbf16>
      tpu.vector_store %arg4[%c0_11, %c0_12], %13 {strides = array<i32>} : memref<256x128xbf16, #tpu.memory_space<vmem>>, vector<256x128xbf16>,
    } else {
    }
    return
  }
  func.func @transform_0(%arg0: i32, %arg1: i32) -> (i32, i32) {
    %c0_i32 = arith.constant 0 : i32
    return %arg0, %arg1 : i32, i32
  }
  func.func @transform_1(%arg0: i32, %arg1: i32) -> (i32, i32) {
    %c0_i32 = arith.constant 0 : i32
    %c0_i32_0 = arith.constant 0 : i32
    return %arg1, %c0_i32 : i32, i32
  }
  func.func @transform_2(%arg0: i32, %arg1: i32) -> (i32, i32) {
    %c0_i32 = arith.constant 0 : i32
    %c0_i32_0 = arith.constant 0 : i32
    return %arg0, %c0_i32 : i32, i32
  }
}

module attributes {stable_mosaic.version = 11 : i64} {
  func.func @_mm_bias_kernel(%arg0: i32, %arg1: i32, %arg2: memref<256x512xbf16, #tpu.memory_space<vmem>>, %arg3: memref<512x128xbf16, #tpu.memory_space<vmem>>, %arg4: memref<1x128xf32, #tpu.memory_space<vmem>>, %arg5: memref<256x128xf32, #tpu.memory_space<vmem>>, %arg6: memref<256x128xf32, #tpu.memory_space<vmem>>) attributes {dimension_semantics = [#tpu.dimension_semantics<parallel>, #tpu.dimension_semantics<arbitrary>], iteration_bounds = array<i64: 2, 6>, scalar_prefetch = 0 : i64, scratch_operands = 1 : i64, tpu.core_type = #tpu.core_type<tc>, window_params = [{transform_indices = @transform_0, window_bounds = array<i64: 256, 512>}, {transform_indices = @transform_1, window_bounds = array<i64: 512, 128>}, {pipeline_mode = #tpu.pipeline_mode<synchronous>, transform_indices = @transform_2, window_bounds = array<i64: 1, 128>}, {transform_indices = @transform_3, window_bounds = array<i64: 256, 128>}]} {
    %c0_i32 = arith.constant 0 : i32
    %0 = arith.cmpi eq, %arg1, %c0_i32 : i32
    %1 = arith.extui %0 : i1 to i32
    %c0_i32_0 = arith.constant 0 : i32
    %2 = arith.cmpi ne, %1, %c0_i32_0 : i32
    scf.if %2 {
      %cst_9 = arith.constant 0.000000e+00 : f32
      %12 = vector.broadcast %cst_9 : f32 to vector<256x128xf32>
      %c0_10 = arith.constant 0 : index
      %c0_11 = arith.constant 0 : index
      %13 = vector.load %arg6[%c0_10, %c0_11] : memref<256x128xf32, #tpu.memory_space<vmem>>, vector<256x128xf32>
      tpu.vector_store %arg6[%c0_10, %c0_11], %12 {strides = array<i32>} : memref<256x128xf32, #tpu.memory_space<vmem>>, vector<256x128xf32>,
    } else {
    }
    %c0 = arith.constant 0 : index
    %c0_1 = arith.constant 0 : index
    %3 = vector.load %arg6[%c0, %c0_1] : memref<256x128xf32, #tpu.memory_space<vmem>>, vector<256x128xf32>
    %c0_2 = arith.constant 0 : index
    %c0_3 = arith.constant 0 : index
    %4 = vector.load %arg2[%c0_2, %c0_3] : memref<256x512xbf16, #tpu.memory_space<vmem>>, vector<256x512xbf16>
    %c0_4 = arith.constant 0 : index
    %c0_5 = arith.constant 0 : index
    %5 = vector.load %arg3[%c0_4, %c0_5] : memref<512x128xbf16, #tpu.memory_space<vmem>>, vector<512x128xbf16>
    %cst = arith.constant dense<0.000000e+00> : vector<256x128xf32>
    %6 = tpu.matmul %4, %5, %cst {dimension_numbers = #tpu.dot_dimension_numbers<[1], [0], [0], [1], [0, 0, 1, 1], [], []>} : vector<256x512xbf16>, vector<512x128xbf16>, vector<256x128xf32> -> vector<256x128xf32>
    %7 = arith.addf %3, %6 : vector<256x128xf32>
    %c0_6 = arith.constant 0 : index
    %c0_7 = arith.constant 0 : index
    %8 = vector.load %arg6[%c0_6, %c0_7] : memref<256x128xf32, #tpu.memory_space<vmem>>, vector<256x128xf32>
    tpu.vector_store %arg6[%c0_6, %c0_7], %7 {strides = array<i32>} : memref<256x128xf32, #tpu.memory_space<vmem>>, vector<256x128xf32>,
    %c5_i32 = arith.constant 5 : i32
    %9 = arith.cmpi eq, %arg1, %c5_i32 : i32
    %10 = arith.extui %9 : i1 to i32
    %c0_i32_8 = arith.constant 0 : i32
    %11 = arith.cmpi ne, %10, %c0_i32_8 : i32
    scf.if %11 {
      %c0_9 = arith.constant 0 : index
      %c0_10 = arith.constant 0 : index
      %12 = vector.load %arg6[%c0_9, %c0_10] : memref<256x128xf32, #tpu.memory_space<vmem>>, vector<256x128xf32>
      %c0_11 = arith.constant 0 : index
      %c0_12 = arith.constant 0 : index
      %13 = vector.load %arg4[%c0_11, %c0_12] : memref<1x128xf32, #tpu.memory_space<vmem>>, vector<1x128xf32>
      %14 = vector.broadcast %13 : vector<1x128xf32> to vector<256x128xf32>
      %15 = arith.addf %12, %14 : vector<256x128xf32>
      %c0_13 = arith.constant 0 : index
      %c0_14 = arith.constant 0 : index
      %16 = vector.load %arg5[%c0_13, %c0_14] : memref<256x128xf32, #tpu.memory_space<vmem>>, vector<256x128xf32>
      tpu.vector_store %arg5[%c0_13, %c0_14], %15 {strides = array<i32>} : memref<256x128xf32, #tpu.memory_space<vmem>>, vector<256x128xf32>,
    } else {
    }
    return
  }
  func.func @transform_0(%arg0: i32, %arg1: i32) -> (i32, i32) {
    %c0_i32 = arith.constant 0 : i32
    return %arg0, %arg1 : i32, i32
  }
  func.func @transform_1(%arg0: i32, %arg1: i32) -> (i32, i32) {
    %c0_i32 = arith.constant 0 : i32
    %c0_i32_0 = arith.constant 0 : i32
    return %arg1, %c0_i32 : i32, i32
  }
  func.func @transform_2(%arg0: i32, %arg1: i32) -> (i32, i32) {
    %c0_i32 = arith.constant 0 : i32
    %c0_i32_0 = arith.constant 0 : i32
    %c0_i32_1 = arith.constant 0 : i32
    return %c0_i32, %c0_i32_0 : i32, i32
  }
  func.func @transform_3(%arg0: i32, %arg1: i32) -> (i32, i32) {
    %c0_i32 = arith.constant 0 : i32
    %c0_i32_0 = arith.constant 0 : i32
    return %arg0, %c0_i32 : i32, i32
  }
}

</mosaic_0001>

<llo_original>
// kernel: genenet_forward.32
$region0: #{genenet_forward.32}
  #allocation0 [shape = 'u32[]', space=smem, size = 0x4, offset = 0x4, fixed_abs, tag = 'smem constant byte address 0x4 - core index']
  #allocation1 [shape = 'u32[144,128]{1,0:T(1,128)}', space=vmem, size = 0x12000, scoped, tag = 'internal scratch']
  %s0 = inlined_call_operand.vmem [shape: bf16[2,256,32], index: 0, kind: input, shape index: {}]
  %s1 = inlined_call_operand.vmem [shape: f32[1,1,32], index: 1, kind: input, shape index: {}]
  %s2 = inlined_call_operand.vmem [shape: f32[1,1,32], index: 2, kind: input, shape index: {}]
  %s3 = inlined_call_operand.vmem [shape: bf16[2,256,32], index: 3, kind: output, shape index: {}]
  %s4 = sld [smem:[#allocation0]]
  $region45: #{genenet_forward.32} parent=0
    _
  %s6 = ssub.s32 1, %s4
  %s7 = scalar_select 0, %s6, %s4
  loop: start=0, step=1, limit=4
  $region2: #{genenet_forward.32} parent=0 // loop_pre_header
    _
  $region3: #{genenet_forward.32} parent=0 // loop_header
    %s9 = sphi 0, %s13
    %p10 = scmp.ge.s32.totalorder %s9, 4
    %s19 = sphi 0, %s21
    %s22 = sphi 0, %s19
    %s23 = sphi 0, %s22
    %s39 = sphi 0, %s23
    %s43 = sphi 0, %s43
    %s45 = sphi 0, %s43
    %s46 = sphi 0, %s45
    %s60 = sphi 0, %s46
    %s64 = sphi 0, %s64
    %s66 = sphi 0, %s64
    %s67 = sphi 0, %s66
    %s81 = sphi 0, %s67
    %s87 = sphi 0, %s89
    %s90 = sphi 0, %s87
    %s91 = sphi 0, %s90
    %s107 = sphi 0, %s91
  $region4: #{genenet_forward.32} parent=0 // loop_header_branch
    %12 = sbr.rel (%p10) target = $region8
  $region5: #{genenet_forward.32} parent=0 // loop_body
    %s14 = ssub.s32 %s9, 1
    %s15 = ssub.s32 %s9, 2
    %s16 = sadd.s32 %s9, 1
    %s17 = ssub.s32 %s9, %s16
    %p18 = scmp.eq.s32.totalorder %s17, 0
    %s20 = sadd.s32 %s19, 1
    %s21 = scalar_select %p18, %s19, %s20
    %p24 = pneg %p18
    %p25 = scmp.eq.s32.totalorder %s9, 1
    %p26 = por %p24, %p25
    %p27 = scmp.ne.s32.totalorder %s19, %s22
    %p28 = scmp.eq.s32.totalorder %s9, 0
    %p29 = por %p27, %p28
    %p30 = scmp.ne.s32.totalorder %s19, %s22
    %p31 = scmp.eq.s32.totalorder %s14, 1
    %p32 = por %p30, %p31
    %p33 = scmp.ne.s32.totalorder %s22, %s23
    %p34 = scmp.eq.s32.totalorder %s14, 0
    %p35 = por %p33, %p34
    %p36 = scmp.ne.s32.totalorder %s22, %s23
    %p37 = scmp.eq.s32.totalorder %s15, 1
    %p38 = por %p36, %p37
    %p40 = scmp.ne.s32.totalorder %s23, %s39
    %p41 = scmp.eq.s32.totalorder %s15, 0
    %p42 = por %p40, %p41
    %s44 = sadd.s32 %s43, 1
    %p47 = scmp.eq.s32.totalorder %s9, 1
    %p48 = scmp.ne.s32.totalorder %s43, %s45
    %p49 = scmp.eq.s32.totalorder %s9, 0
    %p50 = por %p48, %p49
    %p51 = scmp.ne.s32.totalorder %s43, %s45
    %p52 = scmp.eq.s32.totalorder %s14, 1
    %p53 = por %p51, %p52
    %p54 = scmp.ne.s32.totalorder %s45, %s46
    %p55 = scmp.eq.s32.totalorder %s14, 0
    %p56 = por %p54, %p55
    %p57 = scmp.ne.s32.totalorder %s45, %s46
    %p58 = scmp.eq.s32.totalorder %s15, 1
    %p59 = por %p57, %p58
    %p61 = scmp.ne.s32.totalorder %s46, %s60
    %p62 = scmp.eq.s32.totalorder %s15, 0
    %p63 = por %p61, %p62
    %s65 = sadd.s32 %s64, 1
    %p68 = scmp.eq.s32.totalorder %s9, 1
    %p69 = scmp.ne.s32.totalorder %s64, %s66
    %p70 = scmp.eq.s32.totalorder %s9, 0
    %p71 = por %p69, %p70
    %p72 = scmp.ne.s32.totalorder %s64, %s66
    %p73 = scmp.eq.s32.totalorder %s14, 1
    %p74 = por %p72, %p73
    %p75 = scmp.ne.s32.totalorder %s66, %s67
    %p76 = scmp.eq.s32.totalorder %s14, 0
    %p77 = por %p75, %p76
    %p78 = scmp.ne.s32.totalorder %s66, %s67
    %p79 = scmp.eq.s32.totalorder %s15, 1
    %p80 = por %p78, %p79
    %p82 = scmp.ne.s32.totalorder %s67, %s81
    %p83 = scmp.eq.s32.totalorder %s15, 0
    %p84 = por %p82, %p83
    %s85 = ssub.s32 %s9, %s16
    %p86 = scmp.eq.s32.totalorder %s85, 0
    %s88 = sadd.s32 %s87, 1
    %s89 = scalar_select %p86, %s87, %s88
    %p92 = pneg %p86
    %p93 = scmp.eq.s32.totalorder %s9, 1
    %p94 = por %p92, %p93
    %p95 = scmp.ne.s32.totalorder %s87, %s90
    %p96 = scmp.eq.s32.totalorder %s9, 0
    %p97 = por %p95, %p96
    %p98 = scmp.ne.s32.totalorder %s87, %s90
    %p99 = scmp.eq.s32.totalorder %s14, 1
    %p100 = por %p98, %p99
    %p101 = scmp.ne.s32.totalorder %s90, %s91
    %p102 = scmp.eq.s32.totalorder %s14, 0
    %p103 = por %p101, %p102
    %p104 = scmp.ne.s32.totalorder %s90, %s91
    %p105 = scmp.eq.s32.totalorder %s15, 1
    %p106 = por %p104, %p105
    %p108 = scmp.ne.s32.totalorder %s91, %s107
    %p109 = scmp.eq.s32.totalorder %s15, 0
    %p110 = por %p108, %p109
    %p111 = scmp.le.s32.totalorder 1, %s9
    %p112 = scmp.lt.s32.totalorder %s9, 3
    %p113 = pnand %p111, %p112
    %p114 = pneg %p113
    // Predicated region
    $region9: #{genenet_forward.32} parent=5 // pred_check
      _
    $region10: #{genenet_forward.32} parent=5 // pred_check_branch
      %116 = sbr.rel (%p113) target = $region12
    $region11: #{genenet_forward.32} parent=5 // pred_region
      %s117 = ssub.s32 %s9, 1
      // Predicated region
      $region13: #{genenet_forward.32} parent=11 // pred_check
        %p118 = pneg %p56
      $region14: #{genenet_forward.32} parent=11 // pred_check_branch
        %120 = sbr.rel (%p118) target = $region16
      $region15: #{genenet_forward.32} parent=11 // pred_region
        _
      $region16: #{genenet_forward.32} parent=11 // pred_fallthru
        _
      // Predicated region
      $region17: #{genenet_forward.32} parent=11 // pred_check
        %p121 = pneg %p77
      $region18: #{genenet_forward.32} parent=11 // pred_check_branch
        %123 = sbr.rel (%p121) target = $region20
      $region19: #{genenet_forward.32} parent=11 // pred_region
        _
      $region20: #{genenet_forward.32} parent=11 // pred_fallthru
        _
    $region12: #{genenet_forward.32} parent=5 // pred_fallthru
      _
    %p124 = scmp.lt.s32.totalorder %s9, 2
    // Predicated region
    $region21: #{genenet_forward.32} parent=5 // pred_check
      %p125 = pneg %p124
    $region22: #{genenet_forward.32} parent=5 // pred_check_branch
      %127 = sbr.rel (%p125) target = $region24
    $region23: #{genenet_forward.32} parent=5 // pred_region
      // Predicated region
      $region25: #{genenet_forward.32} parent=23 // pred_check
        %p128 = pneg %p29
      $region26: #{genenet_forward.32} parent=23 // pred_check_branch
        %130 = sbr.rel (%p128) target = $region28
      $region27: #{genenet_forward.32} parent=23 // pred_region
        %p131 = scmp.lt.s32.totalorder %s9, 1
        %s132 = scalar_select %p131, %s9, 1
        %s133 = smul.addr %s132, 32
        %s134 = smul.addr %s133, 4
        %s135 = scalar_lea.vmem %s0, %s134
      $region28: #{genenet_forward.32} parent=23 // pred_fallthru
        _
    $region24: #{genenet_forward.32} parent=5 // pred_fallthru
      _
    %p136 = scmp.le.s32.totalorder 1, %s9
    %p137 = scmp.lt.s32.totalorder %s9, 3
    %p138 = pnand %p136, %p137
    %p139 = pneg %p138
    // Predicated region
    $region29: #{genenet_forward.32} parent=5 // pred_check
      _
    $region30: #{genenet_forward.32} parent=5 // pred_check_branch
      %141 = sbr.rel (%p138) target = $region32
    $region31: #{genenet_forward.32} parent=5 // pred_region
      %s142 = ssub.s32 %s9, 1
      %p143 = scmp.lt.s32.totalorder %s14, 1
      %s144 = scalar_select %p143, %s14, 1
      %s145 = smul.addr %s144, 32
      %s146 = smul.addr %s145, 4
      %s147 = scalar_lea.vmem %s0, %s146
      %p148 = pneg %p35
      %p149 = pneg %p32
      %p150 = pneg %p56
      %p151 = pneg %p53
      %p152 = pneg %p77
      %p153 = pneg %p74
      %p154 = pneg %p103
      %p155 = pneg %p100
      %p156 = scmp.lt.s32.totalorder %s14, 1
      %s157 = scalar_select %p156, %s14, 1
      %s158 = smul.addr %s157, 32
      %s159 = smul.addr %s158, 4
      %s160 = scalar_lea.vmem %s3, %s159
      %p161 = scmp.lt.s32.totalorder %s14, 1
      %s162 = scalar_select %p161, %s14, 1
      %s163 = smul.addr %s162, 32
      %s164 = smul.addr %s163, 4
      %s165 = scalar_lea.vmem %s0, %s164
      %p166 = scmp.lt.s32.totalorder %s14, 1
      %s167 = scalar_select %p166, %s14, 1
      %s168 = smul.addr %s167, 32
      %s169 = smul.addr %s168, 4
      %s170 = scalar_lea.vmem %s3, %s169
      %v171 = vld [vmem:[%s165] sm:$0xf]
      %v172 = vld [vmem:[%s165 + $0x4] sm:$0xf]
      %v173 = vld [vmem:[%s165 + $0x8] sm:$0xf]
      %v174 = vld [vmem:[%s165 + $0xc] sm:$0xf]
      %v175 = vld [vmem:[%s165 + $0x10] sm:$0xf]
      %v176 = vld [vmem:[%s165 + $0x14] sm:$0xf]
      %v177 = vld [vmem:[%s165 + $0x18] sm:$0xf]
      %v178 = vld [vmem:[%s165 + $0x1c] sm:$0xf]
      %v179 = vld [vmem:[%s165 + $0x20] sm:$0xf]
      %v180 = vld [vmem:[%s165 + $0x24] sm:$0xf]
      %v181 = vld [vmem:[%s165 + $0x28] sm:$0xf]
      %v182 = vld [vmem:[%s165 + $0x2c] sm:$0xf]
      %v183 = vld [vmem:[%s165 + $0x30] sm:$0xf]
      %v184 = vld [vmem:[%s165 + $0x34] sm:$0xf]
      %v185 = vld [vmem:[%s165 + $0x38] sm:$0xf]
      %v186 = vld [vmem:[%s165 + $0x3c] sm:$0xf]
      %v187 = vld [vmem:[%s165 + $0x40] sm:$0xf]
      %v188 = vld [vmem:[%s165 + $0x44] sm:$0xf]
      %v189 = vld [vmem:[%s165 + $0x48] sm:$0xf]
      %v190 = vld [vmem:[%s165 + $0x4c] sm:$0xf]
      %v191 = vld [vmem:[%s165 + $0x50] sm:$0xf]
      %v192 = vld [vmem:[%s165 + $0x54] sm:$0xf]
      %v193 = vld [vmem:[%s165 + $0x58] sm:$0xf]
      %v194 = vld [vmem:[%s165 + $0x5c] sm:$0xf]
      %v195 = vld [vmem:[%s165 + $0x60] sm:$0xf]
      %v196 = vld [vmem:[%s165 + $0x64] sm:$0xf]
      %v197 = vld [vmem:[%s165 + $0x68] sm:$0xf]
      %v198 = vld [vmem:[%s165 + $0x6c] sm:$0xf]
      %v199 = vld [vmem:[%s165 + $0x70] sm:$0xf]
      %v200 = vld [vmem:[%s165 + $0x74] sm:$0xf]
      %v201 = vld [vmem:[%s165 + $0x78] sm:$0xf]
      %v202 = vld [vmem:[%s165 + $0x7c] sm:$0xf]
      %v203 = vunpack.c.l.bf16 %v171
      %v204 = vunpack.c.l.bf16 %v172
      %v205 = vunpack.c.l.bf16 %v173
      %v206 = vunpack.c.l.bf16 %v174
      %v207 = vunpack.c.l.bf16 %v175
      %v208 = vunpack.c.l.bf16 %v176
      %v209 = vunpack.c.l.bf16 %v177
      %v210 = vunpack.c.l.bf16 %v178
      %v211 = vunpack.c.l.bf16 %v179
      %v212 = vunpack.c.l.bf16 %v180
      %v213 = vunpack.c.l.bf16 %v181
      %v214 = vunpack.c.l.bf16 %v182
      %v215 = vunpack.c.l.bf16 %v183
      %v216 = vunpack.c.l.bf16 %v184
      %v217 = vunpack.c.l.bf16 %v185
      %v218 = vunpack.c.l.bf16 %v186
      %v219 = vunpack.c.l.bf16 %v187
      %v220 = vunpack.c.l.bf16 %v188
      %v221 = vunpack.c.l.bf16 %v189
      %v222 = vunpack.c.l.bf16 %v190
      %v223 = vunpack.c.l.bf16 %v191
      %v224 = vunpack.c.l.bf16 %v192
      %v225 = vunpack.c.l.bf16 %v193
      %v226 = vunpack.c.l.bf16 %v194
      %v227 = vunpack.c.l.bf16 %v195
      %v228 = vunpack.c.l.bf16 %v196
      %v229 = vunpack.c.l.bf16 %v197
      %v230 = vunpack.c.l.bf16 %v198
      %v231 = vunpack.c.l.bf16 %v199
      %v232 = vunpack.c.l.bf16 %v200
      %v233 = vunpack.c.l.bf16 %v201
      %v234 = vunpack.c.l.bf16 %v202
      %vm235 = vcmask 261120
      %v236 = vsel %vm235, %v203, 0.0
      %v237 = vsel %vm235, %v204, 0.0
      %v238 = vadd.f32 %v236, %v237
      %v239 = vsel %vm235, %v205, 0.0
      %v240 = vadd.f32 %v238, %v239
      %v241 = vsel %vm235, %v206, 0.0
      %v242 = vadd.f32 %v240, %v241
      %v243 = vsel %vm235, %v207, 0.0
      %v244 = vadd.f32 %v242, %v243
      %v245 = vsel %vm235, %v208, 0.0
      %v246 = vadd.f32 %v244, %v245
      %v247 = vsel %vm235, %v209, 0.0
      %v248 = vadd.f32 %v246, %v247
      %v249 = vsel %vm235, %v210, 0.0
      %v250 = vadd.f32 %v248, %v249
      %v251 = vsel %vm235, %v211, 0.0
      %v252 = vadd.f32 %v250, %v251
      %v253 = vsel %vm235, %v212, 0.0
      %v254 = vadd.f32 %v252, %v253
      %v255 = vsel %vm235, %v213, 0.0
      %v256 = vadd.f32 %v254, %v255
      %v257 = vsel %vm235, %v214, 0.0
      %v258 = vadd.f32 %v256, %v257
      %v259 = vsel %vm235, %v215, 0.0
      %v260 = vadd.f32 %v258, %v259
      %v261 = vsel %vm235, %v216, 0.0
      %v262 = vadd.f32 %v260, %v261
      %v263 = vsel %vm235, %v217, 0.0
      %v264 = vadd.f32 %v262, %v263
      %v265 = vsel %vm235, %v218, 0.0
      %v266 = vadd.f32 %v264, %v265
      %v267 = vsel %vm235, %v219, 0.0
      %v268 = vadd.f32 %v266, %v267
      %v269 = vsel %vm235, %v220, 0.0
      %v270 = vadd.f32 %v268, %v269
      %v271 = vsel %vm235, %v221, 0.0
      %v272 = vadd.f32 %v270, %v271
      %v273 = vsel %vm235, %v222, 0.0
      %v274 = vadd.f32 %v272, %v273
      %v275 = vsel %vm235, %v223, 0.0
      %v276 = vadd.f32 %v274, %v275
      %v277 = vsel %vm235, %v224, 0.0
      %v278 = vadd.f32 %v276, %v277
      %v279 = vsel %vm235, %v225, 0.0
      %v280 = vadd.f32 %v278, %v279
      %v281 = vsel %vm235, %v226, 0.0
      %v282 = vadd.f32 %v280, %v281
      %v283 = vsel %vm235, %v227, 0.0
      %v284 = vadd.f32 %v282, %v283
      %v285 = vsel %vm235, %v228, 0.0
      %v286 = vadd.f32 %v284, %v285
      %v287 = vsel %vm235, %v229, 0.0
      %v288 = vadd.f32 %v286, %v287
      %v289 = vsel %vm235, %v230, 0.0
      %v290 = vadd.f32 %v288, %v289
      %v291 = vsel %vm235, %v231, 0.0
      %v292 = vadd.f32 %v290, %v291
      %v293 = vsel %vm235, %v232, 0.0
      %v294 = vadd.f32 %v292, %v293
      %v295 = vsel %vm235, %v233, 0.0
      %v296 = vadd.f32 %v294, %v295
      %v297 = vsel %vm235, %v234, 0.0
      %v298 = vadd.f32 %v296, %v297
      %v299 = vrot.slane %v298, 4
      %v300 = vadd.f32 %v298, %v299
      %v301 = vrot.slane %v300, 2
      %v302 = vadd.f32 %v300, %v301
      %v303 = vrot.slane %v302, 1
      %v304 = vadd.f32 %v302, %v303
      %v305 = vrcp.pop 256.0
      %v306 = vmul.f32 %v304, %v305
      %v307 = vsub.f32 %v203, %v306
      %v308 = vsub.f32 %v204, %v306
      %v309 = vsub.f32 %v205, %v306
      %v310 = vsub.f32 %v206, %v306
      %v311 = vsub.f32 %v207, %v306
      %v312 = vsub.f32 %v208, %v306
      %v313 = vsub.f32 %v209, %v306
      %v314 = vsub.f32 %v210, %v306
      %v315 = vsub.f32 %v211, %v306
      %v316 = vsub.f32 %v212, %v306
      %v317 = vsub.f32 %v213, %v306
      %v318 = vsub.f32 %v214, %v306
      %v319 = vsub.f32 %v215, %v306
      %v320 = vsub.f32 %v216, %v306
      %v321 = vsub.f32 %v217, %v306
      %v322 = vsub.f32 %v218, %v306
      %v323 = vsub.f32 %v219, %v306
      %v324 = vsub.f32 %v220, %v306
      %v325 = vsub.f32 %v221, %v306
      %v326 = vsub.f32 %v222, %v306
      %v327 = vsub.f32 %v223, %v306
      %v328 = vsub.f32 %v224, %v306
      %v329 = vsub.f32 %v225, %v306
      %v330 = vsub.f32 %v226, %v306
      %v331 = vsub.f32 %v227, %v306
      %v332 = vsub.f32 %v228, %v306
      %v333 = vsub.f32 %v229, %v306
      %v334 = vsub.f32 %v230, %v306
      %v335 = vsub.f32 %v231, %v306
      %v336 = vsub.f32 %v232, %v306
      %v337 = vsub.f32 %v233, %v306
      %v338 = vsub.f32 %v234, %v306
      %v339 = vmul.f32 %v307, %v307
      %v340 = vmul.f32 %v308, %v308
      %v341 = vmul.f32 %v309, %v309
      %v342 = vmul.f32 %v310, %v310
      %v343 = vmul.f32 %v311, %v311
      %v344 = vmul.f32 %v312, %v312
      %v345 = vmul.f32 %v313, %v313
      %v346 = vmul.f32 %v314, %v314
      %v347 = vmul.f32 %v315, %v315
      %v348 = vmul.f32 %v316, %v316
      %v349 = vmul.f32 %v317, %v317
      %v350 = vmul.f32 %v318, %v318
      %v351 = vmul.f32 %v319, %v319
      %v352 = vmul.f32 %v320, %v320
      %v353 = vmul.f32 %v321, %v321
      %v354 = vmul.f32 %v322, %v322
      %v355 = vmul.f32 %v323, %v323
      %v356 = vmul.f32 %v324, %v324
      %v357 = vmul.f32 %v325, %v325
      %v358 = vmul.f32 %v326, %v326
      %v359 = vmul.f32 %v327, %v327
      %v360 = vmul.f32 %v328, %v328
      %v361 = vmul.f32 %v329, %v329
      %v362 = vmul.f32 %v330, %v330
      %v363 = vmul.f32 %v331, %v331
      %v364 = vmul.f32 %v332, %v332
      %v365 = vmul.f32 %v333, %v333
      %v366 = vmul.f32 %v334, %v334
      %v367 = vmul.f32 %v335, %v335
      %v368 = vmul.f32 %v336, %v336
      %v369 = vmul.f32 %v337, %v337
      %v370 = vmul.f32 %v338, %v338
      %v371 = vsel %vm235, %v339, 0.0
      %v372 = vsel %vm235, %v340, 0.0
      %v373 = vadd.f32 %v371, %v372
      %v374 = vsel %vm235, %v341, 0.0
      %v375 = vadd.f32 %v373, %v374
      %v376 = vsel %vm235, %v342, 0.0
      %v377 = vadd.f32 %v375, %v376
      %v378 = vsel %vm235, %v343, 0.0
      %v379 = vadd.f32 %v377, %v378
      %v380 = vsel %vm235, %v344, 0.0
      %v381 = vadd.f32 %v379, %v380
      %v382 = vsel %vm235, %v345, 0.0
      %v383 = vadd.f32 %v381, %v382
      %v384 = vsel %vm235, %v346, 0.0
      %v385 = vadd.f32 %v383, %v384
      %v386 = vsel %vm235, %v347, 0.0
      %v387 = vadd.f32 %v385, %v386
      %v388 = vsel %vm235, %v348, 0.0
      %v389 = vadd.f32 %v387, %v388
      %v390 = vsel %vm235, %v349, 0.0
      %v391 = vadd.f32 %v389, %v390
      %v392 = vsel %vm235, %v350, 0.0
      %v393 = vadd.f32 %v391, %v392
      %v394 = vsel %vm235, %v351, 0.0
      %v395 = vadd.f32 %v393, %v394
      %v396 = vsel %vm235, %v352, 0.0
      %v397 = vadd.f32 %v395, %v396
      %v398 = vsel %vm235, %v353, 0.0
      %v399 = vadd.f32 %v397, %v398
      %v400 = vsel %vm235, %v354, 0.0
      %v401 = vadd.f32 %v399, %v400
      %v402 = vsel %vm235, %v355, 0.0
      %v403 = vadd.f32 %v401, %v402
      %v404 = vsel %vm235, %v356, 0.0
      %v405 = vadd.f32 %v403, %v404
      %v406 = vsel %vm235, %v357, 0.0
      %v407 = vadd.f32 %v405, %v406
      %v408 = vsel %vm235, %v358, 0.0
      %v409 = vadd.f32 %v407, %v408
      %v410 = vsel %vm235, %v359, 0.0
      %v411 = vadd.f32 %v409, %v410
      %v412 = vsel %vm235, %v360, 0.0
      %v413 = vadd.f32 %v411, %v412
      %v414 = vsel %vm235, %v361, 0.0
      %v415 = vadd.f32 %v413, %v414
      %v416 = vsel %vm235, %v362, 0.0
      %v417 = vadd.f32 %v415, %v416
      %v418 = vsel %vm235, %v363, 0.0
      %v419 = vadd.f32 %v417, %v418
      %v420 = vsel %vm235, %v364, 0.0
      %v421 = vadd.f32 %v419, %v420
      %v422 = vsel %vm235, %v365, 0.0
      %v423 = vadd.f32 %v421, %v422
      %v424 = vsel %vm235, %v366, 0.0
      %v425 = vadd.f32 %v423, %v424
      %v426 = vsel %vm235, %v367, 0.0
      %v427 = vadd.f32 %v425, %v426
      %v428 = vsel %vm235, %v368, 0.0
      %v429 = vadd.f32 %v427, %v428
      %v430 = vsel %vm235, %v369, 0.0
      %v431 = vadd.f32 %v429, %v430
      %v432 = vsel %vm235, %v370, 0.0
      %v433 = vadd.f32 %v431, %v432
      %v434 = vrot.slane %v433, 4
      %v435 = vadd.f32 %v433, %v434
      %v436 = vrot.slane %v435, 2
      %v437 = vadd.f32 %v435, %v436
      %v438 = vrot.slane %v437, 1
      %v439 = vadd.f32 %v437, %v438
      %v440 = vmul.f32 %v439, %v305
      %v441 = vadd.f32 %v440, 1e-05
      %v442 = vrsqrt.pop %v441
      %v443 = vmul.f32 %v307, %v442
      %v444 = vmul.f32 %v308, %v442
      %v445 = vmul.f32 %v309, %v442
      %v446 = vmul.f32 %v310, %v442
      %v447 = vmul.f32 %v311, %v442
      %v448 = vmul.f32 %v312, %v442
      %v449 = vmul.f32 %v313, %v442
      %v450 = vmul.f32 %v314, %v442
      %v451 = vmul.f32 %v315, %v442
      %v452 = vmul.f32 %v316, %v442
      %v453 = vmul.f32 %v317, %v442
      %v454 = vmul.f32 %v318, %v442
      %v455 = vmul.f32 %v319, %v442
      %v456 = vmul.f32 %v320, %v442
      %v457 = vmul.f32 %v321, %v442
      %v458 = vmul.f32 %v322, %v442
      %v459 = vmul.f32 %v323, %v442
      %v460 = vmul.f32 %v324, %v442
      %v461 = vmul.f32 %v325, %v442
      %v462 = vmul.f32 %v326, %v442
      %v463 = vmul.f32 %v327, %v442
      %v464 = vmul.f32 %v328, %v442
      %v465 = vmul.f32 %v329, %v442
      %v466 = vmul.f32 %v330, %v442
      %v467 = vmul.f32 %v331, %v442
      %v468 = vmul.f32 %v332, %v442
      %v469 = vmul.f32 %v333, %v442
      %v470 = vmul.f32 %v334, %v442
      %v471 = vmul.f32 %v335, %v442
      %v472 = vmul.f32 %v336, %v442
      %v473 = vmul.f32 %v337, %v442
      %v474 = vmul.f32 %v338, %v442
      %v475 = vld [vmem:[%s1] sm:$0x1]
      %v477 = vlaneseq
      %v478 = vshrl.u32 %v477, 7
      %v479 = vsub.s32 0, %v478
      %v480 = vrot.slane %v475, %v479
      %v482 = vmul.f32 %v443, %v480
      %v483 = vmul.f32 %v444, %v480
      %v484 = vmul.f32 %v445, %v480
      %v485 = vmul.f32 %v446, %v480
      %v486 = vmul.f32 %v447, %v480
      %v487 = vmul.f32 %v448, %v480
      %v488 = vmul.f32 %v449, %v480
      %v489 = vmul.f32 %v450, %v480
      %v490 = vmul.f32 %v451, %v480
      %v491 = vmul.f32 %v452, %v480
      %v492 = vmul.f32 %v453, %v480
      %v493 = vmul.f32 %v454, %v480
      %v494 = vmul.f32 %v455, %v480
      %v495 = vmul.f32 %v456, %v480
      %v496 = vmul.f32 %v457, %v480
      %v497 = vmul.f32 %v458, %v480
      %v498 = vmul.f32 %v459, %v480
      %v499 = vmul.f32 %v460, %v480
      %v500 = vmul.f32 %v461, %v480
      %v501 = vmul.f32 %v462, %v480
      %v502 = vmul.f32 %v463, %v480
      %v503 = vmul.f32 %v464, %v480
      %v504 = vmul.f32 %v465, %v480
      %v505 = vmul.f32 %v466, %v480
      %v506 = vmul.f32 %v467, %v480
      %v507 = vmul.f32 %v468, %v480
      %v508 = vmul.f32 %v469, %v480
      %v509 = vmul.f32 %v470, %v480
      %v510 = vmul.f32 %v471, %v480
      %v511 = vmul.f32 %v472, %v480
      %v512 = vmul.f32 %v473, %v480
      %v513 = vmul.f32 %v474, %v480
      %v514 = vld [vmem:[%s2] sm:$0x1]
      %v516 = vlaneseq
      %v517 = vshrl.u32 %v516, 7
      %v518 = vsub.s32 0, %v517
      %v519 = vrot.slane %v514, %v518
      %v521 = vadd.f32 %v482, %v519
      %v522 = vadd.f32 %v483, %v519
      %v523 = vadd.f32 %v484, %v519
      %v524 = vadd.f32 %v485, %v519
      %v525 = vadd.f32 %v486, %v519
      %v526 = vadd.f32 %v487, %v519
      %v527 = vadd.f32 %v488, %v519
      %v528 = vadd.f32 %v489, %v519
      %v529 = vadd.f32 %v490, %v519
      %v530 = vadd.f32 %v491, %v519
      %v531 = vadd.f32 %v492, %v519
      %v532 = vadd.f32 %v493, %v519
      %v533 = vadd.f32 %v494, %v519
      %v534 = vadd.f32 %v495, %v519
      %v535 = vadd.f32 %v496, %v519
      %v536 = vadd.f32 %v497, %v519
      %v537 = vadd.f32 %v498, %v519
      %v538 = vadd.f32 %v499, %v519
      %v539 = vadd.f32 %v500, %v519
      %v540 = vadd.f32 %v501, %v519
      %v541 = vadd.f32 %v502, %v519
      %v542 = vadd.f32 %v503, %v519
      %v543 = vadd.f32 %v504, %v519
      %v544 = vadd.f32 %v505, %v519
      %v545 = vadd.f32 %v506, %v519
      %v546 = vadd.f32 %v507, %v519
      %v547 = vadd.f32 %v508, %v519
      %v548 = vadd.f32 %v509, %v519
      %v549 = vadd.f32 %v510, %v519
      %v550 = vadd.f32 %v511, %v519
      %v551 = vadd.f32 %v512, %v519
      %v552 = vadd.f32 %v513, %v519
      %v553 = vmax.f32 %v521, 0.0
      %v554 = vmax.f32 %v522, 0.0
      %v555 = vmax.f32 %v523, 0.0
      %v556 = vmax.f32 %v524, 0.0
      %v557 = vmax.f32 %v525, 0.0
      %v558 = vmax.f32 %v526, 0.0
      %v559 = vmax.f32 %v527, 0.0
      %v560 = vmax.f32 %v528, 0.0
      %v561 = vmax.f32 %v529, 0.0
      %v562 = vmax.f32 %v530, 0.0
      %v563 = vmax.f32 %v531, 0.0
      %v564 = vmax.f32 %v532, 0.0
      %v565 = vmax.f32 %v533, 0.0
      %v566 = vmax.f32 %v534, 0.0
      %v567 = vmax.f32 %v535, 0.0
      %v568 = vmax.f32 %v536, 0.0
      %v569 = vmax.f32 %v537, 0.0
      %v570 = vmax.f32 %v538, 0.0
      %v571 = vmax.f32 %v539, 0.0
      %v572 = vmax.f32 %v540, 0.0
      %v573 = vmax.f32 %v541, 0.0
      %v574 = vmax.f32 %v542, 0.0
      %v575 = vmax.f32 %v543, 0.0
      %v576 = vmax.f32 %v544, 0.0
      %v577 = vmax.f32 %v545, 0.0
      %v578 = vmax.f32 %v546, 0.0
      %v579 = vmax.f32 %v547, 0.0
      %v580 = vmax.f32 %v548, 0.0
      %v581 = vmax.f32 %v549, 0.0
      %v582 = vmax.f32 %v550, 0.0
      %v583 = vmax.f32 %v551, 0.0
      %v584 = vmax.f32 %v552, 0.0
      %v585 = vpack.c.bf16 %v554, %v553
      %v586 = vpack.c.bf16 %v556, %v555
      %v587 = vpack.c.bf16 %v558, %v557
      %v588 = vpack.c.bf16 %v560, %v559
      %v589 = vpack.c.bf16 %v562, %v561
      %v590 = vpack.c.bf16 %v564, %v563
      %v591 = vpack.c.bf16 %v566, %v565
      %v592 = vpack.c.bf16 %v568, %v567
      %v593 = vpack.c.bf16 %v570, %v569
      %v594 = vpack.c.bf16 %v572, %v571
      %v595 = vpack.c.bf16 %v574, %v573
      %v596 = vpack.c.bf16 %v576, %v575
      %v597 = vpack.c.bf16 %v578, %v577
      %v598 = vpack.c.bf16 %v580, %v579
      %v599 = vpack.c.bf16 %v582, %v581
      %v600 = vpack.c.bf16 %v584, %v583
      %v617 = vunpack.c.l.b16 %v585
      %v618 = vunpack.c.h.b16 %v585
      %v619 = vunpack.c.l.b16 %v586
      %v620 = vunpack.c.h.b16 %v586
      %v621 = vunpack.c.l.b16 %v587
      %v622 = vunpack.c.h.b16 %v587
      %v623 = vunpack.c.l.b16 %v588
      %v624 = vunpack.c.h.b16 %v588
      %v625 = vunpack.c.l.b16 %v589
      %v626 = vunpack.c.h.b16 %v589
      %v627 = vunpack.c.l.b16 %v590
      %v628 = vunpack.c.h.b16 %v590
      %v629 = vunpack.c.l.b16 %v591
      %v630 = vunpack.c.h.b16 %v591
      %v631 = vunpack.c.l.b16 %v592
      %v632 = vunpack.c.h.b16 %v592
      %v633 = vunpack.c.l.b16 %v593
      %v634 = vunpack.c.h.b16 %v593
      %v635 = vunpack.c.l.b16 %v594
      %v636 = vunpack.c.h.b16 %v594
      %v637 = vunpack.c.l.b16 %v595
      %v638 = vunpack.c.h.b16 %v595
      %v639 = vunpack.c.l.b16 %v596
      %v640 = vunpack.c.h.b16 %v596
      %v641 = vunpack.c.l.b16 %v597
      %v642 = vunpack.c.h.b16 %v597
      %v643 = vunpack.c.l.b16 %v598
      %v644 = vunpack.c.h.b16 %v598
      %v645 = vunpack.c.l.b16 %v599
      %v646 = vunpack.c.h.b16 %v599
      %v647 = vunpack.c.l.b16 %v600
      %v648 = vunpack.c.h.b16 %v600
      %v649 = vpack.c.b16 %v617, %v617
      %v650 = vpack.c.b16 %v618, %v618
      %v651 = vpack.c.b16 %v619, %v619
      %v652 = vpack.c.b16 %v620, %v620
      %v653 = vpack.c.b16 %v621, %v621
      %v654 = vpack.c.b16 %v622, %v622
      %v655 = vpack.c.b16 %v623, %v623
      %v656 = vpack.c.b16 %v624, %v624
      %v657 = vpack.c.b16 %v625, %v625
      %v658 = vpack.c.b16 %v626, %v626
      %v659 = vpack.c.b16 %v627, %v627
      %v660 = vpack.c.b16 %v628, %v628
      %v661 = vpack.c.b16 %v629, %v629
      %v662 = vpack.c.b16 %v630, %v630
      %v663 = vpack.c.b16 %v631, %v631
      %v664 = vpack.c.b16 %v632, %v632
      %v665 = vpack.c.b16 %v633, %v633
      %v666 = vpack.c.b16 %v634, %v634
      %v667 = vpack.c.b16 %v635, %v635
      %v668 = vpack.c.b16 %v636, %v636
      %v669 = vpack.c.b16 %v637, %v637
      %v670 = vpack.c.b16 %v638, %v638
      %v671 = vpack.c.b16 %v639, %v639
      %v672 = vpack.c.b16 %v640, %v640
      %v673 = vpack.c.b16 %v641, %v641
      %v674 = vpack.c.b16 %v642, %v642
      %v675 = vpack.c.b16 %v643, %v643
      %v676 = vpack.c.b16 %v644, %v644
      %v677 = vpack.c.b16 %v645, %v645
      %v678 = vpack.c.b16 %v646, %v646
      %v679 = vpack.c.b16 %v647, %v647
      %v680 = vpack.c.b16 %v648, %v648
      %vm713 = vcmask 257024
      %714 = vst.msk [vmem:[%s170] sm:$0xf] %vm713, %v649
      %715 = vst.msk [vmem:[%s170 + $0x4] sm:$0xf] %vm713, %v650
      %716 = vst.msk [vmem:[%s170 + $0x8] sm:$0xf] %vm713, %v651
      %717 = vst.msk [vmem:[%s170 + $0xc] sm:$0xf] %vm713, %v652
      %718 = vst.msk [vmem:[%s170 + $0x10] sm:$0xf] %vm713, %v653
      %719 = vst.msk [vmem:[%s170 + $0x14] sm:$0xf] %vm713, %v654
      %720 = vst.msk [vmem:[%s170 + $0x18] sm:$0xf] %vm713, %v655
      %721 = vst.msk [vmem:[%s170 + $0x1c] sm:$0xf] %vm713, %v656
      %722 = vst.msk [vmem:[%s170 + $0x20] sm:$0xf] %vm713, %v657
      %723 = vst.msk [vmem:[%s170 + $0x24] sm:$0xf] %vm713, %v658
      %724 = vst.msk [vmem:[%s170 + $0x28] sm:$0xf] %vm713, %v659
      %725 = vst.msk [vmem:[%s170 + $0x2c] sm:$0xf] %vm713, %v660
      %726 = vst.msk [vmem:[%s170 + $0x30] sm:$0xf] %vm713, %v661
      %727 = vst.msk [vmem:[%s170 + $0x34] sm:$0xf] %vm713, %v662
      %728 = vst.msk [vmem:[%s170 + $0x38] sm:$0xf] %vm713, %v663
      %729 = vst.msk [vmem:[%s170 + $0x3c] sm:$0xf] %vm713, %v664
      %730 = vst.msk [vmem:[%s170 + $0x40] sm:$0xf] %vm713, %v665
      %731 = vst.msk [vmem:[%s170 + $0x44] sm:$0xf] %vm713, %v666
      %732 = vst.msk [vmem:[%s170 + $0x48] sm:$0xf] %vm713, %v667
      %733 = vst.msk [vmem:[%s170 + $0x4c] sm:$0xf] %vm713, %v668
      %734 = vst.msk [vmem:[%s170 + $0x50] sm:$0xf] %vm713, %v669
      %735 = vst.msk [vmem:[%s170 + $0x54] sm:$0xf] %vm713, %v670
      %736 = vst.msk [vmem:[%s170 + $0x58] sm:$0xf] %vm713, %v671
      %737 = vst.msk [vmem:[%s170 + $0x5c] sm:$0xf] %vm713, %v672
      %738 = vst.msk [vmem:[%s170 + $0x60] sm:$0xf] %vm713, %v673
      %739 = vst.msk [vmem:[%s170 + $0x64] sm:$0xf] %vm713, %v674
      %740 = vst.msk [vmem:[%s170 + $0x68] sm:$0xf] %vm713, %v675
      %741 = vst.msk [vmem:[%s170 + $0x6c] sm:$0xf] %vm713, %v676
      %742 = vst.msk [vmem:[%s170 + $0x70] sm:$0xf] %vm713, %v677
      %743 = vst.msk [vmem:[%s170 + $0x74] sm:$0xf] %vm713, %v678
      %744 = vst.msk [vmem:[%s170 + $0x78] sm:$0xf] %vm713, %v679
      %745 = vst.msk [vmem:[%s170 + $0x7c] sm:$0xf] %vm713, %v680
      %p746 = scmp.lt.s32.totalorder %s14, 1
      %s747 = scalar_select %p746, %s14, 1
      %s748 = smul.addr %s747, 32
      %s749 = smul.addr %s748, 4
      %s750 = scalar_lea.vmem %s3, %s749
      // Predicated region
      $region33: #{genenet_forward.32} parent=31 // pred_check
        %p751 = pneg %p100
      $region34: #{genenet_forward.32} parent=31 // pred_check_branch
        %753 = sbr.rel (%p751) target = $region36
      $region35: #{genenet_forward.32} parent=31 // pred_region
        _
      $region36: #{genenet_forward.32} parent=31 // pred_fallthru
        _
    $region32: #{genenet_forward.32} parent=5 // pred_fallthru
      _
    %p754 = scmp.le.s32.totalorder 2, %s9
    // Predicated region
    $region37: #{genenet_forward.32} parent=5 // pred_check
      %p755 = pneg %p754
    $region38: #{genenet_forward.32} parent=5 // pred_check_branch
      %757 = sbr.rel (%p755) target = $region40
    $region39: #{genenet_forward.32} parent=5 // pred_region
      %s758 = ssub.s32 %s9, 2
      // Predicated region
      $region41: #{genenet_forward.32} parent=39 // pred_check
        %p759 = pneg %p106
      $region42: #{genenet_forward.32} parent=39 // pred_check_branch
        %761 = sbr.rel (%p759) target = $region44
      $region43: #{genenet_forward.32} parent=39 // pred_region
        %p762 = scmp.lt.s32.totalorder %s15, 1
        %s763 = scalar_select %p762, %s15, 1
        %s764 = smul.addr %s763, 32
        %s765 = smul.addr %s764, 4
        %s766 = scalar_lea.vmem %s3, %s765
      $region44: #{genenet_forward.32} parent=39 // pred_fallthru
        _
    $region40: #{genenet_forward.32} parent=5 // pred_fallthru
      _
  $region6: #{genenet_forward.32} parent=0 // loop_footer
    %s13 = sadd.s32 1, %s9
  $region7: #{genenet_forward.32} parent=0 // loop_footer_branch
    %8 = sbr.rel target = $region3
  $region8: #{genenet_forward.32} parent=0 // loop_exit
    _

// kernel: genenet_forward.31
$region0: #{genenet_forward.31}
  #allocation0 [shape = 'u32[]', space=smem, size = 0x4, offset = 0x4, fixed_abs, tag = 'smem constant byte address 0x4 - core index']
  #allocation1 [shape = 'u32[144,128]{1,0:T(1,128)}', space=vmem, size = 0x12000, scoped, tag = 'internal scratch']
  #allocation2 [shape = 'f32[256,128]{1,0:T(8,128)}', space=vmem, size = 0x20000, scoped, tag = 'scratch operand']
  %s0 = inlined_call_operand.vmem [shape: bf16[512,256], index: 0, kind: input, shape index: {}]
  %s1 = inlined_call_operand.vmem [shape: bf16[256,128], index: 1, kind: input, shape index: {}]
  %s2 = inlined_call_operand.vmem [shape: bf16[512,128], index: 2, kind: output, shape index: {}]
  %s3 = sld [smem:[#allocation0]]
  $region49: #{genenet_forward.31} parent=0
    _
  %s5 = ssub.s32 1, %s3
  %s6 = scalar_select 0, %s5, %s3
  loop: start=0, step=1, limit=4
  $region2: #{genenet_forward.31} parent=0 // loop_pre_header
    _
  $region3: #{genenet_forward.31} parent=0 // loop_header
    %s8 = sphi 0, %s12
    %p9 = scmp.ge.s32.totalorder %s8, 4
    %s15 = sphi 0, %s27
    %s16 = sphi 0, %s23
    %s17 = sphi 0, %s15
    %s18 = sphi 0, %s16
    %s19 = sphi 0, %s17
    %s20 = sphi 0, %s18
    %s32 = sphi 0, %s34
    %s35 = sphi 0, %s32
    %s36 = sphi 0, %s35
    %s52 = sphi 0, %s36
    %s58 = sphi 0, %s60
    %s61 = sphi 0, %s58
    %s62 = sphi 0, %s61
    %s78 = sphi 0, %s62
    %s84 = sphi 0, %s86
    %s87 = sphi 0, %s84
    %s88 = sphi 0, %s87
    %s104 = sphi 0, %s88
  $region4: #{genenet_forward.31} parent=0 // loop_header_branch
    %11 = sbr.rel (%p9) target = $region8
  $region5: #{genenet_forward.31} parent=0 // loop_body
    %s13 = ssub.s32 %s8, 1
    %s14 = ssub.s32 %s8, 2
    %s21 = sadd.s32 1, %s16
    %p22 = scmp.ge.s32.totalorder %s21, 1
    %s23 = scalar_select %p22, 0, %s21
    %s24 = sadd.s32 1, %s15
    %s25 = scalar_select %p22, %s24, %s15
    %p26 = scmp.ge.s32.totalorder %s25, 2
    %s27 = scalar_select %p26, 0, %s25
    %s28 = ssub.s32 %s15, %s27
    %s29 = ssub.s32 %s16, %s23
    %s30 = sor.u32 %s28, %s29
    %p31 = scmp.eq.s32.totalorder %s30, 0
    %s33 = sadd.s32 %s32, 1
    %s34 = scalar_select %p31, %s32, %s33
    %p37 = pneg %p31
    %p38 = scmp.eq.s32.totalorder %s8, 1
    %p39 = por %p37, %p38
    %p40 = scmp.ne.s32.totalorder %s32, %s35
    %p41 = scmp.eq.s32.totalorder %s8, 0
    %p42 = por %p40, %p41
    %p43 = scmp.ne.s32.totalorder %s32, %s35
    %p44 = scmp.eq.s32.totalorder %s13, 1
    %p45 = por %p43, %p44
    %p46 = scmp.ne.s32.totalorder %s35, %s36
    %p47 = scmp.eq.s32.totalorder %s13, 0
    %p48 = por %p46, %p47
    %p49 = scmp.ne.s32.totalorder %s35, %s36
    %p50 = scmp.eq.s32.totalorder %s14, 1
    %p51 = por %p49, %p50
    %p53 = scmp.ne.s32.totalorder %s36, %s52
    %p54 = scmp.eq.s32.totalorder %s14, 0
    %p55 = por %p53, %p54
    %s56 = ssub.s32 %s16, %s23
    %p57 = scmp.eq.s32.totalorder %s56, 0
    %s59 = sadd.s32 %s58, 1
    %s60 = scalar_select %p57, %s58, %s59
    %p63 = pneg %p57
    %p64 = scmp.eq.s32.totalorder %s8, 1
    %p65 = por %p63, %p64
    %p66 = scmp.ne.s32.totalorder %s58, %s61
    %p67 = scmp.eq.s32.totalorder %s8, 0
    %p68 = por %p66, %p67
    %p69 = scmp.ne.s32.totalorder %s58, %s61
    %p70 = scmp.eq.s32.totalorder %s13, 1
    %p71 = por %p69, %p70
    %p72 = scmp.ne.s32.totalorder %s61, %s62
    %p73 = scmp.eq.s32.totalorder %s13, 0
    %p74 = por %p72, %p73
    %p75 = scmp.ne.s32.totalorder %s61, %s62
    %p76 = scmp.eq.s32.totalorder %s14, 1
    %p77 = por %p75, %p76
    %p79 = scmp.ne.s32.totalorder %s62, %s78
    %p80 = scmp.eq.s32.totalorder %s14, 0
    %p81 = por %p79, %p80
    %s82 = ssub.s32 %s15, %s27
    %p83 = scmp.eq.s32.totalorder %s82, 0
    %s85 = sadd.s32 %s84, 1
    %s86 = scalar_select %p83, %s84, %s85
    %p89 = pneg %p83
    %p90 = scmp.eq.s32.totalorder %s8, 1
    %p91 = por %p89, %p90
    %p92 = scmp.ne.s32.totalorder %s84, %s87
    %p93 = scmp.eq.s32.totalorder %s8, 0
    %p94 = por %p92, %p93
    %p95 = scmp.ne.s32.totalorder %s84, %s87
    %p96 = scmp.eq.s32.totalorder %s13, 1
    %p97 = por %p95, %p96
    %p98 = scmp.ne.s32.totalorder %s87, %s88
    %p99 = scmp.eq.s32.totalorder %s13, 0
    %p100 = por %p98, %p99
    %p101 = scmp.ne.s32.totalorder %s87, %s88
    %p102 = scmp.eq.s32.totalorder %s14, 1
    %p103 = por %p101, %p102
    %p105 = scmp.ne.s32.totalorder %s88, %s104
    %p106 = scmp.eq.s32.totalorder %s14, 0
    %p107 = por %p105, %p106
    %p108 = scmp.le.s32.totalorder 1, %s8
    %p109 = scmp.lt.s32.totalorder %s8, 3
    %p110 = pnand %p108, %p109
    %p111 = pneg %p110
    // Predicated region
    $region9: #{genenet_forward.31} parent=5 // pred_check
      _
    $region10: #{genenet_forward.31} parent=5 // pred_check_branch
      %113 = sbr.rel (%p110) target = $region12
    $region11: #{genenet_forward.31} parent=5 // pred_region
      %s114 = ssub.s32 %s8, 1
      // Predicated region
      $region13: #{genenet_forward.31} parent=11 // pred_check
        %p115 = pneg %p74
      $region14: #{genenet_forward.31} parent=11 // pred_check_branch
        %117 = sbr.rel (%p115) target = $region16
      $region15: #{genenet_forward.31} parent=11 // pred_region
        %s118 = smul.u32 32, %s18
        %p119 = scmp.lt.s32.totalorder %s118, 31
        %s120 = scalar_select %p119, %s118, 31
        %s121 = smul.addr %s120, 4
        %s122 = scalar_lea.vmem %s1, %s121
        %s123 = smul.u32 32, %s18
      $region16: #{genenet_forward.31} parent=11 // pred_fallthru
        _
    $region12: #{genenet_forward.31} parent=5 // pred_fallthru
      _
    %p124 = scmp.lt.s32.totalorder %s8, 2
    // Predicated region
    $region17: #{genenet_forward.31} parent=5 // pred_check
      %p125 = pneg %p124
    $region18: #{genenet_forward.31} parent=5 // pred_check_branch
      %127 = sbr.rel (%p125) target = $region20
    $region19: #{genenet_forward.31} parent=5 // pred_region
      // Predicated region
      $region21: #{genenet_forward.31} parent=19 // pred_check
        %p128 = pneg %p42
      $region22: #{genenet_forward.31} parent=19 // pred_check_branch
        %130 = sbr.rel (%p128) target = $region24
      $region23: #{genenet_forward.31} parent=19 // pred_region
        %s131 = smul.u32 32, %s15
        %s132 = smul.u32 2, %s16
        %p133 = scmp.lt.s32.totalorder %s131, 63
        %s134 = scalar_select %p133, %s131, 63
        %p135 = scmp.lt.s32.totalorder %s132, 1
        %s136 = scalar_select %p135, %s132, 1
        %s137 = smul.addr %s134, 2
        %s138 = sadd.s32 %s136, %s137
        %s139 = smul.addr %s138, 4
        %s140 = scalar_lea.vmem %s0, %s139
        %s141 = smul.u32 32, %s15
        %s142 = smul.u32 2, %s16
      $region24: #{genenet_forward.31} parent=19 // pred_fallthru
        _
    $region20: #{genenet_forward.31} parent=5 // pred_fallthru
      _
    %p143 = scmp.le.s32.totalorder 1, %s8
    %p144 = scmp.lt.s32.totalorder %s8, 3
    %p145 = pnand %p143, %p144
    %p146 = pneg %p145
    // Predicated region
    $region25: #{genenet_forward.31} parent=5 // pred_check
      _
    $region26: #{genenet_forward.31} parent=5 // pred_check_branch
      %148 = sbr.rel (%p145) target = $region28
    $region27: #{genenet_forward.31} parent=5 // pred_region
      %s149 = ssub.s32 %s8, 1
      %s150 = smul.u32 32, %s17
      %s151 = smul.u32 2, %s18
      %p152 = scmp.lt.s32.totalorder %s150, 63
      %s153 = scalar_select %p152, %s150, 63
      %p154 = scmp.lt.s32.totalorder %s151, 1
      %s155 = scalar_select %p154, %s151, 1
      %s156 = smul.addr %s153, 2
      %s157 = sadd.s32 %s155, %s156
      %s158 = smul.addr %s157, 4
      %s159 = scalar_lea.vmem %s0, %s158
      %p160 = pneg %p48
      %p161 = pneg %p45
      %s162 = smul.u32 32, %s18
      %p163 = scmp.lt.s32.totalorder %s162, 31
      %s164 = scalar_select %p163, %s162, 31
      %s165 = smul.addr %s164, 4
      %s166 = scalar_lea.vmem %s1, %s165
      %p167 = pneg %p74
      %p168 = pneg %p71
      %p169 = pneg %p100
      %p170 = pneg %p97
      %s171 = smul.u32 32, %s17
      %p172 = scmp.lt.s32.totalorder %s171, 63
      %s173 = scalar_select %p172, %s171, 63
      %s174 = smul.addr %s173, 4
      %s175 = scalar_lea.vmem %s2, %s174
      %s176 = smul.u32 32, %s17
      %s177 = smul.u32 2, %s18
      %p178 = scmp.lt.s32.totalorder %s176, 63
      %s179 = scalar_select %p178, %s176, 63
      %p180 = scmp.lt.s32.totalorder %s177, 1
      %s181 = scalar_select %p180, %s177, 1
      %s182 = smul.addr %s179, 2
      %s183 = sadd.s32 %s181, %s182
      %s184 = smul.addr %s183, 4
      %s185 = scalar_lea.vmem %s0, %s184
      %s186 = smul.u32 32, %s17
      %s187 = smul.u32 2, %s18
      %s188 = smul.u32 32, %s18
      %p189 = scmp.lt.s32.totalorder %s188, 31
      %s190 = scalar_select %p189, %s188, 31
      %s191 = smul.addr %s190, 4
      %s192 = scalar_lea.vmem %s1, %s191
      %s193 = smul.u32 32, %s18
      %s194 = smul.u32 32, %s17
      %p195 = scmp.lt.s32.totalorder %s194, 63
      %s196 = scalar_select %p195, %s194, 63
      %s197 = smul.addr %s196, 4
      %s198 = scalar_lea.vmem %s2, %s197
      %s199 = smul.u32 32, %s17
      %p201 = scmp.eq.s32.totalorder %s18, 0
      // Predicated region
      $region29: #{genenet_forward.31} parent=27 // pred_check
        %p202 = pneg %p201
      $region30: #{genenet_forward.31} parent=27 // pred_check_branch
        %204 = sbr.rel (%p202) target = $region32
      $region31: #{genenet_forward.31} parent=27 // pred_region
        %205 = vst [vmem:[#allocation2] sm:$0xff] 0.0
        %206 = vst [vmem:[#allocation2 + $0x8] sm:$0xff] 0.0
        %207 = vst [vmem:[#allocation2 + $0x10] sm:$0xff] 0.0
        %208 = vst [vmem:[#allocation2 + $0x18] sm:$0xff] 0.0
        %209 = vst [vmem:[#allocation2 + $0x20] sm:$0xff] 0.0
        %210 = vst [vmem:[#allocation2 + $0x28] sm:$0xff] 0.0
        %211 = vst [vmem:[#allocation2 + $0x30] sm:$0xff] 0.0
        %212 = vst [vmem:[#allocation2 + $0x38] sm:$0xff] 0.0
        %213 = vst [vmem:[#allocation2 + $0x40] sm:$0xff] 0.0
        %214 = vst [vmem:[#allocation2 + $0x48] sm:$0xff] 0.0
        %215 = vst [vmem:[#allocation2 + $0x50] sm:$0xff] 0.0
        %216 = vst [vmem:[#allocation2 + $0x58] sm:$0xff] 0.0
        %217 = vst [vmem:[#allocation2 + $0x60] sm:$0xff] 0.0
        %218 = vst [vmem:[#allocation2 + $0x68] sm:$0xff] 0.0
        %219 = vst [vmem:[#allocation2 + $0x70] sm:$0xff] 0.0
        %220 = vst [vmem:[#allocation2 + $0x78] sm:$0xff] 0.0
        %221 = vst [vmem:[#allocation2 + $0x80] sm:$0xff] 0.0
        %222 = vst [vmem:[#allocation2 + $0x88] sm:$0xff] 0.0
        %223 = vst [vmem:[#allocation2 + $0x90] sm:$0xff] 0.0
        %224 = vst [vmem:[#allocation2 + $0x98] sm:$0xff] 0.0
        %225 = vst [vmem:[#allocation2 + $0xa0] sm:$0xff] 0.0
        %226 = vst [vmem:[#allocation2 + $0xa8] sm:$0xff] 0.0
        %227 = vst [vmem:[#allocation2 + $0xb0] sm:$0xff] 0.0
        %228 = vst [vmem:[#allocation2 + $0xb8] sm:$0xff] 0.0
        %229 = vst [vmem:[#allocation2 + $0xc0] sm:$0xff] 0.0
        %230 = vst [vmem:[#allocation2 + $0xc8] sm:$0xff] 0.0
        %231 = vst [vmem:[#allocation2 + $0xd0] sm:$0xff] 0.0
        %232 = vst [vmem:[#allocation2 + $0xd8] sm:$0xff] 0.0
        %233 = vst [vmem:[#allocation2 + $0xe0] sm:$0xff] 0.0
        %234 = vst [vmem:[#allocation2 + $0xe8] sm:$0xff] 0.0
        %235 = vst [vmem:[#allocation2 + $0xf0] sm:$0xff] 0.0
        %236 = vst [vmem:[#allocation2 + $0xf8] sm:$0xff] 0.0
      $region32: #{genenet_forward.31} parent=27 // pred_fallthru
        _
      %v237 = vld [vmem:[#allocation2] sm:$0xff]
      %v238 = vld [vmem:[#allocation2 + $0x8] sm:$0xff]
      %v239 = vld [vmem:[#allocation2 + $0x10] sm:$0xff]
      %v240 = vld [vmem:[#allocation2 + $0x18] sm:$0xff]
      %v241 = vld [vmem:[#allocation2 + $0x20] sm:$0xff]
      %v242 = vld [vmem:[#allocation2 + $0x28] sm:$0xff]
      %v243 = vld [vmem:[#allocation2 + $0x30] sm:$0xff]
      %v244 = vld [vmem:[#allocation2 + $0x38] sm:$0xff]
      %v245 = vld [vmem:[#allocation2 + $0x40] sm:$0xff]
      %v246 = vld [vmem:[#allocation2 + $0x48] sm:$0xff]
      %v247 = vld [vmem:[#allocation2 + $0x50] sm:$0xff]
      %v248 = vld [vmem:[#allocation2 + $0x58] sm:$0xff]
      %v249 = vld [vmem:[#allocation2 + $0x60] sm:$0xff]
      %v250 = vld [vmem:[#allocation2 + $0x68] sm:$0xff]
      %v251 = vld [vmem:[#allocation2 + $0x70] sm:$0xff]
      %v252 = vld [vmem:[#allocation2 + $0x78] sm:$0xff]
      %v253 = vld [vmem:[#allocation2 + $0x80] sm:$0xff]
      %v254 = vld [vmem:[#allocation2 + $0x88] sm:$0xff]
      %v255 = vld [vmem:[#allocation2 + $0x90] sm:$0xff]
      %v256 = vld [vmem:[#allocation2 + $0x98] sm:$0xff]
      %v257 = vld [vmem:[#allocation2 + $0xa0] sm:$0xff]
      %v258 = vld [vmem:[#allocation2 + $0xa8] sm:$0xff]
      %v259 = vld [vmem:[#allocation2 + $0xb0] sm:$0xff]
      %v260 = vld [vmem:[#allocation2 + $0xb8] sm:$0xff]
      %v261 = vld [vmem:[#allocation2 + $0xc0] sm:$0xff]
      %v262 = vld [vmem:[#allocation2 + $0xc8] sm:$0xff]
      %v263 = vld [vmem:[#allocation2 + $0xd0] sm:$0xff]
      %v264 = vld [vmem:[#allocation2 + $0xd8] sm:$0xff]
      %v265 = vld [vmem:[#allocation2 + $0xe0] sm:$0xff]
      %v266 = vld [vmem:[#allocation2 + $0xe8] sm:$0xff]
      %v267 = vld [vmem:[#allocation2 + $0xf0] sm:$0xff]
      %v268 = vld [vmem:[#allocation2 + $0xf8] sm:$0xff]
      %v269 = vld [vmem:[%s185] sm:$0xff]
      %v270 = vld [vmem:[%s185 + $0x8] sm:$0xff]
      %v271 = vld [vmem:[%s185 + $0x10] sm:$0xff]
      %v272 = vld [vmem:[%s185 + $0x18] sm:$0xff]
      %v273 = vld [vmem:[%s185 + $0x20] sm:$0xff]
      %v274 = vld [vmem:[%s185 + $0x28] sm:$0xff]
      %v275 = vld [vmem:[%s185 + $0x30] sm:$0xff]
      %v276 = vld [vmem:[%s185 + $0x38] sm:$0xff]
      %v277 = vld [vmem:[%s185 + $0x40] sm:$0xff]
      %v278 = vld [vmem:[%s185 + $0x48] sm:$0xff]
      %v279 = vld [vmem:[%s185 + $0x50] sm:$0xff]
      %v280 = vld [vmem:[%s185 + $0x58] sm:$0xff]
      %v281 = vld [vmem:[%s185 + $0x60] sm:$0xff]
      %v282 = vld [vmem:[%s185 + $0x68] sm:$0xff]
      %v283 = vld [vmem:[%s185 + $0x70] sm:$0xff]
      %v284 = vld [vmem:[%s185 + $0x78] sm:$0xff]
      %v285 = vld [vmem:[%s185 + $0x80] sm:$0xff]
      %v286 = vld [vmem:[%s185 + $0x88] sm:$0xff]
      %v287 = vld [vmem:[%s185 + $0x90] sm:$0xff]
      %v288 = vld [vmem:[%s185 + $0x98] sm:$0xff]
      %v289 = vld [vmem:[%s185 + $0xa0] sm:$0xff]
      %v290 = vld [vmem:[%s185 + $0xa8] sm:$0xff]
      %v291 = vld [vmem:[%s185 + $0xb0] sm:$0xff]
      %v292 = vld [vmem:[%s185 + $0xb8] sm:$0xff]
      %v293 = vld [vmem:[%s185 + $0xc0] sm:$0xff]
      %v294 = vld [vmem:[%s185 + $0xc8] sm:$0xff]
      %v295 = vld [vmem:[%s185 + $0xd0] sm:$0xff]
      %v296 = vld [vmem:[%s185 + $0xd8] sm:$0xff]
      %v297 = vld [vmem:[%s185 + $0xe0] sm:$0xff]
      %v298 = vld [vmem:[%s185 + $0xe8] sm:$0xff]
      %v299 = vld [vmem:[%s185 + $0xf0] sm:$0xff]
      %v300 = vld [vmem:[%s185 + $0xf8] sm:$0xff]
      %v301 = vld [vmem:[%s192] sm:$0xf]
      %v302 = vld [vmem:[%s192 + $0x4] sm:$0xf]
      %v303 = vld [vmem:[%s192 + $0x8] sm:$0xf]
      %v304 = vld [vmem:[%s192 + $0xc] sm:$0xf]
      %v305 = vld [vmem:[%s192 + $0x10] sm:$0xf]
      %v306 = vld [vmem:[%s192 + $0x14] sm:$0xf]
      %v307 = vld [vmem:[%s192 + $0x18] sm:$0xf]
      %v308 = vld [vmem:[%s192 + $0x1c] sm:$0xf]
      %v309 = vld [vmem:[%s192 + $0x20] sm:$0xf]
      %v310 = vld [vmem:[%s192 + $0x24] sm:$0xf]
      %v311 = vld [vmem:[%s192 + $0x28] sm:$0xf]
      %v312 = vld [vmem:[%s192 + $0x2c] sm:$0xf]
      %v313 = vld [vmem:[%s192 + $0x30] sm:$0xf]
      %v314 = vld [vmem:[%s192 + $0x34] sm:$0xf]
      %v315 = vld [vmem:[%s192 + $0x38] sm:$0xf]
      %v316 = vld [vmem:[%s192 + $0x3c] sm:$0xf]
      %v317 = vld [vmem:[%s192 + $0x40] sm:$0xf]
      %v318 = vld [vmem:[%s192 + $0x44] sm:$0xf]
      %v319 = vld [vmem:[%s192 + $0x48] sm:$0xf]
      %v320 = vld [vmem:[%s192 + $0x4c] sm:$0xf]
      %v321 = vld [vmem:[%s192 + $0x50] sm:$0xf]
      %v322 = vld [vmem:[%s192 + $0x54] sm:$0xf]
      %v323 = vld [vmem:[%s192 + $0x58] sm:$0xf]
      %v324 = vld [vmem:[%s192 + $0x5c] sm:$0xf]
      %v325 = vld [vmem:[%s192 + $0x60] sm:$0xf]
      %v326 = vld [vmem:[%s192 + $0x64] sm:$0xf]
      %v327 = vld [vmem:[%s192 + $0x68] sm:$0xf]
      %v328 = vld [vmem:[%s192 + $0x6c] sm:$0xf]
      %v329 = vld [vmem:[%s192 + $0x70] sm:$0xf]
      %v330 = vld [vmem:[%s192 + $0x74] sm:$0xf]
      %v331 = vld [vmem:[%s192 + $0x78] sm:$0xf]
      %v332 = vld [vmem:[%s192 + $0x7c] sm:$0xf]
      %v365 = vunpack.c.l.b16 %v269
      %v366 = vunpack.c.h.b16 %v269
      %v367 = vunpack.c.l.b16 %v270
      %v368 = vunpack.c.h.b16 %v270
      %v369 = vunpack.c.l.b16 %v271
      %v370 = vunpack.c.h.b16 %v271
      %v371 = vunpack.c.l.b16 %v272
      %v372 = vunpack.c.h.b16 %v272
      %v373 = vunpack.c.l.b16 %v273
      %v374 = vunpack.c.h.b16 %v273
      %v375 = vunpack.c.l.b16 %v274
      %v376 = vunpack.c.h.b16 %v274
      %v377 = vunpack.c.l.b16 %v275
      %v378 = vunpack.c.h.b16 %v275
      %v379 = vunpack.c.l.b16 %v276
      %v380 = vunpack.c.h.b16 %v276
      %v381 = vunpack.c.l.b16 %v277
      %v382 = vunpack.c.h.b16 %v277
      %v383 = vunpack.c.l.b16 %v278
      %v384 = vunpack.c.h.b16 %v278
      %v385 = vunpack.c.l.b16 %v279
      %v386 = vunpack.c.h.b16 %v279
      %v387 = vunpack.c.l.b16 %v280
      %v388 = vunpack.c.h.b16 %v280
      %v389 = vunpack.c.l.b16 %v281
      %v390 = vunpack.c.h.b16 %v281
      %v391 = vunpack.c.l.b16 %v282
      %v392 = vunpack.c.h.b16 %v282
      %v393 = vunpack.c.l.b16 %v283
      %v394 = vunpack.c.h.b16 %v283
      %v395 = vunpack.c.l.b16 %v284
      %v396 = vunpack.c.h.b16 %v284
      %v397 = vunpack.c.l.b16 %v285
      %v398 = vunpack.c.h.b16 %v285
      %v399 = vunpack.c.l.b16 %v286
      %v400 = vunpack.c.h.b16 %v286
      %v401 = vunpack.c.l.b16 %v287
      %v402 = vunpack.c.h.b16 %v287
      %v403 = vunpack.c.l.b16 %v288
      %v404 = vunpack.c.h.b16 %v288
      %v405 = vunpack.c.l.b16 %v289
      %v406 = vunpack.c.h.b16 %v289
      %v407 = vunpack.c.l.b16 %v290
      %v408 = vunpack.c.h.b16 %v290
      %v409 = vunpack.c.l.b16 %v291
      %v410 = vunpack.c.h.b16 %v291
      %v411 = vunpack.c.l.b16 %v292
      %v412 = vunpack.c.h.b16 %v292
      %v413 = vunpack.c.l.b16 %v293
      %v414 = vunpack.c.h.b16 %v293
      %v415 = vunpack.c.l.b16 %v294
      %v416 = vunpack.c.h.b16 %v294
      %v417 = vunpack.c.l.b16 %v295
      %v418 = vunpack.c.h.b16 %v295
      %v419 = vunpack.c.l.b16 %v296
      %v420 = vunpack.c.h.b16 %v296
      %v421 = vunpack.c.l.b16 %v297
      %v422 = vunpack.c.h.b16 %v297
      %v423 = vunpack.c.l.b16 %v298
      %v424 = vunpack.c.h.b16 %v298
      %v425 = vunpack.c.l.b16 %v299
      %v426 = vunpack.c.h.b16 %v299
      %v427 = vunpack.c.l.b16 %v300
      %v428 = vunpack.c.h.b16 %v300
      %v429 = vpack.c.b16 %v367, %v365
      %v430 = vpack.c.b16 %v368, %v366
      %v431 = vpack.c.b16 %v371, %v369
      %v432 = vpack.c.b16 %v372, %v370
      %v433 = vpack.c.b16 %v375, %v373
      %v434 = vpack.c.b16 %v376, %v374
      %v435 = vpack.c.b16 %v379, %v377
      %v436 = vpack.c.b16 %v380, %v378
      %v437 = vpack.c.b16 %v383, %v381
      %v438 = vpack.c.b16 %v384, %v382
      %v439 = vpack.c.b16 %v387, %v385
      %v440 = vpack.c.b16 %v388, %v386
      %v441 = vpack.c.b16 %v391, %v389
      %v442 = vpack.c.b16 %v392, %v390
      %v443 = vpack.c.b16 %v395, %v393
      %v444 = vpack.c.b16 %v396, %v394
      %v445 = vpack.c.b16 %v399, %v397
      %v446 = vpack.c.b16 %v400, %v398
      %v447 = vpack.c.b16 %v403, %v401
      %v448 = vpack.c.b16 %v404, %v402
      %v449 = vpack.c.b16 %v407, %v405
      %v450 = vpack.c.b16 %v408, %v406
      %v451 = vpack.c.b16 %v411, %v409
      %v452 = vpack.c.b16 %v412, %v410
      %v453 = vpack.c.b16 %v415, %v413
      %v454 = vpack.c.b16 %v416, %v414
      %v455 = vpack.c.b16 %v419, %v417
      %v456 = vpack.c.b16 %v420, %v418
      %v457 = vpack.c.b16 %v423, %v421
      %v458 = vpack.c.b16 %v424, %v422
      %v459 = vpack.c.b16 %v427, %v425
      %v460 = vpack.c.b16 %v428, %v426
      %v525 = vunpack.c.l.b16 %v301
      %v526 = vunpack.c.l.b16 %v302
      %v527 = vunpack.c.l.b16 %v303
      %v528 = vunpack.c.l.b16 %v304
      %v529 = vunpack.c.l.b16 %v305
      %v530 = vunpack.c.l.b16 %v306
      %v531 = vunpack.c.l.b16 %v307
      %v532 = vunpack.c.l.b16 %v308
      %v533 = vunpack.c.l.b16 %v309
      %v534 = vunpack.c.l.b16 %v310
      %v535 = vunpack.c.l.b16 %v311
      %v536 = vunpack.c.l.b16 %v312
      %v537 = vunpack.c.l.b16 %v313
      %v538 = vunpack.c.l.b16 %v314
      %v539 = vunpack.c.l.b16 %v315
      %v540 = vunpack.c.l.b16 %v316
      %v541 = vunpack.c.l.b16 %v317
      %v542 = vunpack.c.l.b16 %v318
      %v543 = vunpack.c.l.b16 %v319
      %v544 = vunpack.c.l.b16 %v320
      %v545 = vunpack.c.l.b16 %v321
      %v546 = vunpack.c.l.b16 %v322
      %v547 = vunpack.c.l.b16 %v323
      %v548 = vunpack.c.l.b16 %v324
      %v549 = vunpack.c.l.b16 %v325
      %v550 = vunpack.c.l.b16 %v326
      %v551 = vunpack.c.l.b16 %v327
      %v552 = vunpack.c.l.b16 %v328
      %v553 = vunpack.c.l.b16 %v329
      %v554 = vunpack.c.l.b16 %v330
      %v555 = vunpack.c.l.b16 %v331
      %v556 = vunpack.c.l.b16 %v332
      %v557 = vpack.c.b16 %v526, %v525
      %v558 = vpack.c.b16 %v528, %v527
      %v559 = vpack.c.b16 %v530, %v529
      %v560 = vpack.c.b16 %v532, %v531
      %v561 = vpack.c.b16 %v534, %v533
      %v562 = vpack.c.b16 %v536, %v535
      %v563 = vpack.c.b16 %v538, %v537
      %v564 = vpack.c.b16 %v540, %v539
      %v565 = vpack.c.b16 %v542, %v541
      %v566 = vpack.c.b16 %v544, %v543
      %v567 = vpack.c.b16 %v546, %v545
      %v568 = vpack.c.b16 %v548, %v547
      %v569 = vpack.c.b16 %v550, %v549
      %v570 = vpack.c.b16 %v552, %v551
      %v571 = vpack.c.b16 %v554, %v553
      %v572 = vpack.c.b16 %v556, %v555
      %589 = vmatprep.subr.bf16.mxu0 0
      %590 = vmatpush1.bf16.msra.mxu0 %v557
      %591 = vmatprep.subr.bf16.mxu0 0
      %592 = vmatpush1.bf16.msra.mxu0 %v558
      %593 = vmatprep.subr.bf16.mxu0 0
      %594 = vmatpush1.bf16.msra.mxu0 %v559
      %595 = vmatprep.subr.bf16.mxu0 0
      %596 = vmatpush1.bf16.msra.mxu0 %v560
      %597 = vmatprep.subr.bf16.mxu0 0
      %598 = vmatpush1.bf16.msra.mxu0 %v561
      %599 = vmatprep.subr.bf16.mxu0 0
      %600 = vmatpush1.bf16.msra.mxu0 %v562
      %601 = vmatprep.subr.bf16.mxu0 0
      %602 = vmatpush1.bf16.msra.mxu0 %v563
      %603 = vmatprep.subr.bf16.mxu0 0
      %604 = vmatpush1.bf16.msra.mxu0 %v564
      %605 = vmatprep.subr.bf16.mxu0 0
      %606 = vmatpush1.bf16.msra.mxu0 %v565
      %607 = vmatprep.subr.bf16.mxu0 0
      %608 = vmatpush1.bf16.msra.mxu0 %v566
      %609 = vmatprep.subr.bf16.mxu0 0
      %610 = vmatpush1.bf16.msra.mxu0 %v567
      %611 = vmatprep.subr.bf16.mxu0 0
      %612 = vmatpush1.bf16.msra.mxu0 %v568
      %613 = vmatprep.subr.bf16.mxu0 0
      %614 = vmatpush1.bf16.msra.mxu0 %v569
      %615 = vmatprep.subr.bf16.mxu0 0
      %616 = vmatpush1.bf16.msra.mxu0 %v570
      %617 = vmatprep.subr.bf16.mxu0 0
      %618 = vmatpush1.bf16.msra.mxu0 %v571
      %619 = vmatprep.subr.bf16.mxu0 0
      %620 = vmatpush1.bf16.msra.mxu0 %v572
      %621 = vmatprep.mubr.bf16.mxu0 %v430
      %622 = vmatmul.mubr.bf16.gmra.mrb[0].mxu0 %v429
      %v623 = vpop.f32.mrb[0].mxu0
      %v624 = vadd.f32 0.0, %v623
      %v625 = vpop.f32.mrb[0].mxu0
      %v626 = vpop.f32.mrb[0].mxu0
      %v627 = vadd.f32 0.0, %v626
      %v628 = vpop.f32.mrb[0].mxu0
      %629 = vmatprep.mubr.bf16.mxu0 %v432
      %630 = vmatmul.mubr.bf16.gmra.mrb[0].mxu0 %v431
      %v631 = vpop.f32.mrb[0].mxu0
      %v632 = vadd.f32 0.0, %v631
      %v633 = vpop.f32.mrb[0].mxu0
      %v634 = vpop.f32.mrb[0].mxu0
      %v635 = vadd.f32 0.0, %v634
      %v636 = vpop.f32.mrb[0].mxu0
      %637 = vmatprep.mubr.bf16.mxu0 %v434
      %638 = vmatmul.mubr.bf16.gmra.mrb[0].mxu0 %v433
      %v639 = vpop.f32.mrb[0].mxu0
      %v640 = vadd.f32 0.0, %v639
      %v641 = vpop.f32.mrb[0].mxu0
      %v642 = vpop.f32.mrb[0].mxu0
      %v643 = vadd.f32 0.0, %v642
      %v644 = vpop.f32.mrb[0].mxu0
      %645 = vmatprep.mubr.bf16.mxu0 %v436
      %646 = vmatmul.mubr.bf16.gmra.mrb[0].mxu0 %v435
      %v647 = vpop.f32.mrb[0].mxu0
      %v648 = vadd.f32 0.0, %v647
      %v649 = vpop.f32.mrb[0].mxu0
      %v650 = vpop.f32.mrb[0].mxu0
      %v651 = vadd.f32 0.0, %v650
      %v652 = vpop.f32.mrb[0].mxu0
      %653 = vmatprep.mubr.bf16.mxu0 %v438
      %654 = vmatmul.mubr.bf16.gmra.mrb[0].mxu0 %v437
      %v655 = vpop.f32.mrb[0].mxu0
      %v656 = vadd.f32 0.0, %v655
      %v657 = vpop.f32.mrb[0].mxu0
      %v658 = vpop.f32.mrb[0].mxu0
      %v659 = vadd.f32 0.0, %v658
      %v660 = vpop.f32.mrb[0].mxu0
      %661 = vmatprep.mubr.bf16.mxu0 %v440
      %662 = vmatmul.mubr.bf16.gmra.mrb[0].mxu0 %v439
      %v663 = vpop.f32.mrb[0].mxu0
      %v664 = vadd.f32 0.0, %v663
      %v665 = vpop.f32.mrb[0].mxu0
      %v666 = vpop.f32.mrb[0].mxu0
      %v667 = vadd.f32 0.0, %v666
      %v668 = vpop.f32.mrb[0].mxu0
      %669 = vmatprep.mubr.bf16.mxu0 %v442
      %670 = vmatmul.mubr.bf16.gmra.mrb[0].mxu0 %v441
      %v671 = vpop.f32.mrb[0].mxu0
      %v672 = vadd.f32 0.0, %v671
      %v673 = vpop.f32.mrb[0].mxu0
      %v674 = vpop.f32.mrb[0].mxu0
      %v675 = vadd.f32 0.0, %v674
      %v676 = vpop.f32.mrb[0].mxu0
      %677 = vmatprep.mubr.bf16.mxu0 %v444
      %678 = vmatmul.mubr.bf16.gmra.mrb[0].mxu0 %v443
      %v679 = vpop.f32.mrb[0].mxu0
      %v680 = vadd.f32 0.0, %v679
      %v681 = vpop.f32.mrb[0].mxu0
      %v682 = vpop.f32.mrb[0].mxu0
      %v683 = vadd.f32 0.0, %v682
      %v684 = vpop.f32.mrb[0].mxu0
      %685 = vmatprep.mubr.bf16.mxu0 %v446
      %686 = vmatmul.mubr.bf16.gmra.mrb[0].mxu0 %v445
      %v687 = vpop.f32.mrb[0].mxu0
      %v688 = vadd.f32 0.0, %v687
      %v689 = vpop.f32.mrb[0].mxu0
      %v690 = vpop.f32.mrb[0].mxu0
      %v691 = vadd.f32 0.0, %v690
      %v692 = vpop.f32.mrb[0].mxu0
      %693 = vmatprep.mubr.bf16.mxu0 %v448
      %694 = vmatmul.mubr.bf16.gmra.mrb[0].mxu0 %v447
      %v695 = vpop.f32.mrb[0].mxu0
      %v696 = vadd.f32 0.0, %v695
      %v697 = vpop.f32.mrb[0].mxu0
      %v698 = vpop.f32.mrb[0].mxu0
      %v699 = vadd.f32 0.0, %v698
      %v700 = vpop.f32.mrb[0].mxu0
      %701 = vmatprep.mubr.bf16.mxu0 %v450
      %702 = vmatmul.mubr.bf16.gmra.mrb[0].mxu0 %v449
      %v703 = vpop.f32.mrb[0].mxu0
      %v704 = vadd.f32 0.0, %v703
      %v705 = vpop.f32.mrb[0].mxu0
      %v706 = vpop.f32.mrb[0].mxu0
      %v707 = vadd.f32 0.0, %v706
      %v708 = vpop.f32.mrb[0].mxu0
      %709 = vmatprep.mubr.bf16.mxu0 %v452
      %710 = vmatmul.mubr.bf16.gmra.mrb[0].mxu0 %v451
      %v711 = vpop.f32.mrb[0].mxu0
      %v712 = vadd.f32 0.0, %v711
      %v713 = vpop.f32.mrb[0].mxu0
      %v714 = vpop.f32.mrb[0].mxu0
      %v715 = vadd.f32 0.0, %v714
      %v716 = vpop.f32.mrb[0].mxu0
      %717 = vmatprep.mubr.bf16.mxu0 %v454
      %718 = vmatmul.mubr.bf16.gmra.mrb[0].mxu0 %v453
      %v719 = vpop.f32.mrb[0].mxu0
      %v720 = vadd.f32 0.0, %v719
      %v721 = vpop.f32.mrb[0].mxu0
      %v722 = vpop.f32.mrb[0].mxu0
      %v723 = vadd.f32 0.0, %v722
      %v724 = vpop.f32.mrb[0].mxu0
      %725 = vmatprep.mubr.bf16.mxu0 %v456
      %726 = vmatmul.mubr.bf16.gmra.mrb[0].mxu0 %v455
      %v727 = vpop.f32.mrb[0].mxu0
      %v728 = vadd.f32 0.0, %v727
      %v729 = vpop.f32.mrb[0].mxu0
      %v730 = vpop.f32.mrb[0].mxu0
      %v731 = vadd.f32 0.0, %v730
      %v732 = vpop.f32.mrb[0].mxu0
      %733 = vmatprep.mubr.bf16.mxu0 %v458
      %734 = vmatmul.mubr.bf16.gmra.mrb[0].mxu0 %v457
      %v735 = vpop.f32.mrb[0].mxu0
      %v736 = vadd.f32 0.0, %v735
      %v737 = vpop.f32.mrb[0].mxu0
      %v738 = vpop.f32.mrb[0].mxu0
      %v739 = vadd.f32 0.0, %v738
      %v740 = vpop.f32.mrb[0].mxu0
      %741 = vmatprep.mubr.bf16.mxu0 %v460
      %742 = vmatmul.mubr.bf16.gmra.mrb[0].mxu0 %v459
      %v743 = vpop.f32.mrb[0].mxu0
      %v744 = vadd.f32 0.0, %v743
      %v745 = vpop.f32.mrb[0].mxu0
      %v746 = vpop.f32.mrb[0].mxu0
      %v747 = vadd.f32 0.0, %v746
      %v748 = vpop.f32.mrb[0].mxu0
      %749 = vdwg.mxu0
      %v750 = vadd.f32 %v237, %v624
      %v751 = vadd.f32 %v238, %v627
      %v752 = vadd.f32 %v239, %v632
      %v753 = vadd.f32 %v240, %v635
      %v754 = vadd.f32 %v241, %v640
      %v755 = vadd.f32 %v242, %v643
      %v756 = vadd.f32 %v243, %v648
      %v757 = vadd.f32 %v244, %v651
      %v758 = vadd.f32 %v245, %v656
      %v759 = vadd.f32 %v246, %v659
      %v760 = vadd.f32 %v247, %v664
      %v761 = vadd.f32 %v248, %v667
      %v762 = vadd.f32 %v249, %v672
      %v763 = vadd.f32 %v250, %v675
      %v764 = vadd.f32 %v251, %v680
      %v765 = vadd.f32 %v252, %v683
      %v766 = vadd.f32 %v253, %v688
      %v767 = vadd.f32 %v254, %v691
      %v768 = vadd.f32 %v255, %v696
      %v769 = vadd.f32 %v256, %v699
      %v770 = vadd.f32 %v257, %v704
      %v771 = vadd.f32 %v258, %v707
      %v772 = vadd.f32 %v259, %v712
      %v773 = vadd.f32 %v260, %v715
      %v774 = vadd.f32 %v261, %v720
      %v775 = vadd.f32 %v262, %v723
      %v776 = vadd.f32 %v263, %v728
      %v777 = vadd.f32 %v264, %v731
      %v778 = vadd.f32 %v265, %v736
      %v779 = vadd.f32 %v266, %v739
      %v780 = vadd.f32 %v267, %v744
      %v781 = vadd.f32 %v268, %v747
      %782 = vst [vmem:[#allocation2] sm:$0xff] %v750
      %783 = vst [vmem:[#allocation2 + $0x8] sm:$0xff] %v751
      %784 = vst [vmem:[#allocation2 + $0x10] sm:$0xff] %v752
      %785 = vst [vmem:[#allocation2 + $0x18] sm:$0xff] %v753
      %786 = vst [vmem:[#allocation2 + $0x20] sm:$0xff] %v754
      %787 = vst [vmem:[#allocation2 + $0x28] sm:$0xff] %v755
      %788 = vst [vmem:[#allocation2 + $0x30] sm:$0xff] %v756
      %789 = vst [vmem:[#allocation2 + $0x38] sm:$0xff] %v757
      %790 = vst [vmem:[#allocation2 + $0x40] sm:$0xff] %v758
      %791 = vst [vmem:[#allocation2 + $0x48] sm:$0xff] %v759
      %792 = vst [vmem:[#allocation2 + $0x50] sm:$0xff] %v760
      %793 = vst [vmem:[#allocation2 + $0x58] sm:$0xff] %v761
      %794 = vst [vmem:[#allocation2 + $0x60] sm:$0xff] %v762
      %795 = vst [vmem:[#allocation2 + $0x68] sm:$0xff] %v763
      %796 = vst [vmem:[#allocation2 + $0x70] sm:$0xff] %v764
      %797 = vst [vmem:[#allocation2 + $0x78] sm:$0xff] %v765
      %798 = vst [vmem:[#allocation2 + $0x80] sm:$0xff] %v766
      %799 = vst [vmem:[#allocation2 + $0x88] sm:$0xff] %v767
      %800 = vst [vmem:[#allocation2 + $0x90] sm:$0xff] %v768
      %801 = vst [vmem:[#allocation2 + $0x98] sm:$0xff] %v769
      %802 = vst [vmem:[#allocation2 + $0xa0] sm:$0xff] %v770
      %803 = vst [vmem:[#allocation2 + $0xa8] sm:$0xff] %v771
      %804 = vst [vmem:[#allocation2 + $0xb0] sm:$0xff] %v772
      %805 = vst [vmem:[#allocation2 + $0xb8] sm:$0xff] %v773
      %806 = vst [vmem:[#allocation2 + $0xc0] sm:$0xff] %v774
      %807 = vst [vmem:[#allocation2 + $0xc8] sm:$0xff] %v775
      %808 = vst [vmem:[#allocation2 + $0xd0] sm:$0xff] %v776
      %809 = vst [vmem:[#allocation2 + $0xd8] sm:$0xff] %v777
      %810 = vst [vmem:[#allocation2 + $0xe0] sm:$0xff] %v778
      %811 = vst [vmem:[#allocation2 + $0xe8] sm:$0xff] %v779
      %812 = vst [vmem:[#allocation2 + $0xf0] sm:$0xff] %v780
      %813 = vst [vmem:[#allocation2 + $0xf8] sm:$0xff] %v781
      // Predicated region
      $region33: #{genenet_forward.31} parent=27 // pred_check
        %p814 = pneg %p201
      $region34: #{genenet_forward.31} parent=27 // pred_check_branch
        %816 = sbr.rel (%p814) target = $region36
      $region35: #{genenet_forward.31} parent=27 // pred_region
        %v817 = vld [vmem:[#allocation2] sm:$0xff]
        %v818 = vld [vmem:[#allocation2 + $0x8] sm:$0xff]
        %v819 = vld [vmem:[#allocation2 + $0x10] sm:$0xff]
        %v820 = vld [vmem:[#allocation2 + $0x18] sm:$0xff]
        %v821 = vld [vmem:[#allocation2 + $0x20] sm:$0xff]
        %v822 = vld [vmem:[#allocation2 + $0x28] sm:$0xff]
        %v823 = vld [vmem:[#allocation2 + $0x30] sm:$0xff]
        %v824 = vld [vmem:[#allocation2 + $0x38] sm:$0xff]
        %v825 = vld [vmem:[#allocation2 + $0x40] sm:$0xff]
        %v826 = vld [vmem:[#allocation2 + $0x48] sm:$0xff]
        %v827 = vld [vmem:[#allocation2 + $0x50] sm:$0xff]
        %v828 = vld [vmem:[#allocation2 + $0x58] sm:$0xff]
        %v829 = vld [vmem:[#allocation2 + $0x60] sm:$0xff]
        %v830 = vld [vmem:[#allocation2 + $0x68] sm:$0xff]
        %v831 = vld [vmem:[#allocation2 + $0x70] sm:$0xff]
        %v832 = vld [vmem:[#allocation2 + $0x78] sm:$0xff]
        %v833 = vld [vmem:[#allocation2 + $0x80] sm:$0xff]
        %v834 = vld [vmem:[#allocation2 + $0x88] sm:$0xff]
        %v835 = vld [vmem:[#allocation2 + $0x90] sm:$0xff]
        %v836 = vld [vmem:[#allocation2 + $0x98] sm:$0xff]
        %v837 = vld [vmem:[#allocation2 + $0xa0] sm:$0xff]
        %v838 = vld [vmem:[#allocation2 + $0xa8] sm:$0xff]
        %v839 = vld [vmem:[#allocation2 + $0xb0] sm:$0xff]
        %v840 = vld [vmem:[#allocation2 + $0xb8] sm:$0xff]
        %v841 = vld [vmem:[#allocation2 + $0xc0] sm:$0xff]
        %v842 = vld [vmem:[#allocation2 + $0xc8] sm:$0xff]
        %v843 = vld [vmem:[#allocation2 + $0xd0] sm:$0xff]
        %v844 = vld [vmem:[#allocation2 + $0xd8] sm:$0xff]
        %v845 = vld [vmem:[#allocation2 + $0xe0] sm:$0xff]
        %v846 = vld [vmem:[#allocation2 + $0xe8] sm:$0xff]
        %v847 = vld [vmem:[#allocation2 + $0xf0] sm:$0xff]
        %v848 = vld [vmem:[#allocation2 + $0xf8] sm:$0xff]
        %v849 = vpack.c.bf16 %v818, %v817
        %v850 = vpack.c.bf16 %v820, %v819
        %v851 = vpack.c.bf16 %v822, %v821
        %v852 = vpack.c.bf16 %v824, %v823
        %v853 = vpack.c.bf16 %v826, %v825
        %v854 = vpack.c.bf16 %v828, %v827
        %v855 = vpack.c.bf16 %v830, %v829
        %v856 = vpack.c.bf16 %v832, %v831
        %v857 = vpack.c.bf16 %v834, %v833
        %v858 = vpack.c.bf16 %v836, %v835
        %v859 = vpack.c.bf16 %v838, %v837
        %v860 = vpack.c.bf16 %v840, %v839
        %v861 = vpack.c.bf16 %v842, %v841
        %v862 = vpack.c.bf16 %v844, %v843
        %v863 = vpack.c.bf16 %v846, %v845
        %v864 = vpack.c.bf16 %v848, %v847
        %v881 = vunpack.c.l.b16 %v849
        %v882 = vunpack.c.h.b16 %v849
        %v883 = vunpack.c.l.b16 %v850
        %v884 = vunpack.c.h.b16 %v850
        %v885 = vunpack.c.l.b16 %v851
        %v886 = vunpack.c.h.b16 %v851
        %v887 = vunpack.c.l.b16 %v852
        %v888 = vunpack.c.h.b16 %v852
        %v889 = vunpack.c.l.b16 %v853
        %v890 = vunpack.c.h.b16 %v853
        %v891 = vunpack.c.l.b16 %v854
        %v892 = vunpack.c.h.b16 %v854
        %v893 = vunpack.c.l.b16 %v855
        %v894 = vunpack.c.h.b16 %v855
        %v895 = vunpack.c.l.b16 %v856
        %v896 = vunpack.c.h.b16 %v856
        %v897 = vunpack.c.l.b16 %v857
        %v898 = vunpack.c.h.b16 %v857
        %v899 = vunpack.c.l.b16 %v858
        %v900 = vunpack.c.h.b16 %v858
        %v901 = vunpack.c.l.b16 %v859
        %v902 = vunpack.c.h.b16 %v859
        %v903 = vunpack.c.l.b16 %v860
        %v904 = vunpack.c.h.b16 %v860
        %v905 = vunpack.c.l.b16 %v861
        %v906 = vunpack.c.h.b16 %v861
        %v907 = vunpack.c.l.b16 %v862
        %v908 = vunpack.c.h.b16 %v862
        %v909 = vunpack.c.l.b16 %v863
        %v910 = vunpack.c.h.b16 %v863
        %v911 = vunpack.c.l.b16 %v864
        %v912 = vunpack.c.h.b16 %v864
        %v913 = vpack.c.b16 %v881, %v881
        %v914 = vpack.c.b16 %v882, %v882
        %v915 = vpack.c.b16 %v883, %v883
        %v916 = vpack.c.b16 %v884, %v884
        %v917 = vpack.c.b16 %v885, %v885
        %v918 = vpack.c.b16 %v886, %v886
        %v919 = vpack.c.b16 %v887, %v887
        %v920 = vpack.c.b16 %v888, %v888
        %v921 = vpack.c.b16 %v889, %v889
        %v922 = vpack.c.b16 %v890, %v890
        %v923 = vpack.c.b16 %v891, %v891
        %v924 = vpack.c.b16 %v892, %v892
        %v925 = vpack.c.b16 %v893, %v893
        %v926 = vpack.c.b16 %v894, %v894
        %v927 = vpack.c.b16 %v895, %v895
        %v928 = vpack.c.b16 %v896, %v896
        %v929 = vpack.c.b16 %v897, %v897
        %v930 = vpack.c.b16 %v898, %v898
        %v931 = vpack.c.b16 %v899, %v899
        %v932 = vpack.c.b16 %v900, %v900
        %v933 = vpack.c.b16 %v901, %v901
        %v934 = vpack.c.b16 %v902, %v902
        %v935 = vpack.c.b16 %v903, %v903
        %v936 = vpack.c.b16 %v904, %v904
        %v937 = vpack.c.b16 %v905, %v905
        %v938 = vpack.c.b16 %v906, %v906
        %v939 = vpack.c.b16 %v907, %v907
        %v940 = vpack.c.b16 %v908, %v908
        %v941 = vpack.c.b16 %v909, %v909
        %v942 = vpack.c.b16 %v910, %v910
        %v943 = vpack.c.b16 %v911, %v911
        %v944 = vpack.c.b16 %v912, %v912
        %977 = vst [vmem:[%s198] sm:$0xf] %v913
        %978 = vst [vmem:[%s198 + $0x4] sm:$0xf] %v914
        %979 = vst [vmem:[%s198 + $0x8] sm:$0xf] %v915
        %980 = vst [vmem:[%s198 + $0xc] sm:$0xf] %v916
        %981 = vst [vmem:[%s198 + $0x10] sm:$0xf] %v917
        %982 = vst [vmem:[%s198 + $0x14] sm:$0xf] %v918
        %983 = vst [vmem:[%s198 + $0x18] sm:$0xf] %v919
        %984 = vst [vmem:[%s198 + $0x1c] sm:$0xf] %v920
        %985 = vst [vmem:[%s198 + $0x20] sm:$0xf] %v921
        %986 = vst [vmem:[%s198 + $0x24] sm:$0xf] %v922
        %987 = vst [vmem:[%s198 + $0x28] sm:$0xf] %v923
        %988 = vst [vmem:[%s198 + $0x2c] sm:$0xf] %v924
        %989 = vst [vmem:[%s198 + $0x30] sm:$0xf] %v925
        %990 = vst [vmem:[%s198 + $0x34] sm:$0xf] %v926
        %991 = vst [vmem:[%s198 + $0x38] sm:$0xf] %v927
        %992 = vst [vmem:[%s198 + $0x3c] sm:$0xf] %v928
        %993 = vst [vmem:[%s198 + $0x40] sm:$0xf] %v929
        %994 = vst [vmem:[%s198 + $0x44] sm:$0xf] %v930
        %995 = vst [vmem:[%s198 + $0x48] sm:$0xf] %v931
        %996 = vst [vmem:[%s198 + $0x4c] sm:$0xf] %v932
        %997 = vst [vmem:[%s198 + $0x50] sm:$0xf] %v933
        %998 = vst [vmem:[%s198 + $0x54] sm:$0xf] %v934
        %999 = vst [vmem:[%s198 + $0x58] sm:$0xf] %v935
        %1000 = vst [vmem:[%s198 + $0x5c] sm:$0xf] %v936
        %1001 = vst [vmem:[%s198 + $0x60] sm:$0xf] %v937
        %1002 = vst [vmem:[%s198 + $0x64] sm:$0xf] %v938
        %1003 = vst [vmem:[%s198 + $0x68] sm:$0xf] %v939
        %1004 = vst [vmem:[%s198 + $0x6c] sm:$0xf] %v940
        %1005 = vst [vmem:[%s198 + $0x70] sm:$0xf] %v941
        %1006 = vst [vmem:[%s198 + $0x74] sm:$0xf] %v942
        %1007 = vst [vmem:[%s198 + $0x78] sm:$0xf] %v943
        %1008 = vst [vmem:[%s198 + $0x7c] sm:$0xf] %v944
      $region36: #{genenet_forward.31} parent=27 // pred_fallthru
        _
      %s1009 = smul.u32 32, %s17
      %p1010 = scmp.lt.s32.totalorder %s1009, 63
      %s1011 = scalar_select %p1010, %s1009, 63
      %s1012 = smul.addr %s1011, 4
      %s1013 = scalar_lea.vmem %s2, %s1012
      // Predicated region
      $region37: #{genenet_forward.31} parent=27 // pred_check
        %p1014 = pneg %p97
      $region38: #{genenet_forward.31} parent=27 // pred_check_branch
        %1016 = sbr.rel (%p1014) target = $region40
      $region39: #{genenet_forward.31} parent=27 // pred_region
        %s1017 = smul.u32 32, %s17
      $region40: #{genenet_forward.31} parent=27 // pred_fallthru
        _
    $region28: #{genenet_forward.31} parent=5 // pred_fallthru
      _
    %p1018 = scmp.le.s32.totalorder 2, %s8
    // Predicated region
    $region41: #{genenet_forward.31} parent=5 // pred_check
      %p1019 = pneg %p1018
    $region42: #{genenet_forward.31} parent=5 // pred_check_branch
      %1021 = sbr.rel (%p1019) target = $region44
    $region43: #{genenet_forward.31} parent=5 // pred_region
      %s1022 = ssub.s32 %s8, 2
      // Predicated region
      $region45: #{genenet_forward.31} parent=43 // pred_check
        %p1023 = pneg %p103
      $region46: #{genenet_forward.31} parent=43 // pred_check_branch
        %1025 = sbr.rel (%p1023) target = $region48
      $region47: #{genenet_forward.31} parent=43 // pred_region
        %s1026 = smul.u32 32, %s19
        %p1027 = scmp.lt.s32.totalorder %s1026, 63
        %s1028 = scalar_select %p1027, %s1026, 63
        %s1029 = smul.addr %s1028, 4
        %s1030 = scalar_lea.vmem %s2, %s1029
      $region48: #{genenet_forward.31} parent=43 // pred_fallthru
        _
    $region44: #{genenet_forward.31} parent=5 // pred_fallthru
      _
  $region6: #{genenet_forward.31} parent=0 // loop_footer
    %s12 = sadd.s32 1, %s8
  $region7: #{genenet_forward.31} parent=0 // loop_footer_branch
    %7 = sbr.rel target = $region3
  $region8: #{genenet_forward.31} parent=0 // loop_exit
    _

// kernel: genenet_forward.34
$region0: #{genenet_forward.34}
  #allocation0 [shape = 'u32[]', space=smem, size = 0x4, offset = 0x4, fixed_abs, tag = 'smem constant byte address 0x4 - core index']
  #allocation1 [shape = 'u32[144,128]{1,0:T(1,128)}', space=vmem, size = 0x12000, scoped, tag = 'internal scratch']
  %s0 = inlined_call_operand.vmem [shape: bf16[2,64,64], index: 0, kind: input, shape index: {}]
  %s1 = inlined_call_operand.vmem [shape: f32[1,1,64], index: 1, kind: input, shape index: {}]
  %s2 = inlined_call_operand.vmem [shape: f32[1,1,64], index: 2, kind: input, shape index: {}]
  %s3 = inlined_call_operand.vmem [shape: bf16[2,64,64], index: 3, kind: output, shape index: {}]
  %s4 = sld [smem:[#allocation0]]
  $region45: #{genenet_forward.34} parent=0
    _
  %s6 = ssub.s32 1, %s4
  %s7 = scalar_select 0, %s6, %s4
  loop: start=0, step=1, limit=4
  $region2: #{genenet_forward.34} parent=0 // loop_pre_header
    _
  $region3: #{genenet_forward.34} parent=0 // loop_header
    %s9 = sphi 0, %s13
    %p10 = scmp.ge.s32.totalorder %s9, 4
    %s19 = sphi 0, %s21
    %s22 = sphi 0, %s19
    %s23 = sphi 0, %s22
    %s39 = sphi 0, %s23
    %s43 = sphi 0, %s43
    %s45 = sphi 0, %s43
    %s46 = sphi 0, %s45
    %s60 = sphi 0, %s46
    %s64 = sphi 0, %s64
    %s66 = sphi 0, %s64
    %s67 = sphi 0, %s66
    %s81 = sphi 0, %s67
    %s87 = sphi 0, %s89
    %s90 = sphi 0, %s87
    %s91 = sphi 0, %s90
    %s107 = sphi 0, %s91
  $region4: #{genenet_forward.34} parent=0 // loop_header_branch
    %12 = sbr.rel (%p10) target = $region8
  $region5: #{genenet_forward.34} parent=0 // loop_body
    %s14 = ssub.s32 %s9, 1
    %s15 = ssub.s32 %s9, 2
    %s16 = sadd.s32 %s9, 1
    %s17 = ssub.s32 %s9, %s16
    %p18 = scmp.eq.s32.totalorder %s17, 0
    %s20 = sadd.s32 %s19, 1
    %s21 = scalar_select %p18, %s19, %s20
    %p24 = pneg %p18
    %p25 = scmp.eq.s32.totalorder %s9, 1
    %p26 = por %p24, %p25
    %p27 = scmp.ne.s32.totalorder %s19, %s22
    %p28 = scmp.eq.s32.totalorder %s9, 0
    %p29 = por %p27, %p28
    %p30 = scmp.ne.s32.totalorder %s19, %s22
    %p31 = scmp.eq.s32.totalorder %s14, 1
    %p32 = por %p30, %p31
    %p33 = scmp.ne.s32.totalorder %s22, %s23
    %p34 = scmp.eq.s32.totalorder %s14, 0
    %p35 = por %p33, %p34
    %p36 = scmp.ne.s32.totalorder %s22, %s23
    %p37 = scmp.eq.s32.totalorder %s15, 1
    %p38 = por %p36, %p37
    %p40 = scmp.ne.s32.totalorder %s23, %s39
    %p41 = scmp.eq.s32.totalorder %s15, 0
    %p42 = por %p40, %p41
    %s44 = sadd.s32 %s43, 1
    %p47 = scmp.eq.s32.totalorder %s9, 1
    %p48 = scmp.ne.s32.totalorder %s43, %s45
    %p49 = scmp.eq.s32.totalorder %s9, 0
    %p50 = por %p48, %p49
    %p51 = scmp.ne.s32.totalorder %s43, %s45
    %p52 = scmp.eq.s32.totalorder %s14, 1
    %p53 = por %p51, %p52
    %p54 = scmp.ne.s32.totalorder %s45, %s46
    %p55 = scmp.eq.s32.totalorder %s14, 0
    %p56 = por %p54, %p55
    %p57 = scmp.ne.s32.totalorder %s45, %s46
    %p58 = scmp.eq.s32.totalorder %s15, 1
    %p59 = por %p57, %p58
    %p61 = scmp.ne.s32.totalorder %s46, %s60
    %p62 = scmp.eq.s32.totalorder %s15, 0
    %p63 = por %p61, %p62
    %s65 = sadd.s32 %s64, 1
    %p68 = scmp.eq.s32.totalorder %s9, 1
    %p69 = scmp.ne.s32.totalorder %s64, %s66
    %p70 = scmp.eq.s32.totalorder %s9, 0
    %p71 = por %p69, %p70
    %p72 = scmp.ne.s32.totalorder %s64, %s66
    %p73 = scmp.eq.s32.totalorder %s14, 1
    %p74 = por %p72, %p73
    %p75 = scmp.ne.s32.totalorder %s66, %s67
    %p76 = scmp.eq.s32.totalorder %s14, 0
    %p77 = por %p75, %p76
    %p78 = scmp.ne.s32.totalorder %s66, %s67
    %p79 = scmp.eq.s32.totalorder %s15, 1
    %p80 = por %p78, %p79
    %p82 = scmp.ne.s32.totalorder %s67, %s81
    %p83 = scmp.eq.s32.totalorder %s15, 0
    %p84 = por %p82, %p83
    %s85 = ssub.s32 %s9, %s16
    %p86 = scmp.eq.s32.totalorder %s85, 0
    %s88 = sadd.s32 %s87, 1
    %s89 = scalar_select %p86, %s87, %s88
    %p92 = pneg %p86
    %p93 = scmp.eq.s32.totalorder %s9, 1
    %p94 = por %p92, %p93
    %p95 = scmp.ne.s32.totalorder %s87, %s90
    %p96 = scmp.eq.s32.totalorder %s9, 0
    %p97 = por %p95, %p96
    %p98 = scmp.ne.s32.totalorder %s87, %s90
    %p99 = scmp.eq.s32.totalorder %s14, 1
    %p100 = por %p98, %p99
    %p101 = scmp.ne.s32.totalorder %s90, %s91
    %p102 = scmp.eq.s32.totalorder %s14, 0
    %p103 = por %p101, %p102
    %p104 = scmp.ne.s32.totalorder %s90, %s91
    %p105 = scmp.eq.s32.totalorder %s15, 1
    %p106 = por %p104, %p105
    %p108 = scmp.ne.s32.totalorder %s91, %s107
    %p109 = scmp.eq.s32.totalorder %s15, 0
    %p110 = por %p108, %p109
    %p111 = scmp.le.s32.totalorder 1, %s9
    %p112 = scmp.lt.s32.totalorder %s9, 3
    %p113 = pnand %p111, %p112
    %p114 = pneg %p113
    // Predicated region
    $region9: #{genenet_forward.34} parent=5 // pred_check
      _
    $region10: #{genenet_forward.34} parent=5 // pred_check_branch
      %116 = sbr.rel (%p113) target = $region12
    $region11: #{genenet_forward.34} parent=5 // pred_region
      %s117 = ssub.s32 %s9, 1
      // Predicated region
      $region13: #{genenet_forward.34} parent=11 // pred_check
        %p118 = pneg %p56
      $region14: #{genenet_forward.34} parent=11 // pred_check_branch
        %120 = sbr.rel (%p118) target = $region16
      $region15: #{genenet_forward.34} parent=11 // pred_region
        _
      $region16: #{genenet_forward.34} parent=11 // pred_fallthru
        _
      // Predicated region
      $region17: #{genenet_forward.34} parent=11 // pred_check
        %p121 = pneg %p77
      $region18: #{genenet_forward.34} parent=11 // pred_check_branch
        %123 = sbr.rel (%p121) target = $region20
      $region19: #{genenet_forward.34} parent=11 // pred_region
        _
      $region20: #{genenet_forward.34} parent=11 // pred_fallthru
        _
    $region12: #{genenet_forward.34} parent=5 // pred_fallthru
      _
    %p124 = scmp.lt.s32.totalorder %s9, 2
    // Predicated region
    $region21: #{genenet_forward.34} parent=5 // pred_check
      %p125 = pneg %p124
    $region22: #{genenet_forward.34} parent=5 // pred_check_branch
      %127 = sbr.rel (%p125) target = $region24
    $region23: #{genenet_forward.34} parent=5 // pred_region
      // Predicated region
      $region25: #{genenet_forward.34} parent=23 // pred_check
        %p128 = pneg %p29
      $region26: #{genenet_forward.34} parent=23 // pred_check_branch
        %130 = sbr.rel (%p128) target = $region28
      $region27: #{genenet_forward.34} parent=23 // pred_region
        %p131 = scmp.lt.s32.totalorder %s9, 1
        %s132 = scalar_select %p131, %s9, 1
        %s133 = smul.addr %s132, 8
        %s134 = smul.addr %s133, 4
        %s135 = scalar_lea.vmem %s0, %s134
      $region28: #{genenet_forward.34} parent=23 // pred_fallthru
        _
    $region24: #{genenet_forward.34} parent=5 // pred_fallthru
      _
    %p136 = scmp.le.s32.totalorder 1, %s9
    %p137 = scmp.lt.s32.totalorder %s9, 3
    %p138 = pnand %p136, %p137
    %p139 = pneg %p138
    // Predicated region
    $region29: #{genenet_forward.34} parent=5 // pred_check
      _
    $region30: #{genenet_forward.34} parent=5 // pred_check_branch
      %141 = sbr.rel (%p138) target = $region32
    $region31: #{genenet_forward.34} parent=5 // pred_region
      %s142 = ssub.s32 %s9, 1
      %p143 = scmp.lt.s32.totalorder %s14, 1
      %s144 = scalar_select %p143, %s14, 1
      %s145 = smul.addr %s144, 8
      %s146 = smul.addr %s145, 4
      %s147 = scalar_lea.vmem %s0, %s146
      %p148 = pneg %p35
      %p149 = pneg %p32
      %p150 = pneg %p56
      %p151 = pneg %p53
      %p152 = pneg %p77
      %p153 = pneg %p74
      %p154 = pneg %p103
      %p155 = pneg %p100
      %p156 = scmp.lt.s32.totalorder %s14, 1
      %s157 = scalar_select %p156, %s14, 1
      %s158 = smul.addr %s157, 8
      %s159 = smul.addr %s158, 4
      %s160 = scalar_lea.vmem %s3, %s159
      %p161 = scmp.lt.s32.totalorder %s14, 1
      %s162 = scalar_select %p161, %s14, 1
      %s163 = smul.addr %s162, 8
      %s164 = smul.addr %s163, 4
      %s165 = scalar_lea.vmem %s0, %s164
      %p166 = scmp.lt.s32.totalorder %s14, 1
      %s167 = scalar_select %p166, %s14, 1
      %s168 = smul.addr %s167, 8
      %s169 = smul.addr %s168, 4
      %s170 = scalar_lea.vmem %s3, %s169
      %v171 = vld [vmem:[%s165] sm:$0xf]
      %v172 = vld [vmem:[%s165 + $0x4] sm:$0xf]
      %v173 = vld [vmem:[%s165 + $0x8] sm:$0xf]
      %v174 = vld [vmem:[%s165 + $0xc] sm:$0xf]
      %v175 = vld [vmem:[%s165 + $0x10] sm:$0xf]
      %v176 = vld [vmem:[%s165 + $0x14] sm:$0xf]
      %v177 = vld [vmem:[%s165 + $0x18] sm:$0xf]
      %v178 = vld [vmem:[%s165 + $0x1c] sm:$0xf]
      %v179 = vunpack.c.l.bf16 %v171
      %v180 = vunpack.c.l.bf16 %v172
      %v181 = vunpack.c.l.bf16 %v173
      %v182 = vunpack.c.l.bf16 %v174
      %v183 = vunpack.c.l.bf16 %v175
      %v184 = vunpack.c.l.bf16 %v176
      %v185 = vunpack.c.l.bf16 %v177
      %v186 = vunpack.c.l.bf16 %v178
      %vm187 = vcmask 523264
      %v188 = vsel %vm187, %v179, 0.0
      %v189 = vsel %vm187, %v180, 0.0
      %v190 = vadd.f32 %v188, %v189
      %v191 = vsel %vm187, %v181, 0.0
      %v192 = vadd.f32 %v190, %v191
      %v193 = vsel %vm187, %v182, 0.0
      %v194 = vadd.f32 %v192, %v193
      %v195 = vsel %vm187, %v183, 0.0
      %v196 = vadd.f32 %v194, %v195
      %v197 = vsel %vm187, %v184, 0.0
      %v198 = vadd.f32 %v196, %v197
      %v199 = vsel %vm187, %v185, 0.0
      %v200 = vadd.f32 %v198, %v199
      %v201 = vsel %vm187, %v186, 0.0
      %v202 = vadd.f32 %v200, %v201
      %v203 = vrot.slane %v202, 4
      %v204 = vadd.f32 %v202, %v203
      %v205 = vrot.slane %v204, 2
      %v206 = vadd.f32 %v204, %v205
      %v207 = vrot.slane %v206, 1
      %v208 = vadd.f32 %v206, %v207
      %v209 = vrcp.pop 64.0
      %v210 = vmul.f32 %v208, %v209
      %v211 = vsub.f32 %v179, %v210
      %v212 = vsub.f32 %v180, %v210
      %v213 = vsub.f32 %v181, %v210
      %v214 = vsub.f32 %v182, %v210
      %v215 = vsub.f32 %v183, %v210
      %v216 = vsub.f32 %v184, %v210
      %v217 = vsub.f32 %v185, %v210
      %v218 = vsub.f32 %v186, %v210
      %v219 = vmul.f32 %v211, %v211
      %v220 = vmul.f32 %v212, %v212
      %v221 = vmul.f32 %v213, %v213
      %v222 = vmul.f32 %v214, %v214
      %v223 = vmul.f32 %v215, %v215
      %v224 = vmul.f32 %v216, %v216
      %v225 = vmul.f32 %v217, %v217
      %v226 = vmul.f32 %v218, %v218
      %v227 = vsel %vm187, %v219, 0.0
      %v228 = vsel %vm187, %v220, 0.0
      %v229 = vadd.f32 %v227, %v228
      %v230 = vsel %vm187, %v221, 0.0
      %v231 = vadd.f32 %v229, %v230
      %v232 = vsel %vm187, %v222, 0.0
      %v233 = vadd.f32 %v231, %v232
      %v234 = vsel %vm187, %v223, 0.0
      %v235 = vadd.f32 %v233, %v234
      %v236 = vsel %vm187, %v224, 0.0
      %v237 = vadd.f32 %v235, %v236
      %v238 = vsel %vm187, %v225, 0.0
      %v239 = vadd.f32 %v237, %v238
      %v240 = vsel %vm187, %v226, 0.0
      %v241 = vadd.f32 %v239, %v240
      %v242 = vrot.slane %v241, 4
      %v243 = vadd.f32 %v241, %v242
      %v244 = vrot.slane %v243, 2
      %v245 = vadd.f32 %v243, %v244
      %v246 = vrot.slane %v245, 1
      %v247 = vadd.f32 %v245, %v246
      %v248 = vmul.f32 %v247, %v209
      %v249 = vadd.f32 %v248, 1e-05
      %v250 = vrsqrt.pop %v249
      %v251 = vmul.f32 %v211, %v250
      %v252 = vmul.f32 %v212, %v250
      %v253 = vmul.f32 %v213, %v250
      %v254 = vmul.f32 %v214, %v250
      %v255 = vmul.f32 %v215, %v250
      %v256 = vmul.f32 %v216, %v250
      %v257 = vmul.f32 %v217, %v250
      %v258 = vmul.f32 %v218, %v250
      %v259 = vld [vmem:[%s1] sm:$0x1]
      %v261 = vlaneseq
      %v262 = vshrl.u32 %v261, 7
      %v263 = vsub.s32 0, %v262
      %v264 = vrot.slane %v259, %v263
      %v266 = vmul.f32 %v251, %v264
      %v267 = vmul.f32 %v252, %v264
      %v268 = vmul.f32 %v253, %v264
      %v269 = vmul.f32 %v254, %v264
      %v270 = vmul.f32 %v255, %v264
      %v271 = vmul.f32 %v256, %v264
      %v272 = vmul.f32 %v257, %v264
      %v273 = vmul.f32 %v258, %v264
      %v274 = vld [vmem:[%s2] sm:$0x1]
      %v276 = vlaneseq
      %v277 = vshrl.u32 %v276, 7
      %v278 = vsub.s32 0, %v277
      %v279 = vrot.slane %v274, %v278
      %v281 = vadd.f32 %v266, %v279
      %v282 = vadd.f32 %v267, %v279
      %v283 = vadd.f32 %v268, %v279
      %v284 = vadd.f32 %v269, %v279
      %v285 = vadd.f32 %v270, %v279
      %v286 = vadd.f32 %v271, %v279
      %v287 = vadd.f32 %v272, %v279
      %v288 = vadd.f32 %v273, %v279
      %v289 = vmax.f32 %v281, 0.0
      %v290 = vmax.f32 %v282, 0.0
      %v291 = vmax.f32 %v283, 0.0
      %v292 = vmax.f32 %v284, 0.0
      %v293 = vmax.f32 %v285, 0.0
      %v294 = vmax.f32 %v286, 0.0
      %v295 = vmax.f32 %v287, 0.0
      %v296 = vmax.f32 %v288, 0.0
      %v297 = vpack.c.bf16 %v290, %v289
      %v298 = vpack.c.bf16 %v292, %v291
      %v299 = vpack.c.bf16 %v294, %v293
      %v300 = vpack.c.bf16 %v296, %v295
      %v305 = vunpack.c.l.b16 %v297
      %v306 = vunpack.c.h.b16 %v297
      %v307 = vunpack.c.l.b16 %v298
      %v308 = vunpack.c.h.b16 %v298
      %v309 = vunpack.c.l.b16 %v299
      %v310 = vunpack.c.h.b16 %v299
      %v311 = vunpack.c.l.b16 %v300
      %v312 = vunpack.c.h.b16 %v300
      %v313 = vpack.c.b16 %v305, %v305
      %v314 = vpack.c.b16 %v306, %v306
      %v315 = vpack.c.b16 %v307, %v307
      %v316 = vpack.c.b16 %v308, %v308
      %v317 = vpack.c.b16 %v309, %v309
      %v318 = vpack.c.b16 %v310, %v310
      %v319 = vpack.c.b16 %v311, %v311
      %v320 = vpack.c.b16 %v312, %v312
      %vm329 = vcmask 519168
      %330 = vst.msk [vmem:[%s170] sm:$0xf] %vm329, %v313
      %331 = vst.msk [vmem:[%s170 + $0x4] sm:$0xf] %vm329, %v314
      %332 = vst.msk [vmem:[%s170 + $0x8] sm:$0xf] %vm329, %v315
      %333 = vst.msk [vmem:[%s170 + $0xc] sm:$0xf] %vm329, %v316
      %334 = vst.msk [vmem:[%s170 + $0x10] sm:$0xf] %vm329, %v317
      %335 = vst.msk [vmem:[%s170 + $0x14] sm:$0xf] %vm329, %v318
      %336 = vst.msk [vmem:[%s170 + $0x18] sm:$0xf] %vm329, %v319
      %337 = vst.msk [vmem:[%s170 + $0x1c] sm:$0xf] %vm329, %v320
      %p338 = scmp.lt.s32.totalorder %s14, 1
      %s339 = scalar_select %p338, %s14, 1
      %s340 = smul.addr %s339, 8
      %s341 = smul.addr %s340, 4
      %s342 = scalar_lea.vmem %s3, %s341
      // Predicated region
      $region33: #{genenet_forward.34} parent=31 // pred_check
        %p343 = pneg %p100
      $region34: #{genenet_forward.34} parent=31 // pred_check_branch
        %345 = sbr.rel (%p343) target = $region36
      $region35: #{genenet_forward.34} parent=31 // pred_region
        _
      $region36: #{genenet_forward.34} parent=31 // pred_fallthru
        _
    $region32: #{genenet_forward.34} parent=5 // pred_fallthru
      _
    %p346 = scmp.le.s32.totalorder 2, %s9
    // Predicated region
    $region37: #{genenet_forward.34} parent=5 // pred_check
      %p347 = pneg %p346
    $region38: #{genenet_forward.34} parent=5 // pred_check_branch
      %349 = sbr.rel (%p347) target = $region40
    $region39: #{genenet_forward.34} parent=5 // pred_region
      %s350 = ssub.s32 %s9, 2
      // Predicated region
      $region41: #{genenet_forward.34} parent=39 // pred_check
        %p351 = pneg %p106
      $region42: #{genenet_forward.34} parent=39 // pred_check_branch
        %353 = sbr.rel (%p351) target = $region44
      $region43: #{genenet_forward.34} parent=39 // pred_region
        %p354 = scmp.lt.s32.totalorder %s15, 1
        %s355 = scalar_select %p354, %s15, 1
        %s356 = smul.addr %s355, 8
        %s357 = smul.addr %s356, 4
        %s358 = scalar_lea.vmem %s3, %s357
      $region44: #{genenet_forward.34} parent=39 // pred_fallthru
        _
    $region40: #{genenet_forward.34} parent=5 // pred_fallthru
      _
  $region6: #{genenet_forward.34} parent=0 // loop_footer
    %s13 = sadd.s32 1, %s9
  $region7: #{genenet_forward.34} parent=0 // loop_footer_branch
    %8 = sbr.rel target = $region3
  $region8: #{genenet_forward.34} parent=0 // loop_exit
    _

// kernel: genenet_forward.33
$region0: #{genenet_forward.33}
  #allocation0 [shape = 'u32[]', space=smem, size = 0x4, offset = 0x4, fixed_abs, tag = 'smem constant byte address 0x4 - core index']
  #allocation1 [shape = 'u32[144,128]{1,0:T(1,128)}', space=vmem, size = 0x12000, scoped, tag = 'internal scratch']
  #allocation2 [shape = 'f32[256,128]{1,0:T(8,128)}', space=vmem, size = 0x20000, scoped, tag = 'scratch operand']
  %s0 = inlined_call_operand.vmem [shape: bf16[256,384], index: 0, kind: input, shape index: {}]
  %s1 = inlined_call_operand.vmem [shape: bf16[384,128], index: 1, kind: input, shape index: {}]
  %s2 = inlined_call_operand.vmem [shape: bf16[256,128], index: 2, kind: output, shape index: {}]
  %s3 = sld [smem:[#allocation0]]
  $region26: #{genenet_forward.33} parent=0
    _
  %s5 = ssub.s32 1, %s3
  %s6 = scalar_select 0, %s5, %s3
  // Predicated region
  $region2: #{genenet_forward.33} parent=0 // pred_check
    _
  $region3: #{genenet_forward.33} parent=0 // pred_check_branch
    %8 = sbr.rel (0) target = $region5
  $region4: #{genenet_forward.33} parent=0 // pred_region
    _
  $region5: #{genenet_forward.33} parent=0 // pred_fallthru
    _
  // Predicated region
  $region6: #{genenet_forward.33} parent=0 // pred_check
    _
  $region7: #{genenet_forward.33} parent=0 // pred_check_branch
    %10 = sbr.rel (0) target = $region9
  $region8: #{genenet_forward.33} parent=0 // pred_region
    _
  $region9: #{genenet_forward.33} parent=0 // pred_fallthru
    _
  %p12 = scmp.eq.s32.totalorder 0, 0
  // Predicated region
  $region10: #{genenet_forward.33} parent=0 // pred_check
    %p13 = pneg %p12
  $region11: #{genenet_forward.33} parent=0 // pred_check_branch
    %15 = sbr.rel (%p13) target = $region13
  $region12: #{genenet_forward.33} parent=0 // pred_region
    %16 = vst [vmem:[#allocation2] sm:$0xff] 0.0
    %17 = vst [vmem:[#allocation2 + $0x8] sm:$0xff] 0.0
    %18 = vst [vmem:[#allocation2 + $0x10] sm:$0xff] 0.0
    %19 = vst [vmem:[#allocation2 + $0x18] sm:$0xff] 0.0
    %20 = vst [vmem:[#allocation2 + $0x20] sm:$0xff] 0.0
    %21 = vst [vmem:[#allocation2 + $0x28] sm:$0xff] 0.0
    %22 = vst [vmem:[#allocation2 + $0x30] sm:$0xff] 0.0
    %23 = vst [vmem:[#allocation2 + $0x38] sm:$0xff] 0.0
    %24 = vst [vmem:[#allocation2 + $0x40] sm:$0xff] 0.0
    %25 = vst [vmem:[#allocation2 + $0x48] sm:$0xff] 0.0
    %26 = vst [vmem:[#allocation2 + $0x50] sm:$0xff] 0.0
    %27 = vst [vmem:[#allocation2 + $0x58] sm:$0xff] 0.0
    %28 = vst [vmem:[#allocation2 + $0x60] sm:$0xff] 0.0
    %29 = vst [vmem:[#allocation2 + $0x68] sm:$0xff] 0.0
    %30 = vst [vmem:[#allocation2 + $0x70] sm:$0xff] 0.0
    %31 = vst [vmem:[#allocation2 + $0x78] sm:$0xff] 0.0
    %32 = vst [vmem:[#allocation2 + $0x80] sm:$0xff] 0.0
    %33 = vst [vmem:[#allocation2 + $0x88] sm:$0xff] 0.0
    %34 = vst [vmem:[#allocation2 + $0x90] sm:$0xff] 0.0
    %35 = vst [vmem:[#allocation2 + $0x98] sm:$0xff] 0.0
    %36 = vst [vmem:[#allocation2 + $0xa0] sm:$0xff] 0.0
    %37 = vst [vmem:[#allocation2 + $0xa8] sm:$0xff] 0.0
    %38 = vst [vmem:[#allocation2 + $0xb0] sm:$0xff] 0.0
    %39 = vst [vmem:[#allocation2 + $0xb8] sm:$0xff] 0.0
    %40 = vst [vmem:[#allocation2 + $0xc0] sm:$0xff] 0.0
    %41 = vst [vmem:[#allocation2 + $0xc8] sm:$0xff] 0.0
    %42 = vst [vmem:[#allocation2 + $0xd0] sm:$0xff] 0.0
    %43 = vst [vmem:[#allocation2 + $0xd8] sm:$0xff] 0.0
    %44 = vst [vmem:[#allocation2 + $0xe0] sm:$0xff] 0.0
    %45 = vst [vmem:[#allocation2 + $0xe8] sm:$0xff] 0.0
    %46 = vst [vmem:[#allocation2 + $0xf0] sm:$0xff] 0.0
    %47 = vst [vmem:[#allocation2 + $0xf8] sm:$0xff] 0.0
  $region13: #{genenet_forward.33} parent=0 // pred_fallthru
    _
  %v48 = vld [vmem:[#allocation2] sm:$0xff]
  %v49 = vld [vmem:[#allocation2 + $0x8] sm:$0xff]
  %v50 = vld [vmem:[#allocation2 + $0x10] sm:$0xff]
  %v51 = vld [vmem:[#allocation2 + $0x18] sm:$0xff]
  %v52 = vld [vmem:[#allocation2 + $0x20] sm:$0xff]
  %v53 = vld [vmem:[#allocation2 + $0x28] sm:$0xff]
  %v54 = vld [vmem:[#allocation2 + $0x30] sm:$0xff]
  %v55 = vld [vmem:[#allocation2 + $0x38] sm:$0xff]
  %v56 = vld [vmem:[#allocation2 + $0x40] sm:$0xff]
  %v57 = vld [vmem:[#allocation2 + $0x48] sm:$0xff]
  %v58 = vld [vmem:[#allocation2 + $0x50] sm:$0xff]
  %v59 = vld [vmem:[#allocation2 + $0x58] sm:$0xff]
  %v60 = vld [vmem:[#allocation2 + $0x60] sm:$0xff]
  %v61 = vld [vmem:[#allocation2 + $0x68] sm:$0xff]
  %v62 = vld [vmem:[#allocation2 + $0x70] sm:$0xff]
  %v63 = vld [vmem:[#allocation2 + $0x78] sm:$0xff]
  %v64 = vld [vmem:[#allocation2 + $0x80] sm:$0xff]
  %v65 = vld [vmem:[#allocation2 + $0x88] sm:$0xff]
  %v66 = vld [vmem:[#allocation2 + $0x90] sm:$0xff]
  %v67 = vld [vmem:[#allocation2 + $0x98] sm:$0xff]
  %v68 = vld [vmem:[#allocation2 + $0xa0] sm:$0xff]
  %v69 = vld [vmem:[#allocation2 + $0xa8] sm:$0xff]
  %v70 = vld [vmem:[#allocation2 + $0xb0] sm:$0xff]
  %v71 = vld [vmem:[#allocation2 + $0xb8] sm:$0xff]
  %v72 = vld [vmem:[#allocation2 + $0xc0] sm:$0xff]
  %v73 = vld [vmem:[#allocation2 + $0xc8] sm:$0xff]
  %v74 = vld [vmem:[#allocation2 + $0xd0] sm:$0xff]
  %v75 = vld [vmem:[#allocation2 + $0xd8] sm:$0xff]
  %v76 = vld [vmem:[#allocation2 + $0xe0] sm:$0xff]
  %v77 = vld [vmem:[#allocation2 + $0xe8] sm:$0xff]
  %v78 = vld [vmem:[#allocation2 + $0xf0] sm:$0xff]
  %v79 = vld [vmem:[#allocation2 + $0xf8] sm:$0xff]
  %v80 = vld [vmem:[%s0] sm:$0xff]
  %v81 = vld [vmem:[%s0 + $0x8] sm:$0xf]
  %v82 = vld [vmem:[%s0 + $0xc] sm:$0xff]
  %v83 = vld [vmem:[%s0 + $0x14] sm:$0xf]
  %v84 = vld [vmem:[%s0 + $0x18] sm:$0xff]
  %v85 = vld [vmem:[%s0 + $0x20] sm:$0xf]
  %v86 = vld [vmem:[%s0 + $0x24] sm:$0xff]
  %v87 = vld [vmem:[%s0 + $0x2c] sm:$0xf]
  %v88 = vld [vmem:[%s0 + $0x30] sm:$0xff]
  %v89 = vld [vmem:[%s0 + $0x38] sm:$0xf]
  %v90 = vld [vmem:[%s0 + $0x3c] sm:$0xff]
  %v91 = vld [vmem:[%s0 + $0x44] sm:$0xf]
  %v92 = vld [vmem:[%s0 + $0x48] sm:$0xff]
  %v93 = vld [vmem:[%s0 + $0x50] sm:$0xf]
  %v94 = vld [vmem:[%s0 + $0x54] sm:$0xff]
  %v95 = vld [vmem:[%s0 + $0x5c] sm:$0xf]
  %v96 = vld [vmem:[%s0 + $0x60] sm:$0xff]
  %v97 = vld [vmem:[%s0 + $0x68] sm:$0xf]
  %v98 = vld [vmem:[%s0 + $0x6c] sm:$0xff]
  %v99 = vld [vmem:[%s0 + $0x74] sm:$0xf]
  %v100 = vld [vmem:[%s0 + $0x78] sm:$0xff]
  %v101 = vld [vmem:[%s0 + $0x80] sm:$0xf]
  %v102 = vld [vmem:[%s0 + $0x84] sm:$0xff]
  %v103 = vld [vmem:[%s0 + $0x8c] sm:$0xf]
  %v104 = vld [vmem:[%s0 + $0x90] sm:$0xff]
  %v105 = vld [vmem:[%s0 + $0x98] sm:$0xf]
  %v106 = vld [vmem:[%s0 + $0x9c] sm:$0xff]
  %v107 = vld [vmem:[%s0 + $0xa4] sm:$0xf]
  %v108 = vld [vmem:[%s0 + $0xa8] sm:$0xff]
  %v109 = vld [vmem:[%s0 + $0xb0] sm:$0xf]
  %v110 = vld [vmem:[%s0 + $0xb4] sm:$0xff]
  %v111 = vld [vmem:[%s0 + $0xbc] sm:$0xf]
  %v112 = vld [vmem:[%s0 + $0xc0] sm:$0xff]
  %v113 = vld [vmem:[%s0 + $0xc8] sm:$0xf]
  %v114 = vld [vmem:[%s0 + $0xcc] sm:$0xff]
  %v115 = vld [vmem:[%s0 + $0xd4] sm:$0xf]
  %v116 = vld [vmem:[%s0 + $0xd8] sm:$0xff]
  %v117 = vld [vmem:[%s0 + $0xe0] sm:$0xf]
  %v118 = vld [vmem:[%s0 + $0xe4] sm:$0xff]
  %v119 = vld [vmem:[%s0 + $0xec] sm:$0xf]
  %v120 = vld [vmem:[%s0 + $0xf0] sm:$0xff]
  %v121 = vld [vmem:[%s0 + $0xf8] sm:$0xf]
  %v122 = vld [vmem:[%s0 + $0xfc] sm:$0xff]
  %v123 = vld [vmem:[%s0 + $0x104] sm:$0xf]
  %v124 = vld [vmem:[%s0 + $0x108] sm:$0xff]
  %v125 = vld [vmem:[%s0 + $0x110] sm:$0xf]
  %v126 = vld [vmem:[%s0 + $0x114] sm:$0xff]
  %v127 = vld [vmem:[%s0 + $0x11c] sm:$0xf]
  %v128 = vld [vmem:[%s0 + $0x120] sm:$0xff]
  %v129 = vld [vmem:[%s0 + $0x128] sm:$0xf]
  %v130 = vld [vmem:[%s0 + $0x12c] sm:$0xff]
  %v131 = vld [vmem:[%s0 + $0x134] sm:$0xf]
  %v132 = vld [vmem:[%s0 + $0x138] sm:$0xff]
  %v133 = vld [vmem:[%s0 + $0x140] sm:$0xf]
  %v134 = vld [vmem:[%s0 + $0x144] sm:$0xff]
  %v135 = vld [vmem:[%s0 + $0x14c] sm:$0xf]
  %v136 = vld [vmem:[%s0 + $0x150] sm:$0xff]
  %v137 = vld [vmem:[%s0 + $0x158] sm:$0xf]
  %v138 = vld [vmem:[%s0 + $0x15c] sm:$0xff]
  %v139 = vld [vmem:[%s0 + $0x164] sm:$0xf]
  %v140 = vld [vmem:[%s0 + $0x168] sm:$0xff]
  %v141 = vld [vmem:[%s0 + $0x170] sm:$0xf]
  %v142 = vld [vmem:[%s0 + $0x174] sm:$0xff]
  %v143 = vld [vmem:[%s0 + $0x17c] sm:$0xf]
  %v144 = vld [vmem:[%s1] sm:$0xf]
  %v145 = vld [vmem:[%s1 + $0x4] sm:$0xf]
  %v146 = vld [vmem:[%s1 + $0x8] sm:$0xf]
  %v147 = vld [vmem:[%s1 + $0xc] sm:$0xf]
  %v148 = vld [vmem:[%s1 + $0x10] sm:$0xf]
  %v149 = vld [vmem:[%s1 + $0x14] sm:$0xf]
  %v150 = vld [vmem:[%s1 + $0x18] sm:$0xf]
  %v151 = vld [vmem:[%s1 + $0x1c] sm:$0xf]
  %v152 = vld [vmem:[%s1 + $0x20] sm:$0xf]
  %v153 = vld [vmem:[%s1 + $0x24] sm:$0xf]
  %v154 = vld [vmem:[%s1 + $0x28] sm:$0xf]
  %v155 = vld [vmem:[%s1 + $0x2c] sm:$0xf]
  %v156 = vld [vmem:[%s1 + $0x30] sm:$0xf]
  %v157 = vld [vmem:[%s1 + $0x34] sm:$0xf]
  %v158 = vld [vmem:[%s1 + $0x38] sm:$0xf]
  %v159 = vld [vmem:[%s1 + $0x3c] sm:$0xf]
  %v160 = vld [vmem:[%s1 + $0x40] sm:$0xf]
  %v161 = vld [vmem:[%s1 + $0x44] sm:$0xf]
  %v162 = vld [vmem:[%s1 + $0x48] sm:$0xf]
  %v163 = vld [vmem:[%s1 + $0x4c] sm:$0xf]
  %v164 = vld [vmem:[%s1 + $0x50] sm:$0xf]
  %v165 = vld [vmem:[%s1 + $0x54] sm:$0xf]
  %v166 = vld [vmem:[%s1 + $0x58] sm:$0xf]
  %v167 = vld [vmem:[%s1 + $0x5c] sm:$0xf]
  %v168 = vld [vmem:[%s1 + $0x60] sm:$0xf]
  %v169 = vld [vmem:[%s1 + $0x64] sm:$0xf]
  %v170 = vld [vmem:[%s1 + $0x68] sm:$0xf]
  %v171 = vld [vmem:[%s1 + $0x6c] sm:$0xf]
  %v172 = vld [vmem:[%s1 + $0x70] sm:$0xf]
  %v173 = vld [vmem:[%s1 + $0x74] sm:$0xf]
  %v174 = vld [vmem:[%s1 + $0x78] sm:$0xf]
  %v175 = vld [vmem:[%s1 + $0x7c] sm:$0xf]
  %v176 = vld [vmem:[%s1 + $0x80] sm:$0xf]
  %v177 = vld [vmem:[%s1 + $0x84] sm:$0xf]
  %v178 = vld [vmem:[%s1 + $0x88] sm:$0xf]
  %v179 = vld [vmem:[%s1 + $0x8c] sm:$0xf]
  %v180 = vld [vmem:[%s1 + $0x90] sm:$0xf]
  %v181 = vld [vmem:[%s1 + $0x94] sm:$0xf]
  %v182 = vld [vmem:[%s1 + $0x98] sm:$0xf]
  %v183 = vld [vmem:[%s1 + $0x9c] sm:$0xf]
  %v184 = vld [vmem:[%s1 + $0xa0] sm:$0xf]
  %v185 = vld [vmem:[%s1 + $0xa4] sm:$0xf]
  %v186 = vld [vmem:[%s1 + $0xa8] sm:$0xf]
  %v187 = vld [vmem:[%s1 + $0xac] sm:$0xf]
  %v188 = vld [vmem:[%s1 + $0xb0] sm:$0xf]
  %v189 = vld [vmem:[%s1 + $0xb4] sm:$0xf]
  %v190 = vld [vmem:[%s1 + $0xb8] sm:$0xf]
  %v191 = vld [vmem:[%s1 + $0xbc] sm:$0xf]
  %v256 = vunpack.c.l.b16 %v80
  %v257 = vunpack.c.h.b16 %v80
  %v258 = vunpack.c.l.b16 %v81
  %v259 = vunpack.c.l.b16 %v82
  %v260 = vunpack.c.h.b16 %v82
  %v261 = vunpack.c.l.b16 %v83
  %v262 = vunpack.c.l.b16 %v84
  %v263 = vunpack.c.h.b16 %v84
  %v264 = vunpack.c.l.b16 %v85
  %v265 = vunpack.c.l.b16 %v86
  %v266 = vunpack.c.h.b16 %v86
  %v267 = vunpack.c.l.b16 %v87
  %v268 = vunpack.c.l.b16 %v88
  %v269 = vunpack.c.h.b16 %v88
  %v270 = vunpack.c.l.b16 %v89
  %v271 = vunpack.c.l.b16 %v90
  %v272 = vunpack.c.h.b16 %v90
  %v273 = vunpack.c.l.b16 %v91
  %v274 = vunpack.c.l.b16 %v92
  %v275 = vunpack.c.h.b16 %v92
  %v276 = vunpack.c.l.b16 %v93
  %v277 = vunpack.c.l.b16 %v94
  %v278 = vunpack.c.h.b16 %v94
  %v279 = vunpack.c.l.b16 %v95
  %v280 = vunpack.c.l.b16 %v96
  %v281 = vunpack.c.h.b16 %v96
  %v282 = vunpack.c.l.b16 %v97
  %v283 = vunpack.c.l.b16 %v98
  %v284 = vunpack.c.h.b16 %v98
  %v285 = vunpack.c.l.b16 %v99
  %v286 = vunpack.c.l.b16 %v100
  %v287 = vunpack.c.h.b16 %v100
  %v288 = vunpack.c.l.b16 %v101
  %v289 = vunpack.c.l.b16 %v102
  %v290 = vunpack.c.h.b16 %v102
  %v291 = vunpack.c.l.b16 %v103
  %v292 = vunpack.c.l.b16 %v104
  %v293 = vunpack.c.h.b16 %v104
  %v294 = vunpack.c.l.b16 %v105
  %v295 = vunpack.c.l.b16 %v106
  %v296 = vunpack.c.h.b16 %v106
  %v297 = vunpack.c.l.b16 %v107
  %v298 = vunpack.c.l.b16 %v108
  %v299 = vunpack.c.h.b16 %v108
  %v300 = vunpack.c.l.b16 %v109
  %v301 = vunpack.c.l.b16 %v110
  %v302 = vunpack.c.h.b16 %v110
  %v303 = vunpack.c.l.b16 %v111
  %v304 = vunpack.c.l.b16 %v112
  %v305 = vunpack.c.h.b16 %v112
  %v306 = vunpack.c.l.b16 %v113
  %v307 = vunpack.c.l.b16 %v114
  %v308 = vunpack.c.h.b16 %v114
  %v309 = vunpack.c.l.b16 %v115
  %v310 = vunpack.c.l.b16 %v116
  %v311 = vunpack.c.h.b16 %v116
  %v312 = vunpack.c.l.b16 %v117
  %v313 = vunpack.c.l.b16 %v118
  %v314 = vunpack.c.h.b16 %v118
  %v315 = vunpack.c.l.b16 %v119
  %v316 = vunpack.c.l.b16 %v120
  %v317 = vunpack.c.h.b16 %v120
  %v318 = vunpack.c.l.b16 %v121
  %v319 = vunpack.c.l.b16 %v122
  %v320 = vunpack.c.h.b16 %v122
  %v321 = vunpack.c.l.b16 %v123
  %v322 = vunpack.c.l.b16 %v124
  %v323 = vunpack.c.h.b16 %v124
  %v324 = vunpack.c.l.b16 %v125
  %v325 = vunpack.c.l.b16 %v126
  %v326 = vunpack.c.h.b16 %v126
  %v327 = vunpack.c.l.b16 %v127
  %v328 = vunpack.c.l.b16 %v128
  %v329 = vunpack.c.h.b16 %v128
  %v330 = vunpack.c.l.b16 %v129
  %v331 = vunpack.c.l.b16 %v130
  %v332 = vunpack.c.h.b16 %v130
  %v333 = vunpack.c.l.b16 %v131
  %v334 = vunpack.c.l.b16 %v132
  %v335 = vunpack.c.h.b16 %v132
  %v336 = vunpack.c.l.b16 %v133
  %v337 = vunpack.c.l.b16 %v134
  %v338 = vunpack.c.h.b16 %v134
  %v339 = vunpack.c.l.b16 %v135
  %v340 = vunpack.c.l.b16 %v136
  %v341 = vunpack.c.h.b16 %v136
  %v342 = vunpack.c.l.b16 %v137
  %v343 = vunpack.c.l.b16 %v138
  %v344 = vunpack.c.h.b16 %v138
  %v345 = vunpack.c.l.b16 %v139
  %v346 = vunpack.c.l.b16 %v140
  %v347 = vunpack.c.h.b16 %v140
  %v348 = vunpack.c.l.b16 %v141
  %v349 = vunpack.c.l.b16 %v142
  %v350 = vunpack.c.h.b16 %v142
  %v351 = vunpack.c.l.b16 %v143
  %v352 = vpack.c.b16 %v259, %v256
  %v353 = vpack.c.b16 %v260, %v257
  %v354 = vpack.c.b16 %v261, %v258
  %v355 = vpack.c.b16 %v265, %v262
  %v356 = vpack.c.b16 %v266, %v263
  %v357 = vpack.c.b16 %v267, %v264
  %v358 = vpack.c.b16 %v271, %v268
  %v359 = vpack.c.b16 %v272, %v269
  %v360 = vpack.c.b16 %v273, %v270
  %v361 = vpack.c.b16 %v277, %v274
  %v362 = vpack.c.b16 %v278, %v275
  %v363 = vpack.c.b16 %v279, %v276
  %v364 = vpack.c.b16 %v283, %v280
  %v365 = vpack.c.b16 %v284, %v281
  %v366 = vpack.c.b16 %v285, %v282
  %v367 = vpack.c.b16 %v289, %v286
  %v368 = vpack.c.b16 %v290, %v287
  %v369 = vpack.c.b16 %v291, %v288
  %v370 = vpack.c.b16 %v295, %v292
  %v371 = vpack.c.b16 %v296, %v293
  %v372 = vpack.c.b16 %v297, %v294
  %v373 = vpack.c.b16 %v301, %v298
  %v374 = vpack.c.b16 %v302, %v299
  %v375 = vpack.c.b16 %v303, %v300
  %v376 = vpack.c.b16 %v307, %v304
  %v377 = vpack.c.b16 %v308, %v305
  %v378 = vpack.c.b16 %v309, %v306
  %v379 = vpack.c.b16 %v313, %v310
  %v380 = vpack.c.b16 %v314, %v311
  %v381 = vpack.c.b16 %v315, %v312
  %v382 = vpack.c.b16 %v319, %v316
  %v383 = vpack.c.b16 %v320, %v317
  %v384 = vpack.c.b16 %v321, %v318
  %v385 = vpack.c.b16 %v325, %v322
  %v386 = vpack.c.b16 %v326, %v323
  %v387 = vpack.c.b16 %v327, %v324
  %v388 = vpack.c.b16 %v331, %v328
  %v389 = vpack.c.b16 %v332, %v329
  %v390 = vpack.c.b16 %v333, %v330
  %v391 = vpack.c.b16 %v337, %v334
  %v392 = vpack.c.b16 %v338, %v335
  %v393 = vpack.c.b16 %v339, %v336
  %v394 = vpack.c.b16 %v343, %v340
  %v395 = vpack.c.b16 %v344, %v341
  %v396 = vpack.c.b16 %v345, %v342
  %v397 = vpack.c.b16 %v349, %v346
  %v398 = vpack.c.b16 %v350, %v347
  %v399 = vpack.c.b16 %v351, %v348
  %v496 = vunpack.c.l.b16 %v144
  %v497 = vunpack.c.l.b16 %v145
  %v498 = vunpack.c.l.b16 %v146
  %v499 = vunpack.c.l.b16 %v147
  %v500 = vunpack.c.l.b16 %v148
  %v501 = vunpack.c.l.b16 %v149
  %v502 = vunpack.c.l.b16 %v150
  %v503 = vunpack.c.l.b16 %v151
  %v504 = vunpack.c.l.b16 %v152
  %v505 = vunpack.c.l.b16 %v153
  %v506 = vunpack.c.l.b16 %v154
  %v507 = vunpack.c.l.b16 %v155
  %v508 = vunpack.c.l.b16 %v156
  %v509 = vunpack.c.l.b16 %v157
  %v510 = vunpack.c.l.b16 %v158
  %v511 = vunpack.c.l.b16 %v159
  %v512 = vunpack.c.l.b16 %v160
  %v513 = vunpack.c.l.b16 %v161
  %v514 = vunpack.c.l.b16 %v162
  %v515 = vunpack.c.l.b16 %v163
  %v516 = vunpack.c.l.b16 %v164
  %v517 = vunpack.c.l.b16 %v165
  %v518 = vunpack.c.l.b16 %v166
  %v519 = vunpack.c.l.b16 %v167
  %v520 = vunpack.c.l.b16 %v168
  %v521 = vunpack.c.l.b16 %v169
  %v522 = vunpack.c.l.b16 %v170
  %v523 = vunpack.c.l.b16 %v171
  %v524 = vunpack.c.l.b16 %v172
  %v525 = vunpack.c.l.b16 %v173
  %v526 = vunpack.c.l.b16 %v174
  %v527 = vunpack.c.l.b16 %v175
  %v528 = vunpack.c.l.b16 %v176
  %v529 = vunpack.c.l.b16 %v177
  %v530 = vunpack.c.l.b16 %v178
  %v531 = vunpack.c.l.b16 %v179
  %v532 = vunpack.c.l.b16 %v180
  %v533 = vunpack.c.l.b16 %v181
  %v534 = vunpack.c.l.b16 %v182
  %v535 = vunpack.c.l.b16 %v183
  %v536 = vunpack.c.l.b16 %v184
  %v537 = vunpack.c.l.b16 %v185
  %v538 = vunpack.c.l.b16 %v186
  %v539 = vunpack.c.l.b16 %v187
  %v540 = vunpack.c.l.b16 %v188
  %v541 = vunpack.c.l.b16 %v189
  %v542 = vunpack.c.l.b16 %v190
  %v543 = vunpack.c.l.b16 %v191
  %v544 = vpack.c.b16 %v497, %v496
  %v545 = vpack.c.b16 %v499, %v498
  %v546 = vpack.c.b16 %v501, %v500
  %v547 = vpack.c.b16 %v503, %v502
  %v548 = vpack.c.b16 %v505, %v504
  %v549 = vpack.c.b16 %v507, %v506
  %v550 = vpack.c.b16 %v509, %v508
  %v551 = vpack.c.b16 %v511, %v510
  %v552 = vpack.c.b16 %v513, %v512
  %v553 = vpack.c.b16 %v515, %v514
  %v554 = vpack.c.b16 %v517, %v516
  %v555 = vpack.c.b16 %v519, %v518
  %v556 = vpack.c.b16 %v521, %v520
  %v557 = vpack.c.b16 %v523, %v522
  %v558 = vpack.c.b16 %v525, %v524
  %v559 = vpack.c.b16 %v527, %v526
  %v560 = vpack.c.b16 %v529, %v528
  %v561 = vpack.c.b16 %v531, %v530
  %v562 = vpack.c.b16 %v533, %v532
  %v563 = vpack.c.b16 %v535, %v534
  %v564 = vpack.c.b16 %v537, %v536
  %v565 = vpack.c.b16 %v539, %v538
  %v566 = vpack.c.b16 %v541, %v540
  %v567 = vpack.c.b16 %v543, %v542
  %592 = vmatprep.subr.bf16.mxu0 0
  %593 = vmatpush1.bf16.msra.mxu0 %v544
  %594 = vmatprep.subr.bf16.mxu0 0
  %595 = vmatpush1.bf16.msra.mxu0 %v545
  %596 = vmatprep.subr.bf16.mxu0 0
  %597 = vmatpush1.bf16.msra.mxu0 %v546
  %598 = vmatprep.subr.bf16.mxu0 0
  %599 = vmatpush1.bf16.msra.mxu0 %v547
  %600 = vmatprep.subr.bf16.mxu0 0
  %601 = vmatpush1.bf16.msra.mxu0 %v548
  %602 = vmatprep.subr.bf16.mxu0 0
  %603 = vmatpush1.bf16.msra.mxu0 %v549
  %604 = vmatprep.subr.bf16.mxu0 0
  %605 = vmatpush1.bf16.msra.mxu0 %v550
  %606 = vmatprep.subr.bf16.mxu0 0
  %607 = vmatpush1.bf16.msra.mxu0 %v551
  %608 = vmatprep.subr.bf16.mxu0 0
  %609 = vmatpush1.bf16.msra.mxu0 %v552
  %610 = vmatprep.subr.bf16.mxu0 0
  %611 = vmatpush1.bf16.msra.mxu0 %v553
  %612 = vmatprep.subr.bf16.mxu0 0
  %613 = vmatpush1.bf16.msra.mxu0 %v554
  %614 = vmatprep.subr.bf16.mxu0 0
  %615 = vmatpush1.bf16.msra.mxu0 %v555
  %616 = vmatprep.subr.bf16.mxu0 0
  %617 = vmatpush1.bf16.msra.mxu0 %v556
  %618 = vmatprep.subr.bf16.mxu0 0
  %619 = vmatpush1.bf16.msra.mxu0 %v557
  %620 = vmatprep.subr.bf16.mxu0 0
  %621 = vmatpush1.bf16.msra.mxu0 %v558
  %622 = vmatprep.subr.bf16.mxu0 0
  %623 = vmatpush1.bf16.msra.mxu0 %v559
  %624 = vmatprep.mubr.bf16.mxu0 %v353
  %625 = vmatmul.mubr.bf16.gmra.mrb[0].mxu0 %v352
  %v626 = vpop.f32.mrb[0].mxu0
  %v627 = vadd.f32 0.0, %v626
  %v628 = vpop.f32.mrb[0].mxu0
  %v629 = vpop.f32.mrb[0].mxu0
  %v630 = vadd.f32 0.0, %v629
  %v631 = vpop.f32.mrb[0].mxu0
  %632 = vmatprep.mubr.bf16.mxu0 %v356
  %633 = vmatmul.mubr.bf16.gmra.mrb[0].mxu0 %v355
  %v634 = vpop.f32.mrb[0].mxu0
  %v635 = vadd.f32 0.0, %v634
  %v636 = vpop.f32.mrb[0].mxu0
  %v637 = vpop.f32.mrb[0].mxu0
  %v638 = vadd.f32 0.0, %v637
  %v639 = vpop.f32.mrb[0].mxu0
  %640 = vmatprep.mubr.bf16.mxu0 %v359
  %641 = vmatmul.mubr.bf16.gmra.mrb[0].mxu0 %v358
  %v642 = vpop.f32.mrb[0].mxu0
  %v643 = vadd.f32 0.0, %v642
  %v644 = vpop.f32.mrb[0].mxu0
  %v645 = vpop.f32.mrb[0].mxu0
  %v646 = vadd.f32 0.0, %v645
  %v647 = vpop.f32.mrb[0].mxu0
  %648 = vmatprep.mubr.bf16.mxu0 %v362
  %649 = vmatmul.mubr.bf16.gmra.mrb[0].mxu0 %v361
  %v650 = vpop.f32.mrb[0].mxu0
  %v651 = vadd.f32 0.0, %v650
  %v652 = vpop.f32.mrb[0].mxu0
  %v653 = vpop.f32.mrb[0].mxu0
  %v654 = vadd.f32 0.0, %v653
  %v655 = vpop.f32.mrb[0].mxu0
  %656 = vmatprep.mubr.bf16.mxu0 %v365
  %657 = vmatmul.mubr.bf16.gmra.mrb[0].mxu0 %v364
  %v658 = vpop.f32.mrb[0].mxu0
  %v659 = vadd.f32 0.0, %v658
  %v660 = vpop.f32.mrb[0].mxu0
  %v661 = vpop.f32.mrb[0].mxu0
  %v662 = vadd.f32 0.0, %v661
  %v663 = vpop.f32.mrb[0].mxu0
  %664 = vmatprep.mubr.bf16.mxu0 %v368
  %665 = vmatmul.mubr.bf16.gmra.mrb[0].mxu0 %v367
  %v666 = vpop.f32.mrb[0].mxu0
  %v667 = vadd.f32 0.0, %v666
  %v668 = vpop.f32.mrb[0].mxu0
  %v669 = vpop.f32.mrb[0].mxu0
  %v670 = vadd.f32 0.0, %v669
  %v671 = vpop.f32.mrb[0].mxu0
  %672 = vmatprep.mubr.bf16.mxu0 %v371
  %673 = vmatmul.mubr.bf16.gmra.mrb[0].mxu0 %v370
  %v674 = vpop.f32.mrb[0].mxu0
  %v675 = vadd.f32 0.0, %v674
  %v676 = vpop.f32.mrb[0].mxu0
  %v677 = vpop.f32.mrb[0].mxu0
  %v678 = vadd.f32 0.0, %v677
  %v679 = vpop.f32.mrb[0].mxu0
  %680 = vmatprep.mubr.bf16.mxu0 %v374
  %681 = vmatmul.mubr.bf16.gmra.mrb[0].mxu0 %v373
  %v682 = vpop.f32.mrb[0].mxu0
  %v683 = vadd.f32 0.0, %v682
  %v684 = vpop.f32.mrb[0].mxu0
  %v685 = vpop.f32.mrb[0].mxu0
  %v686 = vadd.f32 0.0, %v685
  %v687 = vpop.f32.mrb[0].mxu0
  %688 = vmatprep.mubr.bf16.mxu0 %v377
  %689 = vmatmul.mubr.bf16.gmra.mrb[0].mxu0 %v376
  %v690 = vpop.f32.mrb[0].mxu0
  %v691 = vadd.f32 0.0, %v690
  %v692 = vpop.f32.mrb[0].mxu0
  %v693 = vpop.f32.mrb[0].mxu0
  %v694 = vadd.f32 0.0, %v693
  %v695 = vpop.f32.mrb[0].mxu0
  %696 = vmatprep.mubr.bf16.mxu0 %v380
  %697 = vmatmul.mubr.bf16.gmra.mrb[0].mxu0 %v379
  %v698 = vpop.f32.mrb[0].mxu0
  %v699 = vadd.f32 0.0, %v698
  %v700 = vpop.f32.mrb[0].mxu0
  %v701 = vpop.f32.mrb[0].mxu0
  %v702 = vadd.f32 0.0, %v701
  %v703 = vpop.f32.mrb[0].mxu0
  %704 = vmatprep.mubr.bf16.mxu0 %v383
  %705 = vmatmul.mubr.bf16.gmra.mrb[0].mxu0 %v382
  %v706 = vpop.f32.mrb[0].mxu0
  %v707 = vadd.f32 0.0, %v706
  %v708 = vpop.f32.mrb[0].mxu0
  %v709 = vpop.f32.mrb[0].mxu0
  %v710 = vadd.f32 0.0, %v709
  %v711 = vpop.f32.mrb[0].mxu0
  %712 = vmatprep.mubr.bf16.mxu0 %v386
  %713 = vmatmul.mubr.bf16.gmra.mrb[0].mxu0 %v385
  %v714 = vpop.f32.mrb[0].mxu0
  %v715 = vadd.f32 0.0, %v714
  %v716 = vpop.f32.mrb[0].mxu0
  %v717 = vpop.f32.mrb[0].mxu0
  %v718 = vadd.f32 0.0, %v717
  %v719 = vpop.f32.mrb[0].mxu0
  %720 = vmatprep.mubr.bf16.mxu0 %v389
  %721 = vmatmul.mubr.bf16.gmra.mrb[0].mxu0 %v388
  %v722 = vpop.f32.mrb[0].mxu0
  %v723 = vadd.f32 0.0, %v722
  %v724 = vpop.f32.mrb[0].mxu0
  %v725 = vpop.f32.mrb[0].mxu0
  %v726 = vadd.f32 0.0, %v725
  %v727 = vpop.f32.mrb[0].mxu0
  %728 = vmatprep.mubr.bf16.mxu0 %v392
  %729 = vmatmul.mubr.bf16.gmra.mrb[0].mxu0 %v391
  %v730 = vpop.f32.mrb[0].mxu0
  %v731 = vadd.f32 0.0, %v730
  %v732 = vpop.f32.mrb[0].mxu0
  %v733 = vpop.f32.mrb[0].mxu0
  %v734 = vadd.f32 0.0, %v733
  %v735 = vpop.f32.mrb[0].mxu0
  %736 = vmatprep.mubr.bf16.mxu0 %v395
  %737 = vmatmul.mubr.bf16.gmra.mrb[0].mxu0 %v394
  %v738 = vpop.f32.mrb[0].mxu0
  %v739 = vadd.f32 0.0, %v738
  %v740 = vpop.f32.mrb[0].mxu0
  %v741 = vpop.f32.mrb[0].mxu0
  %v742 = vadd.f32 0.0, %v741
  %v743 = vpop.f32.mrb[0].mxu0
  %744 = vmatprep.mubr.bf16.mxu0 %v398
  %745 = vmatmul.mubr.bf16.gmra.mrb[0].mxu0 %v397
  %v746 = vpop.f32.mrb[0].mxu0
  %v747 = vadd.f32 0.0, %v746
  %v748 = vpop.f32.mrb[0].mxu0
  %v749 = vpop.f32.mrb[0].mxu0
  %v750 = vadd.f32 0.0, %v749
  %v751 = vpop.f32.mrb[0].mxu0
  %752 = vdwg.mxu0
  %753 = vmatprep.subr.bf16.mxu0 0
  %754 = vmatpush1.bf16.msra.mxu0 %v560
  %755 = vmatprep.subr.bf16.mxu0 0
  %756 = vmatpush1.bf16.msra.mxu0 %v561
  %757 = vmatprep.subr.bf16.mxu0 0
  %758 = vmatpush1.bf16.msra.mxu0 %v562
  %759 = vmatprep.subr.bf16.mxu0 0
  %760 = vmatpush1.bf16.msra.mxu0 %v563
  %761 = vmatprep.subr.bf16.mxu0 0
  %762 = vmatpush1.bf16.msra.mxu0 %v564
  %763 = vmatprep.subr.bf16.mxu0 0
  %764 = vmatpush1.bf16.msra.mxu0 %v565
  %765 = vmatprep.subr.bf16.mxu0 0
  %766 = vmatpush1.bf16.msra.mxu0 %v566
  %767 = vmatprep.subr.bf16.mxu0 0
  %768 = vmatpush1.bf16.msra.mxu0 %v567
  %769 = vmatprep.subr.bf16.mxu0 0
  %770 = vmatpush1.bf16.msra.mxu0 0
  %771 = vmatprep.subr.bf16.mxu0 0
  %772 = vmatpush1.bf16.msra.mxu0 0
  %773 = vmatprep.subr.bf16.mxu0 0
  %774 = vmatpush1.bf16.msra.mxu0 0
  %775 = vmatprep.subr.bf16.mxu0 0
  %776 = vmatpush1.bf16.msra.mxu0 0
  %777 = vmatprep.subr.bf16.mxu0 0
  %778 = vmatpush1.bf16.msra.mxu0 0
  %779 = vmatprep.subr.bf16.mxu0 0
  %780 = vmatpush1.bf16.msra.mxu0 0
  %781 = vmatprep.subr.bf16.mxu0 0
  %782 = vmatpush1.bf16.msra.mxu0 0
  %783 = vmatprep.subr.bf16.mxu0 0
  %784 = vmatpush1.bf16.msra.mxu0 0
  %785 = vmatprep.mubr.bf16.mxu0 0
  %786 = vmatmul.mubr.bf16.gmra.mrb[0].mxu0 %v354
  %v787 = vpop.f32.mrb[0].mxu0
  %v788 = vadd.f32 %v627, %v787
  %v789 = vpop.f32.mrb[0].mxu0
  %v790 = vpop.f32.mrb[0].mxu0
  %v791 = vadd.f32 %v630, %v790
  %v792 = vpop.f32.mrb[0].mxu0
  %793 = vmatprep.mubr.bf16.mxu0 0
  %794 = vmatmul.mubr.bf16.gmra.mrb[0].mxu0 %v357
  %v795 = vpop.f32.mrb[0].mxu0
  %v796 = vadd.f32 %v635, %v795
  %v797 = vpop.f32.mrb[0].mxu0
  %v798 = vpop.f32.mrb[0].mxu0
  %v799 = vadd.f32 %v638, %v798
  %v800 = vpop.f32.mrb[0].mxu0
  %801 = vmatprep.mubr.bf16.mxu0 0
  %802 = vmatmul.mubr.bf16.gmra.mrb[0].mxu0 %v360
  %v803 = vpop.f32.mrb[0].mxu0
  %v804 = vadd.f32 %v643, %v803
  %v805 = vpop.f32.mrb[0].mxu0
  %v806 = vpop.f32.mrb[0].mxu0
  %v807 = vadd.f32 %v646, %v806
  %v808 = vpop.f32.mrb[0].mxu0
  %809 = vmatprep.mubr.bf16.mxu0 0
  %810 = vmatmul.mubr.bf16.gmra.mrb[0].mxu0 %v363
  %v811 = vpop.f32.mrb[0].mxu0
  %v812 = vadd.f32 %v651, %v811
  %v813 = vpop.f32.mrb[0].mxu0
  %v814 = vpop.f32.mrb[0].mxu0
  %v815 = vadd.f32 %v654, %v814
  %v816 = vpop.f32.mrb[0].mxu0
  %817 = vmatprep.mubr.bf16.mxu0 0
  %818 = vmatmul.mubr.bf16.gmra.mrb[0].mxu0 %v366
  %v819 = vpop.f32.mrb[0].mxu0
  %v820 = vadd.f32 %v659, %v819
  %v821 = vpop.f32.mrb[0].mxu0
  %v822 = vpop.f32.mrb[0].mxu0
  %v823 = vadd.f32 %v662, %v822
  %v824 = vpop.f32.mrb[0].mxu0
  %825 = vmatprep.mubr.bf16.mxu0 0
  %826 = vmatmul.mubr.bf16.gmra.mrb[0].mxu0 %v369
  %v827 = vpop.f32.mrb[0].mxu0
  %v828 = vadd.f32 %v667, %v827
  %v829 = vpop.f32.mrb[0].mxu0
  %v830 = vpop.f32.mrb[0].mxu0
  %v831 = vadd.f32 %v670, %v830
  %v832 = vpop.f32.mrb[0].mxu0
  %833 = vmatprep.mubr.bf16.mxu0 0
  %834 = vmatmul.mubr.bf16.gmra.mrb[0].mxu0 %v372
  %v835 = vpop.f32.mrb[0].mxu0
  %v836 = vadd.f32 %v675, %v835
  %v837 = vpop.f32.mrb[0].mxu0
  %v838 = vpop.f32.mrb[0].mxu0
  %v839 = vadd.f32 %v678, %v838
  %v840 = vpop.f32.mrb[0].mxu0
  %841 = vmatprep.mubr.bf16.mxu0 0
  %842 = vmatmul.mubr.bf16.gmra.mrb[0].mxu0 %v375
  %v843 = vpop.f32.mrb[0].mxu0
  %v844 = vadd.f32 %v683, %v843
  %v845 = vpop.f32.mrb[0].mxu0
  %v846 = vpop.f32.mrb[0].mxu0
  %v847 = vadd.f32 %v686, %v846
  %v848 = vpop.f32.mrb[0].mxu0
  %849 = vmatprep.mubr.bf16.mxu0 0
  %850 = vmatmul.mubr.bf16.gmra.mrb[0].mxu0 %v378
  %v851 = vpop.f32.mrb[0].mxu0
  %v852 = vadd.f32 %v691, %v851
  %v853 = vpop.f32.mrb[0].mxu0
  %v854 = vpop.f32.mrb[0].mxu0
  %v855 = vadd.f32 %v694, %v854
  %v856 = vpop.f32.mrb[0].mxu0
  %857 = vmatprep.mubr.bf16.mxu0 0
  %858 = vmatmul.mubr.bf16.gmra.mrb[0].mxu0 %v381
  %v859 = vpop.f32.mrb[0].mxu0
  %v860 = vadd.f32 %v699, %v859
  %v861 = vpop.f32.mrb[0].mxu0
  %v862 = vpop.f32.mrb[0].mxu0
  %v863 = vadd.f32 %v702, %v862
  %v864 = vpop.f32.mrb[0].mxu0
  %865 = vmatprep.mubr.bf16.mxu0 0
  %866 = vmatmul.mubr.bf16.gmra.mrb[0].mxu0 %v384
  %v867 = vpop.f32.mrb[0].mxu0
  %v868 = vadd.f32 %v707, %v867
  %v869 = vpop.f32.mrb[0].mxu0
  %v870 = vpop.f32.mrb[0].mxu0
  %v871 = vadd.f32 %v710, %v870
  %v872 = vpop.f32.mrb[0].mxu0
  %873 = vmatprep.mubr.bf16.mxu0 0
  %874 = vmatmul.mubr.bf16.gmra.mrb[0].mxu0 %v387
  %v875 = vpop.f32.mrb[0].mxu0
  %v876 = vadd.f32 %v715, %v875
  %v877 = vpop.f32.mrb[0].mxu0
  %v878 = vpop.f32.mrb[0].mxu0
  %v879 = vadd.f32 %v718, %v878
  %v880 = vpop.f32.mrb[0].mxu0
  %881 = vmatprep.mubr.bf16.mxu0 0
  %882 = vmatmul.mubr.bf16.gmra.mrb[0].mxu0 %v390
  %v883 = vpop.f32.mrb[0].mxu0
  %v884 = vadd.f32 %v723, %v883
  %v885 = vpop.f32.mrb[0].mxu0
  %v886 = vpop.f32.mrb[0].mxu0
  %v887 = vadd.f32 %v726, %v886
  %v888 = vpop.f32.mrb[0].mxu0
  %889 = vmatprep.mubr.bf16.mxu0 0
  %890 = vmatmul.mubr.bf16.gmra.mrb[0].mxu0 %v393
  %v891 = vpop.f32.mrb[0].mxu0
  %v892 = vadd.f32 %v731, %v891
  %v893 = vpop.f32.mrb[0].mxu0
  %v894 = vpop.f32.mrb[0].mxu0
  %v895 = vadd.f32 %v734, %v894
  %v896 = vpop.f32.mrb[0].mxu0
  %897 = vmatprep.mubr.bf16.mxu0 0
  %898 = vmatmul.mubr.bf16.gmra.mrb[0].mxu0 %v396
  %v899 = vpop.f32.mrb[0].mxu0
  %v900 = vadd.f32 %v739, %v899
  %v901 = vpop.f32.mrb[0].mxu0
  %v902 = vpop.f32.mrb[0].mxu0
  %v903 = vadd.f32 %v742, %v902
  %v904 = vpop.f32.mrb[0].mxu0
  %905 = vmatprep.mubr.bf16.mxu0 0
  %906 = vmatmul.mubr.bf16.gmra.mrb[0].mxu0 %v399
  %v907 = vpop.f32.mrb[0].mxu0
  %v908 = vadd.f32 %v747, %v907
  %v909 = vpop.f32.mrb[0].mxu0
  %v910 = vpop.f32.mrb[0].mxu0
  %v911 = vadd.f32 %v750, %v910
  %v912 = vpop.f32.mrb[0].mxu0
  %913 = vdwg.mxu0
  %v914 = vadd.f32 %v48, %v788
  %v915 = vadd.f32 %v49, %v791
  %v916 = vadd.f32 %v50, %v796
  %v917 = vadd.f32 %v51, %v799
  %v918 = vadd.f32 %v52, %v804
  %v919 = vadd.f32 %v53, %v807
  %v920 = vadd.f32 %v54, %v812
  %v921 = vadd.f32 %v55, %v815
  %v922 = vadd.f32 %v56, %v820
  %v923 = vadd.f32 %v57, %v823
  %v924 = vadd.f32 %v58, %v828
  %v925 = vadd.f32 %v59, %v831
  %v926 = vadd.f32 %v60, %v836
  %v927 = vadd.f32 %v61, %v839
  %v928 = vadd.f32 %v62, %v844
  %v929 = vadd.f32 %v63, %v847
  %v930 = vadd.f32 %v64, %v852
  %v931 = vadd.f32 %v65, %v855
  %v932 = vadd.f32 %v66, %v860
  %v933 = vadd.f32 %v67, %v863
  %v934 = vadd.f32 %v68, %v868
  %v935 = vadd.f32 %v69, %v871
  %v936 = vadd.f32 %v70, %v876
  %v937 = vadd.f32 %v71, %v879
  %v938 = vadd.f32 %v72, %v884
  %v939 = vadd.f32 %v73, %v887
  %v940 = vadd.f32 %v74, %v892
  %v941 = vadd.f32 %v75, %v895
  %v942 = vadd.f32 %v76, %v900
  %v943 = vadd.f32 %v77, %v903
  %v944 = vadd.f32 %v78, %v908
  %v945 = vadd.f32 %v79, %v911
  %946 = vst [vmem:[#allocation2] sm:$0xff] %v914
  %947 = vst [vmem:[#allocation2 + $0x8] sm:$0xff] %v915
  %948 = vst [vmem:[#allocation2 + $0x10] sm:$0xff] %v916
  %949 = vst [vmem:[#allocation2 + $0x18] sm:$0xff] %v917
  %950 = vst [vmem:[#allocation2 + $0x20] sm:$0xff] %v918
  %951 = vst [vmem:[#allocation2 + $0x28] sm:$0xff] %v919
  %952 = vst [vmem:[#allocation2 + $0x30] sm:$0xff] %v920
  %953 = vst [vmem:[#allocation2 + $0x38] sm:$0xff] %v921
  %954 = vst [vmem:[#allocation2 + $0x40] sm:$0xff] %v922
  %955 = vst [vmem:[#allocation2 + $0x48] sm:$0xff] %v923
  %956 = vst [vmem:[#allocation2 + $0x50] sm:$0xff] %v924
  %957 = vst [vmem:[#allocation2 + $0x58] sm:$0xff] %v925
  %958 = vst [vmem:[#allocation2 + $0x60] sm:$0xff] %v926
  %959 = vst [vmem:[#allocation2 + $0x68] sm:$0xff] %v927
  %960 = vst [vmem:[#allocation2 + $0x70] sm:$0xff] %v928
  %961 = vst [vmem:[#allocation2 + $0x78] sm:$0xff] %v929
  %962 = vst [vmem:[#allocation2 + $0x80] sm:$0xff] %v930
  %963 = vst [vmem:[#allocation2 + $0x88] sm:$0xff] %v931
  %964 = vst [vmem:[#allocation2 + $0x90] sm:$0xff] %v932
  %965 = vst [vmem:[#allocation2 + $0x98] sm:$0xff] %v933
  %966 = vst [vmem:[#allocation2 + $0xa0] sm:$0xff] %v934
  %967 = vst [vmem:[#allocation2 + $0xa8] sm:$0xff] %v935
  %968 = vst [vmem:[#allocation2 + $0xb0] sm:$0xff] %v936
  %969 = vst [vmem:[#allocation2 + $0xb8] sm:$0xff] %v937
  %970 = vst [vmem:[#allocation2 + $0xc0] sm:$0xff] %v938
  %971 = vst [vmem:[#allocation2 + $0xc8] sm:$0xff] %v939
  %972 = vst [vmem:[#allocation2 + $0xd0] sm:$0xff] %v940
  %973 = vst [vmem:[#allocation2 + $0xd8] sm:$0xff] %v941
  %974 = vst [vmem:[#allocation2 + $0xe0] sm:$0xff] %v942
  %975 = vst [vmem:[#allocation2 + $0xe8] sm:$0xff] %v943
  %976 = vst [vmem:[#allocation2 + $0xf0] sm:$0xff] %v944
  %977 = vst [vmem:[#allocation2 + $0xf8] sm:$0xff] %v945
  // Predicated region
  $region14: #{genenet_forward.33} parent=0 // pred_check
    %p978 = pneg %p12
  $region15: #{genenet_forward.33} parent=0 // pred_check_branch
    %980 = sbr.rel (%p978) target = $region17
  $region16: #{genenet_forward.33} parent=0 // pred_region
    %v981 = vld [vmem:[#allocation2] sm:$0xff]
    %v982 = vld [vmem:[#allocation2 + $0x8] sm:$0xff]
    %v983 = vld [vmem:[#allocation2 + $0x10] sm:$0xff]
    %v984 = vld [vmem:[#allocation2 + $0x18] sm:$0xff]
    %v985 = vld [vmem:[#allocation2 + $0x20] sm:$0xff]
    %v986 = vld [vmem:[#allocation2 + $0x28] sm:$0xff]
    %v987 = vld [vmem:[#allocation2 + $0x30] sm:$0xff]
    %v988 = vld [vmem:[#allocation2 + $0x38] sm:$0xff]
    %v989 = vld [vmem:[#allocation2 + $0x40] sm:$0xff]
    %v990 = vld [vmem:[#allocation2 + $0x48] sm:$0xff]
    %v991 = vld [vmem:[#allocation2 + $0x50] sm:$0xff]
    %v992 = vld [vmem:[#allocation2 + $0x58] sm:$0xff]
    %v993 = vld [vmem:[#allocation2 + $0x60] sm:$0xff]
    %v994 = vld [vmem:[#allocation2 + $0x68] sm:$0xff]
    %v995 = vld [vmem:[#allocation2 + $0x70] sm:$0xff]
    %v996 = vld [vmem:[#allocation2 + $0x78] sm:$0xff]
    %v997 = vld [vmem:[#allocation2 + $0x80] sm:$0xff]
    %v998 = vld [vmem:[#allocation2 + $0x88] sm:$0xff]
    %v999 = vld [vmem:[#allocation2 + $0x90] sm:$0xff]
    %v1000 = vld [vmem:[#allocation2 + $0x98] sm:$0xff]
    %v1001 = vld [vmem:[#allocation2 + $0xa0] sm:$0xff]
    %v1002 = vld [vmem:[#allocation2 + $0xa8] sm:$0xff]
    %v1003 = vld [vmem:[#allocation2 + $0xb0] sm:$0xff]
    %v1004 = vld [vmem:[#allocation2 + $0xb8] sm:$0xff]
    %v1005 = vld [vmem:[#allocation2 + $0xc0] sm:$0xff]
    %v1006 = vld [vmem:[#allocation2 + $0xc8] sm:$0xff]
    %v1007 = vld [vmem:[#allocation2 + $0xd0] sm:$0xff]
    %v1008 = vld [vmem:[#allocation2 + $0xd8] sm:$0xff]
    %v1009 = vld [vmem:[#allocation2 + $0xe0] sm:$0xff]
    %v1010 = vld [vmem:[#allocation2 + $0xe8] sm:$0xff]
    %v1011 = vld [vmem:[#allocation2 + $0xf0] sm:$0xff]
    %v1012 = vld [vmem:[#allocation2 + $0xf8] sm:$0xff]
    %v1013 = vpack.c.bf16 %v982, %v981
    %v1014 = vpack.c.bf16 %v984, %v983
    %v1015 = vpack.c.bf16 %v986, %v985
    %v1016 = vpack.c.bf16 %v988, %v987
    %v1017 = vpack.c.bf16 %v990, %v989
    %v1018 = vpack.c.bf16 %v992, %v991
    %v1019 = vpack.c.bf16 %v994, %v993
    %v1020 = vpack.c.bf16 %v996, %v995
    %v1021 = vpack.c.bf16 %v998, %v997
    %v1022 = vpack.c.bf16 %v1000, %v999
    %v1023 = vpack.c.bf16 %v1002, %v1001
    %v1024 = vpack.c.bf16 %v1004, %v1003
    %v1025 = vpack.c.bf16 %v1006, %v1005
    %v1026 = vpack.c.bf16 %v1008, %v1007
    %v1027 = vpack.c.bf16 %v1010, %v1009
    %v1028 = vpack.c.bf16 %v1012, %v1011
    %v1045 = vunpack.c.l.b16 %v1013
    %v1046 = vunpack.c.h.b16 %v1013
    %v1047 = vunpack.c.l.b16 %v1014
    %v1048 = vunpack.c.h.b16 %v1014
    %v1049 = vunpack.c.l.b16 %v1015
    %v1050 = vunpack.c.h.b16 %v1015
    %v1051 = vunpack.c.l.b16 %v1016
    %v1052 = vunpack.c.h.b16 %v1016
    %v1053 = vunpack.c.l.b16 %v1017
    %v1054 = vunpack.c.h.b16 %v1017
    %v1055 = vunpack.c.l.b16 %v1018
    %v1056 = vunpack.c.h.b16 %v1018
    %v1057 = vunpack.c.l.b16 %v1019
    %v1058 = vunpack.c.h.b16 %v1019
    %v1059 = vunpack.c.l.b16 %v1020
    %v1060 = vunpack.c.h.b16 %v1020
    %v1061 = vunpack.c.l.b16 %v1021
    %v1062 = vunpack.c.h.b16 %v1021
    %v1063 = vunpack.c.l.b16 %v1022
    %v1064 = vunpack.c.h.b16 %v1022
    %v1065 = vunpack.c.l.b16 %v1023
    %v1066 = vunpack.c.h.b16 %v1023
    %v1067 = vunpack.c.l.b16 %v1024
    %v1068 = vunpack.c.h.b16 %v1024
    %v1069 = vunpack.c.l.b16 %v1025
    %v1070 = vunpack.c.h.b16 %v1025
    %v1071 = vunpack.c.l.b16 %v1026
    %v1072 = vunpack.c.h.b16 %v1026
    %v1073 = vunpack.c.l.b16 %v1027
    %v1074 = vunpack.c.h.b16 %v1027
    %v1075 = vunpack.c.l.b16 %v1028
    %v1076 = vunpack.c.h.b16 %v1028
    %v1077 = vpack.c.b16 %v1045, %v1045
    %v1078 = vpack.c.b16 %v1046, %v1046
    %v1079 = vpack.c.b16 %v1047, %v1047
    %v1080 = vpack.c.b16 %v1048, %v1048
    %v1081 = vpack.c.b16 %v1049, %v1049
    %v1082 = vpack.c.b16 %v1050, %v1050
    %v1083 = vpack.c.b16 %v1051, %v1051
    %v1084 = vpack.c.b16 %v1052, %v1052
    %v1085 = vpack.c.b16 %v1053, %v1053
    %v1086 = vpack.c.b16 %v1054, %v1054
    %v1087 = vpack.c.b16 %v1055, %v1055
    %v1088 = vpack.c.b16 %v1056, %v1056
    %v1089 = vpack.c.b16 %v1057, %v1057
    %v1090 = vpack.c.b16 %v1058, %v1058
    %v1091 = vpack.c.b16 %v1059, %v1059
    %v1092 = vpack.c.b16 %v1060, %v1060
    %v1093 = vpack.c.b16 %v1061, %v1061
    %v1094 = vpack.c.b16 %v1062, %v1062
    %v1095 = vpack.c.b16 %v1063, %v1063
    %v1096 = vpack.c.b16 %v1064, %v1064
    %v1097 = vpack.c.b16 %v1065, %v1065
    %v1098 = vpack.c.b16 %v1066, %v1066
    %v1099 = vpack.c.b16 %v1067, %v1067
    %v1100 = vpack.c.b16 %v1068, %v1068
    %v1101 = vpack.c.b16 %v1069, %v1069
    %v1102 = vpack.c.b16 %v1070, %v1070
    %v1103 = vpack.c.b16 %v1071, %v1071
    %v1104 = vpack.c.b16 %v1072, %v1072
    %v1105 = vpack.c.b16 %v1073, %v1073
    %v1106 = vpack.c.b16 %v1074, %v1074
    %v1107 = vpack.c.b16 %v1075, %v1075
    %v1108 = vpack.c.b16 %v1076, %v1076
    %1141 = vst [vmem:[%s2] sm:$0xf] %v1077
    %1142 = vst [vmem:[%s2 + $0x4] sm:$0xf] %v1078
    %1143 = vst [vmem:[%s2 + $0x8] sm:$0xf] %v1079
    %1144 = vst [vmem:[%s2 + $0xc] sm:$0xf] %v1080
    %1145 = vst [vmem:[%s2 + $0x10] sm:$0xf] %v1081
    %1146 = vst [vmem:[%s2 + $0x14] sm:$0xf] %v1082
    %1147 = vst [vmem:[%s2 + $0x18] sm:$0xf] %v1083
    %1148 = vst [vmem:[%s2 + $0x1c] sm:$0xf] %v1084
    %1149 = vst [vmem:[%s2 + $0x20] sm:$0xf] %v1085
    %1150 = vst [vmem:[%s2 + $0x24] sm:$0xf] %v1086
    %1151 = vst [vmem:[%s2 + $0x28] sm:$0xf] %v1087
    %1152 = vst [vmem:[%s2 + $0x2c] sm:$0xf] %v1088
    %1153 = vst [vmem:[%s2 + $0x30] sm:$0xf] %v1089
    %1154 = vst [vmem:[%s2 + $0x34] sm:$0xf] %v1090
    %1155 = vst [vmem:[%s2 + $0x38] sm:$0xf] %v1091
    %1156 = vst [vmem:[%s2 + $0x3c] sm:$0xf] %v1092
    %1157 = vst [vmem:[%s2 + $0x40] sm:$0xf] %v1093
    %1158 = vst [vmem:[%s2 + $0x44] sm:$0xf] %v1094
    %1159 = vst [vmem:[%s2 + $0x48] sm:$0xf] %v1095
    %1160 = vst [vmem:[%s2 + $0x4c] sm:$0xf] %v1096
    %1161 = vst [vmem:[%s2 + $0x50] sm:$0xf] %v1097
    %1162 = vst [vmem:[%s2 + $0x54] sm:$0xf] %v1098
    %1163 = vst [vmem:[%s2 + $0x58] sm:$0xf] %v1099
    %1164 = vst [vmem:[%s2 + $0x5c] sm:$0xf] %v1100
    %1165 = vst [vmem:[%s2 + $0x60] sm:$0xf] %v1101
    %1166 = vst [vmem:[%s2 + $0x64] sm:$0xf] %v1102
    %1167 = vst [vmem:[%s2 + $0x68] sm:$0xf] %v1103
    %1168 = vst [vmem:[%s2 + $0x6c] sm:$0xf] %v1104
    %1169 = vst [vmem:[%s2 + $0x70] sm:$0xf] %v1105
    %1170 = vst [vmem:[%s2 + $0x74] sm:$0xf] %v1106
    %1171 = vst [vmem:[%s2 + $0x78] sm:$0xf] %v1107
    %1172 = vst [vmem:[%s2 + $0x7c] sm:$0xf] %v1108
  $region17: #{genenet_forward.33} parent=0 // pred_fallthru
    _
  // Predicated region
  $region18: #{genenet_forward.33} parent=0 // pred_check
    _
  $region19: #{genenet_forward.33} parent=0 // pred_check_branch
    %1174 = sbr.rel (0) target = $region21
  $region20: #{genenet_forward.33} parent=0 // pred_region
    _
  $region21: #{genenet_forward.33} parent=0 // pred_fallthru
    _
  // Predicated region
  $region22: #{genenet_forward.33} parent=0 // pred_check
    _
  $region23: #{genenet_forward.33} parent=0 // pred_check_branch
    %1176 = sbr.rel (0) target = $region25
  $region24: #{genenet_forward.33} parent=0 // pred_region
    _
  $region25: #{genenet_forward.33} parent=0 // pred_fallthru
    _

// kernel: genenet_forward.36
$region0: #{genenet_forward.36}
  #allocation0 [shape = 'u32[]', space=smem, size = 0x4, offset = 0x4, fixed_abs, tag = 'smem constant byte address 0x4 - core index']
  #allocation1 [shape = 'u32[144,128]{1,0:T(1,128)}', space=vmem, size = 0x12000, scoped, tag = 'internal scratch']
  %s0 = inlined_call_operand.vmem [shape: bf16[2,16,128], index: 0, kind: input, shape index: {}]
  %s1 = inlined_call_operand.vmem [shape: f32[1,1,128], index: 1, kind: input, shape index: {}]
  %s2 = inlined_call_operand.vmem [shape: f32[1,1,128], index: 2, kind: input, shape index: {}]
  %s3 = inlined_call_operand.vmem [shape: bf16[2,16,128], index: 3, kind: output, shape index: {}]
  %s4 = sld [smem:[#allocation0]]
  $region45: #{genenet_forward.36} parent=0
    _
  %s6 = ssub.s32 1, %s4
  %s7 = scalar_select 0, %s6, %s4
  loop: start=0, step=1, limit=4
  $region2: #{genenet_forward.36} parent=0 // loop_pre_header
    _
  $region3: #{genenet_forward.36} parent=0 // loop_header
    %s9 = sphi 0, %s13
    %p10 = scmp.ge.s32.totalorder %s9, 4
    %s19 = sphi 0, %s21
    %s22 = sphi 0, %s19
    %s23 = sphi 0, %s22
    %s39 = sphi 0, %s23
    %s43 = sphi 0, %s43
    %s45 = sphi 0, %s43
    %s46 = sphi 0, %s45
    %s60 = sphi 0, %s46
    %s64 = sphi 0, %s64
    %s66 = sphi 0, %s64
    %s67 = sphi 0, %s66
    %s81 = sphi 0, %s67
    %s87 = sphi 0, %s89
    %s90 = sphi 0, %s87
    %s91 = sphi 0, %s90
    %s107 = sphi 0, %s91
  $region4: #{genenet_forward.36} parent=0 // loop_header_branch
    %12 = sbr.rel (%p10) target = $region8
  $region5: #{genenet_forward.36} parent=0 // loop_body
    %s14 = ssub.s32 %s9, 1
    %s15 = ssub.s32 %s9, 2
    %s16 = sadd.s32 %s9, 1
    %s17 = ssub.s32 %s9, %s16
    %p18 = scmp.eq.s32.totalorder %s17, 0
    %s20 = sadd.s32 %s19, 1
    %s21 = scalar_select %p18, %s19, %s20
    %p24 = pneg %p18
    %p25 = scmp.eq.s32.totalorder %s9, 1
    %p26 = por %p24, %p25
    %p27 = scmp.ne.s32.totalorder %s19, %s22
    %p28 = scmp.eq.s32.totalorder %s9, 0
    %p29 = por %p27, %p28
    %p30 = scmp.ne.s32.totalorder %s19, %s22
    %p31 = scmp.eq.s32.totalorder %s14, 1
    %p32 = por %p30, %p31
    %p33 = scmp.ne.s32.totalorder %s22, %s23
    %p34 = scmp.eq.s32.totalorder %s14, 0
    %p35 = por %p33, %p34
    %p36 = scmp.ne.s32.totalorder %s22, %s23
    %p37 = scmp.eq.s32.totalorder %s15, 1
    %p38 = por %p36, %p37
    %p40 = scmp.ne.s32.totalorder %s23, %s39
    %p41 = scmp.eq.s32.totalorder %s15, 0
    %p42 = por %p40, %p41
    %s44 = sadd.s32 %s43, 1
    %p47 = scmp.eq.s32.totalorder %s9, 1
    %p48 = scmp.ne.s32.totalorder %s43, %s45
    %p49 = scmp.eq.s32.totalorder %s9, 0
    %p50 = por %p48, %p49
    %p51 = scmp.ne.s32.totalorder %s43, %s45
    %p52 = scmp.eq.s32.totalorder %s14, 1
    %p53 = por %p51, %p52
    %p54 = scmp.ne.s32.totalorder %s45, %s46
    %p55 = scmp.eq.s32.totalorder %s14, 0
    %p56 = por %p54, %p55
    %p57 = scmp.ne.s32.totalorder %s45, %s46
    %p58 = scmp.eq.s32.totalorder %s15, 1
    %p59 = por %p57, %p58
    %p61 = scmp.ne.s32.totalorder %s46, %s60
    %p62 = scmp.eq.s32.totalorder %s15, 0
    %p63 = por %p61, %p62
    %s65 = sadd.s32 %s64, 1
    %p68 = scmp.eq.s32.totalorder %s9, 1
    %p69 = scmp.ne.s32.totalorder %s64, %s66
    %p70 = scmp.eq.s32.totalorder %s9, 0
    %p71 = por %p69, %p70
    %p72 = scmp.ne.s32.totalorder %s64, %s66
    %p73 = scmp.eq.s32.totalorder %s14, 1
    %p74 = por %p72, %p73
    %p75 = scmp.ne.s32.totalorder %s66, %s67
    %p76 = scmp.eq.s32.totalorder %s14, 0
    %p77 = por %p75, %p76
    %p78 = scmp.ne.s32.totalorder %s66, %s67
    %p79 = scmp.eq.s32.totalorder %s15, 1
    %p80 = por %p78, %p79
    %p82 = scmp.ne.s32.totalorder %s67, %s81
    %p83 = scmp.eq.s32.totalorder %s15, 0
    %p84 = por %p82, %p83
    %s85 = ssub.s32 %s9, %s16
    %p86 = scmp.eq.s32.totalorder %s85, 0
    %s88 = sadd.s32 %s87, 1
    %s89 = scalar_select %p86, %s87, %s88
    %p92 = pneg %p86
    %p93 = scmp.eq.s32.totalorder %s9, 1
    %p94 = por %p92, %p93
    %p95 = scmp.ne.s32.totalorder %s87, %s90
    %p96 = scmp.eq.s32.totalorder %s9, 0
    %p97 = por %p95, %p96
    %p98 = scmp.ne.s32.totalorder %s87, %s90
    %p99 = scmp.eq.s32.totalorder %s14, 1
    %p100 = por %p98, %p99
    %p101 = scmp.ne.s32.totalorder %s90, %s91
    %p102 = scmp.eq.s32.totalorder %s14, 0
    %p103 = por %p101, %p102
    %p104 = scmp.ne.s32.totalorder %s90, %s91
    %p105 = scmp.eq.s32.totalorder %s15, 1
    %p106 = por %p104, %p105
    %p108 = scmp.ne.s32.totalorder %s91, %s107
    %p109 = scmp.eq.s32.totalorder %s15, 0
    %p110 = por %p108, %p109
    %p111 = scmp.le.s32.totalorder 1, %s9
    %p112 = scmp.lt.s32.totalorder %s9, 3
    %p113 = pnand %p111, %p112
    %p114 = pneg %p113
    // Predicated region
    $region9: #{genenet_forward.36} parent=5 // pred_check
      _
    $region10: #{genenet_forward.36} parent=5 // pred_check_branch
      %116 = sbr.rel (%p113) target = $region12
    $region11: #{genenet_forward.36} parent=5 // pred_region
      %s117 = ssub.s32 %s9, 1
      // Predicated region
      $region13: #{genenet_forward.36} parent=11 // pred_check
        %p118 = pneg %p56
      $region14: #{genenet_forward.36} parent=11 // pred_check_branch
        %120 = sbr.rel (%p118) target = $region16
      $region15: #{genenet_forward.36} parent=11 // pred_region
        _
      $region16: #{genenet_forward.36} parent=11 // pred_fallthru
        _
      // Predicated region
      $region17: #{genenet_forward.36} parent=11 // pred_check
        %p121 = pneg %p77
      $region18: #{genenet_forward.36} parent=11 // pred_check_branch
        %123 = sbr.rel (%p121) target = $region20
      $region19: #{genenet_forward.36} parent=11 // pred_region
        _
      $region20: #{genenet_forward.36} parent=11 // pred_fallthru
        _
    $region12: #{genenet_forward.36} parent=5 // pred_fallthru
      _
    %p124 = scmp.lt.s32.totalorder %s9, 2
    // Predicated region
    $region21: #{genenet_forward.36} parent=5 // pred_check
      %p125 = pneg %p124
    $region22: #{genenet_forward.36} parent=5 // pred_check_branch
      %127 = sbr.rel (%p125) target = $region24
    $region23: #{genenet_forward.36} parent=5 // pred_region
      // Predicated region
      $region25: #{genenet_forward.36} parent=23 // pred_check
        %p128 = pneg %p29
      $region26: #{genenet_forward.36} parent=23 // pred_check_branch
        %130 = sbr.rel (%p128) target = $region28
      $region27: #{genenet_forward.36} parent=23 // pred_region
        %p131 = scmp.lt.s32.totalorder %s9, 1
        %s132 = scalar_select %p131, %s9, 1
        %s133 = smul.addr %s132, 2
        %s134 = smul.addr %s133, 4
        %s135 = scalar_lea.vmem %s0, %s134
      $region28: #{genenet_forward.36} parent=23 // pred_fallthru
        _
    $region24: #{genenet_forward.36} parent=5 // pred_fallthru
      _
    %p136 = scmp.le.s32.totalorder 1, %s9
    %p137 = scmp.lt.s32.totalorder %s9, 3
    %p138 = pnand %p136, %p137
    %p139 = pneg %p138
    // Predicated region
    $region29: #{genenet_forward.36} parent=5 // pred_check
      _
    $region30: #{genenet_forward.36} parent=5 // pred_check_branch
      %141 = sbr.rel (%p138) target = $region32
    $region31: #{genenet_forward.36} parent=5 // pred_region
      %s142 = ssub.s32 %s9, 1
      %p143 = scmp.lt.s32.totalorder %s14, 1
      %s144 = scalar_select %p143, %s14, 1
      %s145 = smul.addr %s144, 2
      %s146 = smul.addr %s145, 4
      %s147 = scalar_lea.vmem %s0, %s146
      %p148 = pneg %p35
      %p149 = pneg %p32
      %p150 = pneg %p56
      %p151 = pneg %p53
      %p152 = pneg %p77
      %p153 = pneg %p74
      %p154 = pneg %p103
      %p155 = pneg %p100
      %p156 = scmp.lt.s32.totalorder %s14, 1
      %s157 = scalar_select %p156, %s14, 1
      %s158 = smul.addr %s157, 2
      %s159 = smul.addr %s158, 4
      %s160 = scalar_lea.vmem %s3, %s159
      %p161 = scmp.lt.s32.totalorder %s14, 1
      %s162 = scalar_select %p161, %s14, 1
      %s163 = smul.addr %s162, 2
      %s164 = smul.addr %s163, 4
      %s165 = scalar_lea.vmem %s0, %s164
      %p166 = scmp.lt.s32.totalorder %s14, 1
      %s167 = scalar_select %p166, %s14, 1
      %s168 = smul.addr %s167, 2
      %s169 = smul.addr %s168, 4
      %s170 = scalar_lea.vmem %s3, %s169
      %v171 = vld [vmem:[%s165] sm:$0xf]
      %v172 = vld [vmem:[%s165 + $0x4] sm:$0xf]
      %v173 = vunpack.c.l.bf16 %v171
      %v174 = vunpack.c.l.bf16 %v172
      %v175 = vadd.f32 %v173, %v174
      %v176 = vrot.slane %v175, 4
      %v177 = vadd.f32 %v175, %v176
      %v178 = vrot.slane %v177, 2
      %v179 = vadd.f32 %v177, %v178
      %v180 = vrot.slane %v179, 1
      %v181 = vadd.f32 %v179, %v180
      %v182 = vrcp.pop 16.0
      %v183 = vmul.f32 %v181, %v182
      %v184 = vsub.f32 %v173, %v183
      %v185 = vsub.f32 %v174, %v183
      %v186 = vmul.f32 %v184, %v184
      %v187 = vmul.f32 %v185, %v185
      %v188 = vadd.f32 %v186, %v187
      %v189 = vrot.slane %v188, 4
      %v190 = vadd.f32 %v188, %v189
      %v191 = vrot.slane %v190, 2
      %v192 = vadd.f32 %v190, %v191
      %v193 = vrot.slane %v192, 1
      %v194 = vadd.f32 %v192, %v193
      %v195 = vmul.f32 %v194, %v182
      %v196 = vadd.f32 %v195, 1e-05
      %v197 = vrsqrt.pop %v196
      %v198 = vmul.f32 %v184, %v197
      %v199 = vmul.f32 %v185, %v197
      %v200 = vld [vmem:[%s1] sm:$0x1]
      %v202 = vlaneseq
      %v203 = vshrl.u32 %v202, 7
      %v204 = vsub.s32 0, %v203
      %v205 = vrot.slane %v200, %v204
      %v207 = vmul.f32 %v198, %v205
      %v208 = vmul.f32 %v199, %v205
      %v209 = vld [vmem:[%s2] sm:$0x1]
      %v211 = vlaneseq
      %v212 = vshrl.u32 %v211, 7
      %v213 = vsub.s32 0, %v212
      %v214 = vrot.slane %v209, %v213
      %v216 = vadd.f32 %v207, %v214
      %v217 = vadd.f32 %v208, %v214
      %v218 = vmax.f32 %v216, 0.0
      %v219 = vmax.f32 %v217, 0.0
      %v220 = vpack.c.bf16 %v219, %v218
      %v222 = vunpack.c.l.b16 %v220
      %v223 = vunpack.c.h.b16 %v220
      %v224 = vpack.c.b16 %v222, %v222
      %v225 = vpack.c.b16 %v223, %v223
      %228 = vst [vmem:[%s170] sm:$0xf] %v224
      %229 = vst [vmem:[%s170 + $0x4] sm:$0xf] %v225
      %p230 = scmp.lt.s32.totalorder %s14, 1
      %s231 = scalar_select %p230, %s14, 1
      %s232 = smul.addr %s231, 2
      %s233 = smul.addr %s232, 4
      %s234 = scalar_lea.vmem %s3, %s233
      // Predicated region
      $region33: #{genenet_forward.36} parent=31 // pred_check
        %p235 = pneg %p100
      $region34: #{genenet_forward.36} parent=31 // pred_check_branch
        %237 = sbr.rel (%p235) target = $region36
      $region35: #{genenet_forward.36} parent=31 // pred_region
        _
      $region36: #{genenet_forward.36} parent=31 // pred_fallthru
        _
    $region32: #{genenet_forward.36} parent=5 // pred_fallthru
      _
    %p238 = scmp.le.s32.totalorder 2, %s9
    // Predicated region
    $region37: #{genenet_forward.36} parent=5 // pred_check
      %p239 = pneg %p238
    $region38: #{genenet_forward.36} parent=5 // pred_check_branch
      %241 = sbr.rel (%p239) target = $region40
    $region39: #{genenet_forward.36} parent=5 // pred_region
      %s242 = ssub.s32 %s9, 2
      // Predicated region
      $region41: #{genenet_forward.36} parent=39 // pred_check
        %p243 = pneg %p106
      $region42: #{genenet_forward.36} parent=39 // pred_check_branch
        %245 = sbr.rel (%p243) target = $region44
      $region43: #{genenet_forward.36} parent=39 // pred_region
        %p246 = scmp.lt.s32.totalorder %s15, 1
        %s247 = scalar_select %p246, %s15, 1
        %s248 = smul.addr %s247, 2
        %s249 = smul.addr %s248, 4
        %s250 = scalar_lea.vmem %s3, %s249
      $region44: #{genenet_forward.36} parent=39 // pred_fallthru
        _
    $region40: #{genenet_forward.36} parent=5 // pred_fallthru
      _
  $region6: #{genenet_forward.36} parent=0 // loop_footer
    %s13 = sadd.s32 1, %s9
  $region7: #{genenet_forward.36} parent=0 // loop_footer_branch
    %8 = sbr.rel target = $region3
  $region8: #{genenet_forward.36} parent=0 // loop_exit
    _

// kernel: genenet_forward.35
$region0: #{genenet_forward.35}
  #allocation0 [shape = 'u32[]', space=smem, size = 0x4, offset = 0x4, fixed_abs, tag = 'smem constant byte address 0x4 - core index']
  #allocation1 [shape = 'u32[144,128]{1,0:T(1,128)}', space=vmem, size = 0x12000, scoped, tag = 'internal scratch']
  #allocation2 [shape = 'f32[256,128]{1,0:T(8,128)}', space=vmem, size = 0x20000, scoped, tag = 'scratch operand']
  %s0 = inlined_call_operand.vmem [shape: bf16[256,768], index: 0, kind: input, shape index: {}]
  %s1 = inlined_call_operand.vmem [shape: bf16[768,128], index: 1, kind: input, shape index: {}]
  %s2 = inlined_call_operand.vmem [shape: bf16[256,128], index: 2, kind: output, shape index: {}]
  %s3 = sld [smem:[#allocation0]]
  $region75: #{genenet_forward.35} parent=0
    _
  %s5 = ssub.s32 1, %s3
  %s6 = scalar_select 0, %s5, %s3
  $region1: #{genenet_forward.35} parent=0
    #allocation3 [shape = 'u8[393216]{0}', space=vmem, size = 0x60000, scoped, tag = 'input window, operand 0']
    loop: start=0, step=1, limit=4
    $region2: #{genenet_forward.35} parent=1 // loop_pre_header
      _
    $region3: #{genenet_forward.35} parent=1 // loop_header
      %s8 = sphi 0, %s12
      %p9 = scmp.ge.s32.totalorder %s8, 4
      %s15 = sphi 0, %s27
      %s16 = sphi 0, %s23
      %s17 = sphi 0, %s15
      %s18 = sphi 0, %s16
      %s19 = sphi 0, %s17
      %s20 = sphi 0, %s18
      %s32 = sphi 0, %s34
      %s35 = sphi 0, %s32
      %s36 = sphi 0, %s35
      %s52 = sphi 0, %s36
      %s58 = sphi 0, %s60
      %s61 = sphi 0, %s58
      %s62 = sphi 0, %s61
      %s78 = sphi 0, %s62
      %s84 = sphi 0, %s86
      %s87 = sphi 0, %s84
      %s88 = sphi 0, %s87
      %s104 = sphi 0, %s88
    $region4: #{genenet_forward.35} parent=1 // loop_header_branch
      %11 = sbr.rel (%p9) target = $region8
    $region5: #{genenet_forward.35} parent=1 // loop_body
      %s13 = ssub.s32 %s8, 1
      %s14 = ssub.s32 %s8, 2
      %s21 = sadd.s32 1, %s16
      %p22 = scmp.ge.s32.totalorder %s21, 2
      %s23 = scalar_select %p22, 0, %s21
      %s24 = sadd.s32 1, %s15
      %s25 = scalar_select %p22, %s24, %s15
      %p26 = scmp.ge.s32.totalorder %s25, 1
      %s27 = scalar_select %p26, 0, %s25
      %s28 = ssub.s32 %s15, %s27
      %s29 = ssub.s32 %s16, %s23
      %s30 = sor.u32 %s28, %s29
      %p31 = scmp.eq.s32.totalorder %s30, 0
      %s33 = sadd.s32 %s32, 1
      %s34 = scalar_select %p31, %s32, %s33
      %p37 = pneg %p31
      %p38 = scmp.eq.s32.totalorder %s8, 1
      %p39 = por %p37, %p38
      %p40 = scmp.ne.s32.totalorder %s32, %s35
      %p41 = scmp.eq.s32.totalorder %s8, 0
      %p42 = por %p40, %p41
      %p43 = scmp.ne.s32.totalorder %s32, %s35
      %p44 = scmp.eq.s32.totalorder %s13, 1
      %p45 = por %p43, %p44
      %p46 = scmp.ne.s32.totalorder %s35, %s36
      %p47 = scmp.eq.s32.totalorder %s13, 0
      %p48 = por %p46, %p47
      %p49 = scmp.ne.s32.totalorder %s35, %s36
      %p50 = scmp.eq.s32.totalorder %s14, 1
      %p51 = por %p49, %p50
      %p53 = scmp.ne.s32.totalorder %s36, %s52
      %p54 = scmp.eq.s32.totalorder %s14, 0
      %p55 = por %p53, %p54
      %s56 = ssub.s32 %s16, %s23
      %p57 = scmp.eq.s32.totalorder %s56, 0
      %s59 = sadd.s32 %s58, 1
      %s60 = scalar_select %p57, %s58, %s59
      %p63 = pneg %p57
      %p64 = scmp.eq.s32.totalorder %s8, 1
      %p65 = por %p63, %p64
      %p66 = scmp.ne.s32.totalorder %s58, %s61
      %p67 = scmp.eq.s32.totalorder %s8, 0
      %p68 = por %p66, %p67
      %p69 = scmp.ne.s32.totalorder %s58, %s61
      %p70 = scmp.eq.s32.totalorder %s13, 1
      %p71 = por %p69, %p70
      %p72 = scmp.ne.s32.totalorder %s61, %s62
      %p73 = scmp.eq.s32.totalorder %s13, 0
      %p74 = por %p72, %p73
      %p75 = scmp.ne.s32.totalorder %s61, %s62
      %p76 = scmp.eq.s32.totalorder %s14, 1
      %p77 = por %p75, %p76
      %p79 = scmp.ne.s32.totalorder %s62, %s78
      %p80 = scmp.eq.s32.totalorder %s14, 0
      %p81 = por %p79, %p80
      %s82 = ssub.s32 %s15, %s27
      %p83 = scmp.eq.s32.totalorder %s82, 0
      %s85 = sadd.s32 %s84, 1
      %s86 = scalar_select %p83, %s84, %s85
      %p89 = pneg %p83
      %p90 = scmp.eq.s32.totalorder %s8, 1
      %p91 = por %p89, %p90
      %p92 = scmp.ne.s32.totalorder %s84, %s87
      %p93 = scmp.eq.s32.totalorder %s8, 0
      %p94 = por %p92, %p93
      %p95 = scmp.ne.s32.totalorder %s84, %s87
      %p96 = scmp.eq.s32.totalorder %s13, 1
      %p97 = por %p95, %p96
      %p98 = scmp.ne.s32.totalorder %s87, %s88
      %p99 = scmp.eq.s32.totalorder %s13, 0
      %p100 = por %p98, %p99
      %p101 = scmp.ne.s32.totalorder %s87, %s88
      %p102 = scmp.eq.s32.totalorder %s14, 1
      %p103 = por %p101, %p102
      %p105 = scmp.ne.s32.totalorder %s88, %s104
      %p106 = scmp.eq.s32.totalorder %s14, 0
      %p107 = por %p105, %p106
      %p108 = scmp.le.s32.totalorder 1, %s8
      %p109 = scmp.lt.s32.totalorder %s8, 3
      %p110 = pnand %p108, %p109
      %p111 = pneg %p110
      // Predicated region
      $region9: #{genenet_forward.35} parent=5 // pred_check
        _
      $region10: #{genenet_forward.35} parent=5 // pred_check_branch
        %113 = sbr.rel (%p110) target = $region12
      $region11: #{genenet_forward.35} parent=5 // pred_region
        %s114 = ssub.s32 %s8, 1
      $region12: #{genenet_forward.35} parent=5 // pred_fallthru
        _
      %p115 = scmp.lt.s32.totalorder %s8, 2
      // Predicated region
      $region13: #{genenet_forward.35} parent=5 // pred_check
        %p116 = pneg %p115
      $region14: #{genenet_forward.35} parent=5 // pred_check_branch
        %118 = sbr.rel (%p116) target = $region16
      $region15: #{genenet_forward.35} parent=5 // pred_region
        // Predicated region
        $region17: #{genenet_forward.35} parent=15 // pred_check
          %p119 = pneg %p42
        $region18: #{genenet_forward.35} parent=15 // pred_check_branch
          %121 = sbr.rel (%p119) target = $region20
        $region19: #{genenet_forward.35} parent=15 // pred_region
          %s122 = sand.u32 %s32, 1
          %s123 = sand.u32 %s32, 1
          %s124 = smul.addr %s123, 384
          %s125 = scalar_lea.vmem [#allocation3], %s124
          %s126 = smul.u32 32, %s15
          %s127 = smul.u32 3, %s16
          %s128 = smul.addr %s126, 6
          %s129 = sadd.s32 %s127, %s128
          %s130 = smul.addr %s129, 4
          %s131 = scalar_lea.vmem %s0, %s130
          // Predicated region
          $region21: #{genenet_forward.35} parent=19 // pred_check
            _
          $region22: #{genenet_forward.35} parent=19 // pred_check_branch
            %133 = sbr.rel (0) target = $region24
          $region23: #{genenet_forward.35} parent=19 // pred_region
            // Predicated region
            $region25: #{genenet_forward.35} parent=23 // pred_check
              _
            $region26: #{genenet_forward.35} parent=23 // pred_check_branch
              %135 = sbr.rel (0) target = $region28
            $region27: #{genenet_forward.35} parent=23 // pred_region
              %s136 = scalar_lea.vmem %s131, 8
              %s137 = scalar_lea.vmem %s125, 8 [#allocation3]
              loop: start=0, step=1, limit=1
              $region29: #{genenet_forward.35} parent=27 // loop_pre_header
                _
              $region30: #{genenet_forward.35} parent=27 // loop_header
                %s139 = sphi 0, %s143
                %p140 = scmp.ge.s32.totalorder %s139, 1
                %s144 = sphi %s131, %s131
                %s145 = sphi %s125, %s125
              $region31: #{genenet_forward.35} parent=27 // loop_header_branch
                %142 = sbr.rel (%p140) target = $region35
              $region32: #{genenet_forward.35} parent=27 // loop_body
                %v146 = vld [vmem:[%s144] sm:$0xff]
                %147 = vst [vmem:[%s145] sm:$0xff] %v146
                %v148 = vld [vmem:[%s144 + $0x18] sm:$0xff]
                %149 = vst [vmem:[%s145 + $0xc] sm:$0xff] %v148
                %v150 = vld [vmem:[%s144 + $0x30] sm:$0xff]
                %151 = vst [vmem:[%s145 + $0x18] sm:$0xff] %v150
                %v152 = vld [vmem:[%s144 + $0x48] sm:$0xff]
                %153 = vst [vmem:[%s145 + $0x24] sm:$0xff] %v152
                %v154 = vld [vmem:[%s144 + $0x60] sm:$0xff]
                %155 = vst [vmem:[%s145 + $0x30] sm:$0xff] %v154
                %v156 = vld [vmem:[%s144 + $0x78] sm:$0xff]
                %157 = vst [vmem:[%s145 + $0x3c] sm:$0xff] %v156
                %v158 = vld [vmem:[%s144 + $0x90] sm:$0xff]
                %159 = vst [vmem:[%s145 + $0x48] sm:$0xff] %v158
                %v160 = vld [vmem:[%s144 + $0xa8] sm:$0xff]
                %161 = vst [vmem:[%s145 + $0x54] sm:$0xff] %v160
                %v162 = vld [vmem:[%s144 + $0xc0] sm:$0xff]
                %163 = vst [vmem:[%s145 + $0x60] sm:$0xff] %v162
                %v164 = vld [vmem:[%s144 + $0xd8] sm:$0xff]
                %165 = vst [vmem:[%s145 + $0x6c] sm:$0xff] %v164
                %v166 = vld [vmem:[%s144 + $0xf0] sm:$0xff]
                %167 = vst [vmem:[%s145 + $0x78] sm:$0xff] %v166
                %v168 = vld [vmem:[%s144 + $0x108] sm:$0xff]
                %169 = vst [vmem:[%s145 + $0x84] sm:$0xff] %v168
                %v170 = vld [vmem:[%s144 + $0x120] sm:$0xff]
                %171 = vst [vmem:[%s145 + $0x90] sm:$0xff] %v170
                %v172 = vld [vmem:[%s144 + $0x138] sm:$0xff]
                %173 = vst [vmem:[%s145 + $0x9c] sm:$0xff] %v172
                %v174 = vld [vmem:[%s144 + $0x150] sm:$0xff]
                %175 = vst [vmem:[%s145 + $0xa8] sm:$0xff] %v174
                %v176 = vld [vmem:[%s144 + $0x168] sm:$0xff]
                %177 = vst [vmem:[%s145 + $0xb4] sm:$0xff] %v176
                %v178 = vld [vmem:[%s144 + $0x180] sm:$0xff]
                %179 = vst [vmem:[%s145 + $0xc0] sm:$0xff] %v178
                %v180 = vld [vmem:[%s144 + $0x198] sm:$0xff]
                %181 = vst [vmem:[%s145 + $0xcc] sm:$0xff] %v180
                %v182 = vld [vmem:[%s144 + $0x1b0] sm:$0xff]
                %183 = vst [vmem:[%s145 + $0xd8] sm:$0xff] %v182
                %v184 = vld [vmem:[%s144 + $0x1c8] sm:$0xff]
                %185 = vst [vmem:[%s145 + $0xe4] sm:$0xff] %v184
                %v186 = vld [vmem:[%s144 + $0x1e0] sm:$0xff]
                %187 = vst [vmem:[%s145 + $0xf0] sm:$0xff] %v186
                %v188 = vld [vmem:[%s144 + $0x1f8] sm:$0xff]
                %189 = vst [vmem:[%s145 + $0xfc] sm:$0xff] %v188
                %v190 = vld [vmem:[%s144 + $0x210] sm:$0xff]
                %191 = vst [vmem:[%s145 + $0x108] sm:$0xff] %v190
                %v192 = vld [vmem:[%s144 + $0x228] sm:$0xff]
                %193 = vst [vmem:[%s145 + $0x114] sm:$0xff] %v192
                %v194 = vld [vmem:[%s144 + $0x240] sm:$0xff]
                %195 = vst [vmem:[%s145 + $0x120] sm:$0xff] %v194
                %v196 = vld [vmem:[%s144 + $0x258] sm:$0xff]
                %197 = vst [vmem:[%s145 + $0x12c] sm:$0xff] %v196
                %v198 = vld [vmem:[%s144 + $0x270] sm:$0xff]
                %199 = vst [vmem:[%s145 + $0x138] sm:$0xff] %v198
                %v200 = vld [vmem:[%s144 + $0x288] sm:$0xff]
                %201 = vst [vmem:[%s145 + $0x144] sm:$0xff] %v200
                %v202 = vld [vmem:[%s144 + $0x2a0] sm:$0xff]
                %203 = vst [vmem:[%s145 + $0x150] sm:$0xff] %v202
                %v204 = vld [vmem:[%s144 + $0x2b8] sm:$0xff]
                %205 = vst [vmem:[%s145 + $0x15c] sm:$0xff] %v204
                %v206 = vld [vmem:[%s144 + $0x2d0] sm:$0xff]
                %207 = vst [vmem:[%s145 + $0x168] sm:$0xff] %v206
                %v208 = vld [vmem:[%s144 + $0x2e8] sm:$0xff]
                %209 = vst [vmem:[%s145 + $0x174] sm:$0xff] %v208
              $region33: #{genenet_forward.35} parent=27 // loop_footer
                %s143 = sadd.s32 1, %s139
              $region34: #{genenet_forward.35} parent=27 // loop_footer_branch
                %138 = sbr.rel target = $region30
              $region35: #{genenet_forward.35} parent=27 // loop_exit
                _
              loop: start=0, step=1, limit=1
              $region36: #{genenet_forward.35} parent=27 // loop_pre_header
                _
              $region37: #{genenet_forward.35} parent=27 // loop_header
                %s212 = sphi 0, %s216
                %p213 = scmp.ge.s32.totalorder %s212, 1
                %s217 = sphi %s136, %s136
                %s218 = sphi %s137, %s137
              $region38: #{genenet_forward.35} parent=27 // loop_header_branch
                %215 = sbr.rel (%p213) target = $region42
              $region39: #{genenet_forward.35} parent=27 // loop_body
                %v219 = vld [vmem:[%s217] sm:$0xf]
                %220 = vst [vmem:[%s218] sm:$0xf] %v219
                %v221 = vld [vmem:[%s217 + $0x18] sm:$0xf]
                %222 = vst [vmem:[%s218 + $0xc] sm:$0xf] %v221
                %v223 = vld [vmem:[%s217 + $0x30] sm:$0xf]
                %224 = vst [vmem:[%s218 + $0x18] sm:$0xf] %v223
                %v225 = vld [vmem:[%s217 + $0x48] sm:$0xf]
                %226 = vst [vmem:[%s218 + $0x24] sm:$0xf] %v225
                %v227 = vld [vmem:[%s217 + $0x60] sm:$0xf]
                %228 = vst [vmem:[%s218 + $0x30] sm:$0xf] %v227
                %v229 = vld [vmem:[%s217 + $0x78] sm:$0xf]
                %230 = vst [vmem:[%s218 + $0x3c] sm:$0xf] %v229
                %v231 = vld [vmem:[%s217 + $0x90] sm:$0xf]
                %232 = vst [vmem:[%s218 + $0x48] sm:$0xf] %v231
                %v233 = vld [vmem:[%s217 + $0xa8] sm:$0xf]
                %234 = vst [vmem:[%s218 + $0x54] sm:$0xf] %v233
                %v235 = vld [vmem:[%s217 + $0xc0] sm:$0xf]
                %236 = vst [vmem:[%s218 + $0x60] sm:$0xf] %v235
                %v237 = vld [vmem:[%s217 + $0xd8] sm:$0xf]
                %238 = vst [vmem:[%s218 + $0x6c] sm:$0xf] %v237
                %v239 = vld [vmem:[%s217 + $0xf0] sm:$0xf]
                %240 = vst [vmem:[%s218 + $0x78] sm:$0xf] %v239
                %v241 = vld [vmem:[%s217 + $0x108] sm:$0xf]
                %242 = vst [vmem:[%s218 + $0x84] sm:$0xf] %v241
                %v243 = vld [vmem:[%s217 + $0x120] sm:$0xf]
                %244 = vst [vmem:[%s218 + $0x90] sm:$0xf] %v243
                %v245 = vld [vmem:[%s217 + $0x138] sm:$0xf]
                %246 = vst [vmem:[%s218 + $0x9c] sm:$0xf] %v245
                %v247 = vld [vmem:[%s217 + $0x150] sm:$0xf]
                %248 = vst [vmem:[%s218 + $0xa8] sm:$0xf] %v247
                %v249 = vld [vmem:[%s217 + $0x168] sm:$0xf]
                %250 = vst [vmem:[%s218 + $0xb4] sm:$0xf] %v249
                %v251 = vld [vmem:[%s217 + $0x180] sm:$0xf]
                %252 = vst [vmem:[%s218 + $0xc0] sm:$0xf] %v251
                %v253 = vld [vmem:[%s217 + $0x198] sm:$0xf]
                %254 = vst [vmem:[%s218 + $0xcc] sm:$0xf] %v253
                %v255 = vld [vmem:[%s217 + $0x1b0] sm:$0xf]
                %256 = vst [vmem:[%s218 + $0xd8] sm:$0xf] %v255
                %v257 = vld [vmem:[%s217 + $0x1c8] sm:$0xf]
                %258 = vst [vmem:[%s218 + $0xe4] sm:$0xf] %v257
                %v259 = vld [vmem:[%s217 + $0x1e0] sm:$0xf]
                %260 = vst [vmem:[%s218 + $0xf0] sm:$0xf] %v259
                %v261 = vld [vmem:[%s217 + $0x1f8] sm:$0xf]
                %262 = vst [vmem:[%s218 + $0xfc] sm:$0xf] %v261
                %v263 = vld [vmem:[%s217 + $0x210] sm:$0xf]
                %264 = vst [vmem:[%s218 + $0x108] sm:$0xf] %v263
                %v265 = vld [vmem:[%s217 + $0x228] sm:$0xf]
                %266 = vst [vmem:[%s218 + $0x114] sm:$0xf] %v265
                %v267 = vld [vmem:[%s217 + $0x240] sm:$0xf]
                %268 = vst [vmem:[%s218 + $0x120] sm:$0xf] %v267
                %v269 = vld [vmem:[%s217 + $0x258] sm:$0xf]
                %270 = vst [vmem:[%s218 + $0x12c] sm:$0xf] %v269
                %v271 = vld [vmem:[%s217 + $0x270] sm:$0xf]
                %272 = vst [vmem:[%s218 + $0x138] sm:$0xf] %v271
                %v273 = vld [vmem:[%s217 + $0x288] sm:$0xf]
                %274 = vst [vmem:[%s218 + $0x144] sm:$0xf] %v273
                %v275 = vld [vmem:[%s217 + $0x2a0] sm:$0xf]
                %276 = vst [vmem:[%s218 + $0x150] sm:$0xf] %v275
                %v277 = vld [vmem:[%s217 + $0x2b8] sm:$0xf]
                %278 = vst [vmem:[%s218 + $0x15c] sm:$0xf] %v277
                %v279 = vld [vmem:[%s217 + $0x2d0] sm:$0xf]
                %280 = vst [vmem:[%s218 + $0x168] sm:$0xf] %v279
                %v281 = vld [vmem:[%s217 + $0x2e8] sm:$0xf]
                %282 = vst [vmem:[%s218 + $0x174] sm:$0xf] %v281
              $region40: #{genenet_forward.35} parent=27 // loop_footer
                %s216 = sadd.s32 1, %s212
              $region41: #{genenet_forward.35} parent=27 // loop_footer_branch
                %211 = sbr.rel target = $region37
              $region42: #{genenet_forward.35} parent=27 // loop_exit
                _
            $region28: #{genenet_forward.35} parent=23 // pred_fallthru
              _
          $region24: #{genenet_forward.35} parent=19 // pred_fallthru
            _
          %283 = vnop
        $region20: #{genenet_forward.35} parent=15 // pred_fallthru
          _
        // Predicated region
        $region43: #{genenet_forward.35} parent=15 // pred_check
          %p284 = pneg %p68
        $region44: #{genenet_forward.35} parent=15 // pred_check_branch
          %286 = sbr.rel (%p284) target = $region46
        $region45: #{genenet_forward.35} parent=15 // pred_region
          %s287 = smul.u32 48, %s16
          %p288 = scmp.lt.s32.totalorder %s287, 95
          %s289 = scalar_select %p288, %s287, 95
          %s290 = smul.addr %s289, 4
          %s291 = scalar_lea.vmem %s1, %s290
          %s292 = smul.u32 48, %s16
        $region46: #{genenet_forward.35} parent=15 // pred_fallthru
          _
      $region16: #{genenet_forward.35} parent=5 // pred_fallthru
        _
      %p293 = scmp.le.s32.totalorder 1, %s8
      %p294 = scmp.lt.s32.totalorder %s8, 3
      %p295 = pnand %p293, %p294
      %p296 = pneg %p295
      // Predicated region
      $region47: #{genenet_forward.35} parent=5 // pred_check
        _
      $region48: #{genenet_forward.35} parent=5 // pred_check_branch
        %298 = sbr.rel (%p295) target = $region50
      $region49: #{genenet_forward.35} parent=5 // pred_region
        %s299 = ssub.s32 %s8, 1
        %s300 = sand.u32 %s35, 1
        %s301 = sand.u32 %s35, 1
        %s302 = smul.addr %s301, 384
        %s303 = scalar_lea.vmem [#allocation3], %s302
        // Predicated region
        $region51: #{genenet_forward.35} parent=49 // pred_check
          %p304 = pneg %p48
        $region52: #{genenet_forward.35} parent=49 // pred_check_branch
          %306 = sbr.rel (%p304) target = $region54
        $region53: #{genenet_forward.35} parent=49 // pred_region
          _
        $region54: #{genenet_forward.35} parent=49 // pred_fallthru
          _
        %s307 = sand.u32 %s35, 1
        %s308 = sand.u32 %s35, 1
        %s309 = smul.addr %s308, 384
        %s310 = scalar_lea.vmem [#allocation3], %s309
        %p311 = pneg %p48
        %p312 = pneg %p45
        %s313 = smul.u32 48, %s18
        %p314 = scmp.lt.s32.totalorder %s313, 95
        %s315 = scalar_select %p314, %s313, 95
        %s316 = smul.addr %s315, 4
        %s317 = scalar_lea.vmem %s1, %s316
        %p318 = pneg %p74
        %p319 = pneg %p71
        %p320 = pneg %p100
        %p321 = pneg %p97
        %s322 = smul.u32 32, %s17
        %p323 = scmp.lt.s32.totalorder %s322, 31
        %s324 = scalar_select %p323, %s322, 31
        %s325 = smul.addr %s324, 4
        %s326 = scalar_lea.vmem %s2, %s325
        %s327 = smul.u32 32, %s17
        %s328 = smul.u32 3, %s18
        %s329 = smul.u32 48, %s18
        %p330 = scmp.lt.s32.totalorder %s329, 95
        %s331 = scalar_select %p330, %s329, 95
        %s332 = smul.addr %s331, 4
        %s333 = scalar_lea.vmem %s1, %s332
        %s334 = smul.u32 48, %s18
        %s335 = smul.u32 32, %s17
        %p336 = scmp.lt.s32.totalorder %s335, 31
        %s337 = scalar_select %p336, %s335, 31
        %s338 = smul.addr %s337, 4
        %s339 = scalar_lea.vmem %s2, %s338
        %s340 = smul.u32 32, %s17
        %p342 = scmp.eq.s32.totalorder %s18, 0
        // Predicated region
        $region55: #{genenet_forward.35} parent=49 // pred_check
          %p343 = pneg %p342
        $region56: #{genenet_forward.35} parent=49 // pred_check_branch
          %345 = sbr.rel (%p343) target = $region58
        $region57: #{genenet_forward.35} parent=49 // pred_region
          %346 = vst [vmem:[#allocation2] sm:$0xff] 0.0
          %347 = vst [vmem:[#allocation2 + $0x8] sm:$0xff] 0.0
          %348 = vst [vmem:[#allocation2 + $0x10] sm:$0xff] 0.0
          %349 = vst [vmem:[#allocation2 + $0x18] sm:$0xff] 0.0
          %350 = vst [vmem:[#allocation2 + $0x20] sm:$0xff] 0.0
          %351 = vst [vmem:[#allocation2 + $0x28] sm:$0xff] 0.0
          %352 = vst [vmem:[#allocation2 + $0x30] sm:$0xff] 0.0
          %353 = vst [vmem:[#allocation2 + $0x38] sm:$0xff] 0.0
          %354 = vst [vmem:[#allocation2 + $0x40] sm:$0xff] 0.0
          %355 = vst [vmem:[#allocation2 + $0x48] sm:$0xff] 0.0
          %356 = vst [vmem:[#allocation2 + $0x50] sm:$0xff] 0.0
          %357 = vst [vmem:[#allocation2 + $0x58] sm:$0xff] 0.0
          %358 = vst [vmem:[#allocation2 + $0x60] sm:$0xff] 0.0
          %359 = vst [vmem:[#allocation2 + $0x68] sm:$0xff] 0.0
          %360 = vst [vmem:[#allocation2 + $0x70] sm:$0xff] 0.0
          %361 = vst [vmem:[#allocation2 + $0x78] sm:$0xff] 0.0
          %362 = vst [vmem:[#allocation2 + $0x80] sm:$0xff] 0.0
          %363 = vst [vmem:[#allocation2 + $0x88] sm:$0xff] 0.0
          %364 = vst [vmem:[#allocation2 + $0x90] sm:$0xff] 0.0
          %365 = vst [vmem:[#allocation2 + $0x98] sm:$0xff] 0.0
          %366 = vst [vmem:[#allocation2 + $0xa0] sm:$0xff] 0.0
          %367 = vst [vmem:[#allocation2 + $0xa8] sm:$0xff] 0.0
          %368 = vst [vmem:[#allocation2 + $0xb0] sm:$0xff] 0.0
          %369 = vst [vmem:[#allocation2 + $0xb8] sm:$0xff] 0.0
          %370 = vst [vmem:[#allocation2 + $0xc0] sm:$0xff] 0.0
          %371 = vst [vmem:[#allocation2 + $0xc8] sm:$0xff] 0.0
          %372 = vst [vmem:[#allocation2 + $0xd0] sm:$0xff] 0.0
          %373 = vst [vmem:[#allocation2 + $0xd8] sm:$0xff] 0.0
          %374 = vst [vmem:[#allocation2 + $0xe0] sm:$0xff] 0.0
          %375 = vst [vmem:[#allocation2 + $0xe8] sm:$0xff] 0.0
          %376 = vst [vmem:[#allocation2 + $0xf0] sm:$0xff] 0.0
          %377 = vst [vmem:[#allocation2 + $0xf8] sm:$0xff] 0.0
        $region58: #{genenet_forward.35} parent=49 // pred_fallthru
          _
        %v378 = vld [vmem:[#allocation2] sm:$0xff]
        %v379 = vld [vmem:[#allocation2 + $0x8] sm:$0xff]
        %v380 = vld [vmem:[#allocation2 + $0x10] sm:$0xff]
        %v381 = vld [vmem:[#allocation2 + $0x18] sm:$0xff]
        %v382 = vld [vmem:[#allocation2 + $0x20] sm:$0xff]
        %v383 = vld [vmem:[#allocation2 + $0x28] sm:$0xff]
        %v384 = vld [vmem:[#allocation2 + $0x30] sm:$0xff]
        %v385 = vld [vmem:[#allocation2 + $0x38] sm:$0xff]
        %v386 = vld [vmem:[#allocation2 + $0x40] sm:$0xff]
        %v387 = vld [vmem:[#allocation2 + $0x48] sm:$0xff]
        %v388 = vld [vmem:[#allocation2 + $0x50] sm:$0xff]
        %v389 = vld [vmem:[#allocation2 + $0x58] sm:$0xff]
        %v390 = vld [vmem:[#allocation2 + $0x60] sm:$0xff]
        %v391 = vld [vmem:[#allocation2 + $0x68] sm:$0xff]
        %v392 = vld [vmem:[#allocation2 + $0x70] sm:$0xff]
        %v393 = vld [vmem:[#allocation2 + $0x78] sm:$0xff]
        %v394 = vld [vmem:[#allocation2 + $0x80] sm:$0xff]
        %v395 = vld [vmem:[#allocation2 + $0x88] sm:$0xff]
        %v396 = vld [vmem:[#allocation2 + $0x90] sm:$0xff]
        %v397 = vld [vmem:[#allocation2 + $0x98] sm:$0xff]
        %v398 = vld [vmem:[#allocation2 + $0xa0] sm:$0xff]
        %v399 = vld [vmem:[#allocation2 + $0xa8] sm:$0xff]
        %v400 = vld [vmem:[#allocation2 + $0xb0] sm:$0xff]
        %v401 = vld [vmem:[#allocation2 + $0xb8] sm:$0xff]
        %v402 = vld [vmem:[#allocation2 + $0xc0] sm:$0xff]
        %v403 = vld [vmem:[#allocation2 + $0xc8] sm:$0xff]
        %v404 = vld [vmem:[#allocation2 + $0xd0] sm:$0xff]
        %v405 = vld [vmem:[#allocation2 + $0xd8] sm:$0xff]
        %v406 = vld [vmem:[#allocation2 + $0xe0] sm:$0xff]
        %v407 = vld [vmem:[#allocation2 + $0xe8] sm:$0xff]
        %v408 = vld [vmem:[#allocation2 + $0xf0] sm:$0xff]
        %v409 = vld [vmem:[#allocation2 + $0xf8] sm:$0xff]
        %v410 = vld [vmem:[%s303] sm:$0xff]
        %v411 = vld [vmem:[%s303 + $0x8] sm:$0xf]
        %v412 = vld [vmem:[%s303 + $0xc] sm:$0xff]
        %v413 = vld [vmem:[%s303 + $0x14] sm:$0xf]
        %v414 = vld [vmem:[%s303 + $0x18] sm:$0xff]
        %v415 = vld [vmem:[%s303 + $0x20] sm:$0xf]
        %v416 = vld [vmem:[%s303 + $0x24] sm:$0xff]
        %v417 = vld [vmem:[%s303 + $0x2c] sm:$0xf]
        %v418 = vld [vmem:[%s303 + $0x30] sm:$0xff]
        %v419 = vld [vmem:[%s303 + $0x38] sm:$0xf]
        %v420 = vld [vmem:[%s303 + $0x3c] sm:$0xff]
        %v421 = vld [vmem:[%s303 + $0x44] sm:$0xf]
        %v422 = vld [vmem:[%s303 + $0x48] sm:$0xff]
        %v423 = vld [vmem:[%s303 + $0x50] sm:$0xf]
        %v424 = vld [vmem:[%s303 + $0x54] sm:$0xff]
        %v425 = vld [vmem:[%s303 + $0x5c] sm:$0xf]
        %v426 = vld [vmem:[%s303 + $0x60] sm:$0xff]
        %v427 = vld [vmem:[%s303 + $0x68] sm:$0xf]
        %v428 = vld [vmem:[%s303 + $0x6c] sm:$0xff]
        %v429 = vld [vmem:[%s303 + $0x74] sm:$0xf]
        %v430 = vld [vmem:[%s303 + $0x78] sm:$0xff]
        %v431 = vld [vmem:[%s303 + $0x80] sm:$0xf]
        %v432 = vld [vmem:[%s303 + $0x84] sm:$0xff]
        %v433 = vld [vmem:[%s303 + $0x8c] sm:$0xf]
        %v434 = vld [vmem:[%s303 + $0x90] sm:$0xff]
        %v435 = vld [vmem:[%s303 + $0x98] sm:$0xf]
        %v436 = vld [vmem:[%s303 + $0x9c] sm:$0xff]
        %v437 = vld [vmem:[%s303 + $0xa4] sm:$0xf]
        %v438 = vld [vmem:[%s303 + $0xa8] sm:$0xff]
        %v439 = vld [vmem:[%s303 + $0xb0] sm:$0xf]
        %v440 = vld [vmem:[%s303 + $0xb4] sm:$0xff]
        %v441 = vld [vmem:[%s303 + $0xbc] sm:$0xf]
        %v442 = vld [vmem:[%s303 + $0xc0] sm:$0xff]
        %v443 = vld [vmem:[%s303 + $0xc8] sm:$0xf]
        %v444 = vld [vmem:[%s303 + $0xcc] sm:$0xff]
        %v445 = vld [vmem:[%s303 + $0xd4] sm:$0xf]
        %v446 = vld [vmem:[%s303 + $0xd8] sm:$0xff]
        %v447 = vld [vmem:[%s303 + $0xe0] sm:$0xf]
        %v448 = vld [vmem:[%s303 + $0xe4] sm:$0xff]
        %v449 = vld [vmem:[%s303 + $0xec] sm:$0xf]
        %v450 = vld [vmem:[%s303 + $0xf0] sm:$0xff]
        %v451 = vld [vmem:[%s303 + $0xf8] sm:$0xf]
        %v452 = vld [vmem:[%s303 + $0xfc] sm:$0xff]
        %v453 = vld [vmem:[%s303 + $0x104] sm:$0xf]
        %v454 = vld [vmem:[%s303 + $0x108] sm:$0xff]
        %v455 = vld [vmem:[%s303 + $0x110] sm:$0xf]
        %v456 = vld [vmem:[%s303 + $0x114] sm:$0xff]
        %v457 = vld [vmem:[%s303 + $0x11c] sm:$0xf]
        %v458 = vld [vmem:[%s303 + $0x120] sm:$0xff]
        %v459 = vld [vmem:[%s303 + $0x128] sm:$0xf]
        %v460 = vld [vmem:[%s303 + $0x12c] sm:$0xff]
        %v461 = vld [vmem:[%s303 + $0x134] sm:$0xf]
        %v462 = vld [vmem:[%s303 + $0x138] sm:$0xff]
        %v463 = vld [vmem:[%s303 + $0x140] sm:$0xf]
        %v464 = vld [vmem:[%s303 + $0x144] sm:$0xff]
        %v465 = vld [vmem:[%s303 + $0x14c] sm:$0xf]
        %v466 = vld [vmem:[%s303 + $0x150] sm:$0xff]
        %v467 = vld [vmem:[%s303 + $0x158] sm:$0xf]
        %v468 = vld [vmem:[%s303 + $0x15c] sm:$0xff]
        %v469 = vld [vmem:[%s303 + $0x164] sm:$0xf]
        %v470 = vld [vmem:[%s303 + $0x168] sm:$0xff]
        %v471 = vld [vmem:[%s303 + $0x170] sm:$0xf]
        %v472 = vld [vmem:[%s303 + $0x174] sm:$0xff]
        %v473 = vld [vmem:[%s303 + $0x17c] sm:$0xf]
        %v474 = vld [vmem:[%s333] sm:$0xf]
        %v475 = vld [vmem:[%s333 + $0x4] sm:$0xf]
        %v476 = vld [vmem:[%s333 + $0x8] sm:$0xf]
        %v477 = vld [vmem:[%s333 + $0xc] sm:$0xf]
        %v478 = vld [vmem:[%s333 + $0x10] sm:$0xf]
        %v479 = vld [vmem:[%s333 + $0x14] sm:$0xf]
        %v480 = vld [vmem:[%s333 + $0x18] sm:$0xf]
        %v481 = vld [vmem:[%s333 + $0x1c] sm:$0xf]
        %v482 = vld [vmem:[%s333 + $0x20] sm:$0xf]
        %v483 = vld [vmem:[%s333 + $0x24] sm:$0xf]
        %v484 = vld [vmem:[%s333 + $0x28] sm:$0xf]
        %v485 = vld [vmem:[%s333 + $0x2c] sm:$0xf]
        %v486 = vld [vmem:[%s333 + $0x30] sm:$0xf]
        %v487 = vld [vmem:[%s333 + $0x34] sm:$0xf]
        %v488 = vld [vmem:[%s333 + $0x38] sm:$0xf]
        %v489 = vld [vmem:[%s333 + $0x3c] sm:$0xf]
        %v490 = vld [vmem:[%s333 + $0x40] sm:$0xf]
        %v491 = vld [vmem:[%s333 + $0x44] sm:$0xf]
        %v492 = vld [vmem:[%s333 + $0x48] sm:$0xf]
        %v493 = vld [vmem:[%s333 + $0x4c] sm:$0xf]
        %v494 = vld [vmem:[%s333 + $0x50] sm:$0xf]
        %v495 = vld [vmem:[%s333 + $0x54] sm:$0xf]
        %v496 = vld [vmem:[%s333 + $0x58] sm:$0xf]
        %v497 = vld [vmem:[%s333 + $0x5c] sm:$0xf]
        %v498 = vld [vmem:[%s333 + $0x60] sm:$0xf]
        %v499 = vld [vmem:[%s333 + $0x64] sm:$0xf]
        %v500 = vld [vmem:[%s333 + $0x68] sm:$0xf]
        %v501 = vld [vmem:[%s333 + $0x6c] sm:$0xf]
        %v502 = vld [vmem:[%s333 + $0x70] sm:$0xf]
        %v503 = vld [vmem:[%s333 + $0x74] sm:$0xf]
        %v504 = vld [vmem:[%s333 + $0x78] sm:$0xf]
        %v505 = vld [vmem:[%s333 + $0x7c] sm:$0xf]
        %v506 = vld [vmem:[%s333 + $0x80] sm:$0xf]
        %v507 = vld [vmem:[%s333 + $0x84] sm:$0xf]
        %v508 = vld [vmem:[%s333 + $0x88] sm:$0xf]
        %v509 = vld [vmem:[%s333 + $0x8c] sm:$0xf]
        %v510 = vld [vmem:[%s333 + $0x90] sm:$0xf]
        %v511 = vld [vmem:[%s333 + $0x94] sm:$0xf]
        %v512 = vld [vmem:[%s333 + $0x98] sm:$0xf]
        %v513 = vld [vmem:[%s333 + $0x9c] sm:$0xf]
        %v514 = vld [vmem:[%s333 + $0xa0] sm:$0xf]
        %v515 = vld [vmem:[%s333 + $0xa4] sm:$0xf]
        %v516 = vld [vmem:[%s333 + $0xa8] sm:$0xf]
        %v517 = vld [vmem:[%s333 + $0xac] sm:$0xf]
        %v518 = vld [vmem:[%s333 + $0xb0] sm:$0xf]
        %v519 = vld [vmem:[%s333 + $0xb4] sm:$0xf]
        %v520 = vld [vmem:[%s333 + $0xb8] sm:$0xf]
        %v521 = vld [vmem:[%s333 + $0xbc] sm:$0xf]
        %v586 = vunpack.c.l.b16 %v410
        %v587 = vunpack.c.h.b16 %v410
        %v588 = vunpack.c.l.b16 %v411
        %v589 = vunpack.c.l.b16 %v412
        %v590 = vunpack.c.h.b16 %v412
        %v591 = vunpack.c.l.b16 %v413
        %v592 = vunpack.c.l.b16 %v414
        %v593 = vunpack.c.h.b16 %v414
        %v594 = vunpack.c.l.b16 %v415
        %v595 = vunpack.c.l.b16 %v416
        %v596 = vunpack.c.h.b16 %v416
        %v597 = vunpack.c.l.b16 %v417
        %v598 = vunpack.c.l.b16 %v418
        %v599 = vunpack.c.h.b16 %v418
        %v600 = vunpack.c.l.b16 %v419
        %v601 = vunpack.c.l.b16 %v420
        %v602 = vunpack.c.h.b16 %v420
        %v603 = vunpack.c.l.b16 %v421
        %v604 = vunpack.c.l.b16 %v422
        %v605 = vunpack.c.h.b16 %v422
        %v606 = vunpack.c.l.b16 %v423
        %v607 = vunpack.c.l.b16 %v424
        %v608 = vunpack.c.h.b16 %v424
        %v609 = vunpack.c.l.b16 %v425
        %v610 = vunpack.c.l.b16 %v426
        %v611 = vunpack.c.h.b16 %v426
        %v612 = vunpack.c.l.b16 %v427
        %v613 = vunpack.c.l.b16 %v428
        %v614 = vunpack.c.h.b16 %v428
        %v615 = vunpack.c.l.b16 %v429
        %v616 = vunpack.c.l.b16 %v430
        %v617 = vunpack.c.h.b16 %v430
        %v618 = vunpack.c.l.b16 %v431
        %v619 = vunpack.c.l.b16 %v432
        %v620 = vunpack.c.h.b16 %v432
        %v621 = vunpack.c.l.b16 %v433
        %v622 = vunpack.c.l.b16 %v434
        %v623 = vunpack.c.h.b16 %v434
        %v624 = vunpack.c.l.b16 %v435
        %v625 = vunpack.c.l.b16 %v436
        %v626 = vunpack.c.h.b16 %v436
        %v627 = vunpack.c.l.b16 %v437
        %v628 = vunpack.c.l.b16 %v438
        %v629 = vunpack.c.h.b16 %v438
        %v630 = vunpack.c.l.b16 %v439
        %v631 = vunpack.c.l.b16 %v440
        %v632 = vunpack.c.h.b16 %v440
        %v633 = vunpack.c.l.b16 %v441
        %v634 = vunpack.c.l.b16 %v442
        %v635 = vunpack.c.h.b16 %v442
        %v636 = vunpack.c.l.b16 %v443
        %v637 = vunpack.c.l.b16 %v444
        %v638 = vunpack.c.h.b16 %v444
        %v639 = vunpack.c.l.b16 %v445
        %v640 = vunpack.c.l.b16 %v446
        %v641 = vunpack.c.h.b16 %v446
        %v642 = vunpack.c.l.b16 %v447
        %v643 = vunpack.c.l.b16 %v448
        %v644 = vunpack.c.h.b16 %v448
        %v645 = vunpack.c.l.b16 %v449
        %v646 = vunpack.c.l.b16 %v450
        %v647 = vunpack.c.h.b16 %v450
        %v648 = vunpack.c.l.b16 %v451
        %v649 = vunpack.c.l.b16 %v452
        %v650 = vunpack.c.h.b16 %v452
        %v651 = vunpack.c.l.b16 %v453
        %v652 = vunpack.c.l.b16 %v454
        %v653 = vunpack.c.h.b16 %v454
        %v654 = vunpack.c.l.b16 %v455
        %v655 = vunpack.c.l.b16 %v456
        %v656 = vunpack.c.h.b16 %v456
        %v657 = vunpack.c.l.b16 %v457
        %v658 = vunpack.c.l.b16 %v458
        %v659 = vunpack.c.h.b16 %v458
        %v660 = vunpack.c.l.b16 %v459
        %v661 = vunpack.c.l.b16 %v460
        %v662 = vunpack.c.h.b16 %v460
        %v663 = vunpack.c.l.b16 %v461
        %v664 = vunpack.c.l.b16 %v462
        %v665 = vunpack.c.h.b16 %v462
        %v666 = vunpack.c.l.b16 %v463
        %v667 = vunpack.c.l.b16 %v464
        %v668 = vunpack.c.h.b16 %v464
        %v669 = vunpack.c.l.b16 %v465
        %v670 = vunpack.c.l.b16 %v466
        %v671 = vunpack.c.h.b16 %v466
        %v672 = vunpack.c.l.b16 %v467
        %v673 = vunpack.c.l.b16 %v468
        %v674 = vunpack.c.h.b16 %v468
        %v675 = vunpack.c.l.b16 %v469
        %v676 = vunpack.c.l.b16 %v470
        %v677 = vunpack.c.h.b16 %v470
        %v678 = vunpack.c.l.b16 %v471
        %v679 = vunpack.c.l.b16 %v472
        %v680 = vunpack.c.h.b16 %v472
        %v681 = vunpack.c.l.b16 %v473
        %v682 = vpack.c.b16 %v589, %v586
        %v683 = vpack.c.b16 %v590, %v587
        %v684 = vpack.c.b16 %v591, %v588
        %v685 = vpack.c.b16 %v595, %v592
        %v686 = vpack.c.b16 %v596, %v593
        %v687 = vpack.c.b16 %v597, %v594
        %v688 = vpack.c.b16 %v601, %v598
        %v689 = vpack.c.b16 %v602, %v599
        %v690 = vpack.c.b16 %v603, %v600
        %v691 = vpack.c.b16 %v607, %v604
        %v692 = vpack.c.b16 %v608, %v605
        %v693 = vpack.c.b16 %v609, %v606
        %v694 = vpack.c.b16 %v613, %v610
        %v695 = vpack.c.b16 %v614, %v611
        %v696 = vpack.c.b16 %v615, %v612
        %v697 = vpack.c.b16 %v619, %v616
        %v698 = vpack.c.b16 %v620, %v617
        %v699 = vpack.c.b16 %v621, %v618
        %v700 = vpack.c.b16 %v625, %v622
        %v701 = vpack.c.b16 %v626, %v623
        %v702 = vpack.c.b16 %v627, %v624
        %v703 = vpack.c.b16 %v631, %v628
        %v704 = vpack.c.b16 %v632, %v629
        %v705 = vpack.c.b16 %v633, %v630
        %v706 = vpack.c.b16 %v637, %v634
        %v707 = vpack.c.b16 %v638, %v635
        %v708 = vpack.c.b16 %v639, %v636
        %v709 = vpack.c.b16 %v643, %v640
        %v710 = vpack.c.b16 %v644, %v641
        %v711 = vpack.c.b16 %v645, %v642
        %v712 = vpack.c.b16 %v649, %v646
        %v713 = vpack.c.b16 %v650, %v647
        %v714 = vpack.c.b16 %v651, %v648
        %v715 = vpack.c.b16 %v655, %v652
        %v716 = vpack.c.b16 %v656, %v653
        %v717 = vpack.c.b16 %v657, %v654
        %v718 = vpack.c.b16 %v661, %v658
        %v719 = vpack.c.b16 %v662, %v659
        %v720 = vpack.c.b16 %v663, %v660
        %v721 = vpack.c.b16 %v667, %v664
        %v722 = vpack.c.b16 %v668, %v665
        %v723 = vpack.c.b16 %v669, %v666
        %v724 = vpack.c.b16 %v673, %v670
        %v725 = vpack.c.b16 %v674, %v671
        %v726 = vpack.c.b16 %v675, %v672
        %v727 = vpack.c.b16 %v679, %v676
        %v728 = vpack.c.b16 %v680, %v677
        %v729 = vpack.c.b16 %v681, %v678
        %v826 = vunpack.c.l.b16 %v474
        %v827 = vunpack.c.l.b16 %v475
        %v828 = vunpack.c.l.b16 %v476
        %v829 = vunpack.c.l.b16 %v477
        %v830 = vunpack.c.l.b16 %v478
        %v831 = vunpack.c.l.b16 %v479
        %v832 = vunpack.c.l.b16 %v480
        %v833 = vunpack.c.l.b16 %v481
        %v834 = vunpack.c.l.b16 %v482
        %v835 = vunpack.c.l.b16 %v483
        %v836 = vunpack.c.l.b16 %v484
        %v837 = vunpack.c.l.b16 %v485
        %v838 = vunpack.c.l.b16 %v486
        %v839 = vunpack.c.l.b16 %v487
        %v840 = vunpack.c.l.b16 %v488
        %v841 = vunpack.c.l.b16 %v489
        %v842 = vunpack.c.l.b16 %v490
        %v843 = vunpack.c.l.b16 %v491
        %v844 = vunpack.c.l.b16 %v492
        %v845 = vunpack.c.l.b16 %v493
        %v846 = vunpack.c.l.b16 %v494
        %v847 = vunpack.c.l.b16 %v495
        %v848 = vunpack.c.l.b16 %v496
        %v849 = vunpack.c.l.b16 %v497
        %v850 = vunpack.c.l.b16 %v498
        %v851 = vunpack.c.l.b16 %v499
        %v852 = vunpack.c.l.b16 %v500
        %v853 = vunpack.c.l.b16 %v501
        %v854 = vunpack.c.l.b16 %v502
        %v855 = vunpack.c.l.b16 %v503
        %v856 = vunpack.c.l.b16 %v504
        %v857 = vunpack.c.l.b16 %v505
        %v858 = vunpack.c.l.b16 %v506
        %v859 = vunpack.c.l.b16 %v507
        %v860 = vunpack.c.l.b16 %v508
        %v861 = vunpack.c.l.b16 %v509
        %v862 = vunpack.c.l.b16 %v510
        %v863 = vunpack.c.l.b16 %v511
        %v864 = vunpack.c.l.b16 %v512
        %v865 = vunpack.c.l.b16 %v513
        %v866 = vunpack.c.l.b16 %v514
        %v867 = vunpack.c.l.b16 %v515
        %v868 = vunpack.c.l.b16 %v516
        %v869 = vunpack.c.l.b16 %v517
        %v870 = vunpack.c.l.b16 %v518
        %v871 = vunpack.c.l.b16 %v519
        %v872 = vunpack.c.l.b16 %v520
        %v873 = vunpack.c.l.b16 %v521
        %v874 = vpack.c.b16 %v827, %v826
        %v875 = vpack.c.b16 %v829, %v828
        %v876 = vpack.c.b16 %v831, %v830
        %v877 = vpack.c.b16 %v833, %v832
        %v878 = vpack.c.b16 %v835, %v834
        %v879 = vpack.c.b16 %v837, %v836
        %v880 = vpack.c.b16 %v839, %v838
        %v881 = vpack.c.b16 %v841, %v840
        %v882 = vpack.c.b16 %v843, %v842
        %v883 = vpack.c.b16 %v845, %v844
        %v884 = vpack.c.b16 %v847, %v846
        %v885 = vpack.c.b16 %v849, %v848
        %v886 = vpack.c.b16 %v851, %v850
        %v887 = vpack.c.b16 %v853, %v852
        %v888 = vpack.c.b16 %v855, %v854
        %v889 = vpack.c.b16 %v857, %v856
        %v890 = vpack.c.b16 %v859, %v858
        %v891 = vpack.c.b16 %v861, %v860
        %v892 = vpack.c.b16 %v863, %v862
        %v893 = vpack.c.b16 %v865, %v864
        %v894 = vpack.c.b16 %v867, %v866
        %v895 = vpack.c.b16 %v869, %v868
        %v896 = vpack.c.b16 %v871, %v870
        %v897 = vpack.c.b16 %v873, %v872
        %922 = vmatprep.subr.bf16.mxu0 0
        %923 = vmatpush1.bf16.msra.mxu0 %v874
        %924 = vmatprep.subr.bf16.mxu0 0
        %925 = vmatpush1.bf16.msra.mxu0 %v875
        %926 = vmatprep.subr.bf16.mxu0 0
        %927 = vmatpush1.bf16.msra.mxu0 %v876
        %928 = vmatprep.subr.bf16.mxu0 0
        %929 = vmatpush1.bf16.msra.mxu0 %v877
        %930 = vmatprep.subr.bf16.mxu0 0
        %931 = vmatpush1.bf16.msra.mxu0 %v878
        %932 = vmatprep.subr.bf16.mxu0 0
        %933 = vmatpush1.bf16.msra.mxu0 %v879
        %934 = vmatprep.subr.bf16.mxu0 0
        %935 = vmatpush1.bf16.msra.mxu0 %v880
        %936 = vmatprep.subr.bf16.mxu0 0
        %937 = vmatpush1.bf16.msra.mxu0 %v881
        %938 = vmatprep.subr.bf16.mxu0 0
        %939 = vmatpush1.bf16.msra.mxu0 %v882
        %940 = vmatprep.subr.bf16.mxu0 0
        %941 = vmatpush1.bf16.msra.mxu0 %v883
        %942 = vmatprep.subr.bf16.mxu0 0
        %943 = vmatpush1.bf16.msra.mxu0 %v884
        %944 = vmatprep.subr.bf16.mxu0 0
        %945 = vmatpush1.bf16.msra.mxu0 %v885
        %946 = vmatprep.subr.bf16.mxu0 0
        %947 = vmatpush1.bf16.msra.mxu0 %v886
        %948 = vmatprep.subr.bf16.mxu0 0
        %949 = vmatpush1.bf16.msra.mxu0 %v887
        %950 = vmatprep.subr.bf16.mxu0 0
        %951 = vmatpush1.bf16.msra.mxu0 %v888
        %952 = vmatprep.subr.bf16.mxu0 0
        %953 = vmatpush1.bf16.msra.mxu0 %v889
        %954 = vmatprep.mubr.bf16.mxu0 %v683
        %955 = vmatmul.mubr.bf16.gmra.mrb[0].mxu0 %v682
        %v956 = vpop.f32.mrb[0].mxu0
        %v957 = vadd.f32 0.0, %v956
        %v958 = vpop.f32.mrb[0].mxu0
        %v959 = vpop.f32.mrb[0].mxu0
        %v960 = vadd.f32 0.0, %v959
        %v961 = vpop.f32.mrb[0].mxu0
        %962 = vmatprep.mubr.bf16.mxu0 %v686
        %963 = vmatmul.mubr.bf16.gmra.mrb[0].mxu0 %v685
        %v964 = vpop.f32.mrb[0].mxu0
        %v965 = vadd.f32 0.0, %v964
        %v966 = vpop.f32.mrb[0].mxu0
        %v967 = vpop.f32.mrb[0].mxu0
        %v968 = vadd.f32 0.0, %v967
        %v969 = vpop.f32.mrb[0].mxu0
        %970 = vmatprep.mubr.bf16.mxu0 %v689
        %971 = vmatmul.mubr.bf16.gmra.mrb[0].mxu0 %v688
        %v972 = vpop.f32.mrb[0].mxu0
        %v973 = vadd.f32 0.0, %v972
        %v974 = vpop.f32.mrb[0].mxu0
        %v975 = vpop.f32.mrb[0].mxu0
        %v976 = vadd.f32 0.0, %v975
        %v977 = vpop.f32.mrb[0].mxu0
        %978 = vmatprep.mubr.bf16.mxu0 %v692
        %979 = vmatmul.mubr.bf16.gmra.mrb[0].mxu0 %v691
        %v980 = vpop.f32.mrb[0].mxu0
        %v981 = vadd.f32 0.0, %v980
        %v982 = vpop.f32.mrb[0].mxu0
        %v983 = vpop.f32.mrb[0].mxu0
        %v984 = vadd.f32 0.0, %v983
        %v985 = vpop.f32.mrb[0].mxu0
        %986 = vmatprep.mubr.bf16.mxu0 %v695
        %987 = vmatmul.mubr.bf16.gmra.mrb[0].mxu0 %v694
        %v988 = vpop.f32.mrb[0].mxu0
        %v989 = vadd.f32 0.0, %v988
        %v990 = vpop.f32.mrb[0].mxu0
        %v991 = vpop.f32.mrb[0].mxu0
        %v992 = vadd.f32 0.0, %v991
        %v993 = vpop.f32.mrb[0].mxu0
        %994 = vmatprep.mubr.bf16.mxu0 %v698
        %995 = vmatmul.mubr.bf16.gmra.mrb[0].mxu0 %v697
        %v996 = vpop.f32.mrb[0].mxu0
        %v997 = vadd.f32 0.0, %v996
        %v998 = vpop.f32.mrb[0].mxu0
        %v999 = vpop.f32.mrb[0].mxu0
        %v1000 = vadd.f32 0.0, %v999
        %v1001 = vpop.f32.mrb[0].mxu0
        %1002 = vmatprep.mubr.bf16.mxu0 %v701
        %1003 = vmatmul.mubr.bf16.gmra.mrb[0].mxu0 %v700
        %v1004 = vpop.f32.mrb[0].mxu0
        %v1005 = vadd.f32 0.0, %v1004
        %v1006 = vpop.f32.mrb[0].mxu0
        %v1007 = vpop.f32.mrb[0].mxu0
        %v1008 = vadd.f32 0.0, %v1007
        %v1009 = vpop.f32.mrb[0].mxu0
        %1010 = vmatprep.mubr.bf16.mxu0 %v704
        %1011 = vmatmul.mubr.bf16.gmra.mrb[0].mxu0 %v703
        %v1012 = vpop.f32.mrb[0].mxu0
        %v1013 = vadd.f32 0.0, %v1012
        %v1014 = vpop.f32.mrb[0].mxu0
        %v1015 = vpop.f32.mrb[0].mxu0
        %v1016 = vadd.f32 0.0, %v1015
        %v1017 = vpop.f32.mrb[0].mxu0
        %1018 = vmatprep.mubr.bf16.mxu0 %v707
        %1019 = vmatmul.mubr.bf16.gmra.mrb[0].mxu0 %v706
        %v1020 = vpop.f32.mrb[0].mxu0
        %v1021 = vadd.f32 0.0, %v1020
        %v1022 = vpop.f32.mrb[0].mxu0
        %v1023 = vpop.f32.mrb[0].mxu0
        %v1024 = vadd.f32 0.0, %v1023
        %v1025 = vpop.f32.mrb[0].mxu0
        %1026 = vmatprep.mubr.bf16.mxu0 %v710
        %1027 = vmatmul.mubr.bf16.gmra.mrb[0].mxu0 %v709
        %v1028 = vpop.f32.mrb[0].mxu0
        %v1029 = vadd.f32 0.0, %v1028
        %v1030 = vpop.f32.mrb[0].mxu0
        %v1031 = vpop.f32.mrb[0].mxu0
        %v1032 = vadd.f32 0.0, %v1031
        %v1033 = vpop.f32.mrb[0].mxu0
        %1034 = vmatprep.mubr.bf16.mxu0 %v713
        %1035 = vmatmul.mubr.bf16.gmra.mrb[0].mxu0 %v712
        %v1036 = vpop.f32.mrb[0].mxu0
        %v1037 = vadd.f32 0.0, %v1036
        %v1038 = vpop.f32.mrb[0].mxu0
        %v1039 = vpop.f32.mrb[0].mxu0
        %v1040 = vadd.f32 0.0, %v1039
        %v1041 = vpop.f32.mrb[0].mxu0
        %1042 = vmatprep.mubr.bf16.mxu0 %v716
        %1043 = vmatmul.mubr.bf16.gmra.mrb[0].mxu0 %v715
        %v1044 = vpop.f32.mrb[0].mxu0
        %v1045 = vadd.f32 0.0, %v1044
        %v1046 = vpop.f32.mrb[0].mxu0
        %v1047 = vpop.f32.mrb[0].mxu0
        %v1048 = vadd.f32 0.0, %v1047
        %v1049 = vpop.f32.mrb[0].mxu0
        %1050 = vmatprep.mubr.bf16.mxu0 %v719
        %1051 = vmatmul.mubr.bf16.gmra.mrb[0].mxu0 %v718
        %v1052 = vpop.f32.mrb[0].mxu0
        %v1053 = vadd.f32 0.0, %v1052
        %v1054 = vpop.f32.mrb[0].mxu0
        %v1055 = vpop.f32.mrb[0].mxu0
        %v1056 = vadd.f32 0.0, %v1055
        %v1057 = vpop.f32.mrb[0].mxu0
        %1058 = vmatprep.mubr.bf16.mxu0 %v722
        %1059 = vmatmul.mubr.bf16.gmra.mrb[0].mxu0 %v721
        %v1060 = vpop.f32.mrb[0].mxu0
        %v1061 = vadd.f32 0.0, %v1060
        %v1062 = vpop.f32.mrb[0].mxu0
        %v1063 = vpop.f32.mrb[0].mxu0
        %v1064 = vadd.f32 0.0, %v1063
        %v1065 = vpop.f32.mrb[0].mxu0
        %1066 = vmatprep.mubr.bf16.mxu0 %v725
        %1067 = vmatmul.mubr.bf16.gmra.mrb[0].mxu0 %v724
        %v1068 = vpop.f32.mrb[0].mxu0
        %v1069 = vadd.f32 0.0, %v1068
        %v1070 = vpop.f32.mrb[0].mxu0
        %v1071 = vpop.f32.mrb[0].mxu0
        %v1072 = vadd.f32 0.0, %v1071
        %v1073 = vpop.f32.mrb[0].mxu0
        %1074 = vmatprep.mubr.bf16.mxu0 %v728
        %1075 = vmatmul.mubr.bf16.gmra.mrb[0].mxu0 %v727
        %v1076 = vpop.f32.mrb[0].mxu0
        %v1077 = vadd.f32 0.0, %v1076
        %v1078 = vpop.f32.mrb[0].mxu0
        %v1079 = vpop.f32.mrb[0].mxu0
        %v1080 = vadd.f32 0.0, %v1079
        %v1081 = vpop.f32.mrb[0].mxu0
        %1082 = vdwg.mxu0
        %1083 = vmatprep.subr.bf16.mxu0 0
        %1084 = vmatpush1.bf16.msra.mxu0 %v890
        %1085 = vmatprep.subr.bf16.mxu0 0
        %1086 = vmatpush1.bf16.msra.mxu0 %v891
        %1087 = vmatprep.subr.bf16.mxu0 0
        %1088 = vmatpush1.bf16.msra.mxu0 %v892
        %1089 = vmatprep.subr.bf16.mxu0 0
        %1090 = vmatpush1.bf16.msra.mxu0 %v893
        %1091 = vmatprep.subr.bf16.mxu0 0
        %1092 = vmatpush1.bf16.msra.mxu0 %v894
        %1093 = vmatprep.subr.bf16.mxu0 0
        %1094 = vmatpush1.bf16.msra.mxu0 %v895
        %1095 = vmatprep.subr.bf16.mxu0 0
        %1096 = vmatpush1.bf16.msra.mxu0 %v896
        %1097 = vmatprep.subr.bf16.mxu0 0
        %1098 = vmatpush1.bf16.msra.mxu0 %v897
        %1099 = vmatprep.subr.bf16.mxu0 0
        %1100 = vmatpush1.bf16.msra.mxu0 0
        %1101 = vmatprep.subr.bf16.mxu0 0
        %1102 = vmatpush1.bf16.msra.mxu0 0
        %1103 = vmatprep.subr.bf16.mxu0 0
        %1104 = vmatpush1.bf16.msra.mxu0 0
        %1105 = vmatprep.subr.bf16.mxu0 0
        %1106 = vmatpush1.bf16.msra.mxu0 0
        %1107 = vmatprep.subr.bf16.mxu0 0
        %1108 = vmatpush1.bf16.msra.mxu0 0
        %1109 = vmatprep.subr.bf16.mxu0 0
        %1110 = vmatpush1.bf16.msra.mxu0 0
        %1111 = vmatprep.subr.bf16.mxu0 0
        %1112 = vmatpush1.bf16.msra.mxu0 0
        %1113 = vmatprep.subr.bf16.mxu0 0
        %1114 = vmatpush1.bf16.msra.mxu0 0
        %1115 = vmatprep.mubr.bf16.mxu0 0
        %1116 = vmatmul.mubr.bf16.gmra.mrb[0].mxu0 %v684
        %v1117 = vpop.f32.mrb[0].mxu0
        %v1118 = vadd.f32 %v957, %v1117
        %v1119 = vpop.f32.mrb[0].mxu0
        %v1120 = vpop.f32.mrb[0].mxu0
        %v1121 = vadd.f32 %v960, %v1120
        %v1122 = vpop.f32.mrb[0].mxu0
        %1123 = vmatprep.mubr.bf16.mxu0 0
        %1124 = vmatmul.mubr.bf16.gmra.mrb[0].mxu0 %v687
        %v1125 = vpop.f32.mrb[0].mxu0
        %v1126 = vadd.f32 %v965, %v1125
        %v1127 = vpop.f32.mrb[0].mxu0
        %v1128 = vpop.f32.mrb[0].mxu0
        %v1129 = vadd.f32 %v968, %v1128
        %v1130 = vpop.f32.mrb[0].mxu0
        %1131 = vmatprep.mubr.bf16.mxu0 0
        %1132 = vmatmul.mubr.bf16.gmra.mrb[0].mxu0 %v690
        %v1133 = vpop.f32.mrb[0].mxu0
        %v1134 = vadd.f32 %v973, %v1133
        %v1135 = vpop.f32.mrb[0].mxu0
        %v1136 = vpop.f32.mrb[0].mxu0
        %v1137 = vadd.f32 %v976, %v1136
        %v1138 = vpop.f32.mrb[0].mxu0
        %1139 = vmatprep.mubr.bf16.mxu0 0
        %1140 = vmatmul.mubr.bf16.gmra.mrb[0].mxu0 %v693
        %v1141 = vpop.f32.mrb[0].mxu0
        %v1142 = vadd.f32 %v981, %v1141
        %v1143 = vpop.f32.mrb[0].mxu0
        %v1144 = vpop.f32.mrb[0].mxu0
        %v1145 = vadd.f32 %v984, %v1144
        %v1146 = vpop.f32.mrb[0].mxu0
        %1147 = vmatprep.mubr.bf16.mxu0 0
        %1148 = vmatmul.mubr.bf16.gmra.mrb[0].mxu0 %v696
        %v1149 = vpop.f32.mrb[0].mxu0
        %v1150 = vadd.f32 %v989, %v1149
        %v1151 = vpop.f32.mrb[0].mxu0
        %v1152 = vpop.f32.mrb[0].mxu0
        %v1153 = vadd.f32 %v992, %v1152
        %v1154 = vpop.f32.mrb[0].mxu0
        %1155 = vmatprep.mubr.bf16.mxu0 0
        %1156 = vmatmul.mubr.bf16.gmra.mrb[0].mxu0 %v699
        %v1157 = vpop.f32.mrb[0].mxu0
        %v1158 = vadd.f32 %v997, %v1157
        %v1159 = vpop.f32.mrb[0].mxu0
        %v1160 = vpop.f32.mrb[0].mxu0
        %v1161 = vadd.f32 %v1000, %v1160
        %v1162 = vpop.f32.mrb[0].mxu0
        %1163 = vmatprep.mubr.bf16.mxu0 0
        %1164 = vmatmul.mubr.bf16.gmra.mrb[0].mxu0 %v702
        %v1165 = vpop.f32.mrb[0].mxu0
        %v1166 = vadd.f32 %v1005, %v1165
        %v1167 = vpop.f32.mrb[0].mxu0
        %v1168 = vpop.f32.mrb[0].mxu0
        %v1169 = vadd.f32 %v1008, %v1168
        %v1170 = vpop.f32.mrb[0].mxu0
        %1171 = vmatprep.mubr.bf16.mxu0 0
        %1172 = vmatmul.mubr.bf16.gmra.mrb[0].mxu0 %v705
        %v1173 = vpop.f32.mrb[0].mxu0
        %v1174 = vadd.f32 %v1013, %v1173
        %v1175 = vpop.f32.mrb[0].mxu0
        %v1176 = vpop.f32.mrb[0].mxu0
        %v1177 = vadd.f32 %v1016, %v1176
        %v1178 = vpop.f32.mrb[0].mxu0
        %1179 = vmatprep.mubr.bf16.mxu0 0
        %1180 = vmatmul.mubr.bf16.gmra.mrb[0].mxu0 %v708
        %v1181 = vpop.f32.mrb[0].mxu0
        %v1182 = vadd.f32 %v1021, %v1181
        %v1183 = vpop.f32.mrb[0].mxu0
        %v1184 = vpop.f32.mrb[0].mxu0
        %v1185 = vadd.f32 %v1024, %v1184
        %v1186 = vpop.f32.mrb[0].mxu0
        %1187 = vmatprep.mubr.bf16.mxu0 0
        %1188 = vmatmul.mubr.bf16.gmra.mrb[0].mxu0 %v711
        %v1189 = vpop.f32.mrb[0].mxu0
        %v1190 = vadd.f32 %v1029, %v1189
        %v1191 = vpop.f32.mrb[0].mxu0
        %v1192 = vpop.f32.mrb[0].mxu0
        %v1193 = vadd.f32 %v1032, %v1192
        %v1194 = vpop.f32.mrb[0].mxu0
        %1195 = vmatprep.mubr.bf16.mxu0 0
        %1196 = vmatmul.mubr.bf16.gmra.mrb[0].mxu0 %v714
        %v1197 = vpop.f32.mrb[0].mxu0
        %v1198 = vadd.f32 %v1037, %v1197
        %v1199 = vpop.f32.mrb[0].mxu0
        %v1200 = vpop.f32.mrb[0].mxu0
        %v1201 = vadd.f32 %v1040, %v1200
        %v1202 = vpop.f32.mrb[0].mxu0
        %1203 = vmatprep.mubr.bf16.mxu0 0
        %1204 = vmatmul.mubr.bf16.gmra.mrb[0].mxu0 %v717
        %v1205 = vpop.f32.mrb[0].mxu0
        %v1206 = vadd.f32 %v1045, %v1205
        %v1207 = vpop.f32.mrb[0].mxu0
        %v1208 = vpop.f32.mrb[0].mxu0
        %v1209 = vadd.f32 %v1048, %v1208
        %v1210 = vpop.f32.mrb[0].mxu0
        %1211 = vmatprep.mubr.bf16.mxu0 0
        %1212 = vmatmul.mubr.bf16.gmra.mrb[0].mxu0 %v720
        %v1213 = vpop.f32.mrb[0].mxu0
        %v1214 = vadd.f32 %v1053, %v1213
        %v1215 = vpop.f32.mrb[0].mxu0
        %v1216 = vpop.f32.mrb[0].mxu0
        %v1217 = vadd.f32 %v1056, %v1216
        %v1218 = vpop.f32.mrb[0].mxu0
        %1219 = vmatprep.mubr.bf16.mxu0 0
        %1220 = vmatmul.mubr.bf16.gmra.mrb[0].mxu0 %v723
        %v1221 = vpop.f32.mrb[0].mxu0
        %v1222 = vadd.f32 %v1061, %v1221
        %v1223 = vpop.f32.mrb[0].mxu0
        %v1224 = vpop.f32.mrb[0].mxu0
        %v1225 = vadd.f32 %v1064, %v1224
        %v1226 = vpop.f32.mrb[0].mxu0
        %1227 = vmatprep.mubr.bf16.mxu0 0
        %1228 = vmatmul.mubr.bf16.gmra.mrb[0].mxu0 %v726
        %v1229 = vpop.f32.mrb[0].mxu0
        %v1230 = vadd.f32 %v1069, %v1229
        %v1231 = vpop.f32.mrb[0].mxu0
        %v1232 = vpop.f32.mrb[0].mxu0
        %v1233 = vadd.f32 %v1072, %v1232
        %v1234 = vpop.f32.mrb[0].mxu0
        %1235 = vmatprep.mubr.bf16.mxu0 0
        %1236 = vmatmul.mubr.bf16.gmra.mrb[0].mxu0 %v729
        %v1237 = vpop.f32.mrb[0].mxu0
        %v1238 = vadd.f32 %v1077, %v1237
        %v1239 = vpop.f32.mrb[0].mxu0
        %v1240 = vpop.f32.mrb[0].mxu0
        %v1241 = vadd.f32 %v1080, %v1240
        %v1242 = vpop.f32.mrb[0].mxu0
        %1243 = vdwg.mxu0
        %v1244 = vadd.f32 %v378, %v1118
        %v1245 = vadd.f32 %v379, %v1121
        %v1246 = vadd.f32 %v380, %v1126
        %v1247 = vadd.f32 %v381, %v1129
        %v1248 = vadd.f32 %v382, %v1134
        %v1249 = vadd.f32 %v383, %v1137
        %v1250 = vadd.f32 %v384, %v1142
        %v1251 = vadd.f32 %v385, %v1145
        %v1252 = vadd.f32 %v386, %v1150
        %v1253 = vadd.f32 %v387, %v1153
        %v1254 = vadd.f32 %v388, %v1158
        %v1255 = vadd.f32 %v389, %v1161
        %v1256 = vadd.f32 %v390, %v1166
        %v1257 = vadd.f32 %v391, %v1169
        %v1258 = vadd.f32 %v392, %v1174
        %v1259 = vadd.f32 %v393, %v1177
        %v1260 = vadd.f32 %v394, %v1182
        %v1261 = vadd.f32 %v395, %v1185
        %v1262 = vadd.f32 %v396, %v1190
        %v1263 = vadd.f32 %v397, %v1193
        %v1264 = vadd.f32 %v398, %v1198
        %v1265 = vadd.f32 %v399, %v1201
        %v1266 = vadd.f32 %v400, %v1206
        %v1267 = vadd.f32 %v401, %v1209
        %v1268 = vadd.f32 %v402, %v1214
        %v1269 = vadd.f32 %v403, %v1217
        %v1270 = vadd.f32 %v404, %v1222
        %v1271 = vadd.f32 %v405, %v1225
        %v1272 = vadd.f32 %v406, %v1230
        %v1273 = vadd.f32 %v407, %v1233
        %v1274 = vadd.f32 %v408, %v1238
        %v1275 = vadd.f32 %v409, %v1241
        %1276 = vst [vmem:[#allocation2] sm:$0xff] %v1244
        %1277 = vst [vmem:[#allocation2 + $0x8] sm:$0xff] %v1245
        %1278 = vst [vmem:[#allocation2 + $0x10] sm:$0xff] %v1246
        %1279 = vst [vmem:[#allocation2 + $0x18] sm:$0xff] %v1247
        %1280 = vst [vmem:[#allocation2 + $0x20] sm:$0xff] %v1248
        %1281 = vst [vmem:[#allocation2 + $0x28] sm:$0xff] %v1249
        %1282 = vst [vmem:[#allocation2 + $0x30] sm:$0xff] %v1250
        %1283 = vst [vmem:[#allocation2 + $0x38] sm:$0xff] %v1251
        %1284 = vst [vmem:[#allocation2 + $0x40] sm:$0xff] %v1252
        %1285 = vst [vmem:[#allocation2 + $0x48] sm:$0xff] %v1253
        %1286 = vst [vmem:[#allocation2 + $0x50] sm:$0xff] %v1254
        %1287 = vst [vmem:[#allocation2 + $0x58] sm:$0xff] %v1255
        %1288 = vst [vmem:[#allocation2 + $0x60] sm:$0xff] %v1256
        %1289 = vst [vmem:[#allocation2 + $0x68] sm:$0xff] %v1257
        %1290 = vst [vmem:[#allocation2 + $0x70] sm:$0xff] %v1258
        %1291 = vst [vmem:[#allocation2 + $0x78] sm:$0xff] %v1259
        %1292 = vst [vmem:[#allocation2 + $0x80] sm:$0xff] %v1260
        %1293 = vst [vmem:[#allocation2 + $0x88] sm:$0xff] %v1261
        %1294 = vst [vmem:[#allocation2 + $0x90] sm:$0xff] %v1262
        %1295 = vst [vmem:[#allocation2 + $0x98] sm:$0xff] %v1263
        %1296 = vst [vmem:[#allocation2 + $0xa0] sm:$0xff] %v1264
        %1297 = vst [vmem:[#allocation2 + $0xa8] sm:$0xff] %v1265
        %1298 = vst [vmem:[#allocation2 + $0xb0] sm:$0xff] %v1266
        %1299 = vst [vmem:[#allocation2 + $0xb8] sm:$0xff] %v1267
        %1300 = vst [vmem:[#allocation2 + $0xc0] sm:$0xff] %v1268
        %1301 = vst [vmem:[#allocation2 + $0xc8] sm:$0xff] %v1269
        %1302 = vst [vmem:[#allocation2 + $0xd0] sm:$0xff] %v1270
        %1303 = vst [vmem:[#allocation2 + $0xd8] sm:$0xff] %v1271
        %1304 = vst [vmem:[#allocation2 + $0xe0] sm:$0xff] %v1272
        %1305 = vst [vmem:[#allocation2 + $0xe8] sm:$0xff] %v1273
        %1306 = vst [vmem:[#allocation2 + $0xf0] sm:$0xff] %v1274
        %1307 = vst [vmem:[#allocation2 + $0xf8] sm:$0xff] %v1275
        %p1308 = scmp.eq.s32.totalorder %s18, 1
        // Predicated region
        $region59: #{genenet_forward.35} parent=49 // pred_check
          %p1309 = pneg %p1308
        $region60: #{genenet_forward.35} parent=49 // pred_check_branch
          %1311 = sbr.rel (%p1309) target = $region62
        $region61: #{genenet_forward.35} parent=49 // pred_region
          %v1312 = vld [vmem:[#allocation2] sm:$0xff]
          %v1313 = vld [vmem:[#allocation2 + $0x8] sm:$0xff]
          %v1314 = vld [vmem:[#allocation2 + $0x10] sm:$0xff]
          %v1315 = vld [vmem:[#allocation2 + $0x18] sm:$0xff]
          %v1316 = vld [vmem:[#allocation2 + $0x20] sm:$0xff]
          %v1317 = vld [vmem:[#allocation2 + $0x28] sm:$0xff]
          %v1318 = vld [vmem:[#allocation2 + $0x30] sm:$0xff]
          %v1319 = vld [vmem:[#allocation2 + $0x38] sm:$0xff]
          %v1320 = vld [vmem:[#allocation2 + $0x40] sm:$0xff]
          %v1321 = vld [vmem:[#allocation2 + $0x48] sm:$0xff]
          %v1322 = vld [vmem:[#allocation2 + $0x50] sm:$0xff]
          %v1323 = vld [vmem:[#allocation2 + $0x58] sm:$0xff]
          %v1324 = vld [vmem:[#allocation2 + $0x60] sm:$0xff]
          %v1325 = vld [vmem:[#allocation2 + $0x68] sm:$0xff]
          %v1326 = vld [vmem:[#allocation2 + $0x70] sm:$0xff]
          %v1327 = vld [vmem:[#allocation2 + $0x78] sm:$0xff]
          %v1328 = vld [vmem:[#allocation2 + $0x80] sm:$0xff]
          %v1329 = vld [vmem:[#allocation2 + $0x88] sm:$0xff]
          %v1330 = vld [vmem:[#allocation2 + $0x90] sm:$0xff]
          %v1331 = vld [vmem:[#allocation2 + $0x98] sm:$0xff]
          %v1332 = vld [vmem:[#allocation2 + $0xa0] sm:$0xff]
          %v1333 = vld [vmem:[#allocation2 + $0xa8] sm:$0xff]
          %v1334 = vld [vmem:[#allocation2 + $0xb0] sm:$0xff]
          %v1335 = vld [vmem:[#allocation2 + $0xb8] sm:$0xff]
          %v1336 = vld [vmem:[#allocation2 + $0xc0] sm:$0xff]
          %v1337 = vld [vmem:[#allocation2 + $0xc8] sm:$0xff]
          %v1338 = vld [vmem:[#allocation2 + $0xd0] sm:$0xff]
          %v1339 = vld [vmem:[#allocation2 + $0xd8] sm:$0xff]
          %v1340 = vld [vmem:[#allocation2 + $0xe0] sm:$0xff]
          %v1341 = vld [vmem:[#allocation2 + $0xe8] sm:$0xff]
          %v1342 = vld [vmem:[#allocation2 + $0xf0] sm:$0xff]
          %v1343 = vld [vmem:[#allocation2 + $0xf8] sm:$0xff]
          %v1344 = vpack.c.bf16 %v1313, %v1312
          %v1345 = vpack.c.bf16 %v1315, %v1314
          %v1346 = vpack.c.bf16 %v1317, %v1316
          %v1347 = vpack.c.bf16 %v1319, %v1318
          %v1348 = vpack.c.bf16 %v1321, %v1320
          %v1349 = vpack.c.bf16 %v1323, %v1322
          %v1350 = vpack.c.bf16 %v1325, %v1324
          %v1351 = vpack.c.bf16 %v1327, %v1326
          %v1352 = vpack.c.bf16 %v1329, %v1328
          %v1353 = vpack.c.bf16 %v1331, %v1330
          %v1354 = vpack.c.bf16 %v1333, %v1332
          %v1355 = vpack.c.bf16 %v1335, %v1334
          %v1356 = vpack.c.bf16 %v1337, %v1336
          %v1357 = vpack.c.bf16 %v1339, %v1338
          %v1358 = vpack.c.bf16 %v1341, %v1340
          %v1359 = vpack.c.bf16 %v1343, %v1342
          %v1376 = vunpack.c.l.b16 %v1344
          %v1377 = vunpack.c.h.b16 %v1344
          %v1378 = vunpack.c.l.b16 %v1345
          %v1379 = vunpack.c.h.b16 %v1345
          %v1380 = vunpack.c.l.b16 %v1346
          %v1381 = vunpack.c.h.b16 %v1346
          %v1382 = vunpack.c.l.b16 %v1347
          %v1383 = vunpack.c.h.b16 %v1347
          %v1384 = vunpack.c.l.b16 %v1348
          %v1385 = vunpack.c.h.b16 %v1348
          %v1386 = vunpack.c.l.b16 %v1349
          %v1387 = vunpack.c.h.b16 %v1349
          %v1388 = vunpack.c.l.b16 %v1350
          %v1389 = vunpack.c.h.b16 %v1350
          %v1390 = vunpack.c.l.b16 %v1351
          %v1391 = vunpack.c.h.b16 %v1351
          %v1392 = vunpack.c.l.b16 %v1352
          %v1393 = vunpack.c.h.b16 %v1352
          %v1394 = vunpack.c.l.b16 %v1353
          %v1395 = vunpack.c.h.b16 %v1353
          %v1396 = vunpack.c.l.b16 %v1354
          %v1397 = vunpack.c.h.b16 %v1354
          %v1398 = vunpack.c.l.b16 %v1355
          %v1399 = vunpack.c.h.b16 %v1355
          %v1400 = vunpack.c.l.b16 %v1356
          %v1401 = vunpack.c.h.b16 %v1356
          %v1402 = vunpack.c.l.b16 %v1357
          %v1403 = vunpack.c.h.b16 %v1357
          %v1404 = vunpack.c.l.b16 %v1358
          %v1405 = vunpack.c.h.b16 %v1358
          %v1406 = vunpack.c.l.b16 %v1359
          %v1407 = vunpack.c.h.b16 %v1359
          %v1408 = vpack.c.b16 %v1376, %v1376
          %v1409 = vpack.c.b16 %v1377, %v1377
          %v1410 = vpack.c.b16 %v1378, %v1378
          %v1411 = vpack.c.b16 %v1379, %v1379
          %v1412 = vpack.c.b16 %v1380, %v1380
          %v1413 = vpack.c.b16 %v1381, %v1381
          %v1414 = vpack.c.b16 %v1382, %v1382
          %v1415 = vpack.c.b16 %v1383, %v1383
          %v1416 = vpack.c.b16 %v1384, %v1384
          %v1417 = vpack.c.b16 %v1385, %v1385
          %v1418 = vpack.c.b16 %v1386, %v1386
          %v1419 = vpack.c.b16 %v1387, %v1387
          %v1420 = vpack.c.b16 %v1388, %v1388
          %v1421 = vpack.c.b16 %v1389, %v1389
          %v1422 = vpack.c.b16 %v1390, %v1390
          %v1423 = vpack.c.b16 %v1391, %v1391
          %v1424 = vpack.c.b16 %v1392, %v1392
          %v1425 = vpack.c.b16 %v1393, %v1393
          %v1426 = vpack.c.b16 %v1394, %v1394
          %v1427 = vpack.c.b16 %v1395, %v1395
          %v1428 = vpack.c.b16 %v1396, %v1396
          %v1429 = vpack.c.b16 %v1397, %v1397
          %v1430 = vpack.c.b16 %v1398, %v1398
          %v1431 = vpack.c.b16 %v1399, %v1399
          %v1432 = vpack.c.b16 %v1400, %v1400
          %v1433 = vpack.c.b16 %v1401, %v1401
          %v1434 = vpack.c.b16 %v1402, %v1402
          %v1435 = vpack.c.b16 %v1403, %v1403
          %v1436 = vpack.c.b16 %v1404, %v1404
          %v1437 = vpack.c.b16 %v1405, %v1405
          %v1438 = vpack.c.b16 %v1406, %v1406
          %v1439 = vpack.c.b16 %v1407, %v1407
          %1472 = vst [vmem:[%s339] sm:$0xf] %v1408
          %1473 = vst [vmem:[%s339 + $0x4] sm:$0xf] %v1409
          %1474 = vst [vmem:[%s339 + $0x8] sm:$0xf] %v1410
          %1475 = vst [vmem:[%s339 + $0xc] sm:$0xf] %v1411
          %1476 = vst [vmem:[%s339 + $0x10] sm:$0xf] %v1412
          %1477 = vst [vmem:[%s339 + $0x14] sm:$0xf] %v1413
          %1478 = vst [vmem:[%s339 + $0x18] sm:$0xf] %v1414
          %1479 = vst [vmem:[%s339 + $0x1c] sm:$0xf] %v1415
          %1480 = vst [vmem:[%s339 + $0x20] sm:$0xf] %v1416
          %1481 = vst [vmem:[%s339 + $0x24] sm:$0xf] %v1417
          %1482 = vst [vmem:[%s339 + $0x28] sm:$0xf] %v1418
          %1483 = vst [vmem:[%s339 + $0x2c] sm:$0xf] %v1419
          %1484 = vst [vmem:[%s339 + $0x30] sm:$0xf] %v1420
          %1485 = vst [vmem:[%s339 + $0x34] sm:$0xf] %v1421
          %1486 = vst [vmem:[%s339 + $0x38] sm:$0xf] %v1422
          %1487 = vst [vmem:[%s339 + $0x3c] sm:$0xf] %v1423
          %1488 = vst [vmem:[%s339 + $0x40] sm:$0xf] %v1424
          %1489 = vst [vmem:[%s339 + $0x44] sm:$0xf] %v1425
          %1490 = vst [vmem:[%s339 + $0x48] sm:$0xf] %v1426
          %1491 = vst [vmem:[%s339 + $0x4c] sm:$0xf] %v1427
          %1492 = vst [vmem:[%s339 + $0x50] sm:$0xf] %v1428
          %1493 = vst [vmem:[%s339 + $0x54] sm:$0xf] %v1429
          %1494 = vst [vmem:[%s339 + $0x58] sm:$0xf] %v1430
          %1495 = vst [vmem:[%s339 + $0x5c] sm:$0xf] %v1431
          %1496 = vst [vmem:[%s339 + $0x60] sm:$0xf] %v1432
          %1497 = vst [vmem:[%s339 + $0x64] sm:$0xf] %v1433
          %1498 = vst [vmem:[%s339 + $0x68] sm:$0xf] %v1434
          %1499 = vst [vmem:[%s339 + $0x6c] sm:$0xf] %v1435
          %1500 = vst [vmem:[%s339 + $0x70] sm:$0xf] %v1436
          %1501 = vst [vmem:[%s339 + $0x74] sm:$0xf] %v1437
          %1502 = vst [vmem:[%s339 + $0x78] sm:$0xf] %v1438
          %1503 = vst [vmem:[%s339 + $0x7c] sm:$0xf] %v1439
        $region62: #{genenet_forward.35} parent=49 // pred_fallthru
          _
        %s1504 = smul.u32 32, %s17
        %p1505 = scmp.lt.s32.totalorder %s1504, 31
        %s1506 = scalar_select %p1505, %s1504, 31
        %s1507 = smul.addr %s1506, 4
        %s1508 = scalar_lea.vmem %s2, %s1507
        // Predicated region
        $region63: #{genenet_forward.35} parent=49 // pred_check
          %p1509 = pneg %p97
        $region64: #{genenet_forward.35} parent=49 // pred_check_branch
          %1511 = sbr.rel (%p1509) target = $region66
        $region65: #{genenet_forward.35} parent=49 // pred_region
          %s1512 = smul.u32 32, %s17
        $region66: #{genenet_forward.35} parent=49 // pred_fallthru
          _
        // Predicated region
        $region67: #{genenet_forward.35} parent=49 // pred_check
          %p1513 = pneg %p97
        $region68: #{genenet_forward.35} parent=49 // pred_check_branch
          %1515 = sbr.rel (%p1513) target = $region70
        $region69: #{genenet_forward.35} parent=49 // pred_region
          %s1516 = smul.u32 32, %s17
          %p1517 = scmp.lt.s32.totalorder %s1516, 31
          %s1518 = scalar_select %p1517, %s1516, 31
          %s1519 = smul.addr %s1518, 4
          %s1520 = scalar_lea.vmem %s2, %s1519
        $region70: #{genenet_forward.35} parent=49 // pred_fallthru
          _
      $region50: #{genenet_forward.35} parent=5 // pred_fallthru
        _
      %p1521 = scmp.le.s32.totalorder 2, %s8
      // Predicated region
      $region71: #{genenet_forward.35} parent=5 // pred_check
        %p1522 = pneg %p1521
      $region72: #{genenet_forward.35} parent=5 // pred_check_branch
        %1524 = sbr.rel (%p1522) target = $region74
      $region73: #{genenet_forward.35} parent=5 // pred_region
        %s1525 = ssub.s32 %s8, 2
      $region74: #{genenet_forward.35} parent=5 // pred_fallthru
        _
    $region6: #{genenet_forward.35} parent=1 // loop_footer
      %s12 = sadd.s32 1, %s8
    $region7: #{genenet_forward.35} parent=1 // loop_footer_branch
      %7 = sbr.rel target = $region3
    $region8: #{genenet_forward.35} parent=1 // loop_exit
      _

// kernel: genenet_forward.40
$region0: #{genenet_forward.40}
  #allocation0 [shape = 'u32[]', space=smem, size = 0x4, offset = 0x4, fixed_abs, tag = 'smem constant byte address 0x4 - core index']
  #allocation1 [shape = 'u32[144,128]{1,0:T(1,128)}', space=vmem, size = 0x12000, scoped, tag = 'internal scratch']
  %s0 = inlined_call_operand.vmem [shape: bf16[2,16,128], index: 0, kind: input, shape index: {}]
  %s1 = inlined_call_operand.vmem [shape: f32[1,1,128], index: 1, kind: input, shape index: {}]
  %s2 = inlined_call_operand.vmem [shape: f32[1,1,128], index: 2, kind: input, shape index: {}]
  %s3 = inlined_call_operand.vmem [shape: bf16[2,16,128], index: 3, kind: input, shape index: {}]
  %s4 = inlined_call_operand.vmem [shape: bf16[2,16,128], index: 4, kind: output, shape index: {}]
  %s5 = sld [smem:[#allocation0]]
  $region49: #{genenet_forward.40} parent=0
    _
  %s7 = ssub.s32 1, %s5
  %s8 = scalar_select 0, %s7, %s5
  loop: start=0, step=1, limit=4
  $region2: #{genenet_forward.40} parent=0 // loop_pre_header
    _
  $region3: #{genenet_forward.40} parent=0 // loop_header
    %s10 = sphi 0, %s14
    %p11 = scmp.ge.s32.totalorder %s10, 4
    %s20 = sphi 0, %s22
    %s23 = sphi 0, %s20
    %s24 = sphi 0, %s23
    %s40 = sphi 0, %s24
    %s44 = sphi 0, %s44
    %s46 = sphi 0, %s44
    %s47 = sphi 0, %s46
    %s61 = sphi 0, %s47
    %s65 = sphi 0, %s65
    %s67 = sphi 0, %s65
    %s68 = sphi 0, %s67
    %s82 = sphi 0, %s68
    %s88 = sphi 0, %s90
    %s91 = sphi 0, %s88
    %s92 = sphi 0, %s91
    %s108 = sphi 0, %s92
    %s114 = sphi 0, %s116
    %s117 = sphi 0, %s114
    %s118 = sphi 0, %s117
    %s134 = sphi 0, %s118
  $region4: #{genenet_forward.40} parent=0 // loop_header_branch
    %13 = sbr.rel (%p11) target = $region8
  $region5: #{genenet_forward.40} parent=0 // loop_body
    %s15 = ssub.s32 %s10, 1
    %s16 = ssub.s32 %s10, 2
    %s17 = sadd.s32 %s10, 1
    %s18 = ssub.s32 %s10, %s17
    %p19 = scmp.eq.s32.totalorder %s18, 0
    %s21 = sadd.s32 %s20, 1
    %s22 = scalar_select %p19, %s20, %s21
    %p25 = pneg %p19
    %p26 = scmp.eq.s32.totalorder %s10, 1
    %p27 = por %p25, %p26
    %p28 = scmp.ne.s32.totalorder %s20, %s23
    %p29 = scmp.eq.s32.totalorder %s10, 0
    %p30 = por %p28, %p29
    %p31 = scmp.ne.s32.totalorder %s20, %s23
    %p32 = scmp.eq.s32.totalorder %s15, 1
    %p33 = por %p31, %p32
    %p34 = scmp.ne.s32.totalorder %s23, %s24
    %p35 = scmp.eq.s32.totalorder %s15, 0
    %p36 = por %p34, %p35
    %p37 = scmp.ne.s32.totalorder %s23, %s24
    %p38 = scmp.eq.s32.totalorder %s16, 1
    %p39 = por %p37, %p38
    %p41 = scmp.ne.s32.totalorder %s24, %s40
    %p42 = scmp.eq.s32.totalorder %s16, 0
    %p43 = por %p41, %p42
    %s45 = sadd.s32 %s44, 1
    %p48 = scmp.eq.s32.totalorder %s10, 1
    %p49 = scmp.ne.s32.totalorder %s44, %s46
    %p50 = scmp.eq.s32.totalorder %s10, 0
    %p51 = por %p49, %p50
    %p52 = scmp.ne.s32.totalorder %s44, %s46
    %p53 = scmp.eq.s32.totalorder %s15, 1
    %p54 = por %p52, %p53
    %p55 = scmp.ne.s32.totalorder %s46, %s47
    %p56 = scmp.eq.s32.totalorder %s15, 0
    %p57 = por %p55, %p56
    %p58 = scmp.ne.s32.totalorder %s46, %s47
    %p59 = scmp.eq.s32.totalorder %s16, 1
    %p60 = por %p58, %p59
    %p62 = scmp.ne.s32.totalorder %s47, %s61
    %p63 = scmp.eq.s32.totalorder %s16, 0
    %p64 = por %p62, %p63
    %s66 = sadd.s32 %s65, 1
    %p69 = scmp.eq.s32.totalorder %s10, 1
    %p70 = scmp.ne.s32.totalorder %s65, %s67
    %p71 = scmp.eq.s32.totalorder %s10, 0
    %p72 = por %p70, %p71
    %p73 = scmp.ne.s32.totalorder %s65, %s67
    %p74 = scmp.eq.s32.totalorder %s15, 1
    %p75 = por %p73, %p74
    %p76 = scmp.ne.s32.totalorder %s67, %s68
    %p77 = scmp.eq.s32.totalorder %s15, 0
    %p78 = por %p76, %p77
    %p79 = scmp.ne.s32.totalorder %s67, %s68
    %p80 = scmp.eq.s32.totalorder %s16, 1
    %p81 = por %p79, %p80
    %p83 = scmp.ne.s32.totalorder %s68, %s82
    %p84 = scmp.eq.s32.totalorder %s16, 0
    %p85 = por %p83, %p84
    %s86 = ssub.s32 %s10, %s17
    %p87 = scmp.eq.s32.totalorder %s86, 0
    %s89 = sadd.s32 %s88, 1
    %s90 = scalar_select %p87, %s88, %s89
    %p93 = pneg %p87
    %p94 = scmp.eq.s32.totalorder %s10, 1
    %p95 = por %p93, %p94
    %p96 = scmp.ne.s32.totalorder %s88, %s91
    %p97 = scmp.eq.s32.totalorder %s10, 0
    %p98 = por %p96, %p97
    %p99 = scmp.ne.s32.totalorder %s88, %s91
    %p100 = scmp.eq.s32.totalorder %s15, 1
    %p101 = por %p99, %p100
    %p102 = scmp.ne.s32.totalorder %s91, %s92
    %p103 = scmp.eq.s32.totalorder %s15, 0
    %p104 = por %p102, %p103
    %p105 = scmp.ne.s32.totalorder %s91, %s92
    %p106 = scmp.eq.s32.totalorder %s16, 1
    %p107 = por %p105, %p106
    %p109 = scmp.ne.s32.totalorder %s92, %s108
    %p110 = scmp.eq.s32.totalorder %s16, 0
    %p111 = por %p109, %p110
    %s112 = ssub.s32 %s10, %s17
    %p113 = scmp.eq.s32.totalorder %s112, 0
    %s115 = sadd.s32 %s114, 1
    %s116 = scalar_select %p113, %s114, %s115
    %p119 = pneg %p113
    %p120 = scmp.eq.s32.totalorder %s10, 1
    %p121 = por %p119, %p120
    %p122 = scmp.ne.s32.totalorder %s114, %s117
    %p123 = scmp.eq.s32.totalorder %s10, 0
    %p124 = por %p122, %p123
    %p125 = scmp.ne.s32.totalorder %s114, %s117
    %p126 = scmp.eq.s32.totalorder %s15, 1
    %p127 = por %p125, %p126
    %p128 = scmp.ne.s32.totalorder %s117, %s118
    %p129 = scmp.eq.s32.totalorder %s15, 0
    %p130 = por %p128, %p129
    %p131 = scmp.ne.s32.totalorder %s117, %s118
    %p132 = scmp.eq.s32.totalorder %s16, 1
    %p133 = por %p131, %p132
    %p135 = scmp.ne.s32.totalorder %s118, %s134
    %p136 = scmp.eq.s32.totalorder %s16, 0
    %p137 = por %p135, %p136
    %p138 = scmp.le.s32.totalorder 1, %s10
    %p139 = scmp.lt.s32.totalorder %s10, 3
    %p140 = pnand %p138, %p139
    %p141 = pneg %p140
    // Predicated region
    $region9: #{genenet_forward.40} parent=5 // pred_check
      _
    $region10: #{genenet_forward.40} parent=5 // pred_check_branch
      %143 = sbr.rel (%p140) target = $region12
    $region11: #{genenet_forward.40} parent=5 // pred_region
      %s144 = ssub.s32 %s10, 1
      // Predicated region
      $region13: #{genenet_forward.40} parent=11 // pred_check
        %p145 = pneg %p57
      $region14: #{genenet_forward.40} parent=11 // pred_check_branch
        %147 = sbr.rel (%p145) target = $region16
      $region15: #{genenet_forward.40} parent=11 // pred_region
        _
      $region16: #{genenet_forward.40} parent=11 // pred_fallthru
        _
      // Predicated region
      $region17: #{genenet_forward.40} parent=11 // pred_check
        %p148 = pneg %p78
      $region18: #{genenet_forward.40} parent=11 // pred_check_branch
        %150 = sbr.rel (%p148) target = $region20
      $region19: #{genenet_forward.40} parent=11 // pred_region
        _
      $region20: #{genenet_forward.40} parent=11 // pred_fallthru
        _
    $region12: #{genenet_forward.40} parent=5 // pred_fallthru
      _
    %p151 = scmp.lt.s32.totalorder %s10, 2
    // Predicated region
    $region21: #{genenet_forward.40} parent=5 // pred_check
      %p152 = pneg %p151
    $region22: #{genenet_forward.40} parent=5 // pred_check_branch
      %154 = sbr.rel (%p152) target = $region24
    $region23: #{genenet_forward.40} parent=5 // pred_region
      // Predicated region
      $region25: #{genenet_forward.40} parent=23 // pred_check
        %p155 = pneg %p30
      $region26: #{genenet_forward.40} parent=23 // pred_check_branch
        %157 = sbr.rel (%p155) target = $region28
      $region27: #{genenet_forward.40} parent=23 // pred_region
        %p158 = scmp.lt.s32.totalorder %s10, 1
        %s159 = scalar_select %p158, %s10, 1
        %s160 = smul.addr %s159, 2
        %s161 = smul.addr %s160, 4
        %s162 = scalar_lea.vmem %s0, %s161
      $region28: #{genenet_forward.40} parent=23 // pred_fallthru
        _
      // Predicated region
      $region29: #{genenet_forward.40} parent=23 // pred_check
        %p163 = pneg %p98
      $region30: #{genenet_forward.40} parent=23 // pred_check_branch
        %165 = sbr.rel (%p163) target = $region32
      $region31: #{genenet_forward.40} parent=23 // pred_region
        %p166 = scmp.lt.s32.totalorder %s10, 1
        %s167 = scalar_select %p166, %s10, 1
        %s168 = smul.addr %s167, 2
        %s169 = smul.addr %s168, 4
        %s170 = scalar_lea.vmem %s3, %s169
      $region32: #{genenet_forward.40} parent=23 // pred_fallthru
        _
    $region24: #{genenet_forward.40} parent=5 // pred_fallthru
      _
    %p171 = scmp.le.s32.totalorder 1, %s10
    %p172 = scmp.lt.s32.totalorder %s10, 3
    %p173 = pnand %p171, %p172
    %p174 = pneg %p173
    // Predicated region
    $region33: #{genenet_forward.40} parent=5 // pred_check
      _
    $region34: #{genenet_forward.40} parent=5 // pred_check_branch
      %176 = sbr.rel (%p173) target = $region36
    $region35: #{genenet_forward.40} parent=5 // pred_region
      %s177 = ssub.s32 %s10, 1
      %p178 = scmp.lt.s32.totalorder %s15, 1
      %s179 = scalar_select %p178, %s15, 1
      %s180 = smul.addr %s179, 2
      %s181 = smul.addr %s180, 4
      %s182 = scalar_lea.vmem %s0, %s181
      %p183 = pneg %p36
      %p184 = pneg %p33
      %p185 = pneg %p57
      %p186 = pneg %p54
      %p187 = pneg %p78
      %p188 = pneg %p75
      %p189 = scmp.lt.s32.totalorder %s15, 1
      %s190 = scalar_select %p189, %s15, 1
      %s191 = smul.addr %s190, 2
      %s192 = smul.addr %s191, 4
      %s193 = scalar_lea.vmem %s3, %s192
      %p194 = pneg %p104
      %p195 = pneg %p101
      %p196 = pneg %p130
      %p197 = pneg %p127
      %p198 = scmp.lt.s32.totalorder %s15, 1
      %s199 = scalar_select %p198, %s15, 1
      %s200 = smul.addr %s199, 2
      %s201 = smul.addr %s200, 4
      %s202 = scalar_lea.vmem %s4, %s201
      %p203 = scmp.lt.s32.totalorder %s15, 1
      %s204 = scalar_select %p203, %s15, 1
      %s205 = smul.addr %s204, 2
      %s206 = smul.addr %s205, 4
      %s207 = scalar_lea.vmem %s0, %s206
      %p208 = scmp.lt.s32.totalorder %s15, 1
      %s209 = scalar_select %p208, %s15, 1
      %s210 = smul.addr %s209, 2
      %s211 = smul.addr %s210, 4
      %s212 = scalar_lea.vmem %s3, %s211
      %p213 = scmp.lt.s32.totalorder %s15, 1
      %s214 = scalar_select %p213, %s15, 1
      %s215 = smul.addr %s214, 2
      %s216 = smul.addr %s215, 4
      %s217 = scalar_lea.vmem %s4, %s216
      %v218 = vld [vmem:[%s207] sm:$0xf]
      %v219 = vld [vmem:[%s207 + $0x4] sm:$0xf]
      %v220 = vunpack.c.l.bf16 %v218
      %v221 = vunpack.c.l.bf16 %v219
      %v222 = vadd.f32 %v220, %v221
      %v223 = vrot.slane %v222, 4
      %v224 = vadd.f32 %v222, %v223
      %v225 = vrot.slane %v224, 2
      %v226 = vadd.f32 %v224, %v225
      %v227 = vrot.slane %v226, 1
      %v228 = vadd.f32 %v226, %v227
      %v229 = vrcp.pop 16.0
      %v230 = vmul.f32 %v228, %v229
      %v231 = vsub.f32 %v220, %v230
      %v232 = vsub.f32 %v221, %v230
      %v233 = vmul.f32 %v231, %v231
      %v234 = vmul.f32 %v232, %v232
      %v235 = vadd.f32 %v233, %v234
      %v236 = vrot.slane %v235, 4
      %v237 = vadd.f32 %v235, %v236
      %v238 = vrot.slane %v237, 2
      %v239 = vadd.f32 %v237, %v238
      %v240 = vrot.slane %v239, 1
      %v241 = vadd.f32 %v239, %v240
      %v242 = vmul.f32 %v241, %v229
      %v243 = vadd.f32 %v242, 1e-05
      %v244 = vrsqrt.pop %v243
      %v245 = vmul.f32 %v231, %v244
      %v246 = vmul.f32 %v232, %v244
      %v247 = vld [vmem:[%s1] sm:$0x1]
      %v249 = vlaneseq
      %v250 = vshrl.u32 %v249, 7
      %v251 = vsub.s32 0, %v250
      %v252 = vrot.slane %v247, %v251
      %v254 = vmul.f32 %v245, %v252
      %v255 = vmul.f32 %v246, %v252
      %v256 = vld [vmem:[%s2] sm:$0x1]
      %v258 = vlaneseq
      %v259 = vshrl.u32 %v258, 7
      %v260 = vsub.s32 0, %v259
      %v261 = vrot.slane %v256, %v260
      %v263 = vadd.f32 %v254, %v261
      %v264 = vadd.f32 %v255, %v261
      %v265 = vld [vmem:[%s212] sm:$0xf]
      %v266 = vld [vmem:[%s212 + $0x4] sm:$0xf]
      %v267 = vunpack.c.l.bf16 %v265
      %v268 = vunpack.c.l.bf16 %v266
      %v269 = vadd.f32 %v263, %v267
      %v270 = vadd.f32 %v264, %v268
      %v271 = vpack.c.bf16 %v270, %v269
      %v273 = vunpack.c.l.b16 %v271
      %v274 = vunpack.c.h.b16 %v271
      %v275 = vpack.c.b16 %v273, %v273
      %v276 = vpack.c.b16 %v274, %v274
      %279 = vst [vmem:[%s217] sm:$0xf] %v275
      %280 = vst [vmem:[%s217 + $0x4] sm:$0xf] %v276
      %p281 = scmp.lt.s32.totalorder %s15, 1
      %s282 = scalar_select %p281, %s15, 1
      %s283 = smul.addr %s282, 2
      %s284 = smul.addr %s283, 4
      %s285 = scalar_lea.vmem %s4, %s284
      // Predicated region
      $region37: #{genenet_forward.40} parent=35 // pred_check
        %p286 = pneg %p127
      $region38: #{genenet_forward.40} parent=35 // pred_check_branch
        %288 = sbr.rel (%p286) target = $region40
      $region39: #{genenet_forward.40} parent=35 // pred_region
        _
      $region40: #{genenet_forward.40} parent=35 // pred_fallthru
        _
    $region36: #{genenet_forward.40} parent=5 // pred_fallthru
      _
    %p289 = scmp.le.s32.totalorder 2, %s10
    // Predicated region
    $region41: #{genenet_forward.40} parent=5 // pred_check
      %p290 = pneg %p289
    $region42: #{genenet_forward.40} parent=5 // pred_check_branch
      %292 = sbr.rel (%p290) target = $region44
    $region43: #{genenet_forward.40} parent=5 // pred_region
      %s293 = ssub.s32 %s10, 2
      // Predicated region
      $region45: #{genenet_forward.40} parent=43 // pred_check
        %p294 = pneg %p133
      $region46: #{genenet_forward.40} parent=43 // pred_check_branch
        %296 = sbr.rel (%p294) target = $region48
      $region47: #{genenet_forward.40} parent=43 // pred_region
        %p297 = scmp.lt.s32.totalorder %s16, 1
        %s298 = scalar_select %p297, %s16, 1
        %s299 = smul.addr %s298, 2
        %s300 = smul.addr %s299, 4
        %s301 = scalar_lea.vmem %s4, %s300
      $region48: #{genenet_forward.40} parent=43 // pred_fallthru
        _
    $region44: #{genenet_forward.40} parent=5 // pred_fallthru
      _
  $region6: #{genenet_forward.40} parent=0 // loop_footer
    %s14 = sadd.s32 1, %s10
  $region7: #{genenet_forward.40} parent=0 // loop_footer_branch
    %9 = sbr.rel target = $region3
  $region8: #{genenet_forward.40} parent=0 // loop_exit
    _

// kernel: genenet_forward.37
$region0: #{genenet_forward.37}
  #allocation0 [shape = 'u32[]', space=smem, size = 0x4, offset = 0x4, fixed_abs, tag = 'smem constant byte address 0x4 - core index']
  #allocation1 [shape = 'u32[144,128]{1,0:T(1,128)}', space=vmem, size = 0x12000, scoped, tag = 'internal scratch']
  #allocation2 [shape = 'f32[256,128]{1,0:T(8,128)}', space=vmem, size = 0x20000, scoped, tag = 'scratch operand']
  %s0 = inlined_call_operand.vmem [shape: bf16[256,1152], index: 0, kind: input, shape index: {}]
  %s1 = inlined_call_operand.vmem [shape: bf16[1152,128], index: 1, kind: input, shape index: {}]
  %s2 = inlined_call_operand.vmem [shape: bf16[256,128], index: 2, kind: output, shape index: {}]
  %s3 = sld [smem:[#allocation0]]
  $region75: #{genenet_forward.37} parent=0
    _
  %s5 = ssub.s32 1, %s3
  %s6 = scalar_select 0, %s5, %s3
  $region1: #{genenet_forward.37} parent=0
    #allocation3 [shape = 'u8[393216]{0}', space=vmem, size = 0x60000, scoped, tag = 'input window, operand 0']
    loop: start=0, step=1, limit=5
    $region2: #{genenet_forward.37} parent=1 // loop_pre_header
      _
    $region3: #{genenet_forward.37} parent=1 // loop_header
      %s8 = sphi 0, %s12
      %p9 = scmp.ge.s32.totalorder %s8, 5
      %s15 = sphi 0, %s27
      %s16 = sphi 0, %s23
      %s17 = sphi 0, %s15
      %s18 = sphi 0, %s16
      %s19 = sphi 0, %s17
      %s20 = sphi 0, %s18
      %s32 = sphi 0, %s34
      %s35 = sphi 0, %s32
      %s36 = sphi 0, %s35
      %s52 = sphi 0, %s36
      %s58 = sphi 0, %s60
      %s61 = sphi 0, %s58
      %s62 = sphi 0, %s61
      %s78 = sphi 0, %s62
      %s84 = sphi 0, %s86
      %s87 = sphi 0, %s84
      %s88 = sphi 0, %s87
      %s104 = sphi 0, %s88
    $region4: #{genenet_forward.37} parent=1 // loop_header_branch
      %11 = sbr.rel (%p9) target = $region8
    $region5: #{genenet_forward.37} parent=1 // loop_body
      %s13 = ssub.s32 %s8, 1
      %s14 = ssub.s32 %s8, 2
      %s21 = sadd.s32 1, %s16
      %p22 = scmp.ge.s32.totalorder %s21, 3
      %s23 = scalar_select %p22, 0, %s21
      %s24 = sadd.s32 1, %s15
      %s25 = scalar_select %p22, %s24, %s15
      %p26 = scmp.ge.s32.totalorder %s25, 1
      %s27 = scalar_select %p26, 0, %s25
      %s28 = ssub.s32 %s15, %s27
      %s29 = ssub.s32 %s16, %s23
      %s30 = sor.u32 %s28, %s29
      %p31 = scmp.eq.s32.totalorder %s30, 0
      %s33 = sadd.s32 %s32, 1
      %s34 = scalar_select %p31, %s32, %s33
      %p37 = pneg %p31
      %p38 = scmp.eq.s32.totalorder %s8, 2
      %p39 = por %p37, %p38
      %p40 = scmp.ne.s32.totalorder %s32, %s35
      %p41 = scmp.eq.s32.totalorder %s8, 0
      %p42 = por %p40, %p41
      %p43 = scmp.ne.s32.totalorder %s32, %s35
      %p44 = scmp.eq.s32.totalorder %s13, 2
      %p45 = por %p43, %p44
      %p46 = scmp.ne.s32.totalorder %s35, %s36
      %p47 = scmp.eq.s32.totalorder %s13, 0
      %p48 = por %p46, %p47
      %p49 = scmp.ne.s32.totalorder %s35, %s36
      %p50 = scmp.eq.s32.totalorder %s14, 2
      %p51 = por %p49, %p50
      %p53 = scmp.ne.s32.totalorder %s36, %s52
      %p54 = scmp.eq.s32.totalorder %s14, 0
      %p55 = por %p53, %p54
      %s56 = ssub.s32 %s16, %s23
      %p57 = scmp.eq.s32.totalorder %s56, 0
      %s59 = sadd.s32 %s58, 1
      %s60 = scalar_select %p57, %s58, %s59
      %p63 = pneg %p57
      %p64 = scmp.eq.s32.totalorder %s8, 2
      %p65 = por %p63, %p64
      %p66 = scmp.ne.s32.totalorder %s58, %s61
      %p67 = scmp.eq.s32.totalorder %s8, 0
      %p68 = por %p66, %p67
      %p69 = scmp.ne.s32.totalorder %s58, %s61
      %p70 = scmp.eq.s32.totalorder %s13, 2
      %p71 = por %p69, %p70
      %p72 = scmp.ne.s32.totalorder %s61, %s62
      %p73 = scmp.eq.s32.totalorder %s13, 0
      %p74 = por %p72, %p73
      %p75 = scmp.ne.s32.totalorder %s61, %s62
      %p76 = scmp.eq.s32.totalorder %s14, 2
      %p77 = por %p75, %p76
      %p79 = scmp.ne.s32.totalorder %s62, %s78
      %p80 = scmp.eq.s32.totalorder %s14, 0
      %p81 = por %p79, %p80
      %s82 = ssub.s32 %s15, %s27
      %p83 = scmp.eq.s32.totalorder %s82, 0
      %s85 = sadd.s32 %s84, 1
      %s86 = scalar_select %p83, %s84, %s85
      %p89 = pneg %p83
      %p90 = scmp.eq.s32.totalorder %s8, 2
      %p91 = por %p89, %p90
      %p92 = scmp.ne.s32.totalorder %s84, %s87
      %p93 = scmp.eq.s32.totalorder %s8, 0
      %p94 = por %p92, %p93
      %p95 = scmp.ne.s32.totalorder %s84, %s87
      %p96 = scmp.eq.s32.totalorder %s13, 2
      %p97 = por %p95, %p96
      %p98 = scmp.ne.s32.totalorder %s87, %s88
      %p99 = scmp.eq.s32.totalorder %s13, 0
      %p100 = por %p98, %p99
      %p101 = scmp.ne.s32.totalorder %s87, %s88
      %p102 = scmp.eq.s32.totalorder %s14, 2
      %p103 = por %p101, %p102
      %p105 = scmp.ne.s32.totalorder %s88, %s104
      %p106 = scmp.eq.s32.totalorder %s14, 0
      %p107 = por %p105, %p106
      %p108 = scmp.le.s32.totalorder 1, %s8
      %p109 = scmp.lt.s32.totalorder %s8, 4
      %p110 = pnand %p108, %p109
      %p111 = pneg %p110
      // Predicated region
      $region9: #{genenet_forward.37} parent=5 // pred_check
        _
      $region10: #{genenet_forward.37} parent=5 // pred_check_branch
        %113 = sbr.rel (%p110) target = $region12
      $region11: #{genenet_forward.37} parent=5 // pred_region
        %s114 = ssub.s32 %s8, 1
      $region12: #{genenet_forward.37} parent=5 // pred_fallthru
        _
      %p115 = scmp.lt.s32.totalorder %s8, 3
      // Predicated region
      $region13: #{genenet_forward.37} parent=5 // pred_check
        %p116 = pneg %p115
      $region14: #{genenet_forward.37} parent=5 // pred_check_branch
        %118 = sbr.rel (%p116) target = $region16
      $region15: #{genenet_forward.37} parent=5 // pred_region
        // Predicated region
        $region17: #{genenet_forward.37} parent=15 // pred_check
          %p119 = pneg %p42
        $region18: #{genenet_forward.37} parent=15 // pred_check_branch
          %121 = sbr.rel (%p119) target = $region20
        $region19: #{genenet_forward.37} parent=15 // pred_region
          %s122 = sand.u32 %s32, 1
          %s123 = sand.u32 %s32, 1
          %s124 = smul.addr %s123, 384
          %s125 = scalar_lea.vmem [#allocation3], %s124
          %s126 = smul.u32 32, %s15
          %s127 = smul.u32 3, %s16
          %s128 = smul.addr %s126, 9
          %s129 = sadd.s32 %s127, %s128
          %s130 = smul.addr %s129, 4
          %s131 = scalar_lea.vmem %s0, %s130
          // Predicated region
          $region21: #{genenet_forward.37} parent=19 // pred_check
            _
          $region22: #{genenet_forward.37} parent=19 // pred_check_branch
            %133 = sbr.rel (0) target = $region24
          $region23: #{genenet_forward.37} parent=19 // pred_region
            // Predicated region
            $region25: #{genenet_forward.37} parent=23 // pred_check
              _
            $region26: #{genenet_forward.37} parent=23 // pred_check_branch
              %135 = sbr.rel (0) target = $region28
            $region27: #{genenet_forward.37} parent=23 // pred_region
              %s136 = scalar_lea.vmem %s131, 8
              %s137 = scalar_lea.vmem %s125, 8 [#allocation3]
              loop: start=0, step=1, limit=1
              $region29: #{genenet_forward.37} parent=27 // loop_pre_header
                _
              $region30: #{genenet_forward.37} parent=27 // loop_header
                %s139 = sphi 0, %s143
                %p140 = scmp.ge.s32.totalorder %s139, 1
                %s144 = sphi %s131, %s131
                %s145 = sphi %s125, %s125
              $region31: #{genenet_forward.37} parent=27 // loop_header_branch
                %142 = sbr.rel (%p140) target = $region35
              $region32: #{genenet_forward.37} parent=27 // loop_body
                %v146 = vld [vmem:[%s144] sm:$0xff]
                %147 = vst [vmem:[%s145] sm:$0xff] %v146
                %v148 = vld [vmem:[%s144 + $0x24] sm:$0xff]
                %149 = vst [vmem:[%s145 + $0xc] sm:$0xff] %v148
                %v150 = vld [vmem:[%s144 + $0x48] sm:$0xff]
                %151 = vst [vmem:[%s145 + $0x18] sm:$0xff] %v150
                %v152 = vld [vmem:[%s144 + $0x6c] sm:$0xff]
                %153 = vst [vmem:[%s145 + $0x24] sm:$0xff] %v152
                %v154 = vld [vmem:[%s144 + $0x90] sm:$0xff]
                %155 = vst [vmem:[%s145 + $0x30] sm:$0xff] %v154
                %v156 = vld [vmem:[%s144 + $0xb4] sm:$0xff]
                %157 = vst [vmem:[%s145 + $0x3c] sm:$0xff] %v156
                %v158 = vld [vmem:[%s144 + $0xd8] sm:$0xff]
                %159 = vst [vmem:[%s145 + $0x48] sm:$0xff] %v158
                %v160 = vld [vmem:[%s144 + $0xfc] sm:$0xff]
                %161 = vst [vmem:[%s145 + $0x54] sm:$0xff] %v160
                %v162 = vld [vmem:[%s144 + $0x120] sm:$0xff]
                %163 = vst [vmem:[%s145 + $0x60] sm:$0xff] %v162
                %v164 = vld [vmem:[%s144 + $0x144] sm:$0xff]
                %165 = vst [vmem:[%s145 + $0x6c] sm:$0xff] %v164
                %v166 = vld [vmem:[%s144 + $0x168] sm:$0xff]
                %167 = vst [vmem:[%s145 + $0x78] sm:$0xff] %v166
                %v168 = vld [vmem:[%s144 + $0x18c] sm:$0xff]
                %169 = vst [vmem:[%s145 + $0x84] sm:$0xff] %v168
                %v170 = vld [vmem:[%s144 + $0x1b0] sm:$0xff]
                %171 = vst [vmem:[%s145 + $0x90] sm:$0xff] %v170
                %v172 = vld [vmem:[%s144 + $0x1d4] sm:$0xff]
                %173 = vst [vmem:[%s145 + $0x9c] sm:$0xff] %v172
                %v174 = vld [vmem:[%s144 + $0x1f8] sm:$0xff]
                %175 = vst [vmem:[%s145 + $0xa8] sm:$0xff] %v174
                %v176 = vld [vmem:[%s144 + $0x21c] sm:$0xff]
                %177 = vst [vmem:[%s145 + $0xb4] sm:$0xff] %v176
                %v178 = vld [vmem:[%s144 + $0x240] sm:$0xff]
                %179 = vst [vmem:[%s145 + $0xc0] sm:$0xff] %v178
                %v180 = vld [vmem:[%s144 + $0x264] sm:$0xff]
                %181 = vst [vmem:[%s145 + $0xcc] sm:$0xff] %v180
                %v182 = vld [vmem:[%s144 + $0x288] sm:$0xff]
                %183 = vst [vmem:[%s145 + $0xd8] sm:$0xff] %v182
                %v184 = vld [vmem:[%s144 + $0x2ac] sm:$0xff]
                %185 = vst [vmem:[%s145 + $0xe4] sm:$0xff] %v184
                %v186 = vld [vmem:[%s144 + $0x2d0] sm:$0xff]
                %187 = vst [vmem:[%s145 + $0xf0] sm:$0xff] %v186
                %v188 = vld [vmem:[%s144 + $0x2f4] sm:$0xff]
                %189 = vst [vmem:[%s145 + $0xfc] sm:$0xff] %v188
                %v190 = vld [vmem:[%s144 + $0x318] sm:$0xff]
                %191 = vst [vmem:[%s145 + $0x108] sm:$0xff] %v190
                %v192 = vld [vmem:[%s144 + $0x33c] sm:$0xff]
                %193 = vst [vmem:[%s145 + $0x114] sm:$0xff] %v192
                %v194 = vld [vmem:[%s144 + $0x360] sm:$0xff]
                %195 = vst [vmem:[%s145 + $0x120] sm:$0xff] %v194
                %v196 = vld [vmem:[%s144 + $0x384] sm:$0xff]
                %197 = vst [vmem:[%s145 + $0x12c] sm:$0xff] %v196
                %v198 = vld [vmem:[%s144 + $0x3a8] sm:$0xff]
                %199 = vst [vmem:[%s145 + $0x138] sm:$0xff] %v198
                %v200 = vld [vmem:[%s144 + $0x3cc] sm:$0xff]
                %201 = vst [vmem:[%s145 + $0x144] sm:$0xff] %v200
                %v202 = vld [vmem:[%s144 + $0x3f0] sm:$0xff]
                %203 = vst [vmem:[%s145 + $0x150] sm:$0xff] %v202
                %v204 = vld [vmem:[%s144 + $0x414] sm:$0xff]
                %205 = vst [vmem:[%s145 + $0x15c] sm:$0xff] %v204
                %v206 = vld [vmem:[%s144 + $0x438] sm:$0xff]
                %207 = vst [vmem:[%s145 + $0x168] sm:$0xff] %v206
                %v208 = vld [vmem:[%s144 + $0x45c] sm:$0xff]
                %209 = vst [vmem:[%s145 + $0x174] sm:$0xff] %v208
              $region33: #{genenet_forward.37} parent=27 // loop_footer
                %s143 = sadd.s32 1, %s139
              $region34: #{genenet_forward.37} parent=27 // loop_footer_branch
                %138 = sbr.rel target = $region30
              $region35: #{genenet_forward.37} parent=27 // loop_exit
                _
              loop: start=0, step=1, limit=1
              $region36: #{genenet_forward.37} parent=27 // loop_pre_header
                _
              $region37: #{genenet_forward.37} parent=27 // loop_header
                %s212 = sphi 0, %s216
                %p213 = scmp.ge.s32.totalorder %s212, 1
                %s217 = sphi %s136, %s136
                %s218 = sphi %s137, %s137
              $region38: #{genenet_forward.37} parent=27 // loop_header_branch
                %215 = sbr.rel (%p213) target = $region42
              $region39: #{genenet_forward.37} parent=27 // loop_body
                %v219 = vld [vmem:[%s217] sm:$0xf]
                %220 = vst [vmem:[%s218] sm:$0xf] %v219
                %v221 = vld [vmem:[%s217 + $0x24] sm:$0xf]
                %222 = vst [vmem:[%s218 + $0xc] sm:$0xf] %v221
                %v223 = vld [vmem:[%s217 + $0x48] sm:$0xf]
                %224 = vst [vmem:[%s218 + $0x18] sm:$0xf] %v223
                %v225 = vld [vmem:[%s217 + $0x6c] sm:$0xf]
                %226 = vst [vmem:[%s218 + $0x24] sm:$0xf] %v225
                %v227 = vld [vmem:[%s217 + $0x90] sm:$0xf]
                %228 = vst [vmem:[%s218 + $0x30] sm:$0xf] %v227
                %v229 = vld [vmem:[%s217 + $0xb4] sm:$0xf]
                %230 = vst [vmem:[%s218 + $0x3c] sm:$0xf] %v229
                %v231 = vld [vmem:[%s217 + $0xd8] sm:$0xf]
                %232 = vst [vmem:[%s218 + $0x48] sm:$0xf] %v231
                %v233 = vld [vmem:[%s217 + $0xfc] sm:$0xf]
                %234 = vst [vmem:[%s218 + $0x54] sm:$0xf] %v233
                %v235 = vld [vmem:[%s217 + $0x120] sm:$0xf]
                %236 = vst [vmem:[%s218 + $0x60] sm:$0xf] %v235
                %v237 = vld [vmem:[%s217 + $0x144] sm:$0xf]
                %238 = vst [vmem:[%s218 + $0x6c] sm:$0xf] %v237
                %v239 = vld [vmem:[%s217 + $0x168] sm:$0xf]
                %240 = vst [vmem:[%s218 + $0x78] sm:$0xf] %v239
                %v241 = vld [vmem:[%s217 + $0x18c] sm:$0xf]
                %242 = vst [vmem:[%s218 + $0x84] sm:$0xf] %v241
                %v243 = vld [vmem:[%s217 + $0x1b0] sm:$0xf]
                %244 = vst [vmem:[%s218 + $0x90] sm:$0xf] %v243
                %v245 = vld [vmem:[%s217 + $0x1d4] sm:$0xf]
                %246 = vst [vmem:[%s218 + $0x9c] sm:$0xf] %v245
                %v247 = vld [vmem:[%s217 + $0x1f8] sm:$0xf]
                %248 = vst [vmem:[%s218 + $0xa8] sm:$0xf] %v247
                %v249 = vld [vmem:[%s217 + $0x21c] sm:$0xf]
                %250 = vst [vmem:[%s218 + $0xb4] sm:$0xf] %v249
                %v251 = vld [vmem:[%s217 + $0x240] sm:$0xf]
                %252 = vst [vmem:[%s218 + $0xc0] sm:$0xf] %v251
                %v253 = vld [vmem:[%s217 + $0x264] sm:$0xf]
                %254 = vst [vmem:[%s218 + $0xcc] sm:$0xf] %v253
                %v255 = vld [vmem:[%s217 + $0x288] sm:$0xf]
                %256 = vst [vmem:[%s218 + $0xd8] sm:$0xf] %v255
                %v257 = vld [vmem:[%s217 + $0x2ac] sm:$0xf]
                %258 = vst [vmem:[%s218 + $0xe4] sm:$0xf] %v257
                %v259 = vld [vmem:[%s217 + $0x2d0] sm:$0xf]
                %260 = vst [vmem:[%s218 + $0xf0] sm:$0xf] %v259
                %v261 = vld [vmem:[%s217 + $0x2f4] sm:$0xf]
                %262 = vst [vmem:[%s218 + $0xfc] sm:$0xf] %v261
                %v263 = vld [vmem:[%s217 + $0x318] sm:$0xf]
                %264 = vst [vmem:[%s218 + $0x108] sm:$0xf] %v263
                %v265 = vld [vmem:[%s217 + $0x33c] sm:$0xf]
                %266 = vst [vmem:[%s218 + $0x114] sm:$0xf] %v265
                %v267 = vld [vmem:[%s217 + $0x360] sm:$0xf]
                %268 = vst [vmem:[%s218 + $0x120] sm:$0xf] %v267
                %v269 = vld [vmem:[%s217 + $0x384] sm:$0xf]
                %270 = vst [vmem:[%s218 + $0x12c] sm:$0xf] %v269
                %v271 = vld [vmem:[%s217 + $0x3a8] sm:$0xf]
                %272 = vst [vmem:[%s218 + $0x138] sm:$0xf] %v271
                %v273 = vld [vmem:[%s217 + $0x3cc] sm:$0xf]
                %274 = vst [vmem:[%s218 + $0x144] sm:$0xf] %v273
                %v275 = vld [vmem:[%s217 + $0x3f0] sm:$0xf]
                %276 = vst [vmem:[%s218 + $0x150] sm:$0xf] %v275
                %v277 = vld [vmem:[%s217 + $0x414] sm:$0xf]
                %278 = vst [vmem:[%s218 + $0x15c] sm:$0xf] %v277
                %v279 = vld [vmem:[%s217 + $0x438] sm:$0xf]
                %280 = vst [vmem:[%s218 + $0x168] sm:$0xf] %v279
                %v281 = vld [vmem:[%s217 + $0x45c] sm:$0xf]
                %282 = vst [vmem:[%s218 + $0x174] sm:$0xf] %v281
              $region40: #{genenet_forward.37} parent=27 // loop_footer
                %s216 = sadd.s32 1, %s212
              $region41: #{genenet_forward.37} parent=27 // loop_footer_branch
                %211 = sbr.rel target = $region37
              $region42: #{genenet_forward.37} parent=27 // loop_exit
                _
            $region28: #{genenet_forward.37} parent=23 // pred_fallthru
              _
          $region24: #{genenet_forward.37} parent=19 // pred_fallthru
            _
          %283 = vnop
        $region20: #{genenet_forward.37} parent=15 // pred_fallthru
          _
        // Predicated region
        $region43: #{genenet_forward.37} parent=15 // pred_check
          %p284 = pneg %p68
        $region44: #{genenet_forward.37} parent=15 // pred_check_branch
          %286 = sbr.rel (%p284) target = $region46
        $region45: #{genenet_forward.37} parent=15 // pred_region
          %s287 = smul.u32 48, %s16
          %p288 = scmp.lt.s32.totalorder %s287, 143
          %s289 = scalar_select %p288, %s287, 143
          %s290 = smul.addr %s289, 4
          %s291 = scalar_lea.vmem %s1, %s290
          %s292 = smul.u32 48, %s16
        $region46: #{genenet_forward.37} parent=15 // pred_fallthru
          _
      $region16: #{genenet_forward.37} parent=5 // pred_fallthru
        _
      %p293 = scmp.le.s32.totalorder 1, %s8
      %p294 = scmp.lt.s32.totalorder %s8, 4
      %p295 = pnand %p293, %p294
      %p296 = pneg %p295
      // Predicated region
      $region47: #{genenet_forward.37} parent=5 // pred_check
        _
      $region48: #{genenet_forward.37} parent=5 // pred_check_branch
        %298 = sbr.rel (%p295) target = $region50
      $region49: #{genenet_forward.37} parent=5 // pred_region
        %s299 = ssub.s32 %s8, 1
        %s300 = sand.u32 %s35, 1
        %s301 = sand.u32 %s35, 1
        %s302 = smul.addr %s301, 384
        %s303 = scalar_lea.vmem [#allocation3], %s302
        // Predicated region
        $region51: #{genenet_forward.37} parent=49 // pred_check
          %p304 = pneg %p48
        $region52: #{genenet_forward.37} parent=49 // pred_check_branch
          %306 = sbr.rel (%p304) target = $region54
        $region53: #{genenet_forward.37} parent=49 // pred_region
          _
        $region54: #{genenet_forward.37} parent=49 // pred_fallthru
          _
        %s307 = sand.u32 %s35, 1
        %s308 = sand.u32 %s35, 1
        %s309 = smul.addr %s308, 384
        %s310 = scalar_lea.vmem [#allocation3], %s309
        %p311 = pneg %p48
        %p312 = pneg %p45
        %s313 = smul.u32 48, %s18
        %p314 = scmp.lt.s32.totalorder %s313, 143
        %s315 = scalar_select %p314, %s313, 143
        %s316 = smul.addr %s315, 4
        %s317 = scalar_lea.vmem %s1, %s316
        %p318 = pneg %p74
        %p319 = pneg %p71
        %p320 = pneg %p100
        %p321 = pneg %p97
        %s322 = smul.u32 32, %s17
        %p323 = scmp.lt.s32.totalorder %s322, 31
        %s324 = scalar_select %p323, %s322, 31
        %s325 = smul.addr %s324, 4
        %s326 = scalar_lea.vmem %s2, %s325
        %s327 = smul.u32 32, %s17
        %s328 = smul.u32 3, %s18
        %s329 = smul.u32 48, %s18
        %p330 = scmp.lt.s32.totalorder %s329, 143
        %s331 = scalar_select %p330, %s329, 143
        %s332 = smul.addr %s331, 4
        %s333 = scalar_lea.vmem %s1, %s332
        %s334 = smul.u32 48, %s18
        %s335 = smul.u32 32, %s17
        %p336 = scmp.lt.s32.totalorder %s335, 31
        %s337 = scalar_select %p336, %s335, 31
        %s338 = smul.addr %s337, 4
        %s339 = scalar_lea.vmem %s2, %s338
        %s340 = smul.u32 32, %s17
        %p342 = scmp.eq.s32.totalorder %s18, 0
        // Predicated region
        $region55: #{genenet_forward.37} parent=49 // pred_check
          %p343 = pneg %p342
        $region56: #{genenet_forward.37} parent=49 // pred_check_branch
          %345 = sbr.rel (%p343) target = $region58
        $region57: #{genenet_forward.37} parent=49 // pred_region
          %346 = vst [vmem:[#allocation2] sm:$0xff] 0.0
          %347 = vst [vmem:[#allocation2 + $0x8] sm:$0xff] 0.0
          %348 = vst [vmem:[#allocation2 + $0x10] sm:$0xff] 0.0
          %349 = vst [vmem:[#allocation2 + $0x18] sm:$0xff] 0.0
          %350 = vst [vmem:[#allocation2 + $0x20] sm:$0xff] 0.0
          %351 = vst [vmem:[#allocation2 + $0x28] sm:$0xff] 0.0
          %352 = vst [vmem:[#allocation2 + $0x30] sm:$0xff] 0.0
          %353 = vst [vmem:[#allocation2 + $0x38] sm:$0xff] 0.0
          %354 = vst [vmem:[#allocation2 + $0x40] sm:$0xff] 0.0
          %355 = vst [vmem:[#allocation2 + $0x48] sm:$0xff] 0.0
          %356 = vst [vmem:[#allocation2 + $0x50] sm:$0xff] 0.0
          %357 = vst [vmem:[#allocation2 + $0x58] sm:$0xff] 0.0
          %358 = vst [vmem:[#allocation2 + $0x60] sm:$0xff] 0.0
          %359 = vst [vmem:[#allocation2 + $0x68] sm:$0xff] 0.0
          %360 = vst [vmem:[#allocation2 + $0x70] sm:$0xff] 0.0
          %361 = vst [vmem:[#allocation2 + $0x78] sm:$0xff] 0.0
          %362 = vst [vmem:[#allocation2 + $0x80] sm:$0xff] 0.0
          %363 = vst [vmem:[#allocation2 + $0x88] sm:$0xff] 0.0
          %364 = vst [vmem:[#allocation2 + $0x90] sm:$0xff] 0.0
          %365 = vst [vmem:[#allocation2 + $0x98] sm:$0xff] 0.0
          %366 = vst [vmem:[#allocation2 + $0xa0] sm:$0xff] 0.0
          %367 = vst [vmem:[#allocation2 + $0xa8] sm:$0xff] 0.0
          %368 = vst [vmem:[#allocation2 + $0xb0] sm:$0xff] 0.0
          %369 = vst [vmem:[#allocation2 + $0xb8] sm:$0xff] 0.0
          %370 = vst [vmem:[#allocation2 + $0xc0] sm:$0xff] 0.0
          %371 = vst [vmem:[#allocation2 + $0xc8] sm:$0xff] 0.0
          %372 = vst [vmem:[#allocation2 + $0xd0] sm:$0xff] 0.0
          %373 = vst [vmem:[#allocation2 + $0xd8] sm:$0xff] 0.0
          %374 = vst [vmem:[#allocation2 + $0xe0] sm:$0xff] 0.0
          %375 = vst [vmem:[#allocation2 + $0xe8] sm:$0xff] 0.0
          %376 = vst [vmem:[#allocation2 + $0xf0] sm:$0xff] 0.0
          %377 = vst [vmem:[#allocation2 + $0xf8] sm:$0xff] 0.0
        $region58: #{genenet_forward.37} parent=49 // pred_fallthru
          _
        %v378 = vld [vmem:[#allocation2] sm:$0xff]
        %v379 = vld [vmem:[#allocation2 + $0x8] sm:$0xff]
        %v380 = vld [vmem:[#allocation2 + $0x10] sm:$0xff]
        %v381 = vld [vmem:[#allocation2 + $0x18] sm:$0xff]
        %v382 = vld [vmem:[#allocation2 + $0x20] sm:$0xff]
        %v383 = vld [vmem:[#allocation2 + $0x28] sm:$0xff]
        %v384 = vld [vmem:[#allocation2 + $0x30] sm:$0xff]
        %v385 = vld [vmem:[#allocation2 + $0x38] sm:$0xff]
        %v386 = vld [vmem:[#allocation2 + $0x40] sm:$0xff]
        %v387 = vld [vmem:[#allocation2 + $0x48] sm:$0xff]
        %v388 = vld [vmem:[#allocation2 + $0x50] sm:$0xff]
        %v389 = vld [vmem:[#allocation2 + $0x58] sm:$0xff]
        %v390 = vld [vmem:[#allocation2 + $0x60] sm:$0xff]
        %v391 = vld [vmem:[#allocation2 + $0x68] sm:$0xff]
        %v392 = vld [vmem:[#allocation2 + $0x70] sm:$0xff]
        %v393 = vld [vmem:[#allocation2 + $0x78] sm:$0xff]
        %v394 = vld [vmem:[#allocation2 + $0x80] sm:$0xff]
        %v395 = vld [vmem:[#allocation2 + $0x88] sm:$0xff]
        %v396 = vld [vmem:[#allocation2 + $0x90] sm:$0xff]
        %v397 = vld [vmem:[#allocation2 + $0x98] sm:$0xff]
        %v398 = vld [vmem:[#allocation2 + $0xa0] sm:$0xff]
        %v399 = vld [vmem:[#allocation2 + $0xa8] sm:$0xff]
        %v400 = vld [vmem:[#allocation2 + $0xb0] sm:$0xff]
        %v401 = vld [vmem:[#allocation2 + $0xb8] sm:$0xff]
        %v402 = vld [vmem:[#allocation2 + $0xc0] sm:$0xff]
        %v403 = vld [vmem:[#allocation2 + $0xc8] sm:$0xff]
        %v404 = vld [vmem:[#allocation2 + $0xd0] sm:$0xff]
        %v405 = vld [vmem:[#allocation2 + $0xd8] sm:$0xff]
        %v406 = vld [vmem:[#allocation2 + $0xe0] sm:$0xff]
        %v407 = vld [vmem:[#allocation2 + $0xe8] sm:$0xff]
        %v408 = vld [vmem:[#allocation2 + $0xf0] sm:$0xff]
        %v409 = vld [vmem:[#allocation2 + $0xf8] sm:$0xff]
        %v410 = vld [vmem:[%s303] sm:$0xff]
        %v411 = vld [vmem:[%s303 + $0x8] sm:$0xf]
        %v412 = vld [vmem:[%s303 + $0xc] sm:$0xff]
        %v413 = vld [vmem:[%s303 + $0x14] sm:$0xf]
        %v414 = vld [vmem:[%s303 + $0x18] sm:$0xff]
        %v415 = vld [vmem:[%s303 + $0x20] sm:$0xf]
        %v416 = vld [vmem:[%s303 + $0x24] sm:$0xff]
        %v417 = vld [vmem:[%s303 + $0x2c] sm:$0xf]
        %v418 = vld [vmem:[%s303 + $0x30] sm:$0xff]
        %v419 = vld [vmem:[%s303 + $0x38] sm:$0xf]
        %v420 = vld [vmem:[%s303 + $0x3c] sm:$0xff]
        %v421 = vld [vmem:[%s303 + $0x44] sm:$0xf]
        %v422 = vld [vmem:[%s303 + $0x48] sm:$0xff]
        %v423 = vld [vmem:[%s303 + $0x50] sm:$0xf]
        %v424 = vld [vmem:[%s303 + $0x54] sm:$0xff]
        %v425 = vld [vmem:[%s303 + $0x5c] sm:$0xf]
        %v426 = vld [vmem:[%s303 + $0x60] sm:$0xff]
        %v427 = vld [vmem:[%s303 + $0x68] sm:$0xf]
        %v428 = vld [vmem:[%s303 + $0x6c] sm:$0xff]
        %v429 = vld [vmem:[%s303 + $0x74] sm:$0xf]
        %v430 = vld [vmem:[%s303 + $0x78] sm:$0xff]
        %v431 = vld [vmem:[%s303 + $0x80] sm:$0xf]
        %v432 = vld [vmem:[%s303 + $0x84] sm:$0xff]
        %v433 = vld [vmem:[%s303 + $0x8c] sm:$0xf]
        %v434 = vld [vmem:[%s303 + $0x90] sm:$0xff]
        %v435 = vld [vmem:[%s303 + $0x98] sm:$0xf]
        %v436 = vld [vmem:[%s303 + $0x9c] sm:$0xff]
        %v437 = vld [vmem:[%s303 + $0xa4] sm:$0xf]
        %v438 = vld [vmem:[%s303 + $0xa8] sm:$0xff]
        %v439 = vld [vmem:[%s303 + $0xb0] sm:$0xf]
        %v440 = vld [vmem:[%s303 + $0xb4] sm:$0xff]
        %v441 = vld [vmem:[%s303 + $0xbc] sm:$0xf]
        %v442 = vld [vmem:[%s303 + $0xc0] sm:$0xff]
        %v443 = vld [vmem:[%s303 + $0xc8] sm:$0xf]
        %v444 = vld [vmem:[%s303 + $0xcc] sm:$0xff]
        %v445 = vld [vmem:[%s303 + $0xd4] sm:$0xf]
        %v446 = vld [vmem:[%s303 + $0xd8] sm:$0xff]
        %v447 = vld [vmem:[%s303 + $0xe0] sm:$0xf]
        %v448 = vld [vmem:[%s303 + $0xe4] sm:$0xff]
        %v449 = vld [vmem:[%s303 + $0xec] sm:$0xf]
        %v450 = vld [vmem:[%s303 + $0xf0] sm:$0xff]
        %v451 = vld [vmem:[%s303 + $0xf8] sm:$0xf]
        %v452 = vld [vmem:[%s303 + $0xfc] sm:$0xff]
        %v453 = vld [vmem:[%s303 + $0x104] sm:$0xf]
        %v454 = vld [vmem:[%s303 + $0x108] sm:$0xff]
        %v455 = vld [vmem:[%s303 + $0x110] sm:$0xf]
        %v456 = vld [vmem:[%s303 + $0x114] sm:$0xff]
        %v457 = vld [vmem:[%s303 + $0x11c] sm:$0xf]
        %v458 = vld [vmem:[%s303 + $0x120] sm:$0xff]
        %v459 = vld [vmem:[%s303 + $0x128] sm:$0xf]
        %v460 = vld [vmem:[%s303 + $0x12c] sm:$0xff]
        %v461 = vld [vmem:[%s303 + $0x134] sm:$0xf]
        %v462 = vld [vmem:[%s303 + $0x138] sm:$0xff]
        %v463 = vld [vmem:[%s303 + $0x140] sm:$0xf]
        %v464 = vld [vmem:[%s303 + $0x144] sm:$0xff]
        %v465 = vld [vmem:[%s303 + $0x14c] sm:$0xf]
        %v466 = vld [vmem:[%s303 + $0x150] sm:$0xff]
        %v467 = vld [vmem:[%s303 + $0x158] sm:$0xf]
        %v468 = vld [vmem:[%s303 + $0x15c] sm:$0xff]
        %v469 = vld [vmem:[%s303 + $0x164] sm:$0xf]
        %v470 = vld [vmem:[%s303 + $0x168] sm:$0xff]
        %v471 = vld [vmem:[%s303 + $0x170] sm:$0xf]
        %v472 = vld [vmem:[%s303 + $0x174] sm:$0xff]
        %v473 = vld [vmem:[%s303 + $0x17c] sm:$0xf]
        %v474 = vld [vmem:[%s333] sm:$0xf]
        %v475 = vld [vmem:[%s333 + $0x4] sm:$0xf]
        %v476 = vld [vmem:[%s333 + $0x8] sm:$0xf]
        %v477 = vld [vmem:[%s333 + $0xc] sm:$0xf]
        %v478 = vld [vmem:[%s333 + $0x10] sm:$0xf]
        %v479 = vld [vmem:[%s333 + $0x14] sm:$0xf]
        %v480 = vld [vmem:[%s333 + $0x18] sm:$0xf]
        %v481 = vld [vmem:[%s333 + $0x1c] sm:$0xf]
        %v482 = vld [vmem:[%s333 + $0x20] sm:$0xf]
        %v483 = vld [vmem:[%s333 + $0x24] sm:$0xf]
        %v484 = vld [vmem:[%s333 + $0x28] sm:$0xf]
        %v485 = vld [vmem:[%s333 + $0x2c] sm:$0xf]
        %v486 = vld [vmem:[%s333 + $0x30] sm:$0xf]
        %v487 = vld [vmem:[%s333 + $0x34] sm:$0xf]
        %v488 = vld [vmem:[%s333 + $0x38] sm:$0xf]
        %v489 = vld [vmem:[%s333 + $0x3c] sm:$0xf]
        %v490 = vld [vmem:[%s333 + $0x40] sm:$0xf]
        %v491 = vld [vmem:[%s333 + $0x44] sm:$0xf]
        %v492 = vld [vmem:[%s333 + $0x48] sm:$0xf]
        %v493 = vld [vmem:[%s333 + $0x4c] sm:$0xf]
        %v494 = vld [vmem:[%s333 + $0x50] sm:$0xf]
        %v495 = vld [vmem:[%s333 + $0x54] sm:$0xf]
        %v496 = vld [vmem:[%s333 + $0x58] sm:$0xf]
        %v497 = vld [vmem:[%s333 + $0x5c] sm:$0xf]
        %v498 = vld [vmem:[%s333 + $0x60] sm:$0xf]
        %v499 = vld [vmem:[%s333 + $0x64] sm:$0xf]
        %v500 = vld [vmem:[%s333 + $0x68] sm:$0xf]
        %v501 = vld [vmem:[%s333 + $0x6c] sm:$0xf]
        %v502 = vld [vmem:[%s333 + $0x70] sm:$0xf]
        %v503 = vld [vmem:[%s333 + $0x74] sm:$0xf]
        %v504 = vld [vmem:[%s333 + $0x78] sm:$0xf]
        %v505 = vld [vmem:[%s333 + $0x7c] sm:$0xf]
        %v506 = vld [vmem:[%s333 + $0x80] sm:$0xf]
        %v507 = vld [vmem:[%s333 + $0x84] sm:$0xf]
        %v508 = vld [vmem:[%s333 + $0x88] sm:$0xf]
        %v509 = vld [vmem:[%s333 + $0x8c] sm:$0xf]
        %v510 = vld [vmem:[%s333 + $0x90] sm:$0xf]
        %v511 = vld [vmem:[%s333 + $0x94] sm:$0xf]
        %v512 = vld [vmem:[%s333 + $0x98] sm:$0xf]
        %v513 = vld [vmem:[%s333 + $0x9c] sm:$0xf]
        %v514 = vld [vmem:[%s333 + $0xa0] sm:$0xf]
        %v515 = vld [vmem:[%s333 + $0xa4] sm:$0xf]
        %v516 = vld [vmem:[%s333 + $0xa8] sm:$0xf]
        %v517 = vld [vmem:[%s333 + $0xac] sm:$0xf]
        %v518 = vld [vmem:[%s333 + $0xb0] sm:$0xf]
        %v519 = vld [vmem:[%s333 + $0xb4] sm:$0xf]
        %v520 = vld [vmem:[%s333 + $0xb8] sm:$0xf]
        %v521 = vld [vmem:[%s333 + $0xbc] sm:$0xf]
        %v586 = vunpack.c.l.b16 %v410
        %v587 = vunpack.c.h.b16 %v410
        %v588 = vunpack.c.l.b16 %v411
        %v589 = vunpack.c.l.b16 %v412
        %v590 = vunpack.c.h.b16 %v412
        %v591 = vunpack.c.l.b16 %v413
        %v592 = vunpack.c.l.b16 %v414
        %v593 = vunpack.c.h.b16 %v414
        %v594 = vunpack.c.l.b16 %v415
        %v595 = vunpack.c.l.b16 %v416
        %v596 = vunpack.c.h.b16 %v416
        %v597 = vunpack.c.l.b16 %v417
        %v598 = vunpack.c.l.b16 %v418
        %v599 = vunpack.c.h.b16 %v418
        %v600 = vunpack.c.l.b16 %v419
        %v601 = vunpack.c.l.b16 %v420
        %v602 = vunpack.c.h.b16 %v420
        %v603 = vunpack.c.l.b16 %v421
        %v604 = vunpack.c.l.b16 %v422
        %v605 = vunpack.c.h.b16 %v422
        %v606 = vunpack.c.l.b16 %v423
        %v607 = vunpack.c.l.b16 %v424
        %v608 = vunpack.c.h.b16 %v424
        %v609 = vunpack.c.l.b16 %v425
        %v610 = vunpack.c.l.b16 %v426
        %v611 = vunpack.c.h.b16 %v426
        %v612 = vunpack.c.l.b16 %v427
        %v613 = vunpack.c.l.b16 %v428
        %v614 = vunpack.c.h.b16 %v428
        %v615 = vunpack.c.l.b16 %v429
        %v616 = vunpack.c.l.b16 %v430
        %v617 = vunpack.c.h.b16 %v430
        %v618 = vunpack.c.l.b16 %v431
        %v619 = vunpack.c.l.b16 %v432
        %v620 = vunpack.c.h.b16 %v432
        %v621 = vunpack.c.l.b16 %v433
        %v622 = vunpack.c.l.b16 %v434
        %v623 = vunpack.c.h.b16 %v434
        %v624 = vunpack.c.l.b16 %v435
        %v625 = vunpack.c.l.b16 %v436
        %v626 = vunpack.c.h.b16 %v436
        %v627 = vunpack.c.l.b16 %v437
        %v628 = vunpack.c.l.b16 %v438
        %v629 = vunpack.c.h.b16 %v438
        %v630 = vunpack.c.l.b16 %v439
        %v631 = vunpack.c.l.b16 %v440
        %v632 = vunpack.c.h.b16 %v440
        %v633 = vunpack.c.l.b16 %v441
        %v634 = vunpack.c.l.b16 %v442
        %v635 = vunpack.c.h.b16 %v442
        %v636 = vunpack.c.l.b16 %v443
        %v637 = vunpack.c.l.b16 %v444
        %v638 = vunpack.c.h.b16 %v444
        %v639 = vunpack.c.l.b16 %v445
        %v640 = vunpack.c.l.b16 %v446
        %v641 = vunpack.c.h.b16 %v446
        %v642 = vunpack.c.l.b16 %v447
        %v643 = vunpack.c.l.b16 %v448
        %v644 = vunpack.c.h.b16 %v448
        %v645 = vunpack.c.l.b16 %v449
        %v646 = vunpack.c.l.b16 %v450
        %v647 = vunpack.c.h.b16 %v450
        %v648 = vunpack.c.l.b16 %v451
        %v649 = vunpack.c.l.b16 %v452
        %v650 = vunpack.c.h.b16 %v452
        %v651 = vunpack.c.l.b16 %v453
        %v652 = vunpack.c.l.b16 %v454
        %v653 = vunpack.c.h.b16 %v454
        %v654 = vunpack.c.l.b16 %v455
        %v655 = vunpack.c.l.b16 %v456
        %v656 = vunpack.c.h.b16 %v456
        %v657 = vunpack.c.l.b16 %v457
        %v658 = vunpack.c.l.b16 %v458
        %v659 = vunpack.c.h.b16 %v458
        %v660 = vunpack.c.l.b16 %v459
        %v661 = vunpack.c.l.b16 %v460
        %v662 = vunpack.c.h.b16 %v460
        %v663 = vunpack.c.l.b16 %v461
        %v664 = vunpack.c.l.b16 %v462
        %v665 = vunpack.c.h.b16 %v462
        %v666 = vunpack.c.l.b16 %v463
        %v667 = vunpack.c.l.b16 %v464
        %v668 = vunpack.c.h.b16 %v464
        %v669 = vunpack.c.l.b16 %v465
        %v670 = vunpack.c.l.b16 %v466
        %v671 = vunpack.c.h.b16 %v466
        %v672 = vunpack.c.l.b16 %v467
        %v673 = vunpack.c.l.b16 %v468
        %v674 = vunpack.c.h.b16 %v468
        %v675 = vunpack.c.l.b16 %v469
        %v676 = vunpack.c.l.b16 %v470
        %v677 = vunpack.c.h.b16 %v470
        %v678 = vunpack.c.l.b16 %v471
        %v679 = vunpack.c.l.b16 %v472
        %v680 = vunpack.c.h.b16 %v472
        %v681 = vunpack.c.l.b16 %v473
        %v682 = vpack.c.b16 %v589, %v586
        %v683 = vpack.c.b16 %v590, %v587
        %v684 = vpack.c.b16 %v591, %v588
        %v685 = vpack.c.b16 %v595, %v592
        %v686 = vpack.c.b16 %v596, %v593
        %v687 = vpack.c.b16 %v597, %v594
        %v688 = vpack.c.b16 %v601, %v598
        %v689 = vpack.c.b16 %v602, %v599
        %v690 = vpack.c.b16 %v603, %v600
        %v691 = vpack.c.b16 %v607, %v604
        %v692 = vpack.c.b16 %v608, %v605
        %v693 = vpack.c.b16 %v609, %v606
        %v694 = vpack.c.b16 %v613, %v610
        %v695 = vpack.c.b16 %v614, %v611
        %v696 = vpack.c.b16 %v615, %v612
        %v697 = vpack.c.b16 %v619, %v616
        %v698 = vpack.c.b16 %v620, %v617
        %v699 = vpack.c.b16 %v621, %v618
        %v700 = vpack.c.b16 %v625, %v622
        %v701 = vpack.c.b16 %v626, %v623
        %v702 = vpack.c.b16 %v627, %v624
        %v703 = vpack.c.b16 %v631, %v628
        %v704 = vpack.c.b16 %v632, %v629
        %v705 = vpack.c.b16 %v633, %v630
        %v706 = vpack.c.b16 %v637, %v634
        %v707 = vpack.c.b16 %v638, %v635
        %v708 = vpack.c.b16 %v639, %v636
        %v709 = vpack.c.b16 %v643, %v640
        %v710 = vpack.c.b16 %v644, %v641
        %v711 = vpack.c.b16 %v645, %v642
        %v712 = vpack.c.b16 %v649, %v646
        %v713 = vpack.c.b16 %v650, %v647
        %v714 = vpack.c.b16 %v651, %v648
        %v715 = vpack.c.b16 %v655, %v652
        %v716 = vpack.c.b16 %v656, %v653
        %v717 = vpack.c.b16 %v657, %v654
        %v718 = vpack.c.b16 %v661, %v658
        %v719 = vpack.c.b16 %v662, %v659
        %v720 = vpack.c.b16 %v663, %v660
        %v721 = vpack.c.b16 %v667, %v664
        %v722 = vpack.c.b16 %v668, %v665
        %v723 = vpack.c.b16 %v669, %v666
        %v724 = vpack.c.b16 %v673, %v670
        %v725 = vpack.c.b16 %v674, %v671
        %v726 = vpack.c.b16 %v675, %v672
        %v727 = vpack.c.b16 %v679, %v676
        %v728 = vpack.c.b16 %v680, %v677
        %v729 = vpack.c.b16 %v681, %v678
        %v826 = vunpack.c.l.b16 %v474
        %v827 = vunpack.c.l.b16 %v475
        %v828 = vunpack.c.l.b16 %v476
        %v829 = vunpack.c.l.b16 %v477
        %v830 = vunpack.c.l.b16 %v478
        %v831 = vunpack.c.l.b16 %v479
        %v832 = vunpack.c.l.b16 %v480
        %v833 = vunpack.c.l.b16 %v481
        %v834 = vunpack.c.l.b16 %v482
        %v835 = vunpack.c.l.b16 %v483
        %v836 = vunpack.c.l.b16 %v484
        %v837 = vunpack.c.l.b16 %v485
        %v838 = vunpack.c.l.b16 %v486
        %v839 = vunpack.c.l.b16 %v487
        %v840 = vunpack.c.l.b16 %v488
        %v841 = vunpack.c.l.b16 %v489
        %v842 = vunpack.c.l.b16 %v490
        %v843 = vunpack.c.l.b16 %v491
        %v844 = vunpack.c.l.b16 %v492
        %v845 = vunpack.c.l.b16 %v493
        %v846 = vunpack.c.l.b16 %v494
        %v847 = vunpack.c.l.b16 %v495
        %v848 = vunpack.c.l.b16 %v496
        %v849 = vunpack.c.l.b16 %v497
        %v850 = vunpack.c.l.b16 %v498
        %v851 = vunpack.c.l.b16 %v499
        %v852 = vunpack.c.l.b16 %v500
        %v853 = vunpack.c.l.b16 %v501
        %v854 = vunpack.c.l.b16 %v502
        %v855 = vunpack.c.l.b16 %v503
        %v856 = vunpack.c.l.b16 %v504
        %v857 = vunpack.c.l.b16 %v505
        %v858 = vunpack.c.l.b16 %v506
        %v859 = vunpack.c.l.b16 %v507
        %v860 = vunpack.c.l.b16 %v508
        %v861 = vunpack.c.l.b16 %v509
        %v862 = vunpack.c.l.b16 %v510
        %v863 = vunpack.c.l.b16 %v511
        %v864 = vunpack.c.l.b16 %v512
        %v865 = vunpack.c.l.b16 %v513
        %v866 = vunpack.c.l.b16 %v514
        %v867 = vunpack.c.l.b16 %v515
        %v868 = vunpack.c.l.b16 %v516
        %v869 = vunpack.c.l.b16 %v517
        %v870 = vunpack.c.l.b16 %v518
        %v871 = vunpack.c.l.b16 %v519
        %v872 = vunpack.c.l.b16 %v520
        %v873 = vunpack.c.l.b16 %v521
        %v874 = vpack.c.b16 %v827, %v826
        %v875 = vpack.c.b16 %v829, %v828
        %v876 = vpack.c.b16 %v831, %v830
        %v877 = vpack.c.b16 %v833, %v832
        %v878 = vpack.c.b16 %v835, %v834
        %v879 = vpack.c.b16 %v837, %v836
        %v880 = vpack.c.b16 %v839, %v838
        %v881 = vpack.c.b16 %v841, %v840
        %v882 = vpack.c.b16 %v843, %v842
        %v883 = vpack.c.b16 %v845, %v844
        %v884 = vpack.c.b16 %v847, %v846
        %v885 = vpack.c.b16 %v849, %v848
        %v886 = vpack.c.b16 %v851, %v850
        %v887 = vpack.c.b16 %v853, %v852
        %v888 = vpack.c.b16 %v855, %v854
        %v889 = vpack.c.b16 %v857, %v856
        %v890 = vpack.c.b16 %v859, %v858
        %v891 = vpack.c.b16 %v861, %v860
        %v892 = vpack.c.b16 %v863, %v862
        %v893 = vpack.c.b16 %v865, %v864
        %v894 = vpack.c.b16 %v867, %v866
        %v895 = vpack.c.b16 %v869, %v868
        %v896 = vpack.c.b16 %v871, %v870
        %v897 = vpack.c.b16 %v873, %v872
        %922 = vmatprep.subr.bf16.mxu0 0
        %923 = vmatpush1.bf16.msra.mxu0 %v874
        %924 = vmatprep.subr.bf16.mxu0 0
        %925 = vmatpush1.bf16.msra.mxu0 %v875
        %926 = vmatprep.subr.bf16.mxu0 0
        %927 = vmatpush1.bf16.msra.mxu0 %v876
        %928 = vmatprep.subr.bf16.mxu0 0
        %929 = vmatpush1.bf16.msra.mxu0 %v877
        %930 = vmatprep.subr.bf16.mxu0 0
        %931 = vmatpush1.bf16.msra.mxu0 %v878
        %932 = vmatprep.subr.bf16.mxu0 0
        %933 = vmatpush1.bf16.msra.mxu0 %v879
        %934 = vmatprep.subr.bf16.mxu0 0
        %935 = vmatpush1.bf16.msra.mxu0 %v880
        %936 = vmatprep.subr.bf16.mxu0 0
        %937 = vmatpush1.bf16.msra.mxu0 %v881
        %938 = vmatprep.subr.bf16.mxu0 0
        %939 = vmatpush1.bf16.msra.mxu0 %v882
        %940 = vmatprep.subr.bf16.mxu0 0
        %941 = vmatpush1.bf16.msra.mxu0 %v883
        %942 = vmatprep.subr.bf16.mxu0 0
        %943 = vmatpush1.bf16.msra.mxu0 %v884
        %944 = vmatprep.subr.bf16.mxu0 0
        %945 = vmatpush1.bf16.msra.mxu0 %v885
        %946 = vmatprep.subr.bf16.mxu0 0
        %947 = vmatpush1.bf16.msra.mxu0 %v886
        %948 = vmatprep.subr.bf16.mxu0 0
        %949 = vmatpush1.bf16.msra.mxu0 %v887
        %950 = vmatprep.subr.bf16.mxu0 0
        %951 = vmatpush1.bf16.msra.mxu0 %v888
        %952 = vmatprep.subr.bf16.mxu0 0
        %953 = vmatpush1.bf16.msra.mxu0 %v889
        %954 = vmatprep.mubr.bf16.mxu0 %v683
        %955 = vmatmul.mubr.bf16.gmra.mrb[0].mxu0 %v682
        %v956 = vpop.f32.mrb[0].mxu0
        %v957 = vadd.f32 0.0, %v956
        %v958 = vpop.f32.mrb[0].mxu0
        %v959 = vpop.f32.mrb[0].mxu0
        %v960 = vadd.f32 0.0, %v959
        %v961 = vpop.f32.mrb[0].mxu0
        %962 = vmatprep.mubr.bf16.mxu0 %v686
        %963 = vmatmul.mubr.bf16.gmra.mrb[0].mxu0 %v685
        %v964 = vpop.f32.mrb[0].mxu0
        %v965 = vadd.f32 0.0, %v964
        %v966 = vpop.f32.mrb[0].mxu0
        %v967 = vpop.f32.mrb[0].mxu0
        %v968 = vadd.f32 0.0, %v967
        %v969 = vpop.f32.mrb[0].mxu0
        %970 = vmatprep.mubr.bf16.mxu0 %v689
        %971 = vmatmul.mubr.bf16.gmra.mrb[0].mxu0 %v688
        %v972 = vpop.f32.mrb[0].mxu0
        %v973 = vadd.f32 0.0, %v972
        %v974 = vpop.f32.mrb[0].mxu0
        %v975 = vpop.f32.mrb[0].mxu0
        %v976 = vadd.f32 0.0, %v975
        %v977 = vpop.f32.mrb[0].mxu0
        %978 = vmatprep.mubr.bf16.mxu0 %v692
        %979 = vmatmul.mubr.bf16.gmra.mrb[0].mxu0 %v691
        %v980 = vpop.f32.mrb[0].mxu0
        %v981 = vadd.f32 0.0, %v980
        %v982 = vpop.f32.mrb[0].mxu0
        %v983 = vpop.f32.mrb[0].mxu0
        %v984 = vadd.f32 0.0, %v983
        %v985 = vpop.f32.mrb[0].mxu0
        %986 = vmatprep.mubr.bf16.mxu0 %v695
        %987 = vmatmul.mubr.bf16.gmra.mrb[0].mxu0 %v694
        %v988 = vpop.f32.mrb[0].mxu0
        %v989 = vadd.f32 0.0, %v988
        %v990 = vpop.f32.mrb[0].mxu0
        %v991 = vpop.f32.mrb[0].mxu0
        %v992 = vadd.f32 0.0, %v991
        %v993 = vpop.f32.mrb[0].mxu0
        %994 = vmatprep.mubr.bf16.mxu0 %v698
        %995 = vmatmul.mubr.bf16.gmra.mrb[0].mxu0 %v697
        %v996 = vpop.f32.mrb[0].mxu0
        %v997 = vadd.f32 0.0, %v996
        %v998 = vpop.f32.mrb[0].mxu0
        %v999 = vpop.f32.mrb[0].mxu0
        %v1000 = vadd.f32 0.0, %v999
        %v1001 = vpop.f32.mrb[0].mxu0
        %1002 = vmatprep.mubr.bf16.mxu0 %v701
        %1003 = vmatmul.mubr.bf16.gmra.mrb[0].mxu0 %v700
        %v1004 = vpop.f32.mrb[0].mxu0
        %v1005 = vadd.f32 0.0, %v1004
        %v1006 = vpop.f32.mrb[0].mxu0
        %v1007 = vpop.f32.mrb[0].mxu0
        %v1008 = vadd.f32 0.0, %v1007
        %v1009 = vpop.f32.mrb[0].mxu0
        %1010 = vmatprep.mubr.bf16.mxu0 %v704
        %1011 = vmatmul.mubr.bf16.gmra.mrb[0].mxu0 %v703
        %v1012 = vpop.f32.mrb[0].mxu0
        %v1013 = vadd.f32 0.0, %v1012
        %v1014 = vpop.f32.mrb[0].mxu0
        %v1015 = vpop.f32.mrb[0].mxu0
        %v1016 = vadd.f32 0.0, %v1015
        %v1017 = vpop.f32.mrb[0].mxu0
        %1018 = vmatprep.mubr.bf16.mxu0 %v707
        %1019 = vmatmul.mubr.bf16.gmra.mrb[0].mxu0 %v706
        %v1020 = vpop.f32.mrb[0].mxu0
        %v1021 = vadd.f32 0.0, %v1020
        %v1022 = vpop.f32.mrb[0].mxu0
        %v1023 = vpop.f32.mrb[0].mxu0
        %v1024 = vadd.f32 0.0, %v1023
        %v1025 = vpop.f32.mrb[0].mxu0
        %1026 = vmatprep.mubr.bf16.mxu0 %v710
        %1027 = vmatmul.mubr.bf16.gmra.mrb[0].mxu0 %v709
        %v1028 = vpop.f32.mrb[0].mxu0
        %v1029 = vadd.f32 0.0, %v1028
        %v1030 = vpop.f32.mrb[0].mxu0
        %v1031 = vpop.f32.mrb[0].mxu0
        %v1032 = vadd.f32 0.0, %v1031
        %v1033 = vpop.f32.mrb[0].mxu0
        %1034 = vmatprep.mubr.bf16.mxu0 %v713
        %1035 = vmatmul.mubr.bf16.gmra.mrb[0].mxu0 %v712
        %v1036 = vpop.f32.mrb[0].mxu0
        %v1037 = vadd.f32 0.0, %v1036
        %v1038 = vpop.f32.mrb[0].mxu0
        %v1039 = vpop.f32.mrb[0].mxu0
        %v1040 = vadd.f32 0.0, %v1039
        %v1041 = vpop.f32.mrb[0].mxu0
        %1042 = vmatprep.mubr.bf16.mxu0 %v716
        %1043 = vmatmul.mubr.bf16.gmra.mrb[0].mxu0 %v715
        %v1044 = vpop.f32.mrb[0].mxu0
        %v1045 = vadd.f32 0.0, %v1044
        %v1046 = vpop.f32.mrb[0].mxu0
        %v1047 = vpop.f32.mrb[0].mxu0
        %v1048 = vadd.f32 0.0, %v1047
        %v1049 = vpop.f32.mrb[0].mxu0
        %1050 = vmatprep.mubr.bf16.mxu0 %v719
        %1051 = vmatmul.mubr.bf16.gmra.mrb[0].mxu0 %v718
        %v1052 = vpop.f32.mrb[0].mxu0
        %v1053 = vadd.f32 0.0, %v1052
        %v1054 = vpop.f32.mrb[0].mxu0
        %v1055 = vpop.f32.mrb[0].mxu0
        %v1056 = vadd.f32 0.0, %v1055
        %v1057 = vpop.f32.mrb[0].mxu0
        %1058 = vmatprep.mubr.bf16.mxu0 %v722
        %1059 = vmatmul.mubr.bf16.gmra.mrb[0].mxu0 %v721
        %v1060 = vpop.f32.mrb[0].mxu0
        %v1061 = vadd.f32 0.0, %v1060
        %v1062 = vpop.f32.mrb[0].mxu0
        %v1063 = vpop.f32.mrb[0].mxu0
        %v1064 = vadd.f32 0.0, %v1063
        %v1065 = vpop.f32.mrb[0].mxu0
        %1066 = vmatprep.mubr.bf16.mxu0 %v725
        %1067 = vmatmul.mubr.bf16.gmra.mrb[0].mxu0 %v724
        %v1068 = vpop.f32.mrb[0].mxu0
        %v1069 = vadd.f32 0.0, %v1068
        %v1070 = vpop.f32.mrb[0].mxu0
        %v1071 = vpop.f32.mrb[0].mxu0
        %v1072 = vadd.f32 0.0, %v1071
        %v1073 = vpop.f32.mrb[0].mxu0
        %1074 = vmatprep.mubr.bf16.mxu0 %v728
        %1075 = vmatmul.mubr.bf16.gmra.mrb[0].mxu0 %v727
        %v1076 = vpop.f32.mrb[0].mxu0
        %v1077 = vadd.f32 0.0, %v1076
        %v1078 = vpop.f32.mrb[0].mxu0
        %v1079 = vpop.f32.mrb[0].mxu0
        %v1080 = vadd.f32 0.0, %v1079
        %v1081 = vpop.f32.mrb[0].mxu0
        %1082 = vdwg.mxu0
        %1083 = vmatprep.subr.bf16.mxu0 0
        %1084 = vmatpush1.bf16.msra.mxu0 %v890
        %1085 = vmatprep.subr.bf16.mxu0 0
        %1086 = vmatpush1.bf16.msra.mxu0 %v891
        %1087 = vmatprep.subr.bf16.mxu0 0
        %1088 = vmatpush1.bf16.msra.mxu0 %v892
        %1089 = vmatprep.subr.bf16.mxu0 0
        %1090 = vmatpush1.bf16.msra.mxu0 %v893
        %1091 = vmatprep.subr.bf16.mxu0 0
        %1092 = vmatpush1.bf16.msra.mxu0 %v894
        %1093 = vmatprep.subr.bf16.mxu0 0
        %1094 = vmatpush1.bf16.msra.mxu0 %v895
        %1095 = vmatprep.subr.bf16.mxu0 0
        %1096 = vmatpush1.bf16.msra.mxu0 %v896
        %1097 = vmatprep.subr.bf16.mxu0 0
        %1098 = vmatpush1.bf16.msra.mxu0 %v897
        %1099 = vmatprep.subr.bf16.mxu0 0
        %1100 = vmatpush1.bf16.msra.mxu0 0
        %1101 = vmatprep.subr.bf16.mxu0 0
        %1102 = vmatpush1.bf16.msra.mxu0 0
        %1103 = vmatprep.subr.bf16.mxu0 0
        %1104 = vmatpush1.bf16.msra.mxu0 0
        %1105 = vmatprep.subr.bf16.mxu0 0
        %1106 = vmatpush1.bf16.msra.mxu0 0
        %1107 = vmatprep.subr.bf16.mxu0 0
        %1108 = vmatpush1.bf16.msra.mxu0 0
        %1109 = vmatprep.subr.bf16.mxu0 0
        %1110 = vmatpush1.bf16.msra.mxu0 0
        %1111 = vmatprep.subr.bf16.mxu0 0
        %1112 = vmatpush1.bf16.msra.mxu0 0
        %1113 = vmatprep.subr.bf16.mxu0 0
        %1114 = vmatpush1.bf16.msra.mxu0 0
        %1115 = vmatprep.mubr.bf16.mxu0 0
        %1116 = vmatmul.mubr.bf16.gmra.mrb[0].mxu0 %v684
        %v1117 = vpop.f32.mrb[0].mxu0
        %v1118 = vadd.f32 %v957, %v1117
        %v1119 = vpop.f32.mrb[0].mxu0
        %v1120 = vpop.f32.mrb[0].mxu0
        %v1121 = vadd.f32 %v960, %v1120
        %v1122 = vpop.f32.mrb[0].mxu0
        %1123 = vmatprep.mubr.bf16.mxu0 0
        %1124 = vmatmul.mubr.bf16.gmra.mrb[0].mxu0 %v687
        %v1125 = vpop.f32.mrb[0].mxu0
        %v1126 = vadd.f32 %v965, %v1125
        %v1127 = vpop.f32.mrb[0].mxu0
        %v1128 = vpop.f32.mrb[0].mxu0
        %v1129 = vadd.f32 %v968, %v1128
        %v1130 = vpop.f32.mrb[0].mxu0
        %1131 = vmatprep.mubr.bf16.mxu0 0
        %1132 = vmatmul.mubr.bf16.gmra.mrb[0].mxu0 %v690
        %v1133 = vpop.f32.mrb[0].mxu0
        %v1134 = vadd.f32 %v973, %v1133
        %v1135 = vpop.f32.mrb[0].mxu0
        %v1136 = vpop.f32.mrb[0].mxu0
        %v1137 = vadd.f32 %v976, %v1136
        %v1138 = vpop.f32.mrb[0].mxu0
        %1139 = vmatprep.mubr.bf16.mxu0 0
        %1140 = vmatmul.mubr.bf16.gmra.mrb[0].mxu0 %v693
        %v1141 = vpop.f32.mrb[0].mxu0
        %v1142 = vadd.f32 %v981, %v1141
        %v1143 = vpop.f32.mrb[0].mxu0
        %v1144 = vpop.f32.mrb[0].mxu0
        %v1145 = vadd.f32 %v984, %v1144
        %v1146 = vpop.f32.mrb[0].mxu0
        %1147 = vmatprep.mubr.bf16.mxu0 0
        %1148 = vmatmul.mubr.bf16.gmra.mrb[0].mxu0 %v696
        %v1149 = vpop.f32.mrb[0].mxu0
        %v1150 = vadd.f32 %v989, %v1149
        %v1151 = vpop.f32.mrb[0].mxu0
        %v1152 = vpop.f32.mrb[0].mxu0
        %v1153 = vadd.f32 %v992, %v1152
        %v1154 = vpop.f32.mrb[0].mxu0
        %1155 = vmatprep.mubr.bf16.mxu0 0
        %1156 = vmatmul.mubr.bf16.gmra.mrb[0].mxu0 %v699
        %v1157 = vpop.f32.mrb[0].mxu0
        %v1158 = vadd.f32 %v997, %v1157
        %v1159 = vpop.f32.mrb[0].mxu0
        %v1160 = vpop.f32.mrb[0].mxu0
        %v1161 = vadd.f32 %v1000, %v1160
        %v1162 = vpop.f32.mrb[0].mxu0
        %1163 = vmatprep.mubr.bf16.mxu0 0
        %1164 = vmatmul.mubr.bf16.gmra.mrb[0].mxu0 %v702
        %v1165 = vpop.f32.mrb[0].mxu0
        %v1166 = vadd.f32 %v1005, %v1165
        %v1167 = vpop.f32.mrb[0].mxu0
        %v1168 = vpop.f32.mrb[0].mxu0
        %v1169 = vadd.f32 %v1008, %v1168
        %v1170 = vpop.f32.mrb[0].mxu0
        %1171 = vmatprep.mubr.bf16.mxu0 0
        %1172 = vmatmul.mubr.bf16.gmra.mrb[0].mxu0 %v705
        %v1173 = vpop.f32.mrb[0].mxu0
        %v1174 = vadd.f32 %v1013, %v1173
        %v1175 = vpop.f32.mrb[0].mxu0
        %v1176 = vpop.f32.mrb[0].mxu0
        %v1177 = vadd.f32 %v1016, %v1176
        %v1178 = vpop.f32.mrb[0].mxu0
        %1179 = vmatprep.mubr.bf16.mxu0 0
        %1180 = vmatmul.mubr.bf16.gmra.mrb[0].mxu0 %v708
        %v1181 = vpop.f32.mrb[0].mxu0
        %v1182 = vadd.f32 %v1021, %v1181
        %v1183 = vpop.f32.mrb[0].mxu0
        %v1184 = vpop.f32.mrb[0].mxu0
        %v1185 = vadd.f32 %v1024, %v1184
        %v1186 = vpop.f32.mrb[0].mxu0
        %1187 = vmatprep.mubr.bf16.mxu0 0
        %1188 = vmatmul.mubr.bf16.gmra.mrb[0].mxu0 %v711
        %v1189 = vpop.f32.mrb[0].mxu0
        %v1190 = vadd.f32 %v1029, %v1189
        %v1191 = vpop.f32.mrb[0].mxu0
        %v1192 = vpop.f32.mrb[0].mxu0
        %v1193 = vadd.f32 %v1032, %v1192
        %v1194 = vpop.f32.mrb[0].mxu0
        %1195 = vmatprep.mubr.bf16.mxu0 0
        %1196 = vmatmul.mubr.bf16.gmra.mrb[0].mxu0 %v714
        %v1197 = vpop.f32.mrb[0].mxu0
        %v1198 = vadd.f32 %v1037, %v1197
        %v1199 = vpop.f32.mrb[0].mxu0
        %v1200 = vpop.f32.mrb[0].mxu0
        %v1201 = vadd.f32 %v1040, %v1200
        %v1202 = vpop.f32.mrb[0].mxu0
        %1203 = vmatprep.mubr.bf16.mxu0 0
        %1204 = vmatmul.mubr.bf16.gmra.mrb[0].mxu0 %v717
        %v1205 = vpop.f32.mrb[0].mxu0
        %v1206 = vadd.f32 %v1045, %v1205
        %v1207 = vpop.f32.mrb[0].mxu0
        %v1208 = vpop.f32.mrb[0].mxu0
        %v1209 = vadd.f32 %v1048, %v1208
        %v1210 = vpop.f32.mrb[0].mxu0
        %1211 = vmatprep.mubr.bf16.mxu0 0
        %1212 = vmatmul.mubr.bf16.gmra.mrb[0].mxu0 %v720
        %v1213 = vpop.f32.mrb[0].mxu0
        %v1214 = vadd.f32 %v1053, %v1213
        %v1215 = vpop.f32.mrb[0].mxu0
        %v1216 = vpop.f32.mrb[0].mxu0
        %v1217 = vadd.f32 %v1056, %v1216
        %v1218 = vpop.f32.mrb[0].mxu0
        %1219 = vmatprep.mubr.bf16.mxu0 0
        %1220 = vmatmul.mubr.bf16.gmra.mrb[0].mxu0 %v723
        %v1221 = vpop.f32.mrb[0].mxu0
        %v1222 = vadd.f32 %v1061, %v1221
        %v1223 = vpop.f32.mrb[0].mxu0
        %v1224 = vpop.f32.mrb[0].mxu0
        %v1225 = vadd.f32 %v1064, %v1224
        %v1226 = vpop.f32.mrb[0].mxu0
        %1227 = vmatprep.mubr.bf16.mxu0 0
        %1228 = vmatmul.mubr.bf16.gmra.mrb[0].mxu0 %v726
        %v1229 = vpop.f32.mrb[0].mxu0
        %v1230 = vadd.f32 %v1069, %v1229
        %v1231 = vpop.f32.mrb[0].mxu0
        %v1232 = vpop.f32.mrb[0].mxu0
        %v1233 = vadd.f32 %v1072, %v1232
        %v1234 = vpop.f32.mrb[0].mxu0
        %1235 = vmatprep.mubr.bf16.mxu0 0
        %1236 = vmatmul.mubr.bf16.gmra.mrb[0].mxu0 %v729
        %v1237 = vpop.f32.mrb[0].mxu0
        %v1238 = vadd.f32 %v1077, %v1237
        %v1239 = vpop.f32.mrb[0].mxu0
        %v1240 = vpop.f32.mrb[0].mxu0
        %v1241 = vadd.f32 %v1080, %v1240
        %v1242 = vpop.f32.mrb[0].mxu0
        %1243 = vdwg.mxu0
        %v1244 = vadd.f32 %v378, %v1118
        %v1245 = vadd.f32 %v379, %v1121
        %v1246 = vadd.f32 %v380, %v1126
        %v1247 = vadd.f32 %v381, %v1129
        %v1248 = vadd.f32 %v382, %v1134
        %v1249 = vadd.f32 %v383, %v1137
        %v1250 = vadd.f32 %v384, %v1142
        %v1251 = vadd.f32 %v385, %v1145
        %v1252 = vadd.f32 %v386, %v1150
        %v1253 = vadd.f32 %v387, %v1153
        %v1254 = vadd.f32 %v388, %v1158
        %v1255 = vadd.f32 %v389, %v1161
        %v1256 = vadd.f32 %v390, %v1166
        %v1257 = vadd.f32 %v391, %v1169
        %v1258 = vadd.f32 %v392, %v1174
        %v1259 = vadd.f32 %v393, %v1177
        %v1260 = vadd.f32 %v394, %v1182
        %v1261 = vadd.f32 %v395, %v1185
        %v1262 = vadd.f32 %v396, %v1190
        %v1263 = vadd.f32 %v397, %v1193
        %v1264 = vadd.f32 %v398, %v1198
        %v1265 = vadd.f32 %v399, %v1201
        %v1266 = vadd.f32 %v400, %v1206
        %v1267 = vadd.f32 %v401, %v1209
        %v1268 = vadd.f32 %v402, %v1214
        %v1269 = vadd.f32 %v403, %v1217
        %v1270 = vadd.f32 %v404, %v1222
        %v1271 = vadd.f32 %v405, %v1225
        %v1272 = vadd.f32 %v406, %v1230
        %v1273 = vadd.f32 %v407, %v1233
        %v1274 = vadd.f32 %v408, %v1238
        %v1275 = vadd.f32 %v409, %v1241
        %1276 = vst [vmem:[#allocation2] sm:$0xff] %v1244
        %1277 = vst [vmem:[#allocation2 + $0x8] sm:$0xff] %v1245
        %1278 = vst [vmem:[#allocation2 + $0x10] sm:$0xff] %v1246
        %1279 = vst [vmem:[#allocation2 + $0x18] sm:$0xff] %v1247
        %1280 = vst [vmem:[#allocation2 + $0x20] sm:$0xff] %v1248
        %1281 = vst [vmem:[#allocation2 + $0x28] sm:$0xff] %v1249
        %1282 = vst [vmem:[#allocation2 + $0x30] sm:$0xff] %v1250
        %1283 = vst [vmem:[#allocation2 + $0x38] sm:$0xff] %v1251
        %1284 = vst [vmem:[#allocation2 + $0x40] sm:$0xff] %v1252
        %1285 = vst [vmem:[#allocation2 + $0x48] sm:$0xff] %v1253
        %1286 = vst [vmem:[#allocation2 + $0x50] sm:$0xff] %v1254
        %1287 = vst [vmem:[#allocation2 + $0x58] sm:$0xff] %v1255
        %1288 = vst [vmem:[#allocation2 + $0x60] sm:$0xff] %v1256
        %1289 = vst [vmem:[#allocation2 + $0x68] sm:$0xff] %v1257
        %1290 = vst [vmem:[#allocation2 + $0x70] sm:$0xff] %v1258
        %1291 = vst [vmem:[#allocation2 + $0x78] sm:$0xff] %v1259
        %1292 = vst [vmem:[#allocation2 + $0x80] sm:$0xff] %v1260
        %1293 = vst [vmem:[#allocation2 + $0x88] sm:$0xff] %v1261
        %1294 = vst [vmem:[#allocation2 + $0x90] sm:$0xff] %v1262
        %1295 = vst [vmem:[#allocation2 + $0x98] sm:$0xff] %v1263
        %1296 = vst [vmem:[#allocation2 + $0xa0] sm:$0xff] %v1264
        %1297 = vst [vmem:[#allocation2 + $0xa8] sm:$0xff] %v1265
        %1298 = vst [vmem:[#allocation2 + $0xb0] sm:$0xff] %v1266
        %1299 = vst [vmem:[#allocation2 + $0xb8] sm:$0xff] %v1267
        %1300 = vst [vmem:[#allocation2 + $0xc0] sm:$0xff] %v1268
        %1301 = vst [vmem:[#allocation2 + $0xc8] sm:$0xff] %v1269
        %1302 = vst [vmem:[#allocation2 + $0xd0] sm:$0xff] %v1270
        %1303 = vst [vmem:[#allocation2 + $0xd8] sm:$0xff] %v1271
        %1304 = vst [vmem:[#allocation2 + $0xe0] sm:$0xff] %v1272
        %1305 = vst [vmem:[#allocation2 + $0xe8] sm:$0xff] %v1273
        %1306 = vst [vmem:[#allocation2 + $0xf0] sm:$0xff] %v1274
        %1307 = vst [vmem:[#allocation2 + $0xf8] sm:$0xff] %v1275
        %p1308 = scmp.eq.s32.totalorder %s18, 2
        // Predicated region
        $region59: #{genenet_forward.37} parent=49 // pred_check
          %p1309 = pneg %p1308
        $region60: #{genenet_forward.37} parent=49 // pred_check_branch
          %1311 = sbr.rel (%p1309) target = $region62
        $region61: #{genenet_forward.37} parent=49 // pred_region
          %v1312 = vld [vmem:[#allocation2] sm:$0xff]
          %v1313 = vld [vmem:[#allocation2 + $0x8] sm:$0xff]
          %v1314 = vld [vmem:[#allocation2 + $0x10] sm:$0xff]
          %v1315 = vld [vmem:[#allocation2 + $0x18] sm:$0xff]
          %v1316 = vld [vmem:[#allocation2 + $0x20] sm:$0xff]
          %v1317 = vld [vmem:[#allocation2 + $0x28] sm:$0xff]
          %v1318 = vld [vmem:[#allocation2 + $0x30] sm:$0xff]
          %v1319 = vld [vmem:[#allocation2 + $0x38] sm:$0xff]
          %v1320 = vld [vmem:[#allocation2 + $0x40] sm:$0xff]
          %v1321 = vld [vmem:[#allocation2 + $0x48] sm:$0xff]
          %v1322 = vld [vmem:[#allocation2 + $0x50] sm:$0xff]
          %v1323 = vld [vmem:[#allocation2 + $0x58] sm:$0xff]
          %v1324 = vld [vmem:[#allocation2 + $0x60] sm:$0xff]
          %v1325 = vld [vmem:[#allocation2 + $0x68] sm:$0xff]
          %v1326 = vld [vmem:[#allocation2 + $0x70] sm:$0xff]
          %v1327 = vld [vmem:[#allocation2 + $0x78] sm:$0xff]
          %v1328 = vld [vmem:[#allocation2 + $0x80] sm:$0xff]
          %v1329 = vld [vmem:[#allocation2 + $0x88] sm:$0xff]
          %v1330 = vld [vmem:[#allocation2 + $0x90] sm:$0xff]
          %v1331 = vld [vmem:[#allocation2 + $0x98] sm:$0xff]
          %v1332 = vld [vmem:[#allocation2 + $0xa0] sm:$0xff]
          %v1333 = vld [vmem:[#allocation2 + $0xa8] sm:$0xff]
          %v1334 = vld [vmem:[#allocation2 + $0xb0] sm:$0xff]
          %v1335 = vld [vmem:[#allocation2 + $0xb8] sm:$0xff]
          %v1336 = vld [vmem:[#allocation2 + $0xc0] sm:$0xff]
          %v1337 = vld [vmem:[#allocation2 + $0xc8] sm:$0xff]
          %v1338 = vld [vmem:[#allocation2 + $0xd0] sm:$0xff]
          %v1339 = vld [vmem:[#allocation2 + $0xd8] sm:$0xff]
          %v1340 = vld [vmem:[#allocation2 + $0xe0] sm:$0xff]
          %v1341 = vld [vmem:[#allocation2 + $0xe8] sm:$0xff]
          %v1342 = vld [vmem:[#allocation2 + $0xf0] sm:$0xff]
          %v1343 = vld [vmem:[#allocation2 + $0xf8] sm:$0xff]
          %v1344 = vpack.c.bf16 %v1313, %v1312
          %v1345 = vpack.c.bf16 %v1315, %v1314
          %v1346 = vpack.c.bf16 %v1317, %v1316
          %v1347 = vpack.c.bf16 %v1319, %v1318
          %v1348 = vpack.c.bf16 %v1321, %v1320
          %v1349 = vpack.c.bf16 %v1323, %v1322
          %v1350 = vpack.c.bf16 %v1325, %v1324
          %v1351 = vpack.c.bf16 %v1327, %v1326
          %v1352 = vpack.c.bf16 %v1329, %v1328
          %v1353 = vpack.c.bf16 %v1331, %v1330
          %v1354 = vpack.c.bf16 %v1333, %v1332
          %v1355 = vpack.c.bf16 %v1335, %v1334
          %v1356 = vpack.c.bf16 %v1337, %v1336
          %v1357 = vpack.c.bf16 %v1339, %v1338
          %v1358 = vpack.c.bf16 %v1341, %v1340
          %v1359 = vpack.c.bf16 %v1343, %v1342
          %v1376 = vunpack.c.l.b16 %v1344
          %v1377 = vunpack.c.h.b16 %v1344
          %v1378 = vunpack.c.l.b16 %v1345
          %v1379 = vunpack.c.h.b16 %v1345
          %v1380 = vunpack.c.l.b16 %v1346
          %v1381 = vunpack.c.h.b16 %v1346
          %v1382 = vunpack.c.l.b16 %v1347
          %v1383 = vunpack.c.h.b16 %v1347
          %v1384 = vunpack.c.l.b16 %v1348
          %v1385 = vunpack.c.h.b16 %v1348
          %v1386 = vunpack.c.l.b16 %v1349
          %v1387 = vunpack.c.h.b16 %v1349
          %v1388 = vunpack.c.l.b16 %v1350
          %v1389 = vunpack.c.h.b16 %v1350
          %v1390 = vunpack.c.l.b16 %v1351
          %v1391 = vunpack.c.h.b16 %v1351
          %v1392 = vunpack.c.l.b16 %v1352
          %v1393 = vunpack.c.h.b16 %v1352
          %v1394 = vunpack.c.l.b16 %v1353
          %v1395 = vunpack.c.h.b16 %v1353
          %v1396 = vunpack.c.l.b16 %v1354
          %v1397 = vunpack.c.h.b16 %v1354
          %v1398 = vunpack.c.l.b16 %v1355
          %v1399 = vunpack.c.h.b16 %v1355
          %v1400 = vunpack.c.l.b16 %v1356
          %v1401 = vunpack.c.h.b16 %v1356
          %v1402 = vunpack.c.l.b16 %v1357
          %v1403 = vunpack.c.h.b16 %v1357
          %v1404 = vunpack.c.l.b16 %v1358
          %v1405 = vunpack.c.h.b16 %v1358
          %v1406 = vunpack.c.l.b16 %v1359
          %v1407 = vunpack.c.h.b16 %v1359
          %v1408 = vpack.c.b16 %v1376, %v1376
          %v1409 = vpack.c.b16 %v1377, %v1377
          %v1410 = vpack.c.b16 %v1378, %v1378
          %v1411 = vpack.c.b16 %v1379, %v1379
          %v1412 = vpack.c.b16 %v1380, %v1380
          %v1413 = vpack.c.b16 %v1381, %v1381
          %v1414 = vpack.c.b16 %v1382, %v1382
          %v1415 = vpack.c.b16 %v1383, %v1383
          %v1416 = vpack.c.b16 %v1384, %v1384
          %v1417 = vpack.c.b16 %v1385, %v1385
          %v1418 = vpack.c.b16 %v1386, %v1386
          %v1419 = vpack.c.b16 %v1387, %v1387
          %v1420 = vpack.c.b16 %v1388, %v1388
          %v1421 = vpack.c.b16 %v1389, %v1389
          %v1422 = vpack.c.b16 %v1390, %v1390
          %v1423 = vpack.c.b16 %v1391, %v1391
          %v1424 = vpack.c.b16 %v1392, %v1392
          %v1425 = vpack.c.b16 %v1393, %v1393
          %v1426 = vpack.c.b16 %v1394, %v1394
          %v1427 = vpack.c.b16 %v1395, %v1395
          %v1428 = vpack.c.b16 %v1396, %v1396
          %v1429 = vpack.c.b16 %v1397, %v1397
          %v1430 = vpack.c.b16 %v1398, %v1398
          %v1431 = vpack.c.b16 %v1399, %v1399
          %v1432 = vpack.c.b16 %v1400, %v1400
          %v1433 = vpack.c.b16 %v1401, %v1401
          %v1434 = vpack.c.b16 %v1402, %v1402
          %v1435 = vpack.c.b16 %v1403, %v1403
          %v1436 = vpack.c.b16 %v1404, %v1404
          %v1437 = vpack.c.b16 %v1405, %v1405
          %v1438 = vpack.c.b16 %v1406, %v1406
          %v1439 = vpack.c.b16 %v1407, %v1407
          %1472 = vst [vmem:[%s339] sm:$0xf] %v1408
          %1473 = vst [vmem:[%s339 + $0x4] sm:$0xf] %v1409
          %1474 = vst [vmem:[%s339 + $0x8] sm:$0xf] %v1410
          %1475 = vst [vmem:[%s339 + $0xc] sm:$0xf] %v1411
          %1476 = vst [vmem:[%s339 + $0x10] sm:$0xf] %v1412
          %1477 = vst [vmem:[%s339 + $0x14] sm:$0xf] %v1413
          %1478 = vst [vmem:[%s339 + $0x18] sm:$0xf] %v1414
          %1479 = vst [vmem:[%s339 + $0x1c] sm:$0xf] %v1415
          %1480 = vst [vmem:[%s339 + $0x20] sm:$0xf] %v1416
          %1481 = vst [vmem:[%s339 + $0x24] sm:$0xf] %v1417
          %1482 = vst [vmem:[%s339 + $0x28] sm:$0xf] %v1418
          %1483 = vst [vmem:[%s339 + $0x2c] sm:$0xf] %v1419
          %1484 = vst [vmem:[%s339 + $0x30] sm:$0xf] %v1420
          %1485 = vst [vmem:[%s339 + $0x34] sm:$0xf] %v1421
          %1486 = vst [vmem:[%s339 + $0x38] sm:$0xf] %v1422
          %1487 = vst [vmem:[%s339 + $0x3c] sm:$0xf] %v1423
          %1488 = vst [vmem:[%s339 + $0x40] sm:$0xf] %v1424
          %1489 = vst [vmem:[%s339 + $0x44] sm:$0xf] %v1425
          %1490 = vst [vmem:[%s339 + $0x48] sm:$0xf] %v1426
          %1491 = vst [vmem:[%s339 + $0x4c] sm:$0xf] %v1427
          %1492 = vst [vmem:[%s339 + $0x50] sm:$0xf] %v1428
          %1493 = vst [vmem:[%s339 + $0x54] sm:$0xf] %v1429
          %1494 = vst [vmem:[%s339 + $0x58] sm:$0xf] %v1430
          %1495 = vst [vmem:[%s339 + $0x5c] sm:$0xf] %v1431
          %1496 = vst [vmem:[%s339 + $0x60] sm:$0xf] %v1432
          %1497 = vst [vmem:[%s339 + $0x64] sm:$0xf] %v1433
          %1498 = vst [vmem:[%s339 + $0x68] sm:$0xf] %v1434
          %1499 = vst [vmem:[%s339 + $0x6c] sm:$0xf] %v1435
          %1500 = vst [vmem:[%s339 + $0x70] sm:$0xf] %v1436
          %1501 = vst [vmem:[%s339 + $0x74] sm:$0xf] %v1437
          %1502 = vst [vmem:[%s339 + $0x78] sm:$0xf] %v1438
          %1503 = vst [vmem:[%s339 + $0x7c] sm:$0xf] %v1439
        $region62: #{genenet_forward.37} parent=49 // pred_fallthru
          _
        %s1504 = smul.u32 32, %s17
        %p1505 = scmp.lt.s32.totalorder %s1504, 31
        %s1506 = scalar_select %p1505, %s1504, 31
        %s1507 = smul.addr %s1506, 4
        %s1508 = scalar_lea.vmem %s2, %s1507
        // Predicated region
        $region63: #{genenet_forward.37} parent=49 // pred_check
          %p1509 = pneg %p97
        $region64: #{genenet_forward.37} parent=49 // pred_check_branch
          %1511 = sbr.rel (%p1509) target = $region66
        $region65: #{genenet_forward.37} parent=49 // pred_region
          %s1512 = smul.u32 32, %s17
        $region66: #{genenet_forward.37} parent=49 // pred_fallthru
          _
        // Predicated region
        $region67: #{genenet_forward.37} parent=49 // pred_check
          %p1513 = pneg %p97
        $region68: #{genenet_forward.37} parent=49 // pred_check_branch
          %1515 = sbr.rel (%p1513) target = $region70
        $region69: #{genenet_forward.37} parent=49 // pred_region
          %s1516 = smul.u32 32, %s17
          %p1517 = scmp.lt.s32.totalorder %s1516, 31
          %s1518 = scalar_select %p1517, %s1516, 31
          %s1519 = smul.addr %s1518, 4
          %s1520 = scalar_lea.vmem %s2, %s1519
        $region70: #{genenet_forward.37} parent=49 // pred_fallthru
          _
      $region50: #{genenet_forward.37} parent=5 // pred_fallthru
        _
      %p1521 = scmp.le.s32.totalorder 2, %s8
      // Predicated region
      $region71: #{genenet_forward.37} parent=5 // pred_check
        %p1522 = pneg %p1521
      $region72: #{genenet_forward.37} parent=5 // pred_check_branch
        %1524 = sbr.rel (%p1522) target = $region74
      $region73: #{genenet_forward.37} parent=5 // pred_region
        %s1525 = ssub.s32 %s8, 2
      $region74: #{genenet_forward.37} parent=5 // pred_fallthru
        _
    $region6: #{genenet_forward.37} parent=1 // loop_footer
      %s12 = sadd.s32 1, %s8
    $region7: #{genenet_forward.37} parent=1 // loop_footer_branch
      %7 = sbr.rel target = $region3
    $region8: #{genenet_forward.37} parent=1 // loop_exit
      _

// kernel: genenet_forward.59
$region0: #{genenet_forward.59}
  #allocation0 [shape = 'u32[]', space=smem, size = 0x4, offset = 0x4, fixed_abs, tag = 'smem constant byte address 0x4 - core index']
  #allocation1 [shape = 'u32[144,128]{1,0:T(1,128)}', space=vmem, size = 0x12000, scoped, tag = 'internal scratch']
  #allocation2 [shape = 'f32[256,128]{1,0:T(8,128)}', space=vmem, size = 0x20000, scoped, tag = 'scratch operand']
  %s0 = inlined_call_operand.vmem [shape: bf16[512,768], index: 0, kind: input, shape index: {}]
  %s1 = inlined_call_operand.vmem [shape: bf16[768,128], index: 1, kind: input, shape index: {}]
  %s2 = inlined_call_operand.vmem [shape: bf16[512,128], index: 2, kind: output, shape index: {}]
  %s3 = sld [smem:[#allocation0]]
  $region75: #{genenet_forward.59} parent=0
    _
  %s5 = ssub.s32 1, %s3
  %s6 = scalar_select 0, %s5, %s3
  $region1: #{genenet_forward.59} parent=0
    #allocation3 [shape = 'u8[393216]{0}', space=vmem, size = 0x60000, scoped, tag = 'input window, operand 0']
    loop: start=0, step=1, limit=6
    $region2: #{genenet_forward.59} parent=1 // loop_pre_header
      _
    $region3: #{genenet_forward.59} parent=1 // loop_header
      %s8 = sphi 0, %s12
      %p9 = scmp.ge.s32.totalorder %s8, 6
      %s15 = sphi 0, %s27
      %s16 = sphi 0, %s23
      %s17 = sphi 0, %s15
      %s18 = sphi 0, %s16
      %s19 = sphi 0, %s17
      %s20 = sphi 0, %s18
      %s32 = sphi 0, %s34
      %s35 = sphi 0, %s32
      %s36 = sphi 0, %s35
      %s52 = sphi 0, %s36
      %s58 = sphi 0, %s60
      %s61 = sphi 0, %s58
      %s62 = sphi 0, %s61
      %s78 = sphi 0, %s62
      %s84 = sphi 0, %s86
      %s87 = sphi 0, %s84
      %s88 = sphi 0, %s87
      %s104 = sphi 0, %s88
    $region4: #{genenet_forward.59} parent=1 // loop_header_branch
      %11 = sbr.rel (%p9) target = $region8
    $region5: #{genenet_forward.59} parent=1 // loop_body
      %s13 = ssub.s32 %s8, 1
      %s14 = ssub.s32 %s8, 2
      %s21 = sadd.s32 1, %s16
      %p22 = scmp.ge.s32.totalorder %s21, 2
      %s23 = scalar_select %p22, 0, %s21
      %s24 = sadd.s32 1, %s15
      %s25 = scalar_select %p22, %s24, %s15
      %p26 = scmp.ge.s32.totalorder %s25, 2
      %s27 = scalar_select %p26, 0, %s25
      %s28 = ssub.s32 %s15, %s27
      %s29 = ssub.s32 %s16, %s23
      %s30 = sor.u32 %s28, %s29
      %p31 = scmp.eq.s32.totalorder %s30, 0
      %s33 = sadd.s32 %s32, 1
      %s34 = scalar_select %p31, %s32, %s33
      %p37 = pneg %p31
      %p38 = scmp.eq.s32.totalorder %s8, 3
      %p39 = por %p37, %p38
      %p40 = scmp.ne.s32.totalorder %s32, %s35
      %p41 = scmp.eq.s32.totalorder %s8, 0
      %p42 = por %p40, %p41
      %p43 = scmp.ne.s32.totalorder %s32, %s35
      %p44 = scmp.eq.s32.totalorder %s13, 3
      %p45 = por %p43, %p44
      %p46 = scmp.ne.s32.totalorder %s35, %s36
      %p47 = scmp.eq.s32.totalorder %s13, 0
      %p48 = por %p46, %p47
      %p49 = scmp.ne.s32.totalorder %s35, %s36
      %p50 = scmp.eq.s32.totalorder %s14, 3
      %p51 = por %p49, %p50
      %p53 = scmp.ne.s32.totalorder %s36, %s52
      %p54 = scmp.eq.s32.totalorder %s14, 0
      %p55 = por %p53, %p54
      %s56 = ssub.s32 %s16, %s23
      %p57 = scmp.eq.s32.totalorder %s56, 0
      %s59 = sadd.s32 %s58, 1
      %s60 = scalar_select %p57, %s58, %s59
      %p63 = pneg %p57
      %p64 = scmp.eq.s32.totalorder %s8, 3
      %p65 = por %p63, %p64
      %p66 = scmp.ne.s32.totalorder %s58, %s61
      %p67 = scmp.eq.s32.totalorder %s8, 0
      %p68 = por %p66, %p67
      %p69 = scmp.ne.s32.totalorder %s58, %s61
      %p70 = scmp.eq.s32.totalorder %s13, 3
      %p71 = por %p69, %p70
      %p72 = scmp.ne.s32.totalorder %s61, %s62
      %p73 = scmp.eq.s32.totalorder %s13, 0
      %p74 = por %p72, %p73
      %p75 = scmp.ne.s32.totalorder %s61, %s62
      %p76 = scmp.eq.s32.totalorder %s14, 3
      %p77 = por %p75, %p76
      %p79 = scmp.ne.s32.totalorder %s62, %s78
      %p80 = scmp.eq.s32.totalorder %s14, 0
      %p81 = por %p79, %p80
      %s82 = ssub.s32 %s15, %s27
      %p83 = scmp.eq.s32.totalorder %s82, 0
      %s85 = sadd.s32 %s84, 1
      %s86 = scalar_select %p83, %s84, %s85
      %p89 = pneg %p83
      %p90 = scmp.eq.s32.totalorder %s8, 3
      %p91 = por %p89, %p90
      %p92 = scmp.ne.s32.totalorder %s84, %s87
      %p93 = scmp.eq.s32.totalorder %s8, 0
      %p94 = por %p92, %p93
      %p95 = scmp.ne.s32.totalorder %s84, %s87
      %p96 = scmp.eq.s32.totalorder %s13, 3
      %p97 = por %p95, %p96
      %p98 = scmp.ne.s32.totalorder %s87, %s88
      %p99 = scmp.eq.s32.totalorder %s13, 0
      %p100 = por %p98, %p99
      %p101 = scmp.ne.s32.totalorder %s87, %s88
      %p102 = scmp.eq.s32.totalorder %s14, 3
      %p103 = por %p101, %p102
      %p105 = scmp.ne.s32.totalorder %s88, %s104
      %p106 = scmp.eq.s32.totalorder %s14, 0
      %p107 = por %p105, %p106
      %p108 = scmp.le.s32.totalorder 1, %s8
      %p109 = scmp.lt.s32.totalorder %s8, 5
      %p110 = pnand %p108, %p109
      %p111 = pneg %p110
      // Predicated region
      $region9: #{genenet_forward.59} parent=5 // pred_check
        _
      $region10: #{genenet_forward.59} parent=5 // pred_check_branch
        %113 = sbr.rel (%p110) target = $region12
      $region11: #{genenet_forward.59} parent=5 // pred_region
        %s114 = ssub.s32 %s8, 1
      $region12: #{genenet_forward.59} parent=5 // pred_fallthru
        _
      %p115 = scmp.lt.s32.totalorder %s8, 4
      // Predicated region
      $region13: #{genenet_forward.59} parent=5 // pred_check
        %p116 = pneg %p115
      $region14: #{genenet_forward.59} parent=5 // pred_check_branch
        %118 = sbr.rel (%p116) target = $region16
      $region15: #{genenet_forward.59} parent=5 // pred_region
        // Predicated region
        $region17: #{genenet_forward.59} parent=15 // pred_check
          %p119 = pneg %p42
        $region18: #{genenet_forward.59} parent=15 // pred_check_branch
          %121 = sbr.rel (%p119) target = $region20
        $region19: #{genenet_forward.59} parent=15 // pred_region
          %s122 = sand.u32 %s32, 1
          %s123 = sand.u32 %s32, 1
          %s124 = smul.addr %s123, 384
          %s125 = scalar_lea.vmem [#allocation3], %s124
          %s126 = smul.u32 32, %s15
          %s127 = smul.u32 3, %s16
          %s128 = smul.addr %s126, 6
          %s129 = sadd.s32 %s127, %s128
          %s130 = smul.addr %s129, 4
          %s131 = scalar_lea.vmem %s0, %s130
          // Predicated region
          $region21: #{genenet_forward.59} parent=19 // pred_check
            _
          $region22: #{genenet_forward.59} parent=19 // pred_check_branch
            %133 = sbr.rel (0) target = $region24
          $region23: #{genenet_forward.59} parent=19 // pred_region
            // Predicated region
            $region25: #{genenet_forward.59} parent=23 // pred_check
              _
            $region26: #{genenet_forward.59} parent=23 // pred_check_branch
              %135 = sbr.rel (0) target = $region28
            $region27: #{genenet_forward.59} parent=23 // pred_region
              %s136 = scalar_lea.vmem %s131, 8
              %s137 = scalar_lea.vmem %s125, 8 [#allocation3]
              loop: start=0, step=1, limit=1
              $region29: #{genenet_forward.59} parent=27 // loop_pre_header
                _
              $region30: #{genenet_forward.59} parent=27 // loop_header
                %s139 = sphi 0, %s143
                %p140 = scmp.ge.s32.totalorder %s139, 1
                %s144 = sphi %s131, %s131
                %s145 = sphi %s125, %s125
              $region31: #{genenet_forward.59} parent=27 // loop_header_branch
                %142 = sbr.rel (%p140) target = $region35
              $region32: #{genenet_forward.59} parent=27 // loop_body
                %v146 = vld [vmem:[%s144] sm:$0xff]
                %147 = vst [vmem:[%s145] sm:$0xff] %v146
                %v148 = vld [vmem:[%s144 + $0x18] sm:$0xff]
                %149 = vst [vmem:[%s145 + $0xc] sm:$0xff] %v148
                %v150 = vld [vmem:[%s144 + $0x30] sm:$0xff]
                %151 = vst [vmem:[%s145 + $0x18] sm:$0xff] %v150
                %v152 = vld [vmem:[%s144 + $0x48] sm:$0xff]
                %153 = vst [vmem:[%s145 + $0x24] sm:$0xff] %v152
                %v154 = vld [vmem:[%s144 + $0x60] sm:$0xff]
                %155 = vst [vmem:[%s145 + $0x30] sm:$0xff] %v154
                %v156 = vld [vmem:[%s144 + $0x78] sm:$0xff]
                %157 = vst [vmem:[%s145 + $0x3c] sm:$0xff] %v156
                %v158 = vld [vmem:[%s144 + $0x90] sm:$0xff]
                %159 = vst [vmem:[%s145 + $0x48] sm:$0xff] %v158
                %v160 = vld [vmem:[%s144 + $0xa8] sm:$0xff]
                %161 = vst [vmem:[%s145 + $0x54] sm:$0xff] %v160
                %v162 = vld [vmem:[%s144 + $0xc0] sm:$0xff]
                %163 = vst [vmem:[%s145 + $0x60] sm:$0xff] %v162
                %v164 = vld [vmem:[%s144 + $0xd8] sm:$0xff]
                %165 = vst [vmem:[%s145 + $0x6c] sm:$0xff] %v164
                %v166 = vld [vmem:[%s144 + $0xf0] sm:$0xff]
                %167 = vst [vmem:[%s145 + $0x78] sm:$0xff] %v166
                %v168 = vld [vmem:[%s144 + $0x108] sm:$0xff]
                %169 = vst [vmem:[%s145 + $0x84] sm:$0xff] %v168
                %v170 = vld [vmem:[%s144 + $0x120] sm:$0xff]
                %171 = vst [vmem:[%s145 + $0x90] sm:$0xff] %v170
                %v172 = vld [vmem:[%s144 + $0x138] sm:$0xff]
                %173 = vst [vmem:[%s145 + $0x9c] sm:$0xff] %v172
                %v174 = vld [vmem:[%s144 + $0x150] sm:$0xff]
                %175 = vst [vmem:[%s145 + $0xa8] sm:$0xff] %v174
                %v176 = vld [vmem:[%s144 + $0x168] sm:$0xff]
                %177 = vst [vmem:[%s145 + $0xb4] sm:$0xff] %v176
                %v178 = vld [vmem:[%s144 + $0x180] sm:$0xff]
                %179 = vst [vmem:[%s145 + $0xc0] sm:$0xff] %v178
                %v180 = vld [vmem:[%s144 + $0x198] sm:$0xff]
                %181 = vst [vmem:[%s145 + $0xcc] sm:$0xff] %v180
                %v182 = vld [vmem:[%s144 + $0x1b0] sm:$0xff]
                %183 = vst [vmem:[%s145 + $0xd8] sm:$0xff] %v182
                %v184 = vld [vmem:[%s144 + $0x1c8] sm:$0xff]
                %185 = vst [vmem:[%s145 + $0xe4] sm:$0xff] %v184
                %v186 = vld [vmem:[%s144 + $0x1e0] sm:$0xff]
                %187 = vst [vmem:[%s145 + $0xf0] sm:$0xff] %v186
                %v188 = vld [vmem:[%s144 + $0x1f8] sm:$0xff]
                %189 = vst [vmem:[%s145 + $0xfc] sm:$0xff] %v188
                %v190 = vld [vmem:[%s144 + $0x210] sm:$0xff]
                %191 = vst [vmem:[%s145 + $0x108] sm:$0xff] %v190
                %v192 = vld [vmem:[%s144 + $0x228] sm:$0xff]
                %193 = vst [vmem:[%s145 + $0x114] sm:$0xff] %v192
                %v194 = vld [vmem:[%s144 + $0x240] sm:$0xff]
                %195 = vst [vmem:[%s145 + $0x120] sm:$0xff] %v194
                %v196 = vld [vmem:[%s144 + $0x258] sm:$0xff]
                %197 = vst [vmem:[%s145 + $0x12c] sm:$0xff] %v196
                %v198 = vld [vmem:[%s144 + $0x270] sm:$0xff]
                %199 = vst [vmem:[%s145 + $0x138] sm:$0xff] %v198
                %v200 = vld [vmem:[%s144 + $0x288] sm:$0xff]
                %201 = vst [vmem:[%s145 + $0x144] sm:$0xff] %v200
                %v202 = vld [vmem:[%s144 + $0x2a0] sm:$0xff]
                %203 = vst [vmem:[%s145 + $0x150] sm:$0xff] %v202
                %v204 = vld [vmem:[%s144 + $0x2b8] sm:$0xff]
                %205 = vst [vmem:[%s145 + $0x15c] sm:$0xff] %v204
                %v206 = vld [vmem:[%s144 + $0x2d0] sm:$0xff]
                %207 = vst [vmem:[%s145 + $0x168] sm:$0xff] %v206
                %v208 = vld [vmem:[%s144 + $0x2e8] sm:$0xff]
                %209 = vst [vmem:[%s145 + $0x174] sm:$0xff] %v208
              $region33: #{genenet_forward.59} parent=27 // loop_footer
                %s143 = sadd.s32 1, %s139
              $region34: #{genenet_forward.59} parent=27 // loop_footer_branch
                %138 = sbr.rel target = $region30
              $region35: #{genenet_forward.59} parent=27 // loop_exit
                _
              loop: start=0, step=1, limit=1
              $region36: #{genenet_forward.59} parent=27 // loop_pre_header
                _
              $region37: #{genenet_forward.59} parent=27 // loop_header
                %s212 = sphi 0, %s216
                %p213 = scmp.ge.s32.totalorder %s212, 1
                %s217 = sphi %s136, %s136
                %s218 = sphi %s137, %s137
              $region38: #{genenet_forward.59} parent=27 // loop_header_branch
                %215 = sbr.rel (%p213) target = $region42
              $region39: #{genenet_forward.59} parent=27 // loop_body
                %v219 = vld [vmem:[%s217] sm:$0xf]
                %220 = vst [vmem:[%s218] sm:$0xf] %v219
                %v221 = vld [vmem:[%s217 + $0x18] sm:$0xf]
                %222 = vst [vmem:[%s218 + $0xc] sm:$0xf] %v221
                %v223 = vld [vmem:[%s217 + $0x30] sm:$0xf]
                %224 = vst [vmem:[%s218 + $0x18] sm:$0xf] %v223
                %v225 = vld [vmem:[%s217 + $0x48] sm:$0xf]
                %226 = vst [vmem:[%s218 + $0x24] sm:$0xf] %v225
                %v227 = vld [vmem:[%s217 + $0x60] sm:$0xf]
                %228 = vst [vmem:[%s218 + $0x30] sm:$0xf] %v227
                %v229 = vld [vmem:[%s217 + $0x78] sm:$0xf]
                %230 = vst [vmem:[%s218 + $0x3c] sm:$0xf] %v229
                %v231 = vld [vmem:[%s217 + $0x90] sm:$0xf]
                %232 = vst [vmem:[%s218 + $0x48] sm:$0xf] %v231
                %v233 = vld [vmem:[%s217 + $0xa8] sm:$0xf]
                %234 = vst [vmem:[%s218 + $0x54] sm:$0xf] %v233
                %v235 = vld [vmem:[%s217 + $0xc0] sm:$0xf]
                %236 = vst [vmem:[%s218 + $0x60] sm:$0xf] %v235
                %v237 = vld [vmem:[%s217 + $0xd8] sm:$0xf]
                %238 = vst [vmem:[%s218 + $0x6c] sm:$0xf] %v237
                %v239 = vld [vmem:[%s217 + $0xf0] sm:$0xf]
                %240 = vst [vmem:[%s218 + $0x78] sm:$0xf] %v239
                %v241 = vld [vmem:[%s217 + $0x108] sm:$0xf]
                %242 = vst [vmem:[%s218 + $0x84] sm:$0xf] %v241
                %v243 = vld [vmem:[%s217 + $0x120] sm:$0xf]
                %244 = vst [vmem:[%s218 + $0x90] sm:$0xf] %v243
                %v245 = vld [vmem:[%s217 + $0x138] sm:$0xf]
                %246 = vst [vmem:[%s218 + $0x9c] sm:$0xf] %v245
                %v247 = vld [vmem:[%s217 + $0x150] sm:$0xf]
                %248 = vst [vmem:[%s218 + $0xa8] sm:$0xf] %v247
                %v249 = vld [vmem:[%s217 + $0x168] sm:$0xf]
                %250 = vst [vmem:[%s218 + $0xb4] sm:$0xf] %v249
                %v251 = vld [vmem:[%s217 + $0x180] sm:$0xf]
                %252 = vst [vmem:[%s218 + $0xc0] sm:$0xf] %v251
                %v253 = vld [vmem:[%s217 + $0x198] sm:$0xf]
                %254 = vst [vmem:[%s218 + $0xcc] sm:$0xf] %v253
                %v255 = vld [vmem:[%s217 + $0x1b0] sm:$0xf]
                %256 = vst [vmem:[%s218 + $0xd8] sm:$0xf] %v255
                %v257 = vld [vmem:[%s217 + $0x1c8] sm:$0xf]
                %258 = vst [vmem:[%s218 + $0xe4] sm:$0xf] %v257
                %v259 = vld [vmem:[%s217 + $0x1e0] sm:$0xf]
                %260 = vst [vmem:[%s218 + $0xf0] sm:$0xf] %v259
                %v261 = vld [vmem:[%s217 + $0x1f8] sm:$0xf]
                %262 = vst [vmem:[%s218 + $0xfc] sm:$0xf] %v261
                %v263 = vld [vmem:[%s217 + $0x210] sm:$0xf]
                %264 = vst [vmem:[%s218 + $0x108] sm:$0xf] %v263
                %v265 = vld [vmem:[%s217 + $0x228] sm:$0xf]
                %266 = vst [vmem:[%s218 + $0x114] sm:$0xf] %v265
                %v267 = vld [vmem:[%s217 + $0x240] sm:$0xf]
                %268 = vst [vmem:[%s218 + $0x120] sm:$0xf] %v267
                %v269 = vld [vmem:[%s217 + $0x258] sm:$0xf]
                %270 = vst [vmem:[%s218 + $0x12c] sm:$0xf] %v269
                %v271 = vld [vmem:[%s217 + $0x270] sm:$0xf]
                %272 = vst [vmem:[%s218 + $0x138] sm:$0xf] %v271
                %v273 = vld [vmem:[%s217 + $0x288] sm:$0xf]
                %274 = vst [vmem:[%s218 + $0x144] sm:$0xf] %v273
                %v275 = vld [vmem:[%s217 + $0x2a0] sm:$0xf]
                %276 = vst [vmem:[%s218 + $0x150] sm:$0xf] %v275
                %v277 = vld [vmem:[%s217 + $0x2b8] sm:$0xf]
                %278 = vst [vmem:[%s218 + $0x15c] sm:$0xf] %v277
                %v279 = vld [vmem:[%s217 + $0x2d0] sm:$0xf]
                %280 = vst [vmem:[%s218 + $0x168] sm:$0xf] %v279
                %v281 = vld [vmem:[%s217 + $0x2e8] sm:$0xf]
                %282 = vst [vmem:[%s218 + $0x174] sm:$0xf] %v281
              $region40: #{genenet_forward.59} parent=27 // loop_footer
                %s216 = sadd.s32 1, %s212
              $region41: #{genenet_forward.59} parent=27 // loop_footer_branch
                %211 = sbr.rel target = $region37
              $region42: #{genenet_forward.59} parent=27 // loop_exit
                _
            $region28: #{genenet_forward.59} parent=23 // pred_fallthru
              _
          $region24: #{genenet_forward.59} parent=19 // pred_fallthru
            _
          %283 = vnop
        $region20: #{genenet_forward.59} parent=15 // pred_fallthru
          _
        // Predicated region
        $region43: #{genenet_forward.59} parent=15 // pred_check
          %p284 = pneg %p68
        $region44: #{genenet_forward.59} parent=15 // pred_check_branch
          %286 = sbr.rel (%p284) target = $region46
        $region45: #{genenet_forward.59} parent=15 // pred_region
          %s287 = smul.u32 48, %s16
          %p288 = scmp.lt.s32.totalorder %s287, 95
          %s289 = scalar_select %p288, %s287, 95
          %s290 = smul.addr %s289, 4
          %s291 = scalar_lea.vmem %s1, %s290
          %s292 = smul.u32 48, %s16
        $region46: #{genenet_forward.59} parent=15 // pred_fallthru
          _
      $region16: #{genenet_forward.59} parent=5 // pred_fallthru
        _
      %p293 = scmp.le.s32.totalorder 1, %s8
      %p294 = scmp.lt.s32.totalorder %s8, 5
      %p295 = pnand %p293, %p294
      %p296 = pneg %p295
      // Predicated region
      $region47: #{genenet_forward.59} parent=5 // pred_check
        _
      $region48: #{genenet_forward.59} parent=5 // pred_check_branch
        %298 = sbr.rel (%p295) target = $region50
      $region49: #{genenet_forward.59} parent=5 // pred_region
        %s299 = ssub.s32 %s8, 1
        %s300 = sand.u32 %s35, 1
        %s301 = sand.u32 %s35, 1
        %s302 = smul.addr %s301, 384
        %s303 = scalar_lea.vmem [#allocation3], %s302
        // Predicated region
        $region51: #{genenet_forward.59} parent=49 // pred_check
          %p304 = pneg %p48
        $region52: #{genenet_forward.59} parent=49 // pred_check_branch
          %306 = sbr.rel (%p304) target = $region54
        $region53: #{genenet_forward.59} parent=49 // pred_region
          _
        $region54: #{genenet_forward.59} parent=49 // pred_fallthru
          _
        %s307 = sand.u32 %s35, 1
        %s308 = sand.u32 %s35, 1
        %s309 = smul.addr %s308, 384
        %s310 = scalar_lea.vmem [#allocation3], %s309
        %p311 = pneg %p48
        %p312 = pneg %p45
        %s313 = smul.u32 48, %s18
        %p314 = scmp.lt.s32.totalorder %s313, 95
        %s315 = scalar_select %p314, %s313, 95
        %s316 = smul.addr %s315, 4
        %s317 = scalar_lea.vmem %s1, %s316
        %p318 = pneg %p74
        %p319 = pneg %p71
        %p320 = pneg %p100
        %p321 = pneg %p97
        %s322 = smul.u32 32, %s17
        %p323 = scmp.lt.s32.totalorder %s322, 63
        %s324 = scalar_select %p323, %s322, 63
        %s325 = smul.addr %s324, 4
        %s326 = scalar_lea.vmem %s2, %s325
        %s327 = smul.u32 32, %s17
        %s328 = smul.u32 3, %s18
        %s329 = smul.u32 48, %s18
        %p330 = scmp.lt.s32.totalorder %s329, 95
        %s331 = scalar_select %p330, %s329, 95
        %s332 = smul.addr %s331, 4
        %s333 = scalar_lea.vmem %s1, %s332
        %s334 = smul.u32 48, %s18
        %s335 = smul.u32 32, %s17
        %p336 = scmp.lt.s32.totalorder %s335, 63
        %s337 = scalar_select %p336, %s335, 63
        %s338 = smul.addr %s337, 4
        %s339 = scalar_lea.vmem %s2, %s338
        %s340 = smul.u32 32, %s17
        %p342 = scmp.eq.s32.totalorder %s18, 0
        // Predicated region
        $region55: #{genenet_forward.59} parent=49 // pred_check
          %p343 = pneg %p342
        $region56: #{genenet_forward.59} parent=49 // pred_check_branch
          %345 = sbr.rel (%p343) target = $region58
        $region57: #{genenet_forward.59} parent=49 // pred_region
          %346 = vst [vmem:[#allocation2] sm:$0xff] 0.0
          %347 = vst [vmem:[#allocation2 + $0x8] sm:$0xff] 0.0
          %348 = vst [vmem:[#allocation2 + $0x10] sm:$0xff] 0.0
          %349 = vst [vmem:[#allocation2 + $0x18] sm:$0xff] 0.0
          %350 = vst [vmem:[#allocation2 + $0x20] sm:$0xff] 0.0
          %351 = vst [vmem:[#allocation2 + $0x28] sm:$0xff] 0.0
          %352 = vst [vmem:[#allocation2 + $0x30] sm:$0xff] 0.0
          %353 = vst [vmem:[#allocation2 + $0x38] sm:$0xff] 0.0
          %354 = vst [vmem:[#allocation2 + $0x40] sm:$0xff] 0.0
          %355 = vst [vmem:[#allocation2 + $0x48] sm:$0xff] 0.0
          %356 = vst [vmem:[#allocation2 + $0x50] sm:$0xff] 0.0
          %357 = vst [vmem:[#allocation2 + $0x58] sm:$0xff] 0.0
          %358 = vst [vmem:[#allocation2 + $0x60] sm:$0xff] 0.0
          %359 = vst [vmem:[#allocation2 + $0x68] sm:$0xff] 0.0
          %360 = vst [vmem:[#allocation2 + $0x70] sm:$0xff] 0.0
          %361 = vst [vmem:[#allocation2 + $0x78] sm:$0xff] 0.0
          %362 = vst [vmem:[#allocation2 + $0x80] sm:$0xff] 0.0
          %363 = vst [vmem:[#allocation2 + $0x88] sm:$0xff] 0.0
          %364 = vst [vmem:[#allocation2 + $0x90] sm:$0xff] 0.0
          %365 = vst [vmem:[#allocation2 + $0x98] sm:$0xff] 0.0
          %366 = vst [vmem:[#allocation2 + $0xa0] sm:$0xff] 0.0
          %367 = vst [vmem:[#allocation2 + $0xa8] sm:$0xff] 0.0
          %368 = vst [vmem:[#allocation2 + $0xb0] sm:$0xff] 0.0
          %369 = vst [vmem:[#allocation2 + $0xb8] sm:$0xff] 0.0
          %370 = vst [vmem:[#allocation2 + $0xc0] sm:$0xff] 0.0
          %371 = vst [vmem:[#allocation2 + $0xc8] sm:$0xff] 0.0
          %372 = vst [vmem:[#allocation2 + $0xd0] sm:$0xff] 0.0
          %373 = vst [vmem:[#allocation2 + $0xd8] sm:$0xff] 0.0
          %374 = vst [vmem:[#allocation2 + $0xe0] sm:$0xff] 0.0
          %375 = vst [vmem:[#allocation2 + $0xe8] sm:$0xff] 0.0
          %376 = vst [vmem:[#allocation2 + $0xf0] sm:$0xff] 0.0
          %377 = vst [vmem:[#allocation2 + $0xf8] sm:$0xff] 0.0
        $region58: #{genenet_forward.59} parent=49 // pred_fallthru
          _
        %v378 = vld [vmem:[#allocation2] sm:$0xff]
        %v379 = vld [vmem:[#allocation2 + $0x8] sm:$0xff]
        %v380 = vld [vmem:[#allocation2 + $0x10] sm:$0xff]
        %v381 = vld [vmem:[#allocation2 + $0x18] sm:$0xff]
        %v382 = vld [vmem:[#allocation2 + $0x20] sm:$0xff]
        %v383 = vld [vmem:[#allocation2 + $0x28] sm:$0xff]
        %v384 = vld [vmem:[#allocation2 + $0x30] sm:$0xff]
        %v385 = vld [vmem:[#allocation2 + $0x38] sm:$0xff]
        %v386 = vld [vmem:[#allocation2 + $0x40] sm:$0xff]
        %v387 = vld [vmem:[#allocation2 + $0x48] sm:$0xff]
        %v388 = vld [vmem:[#allocation2 + $0x50] sm:$0xff]
        %v389 = vld [vmem:[#allocation2 + $0x58] sm:$0xff]
        %v390 = vld [vmem:[#allocation2 + $0x60] sm:$0xff]
        %v391 = vld [vmem:[#allocation2 + $0x68] sm:$0xff]
        %v392 = vld [vmem:[#allocation2 + $0x70] sm:$0xff]
        %v393 = vld [vmem:[#allocation2 + $0x78] sm:$0xff]
        %v394 = vld [vmem:[#allocation2 + $0x80] sm:$0xff]
        %v395 = vld [vmem:[#allocation2 + $0x88] sm:$0xff]
        %v396 = vld [vmem:[#allocation2 + $0x90] sm:$0xff]
        %v397 = vld [vmem:[#allocation2 + $0x98] sm:$0xff]
        %v398 = vld [vmem:[#allocation2 + $0xa0] sm:$0xff]
        %v399 = vld [vmem:[#allocation2 + $0xa8] sm:$0xff]
        %v400 = vld [vmem:[#allocation2 + $0xb0] sm:$0xff]
        %v401 = vld [vmem:[#allocation2 + $0xb8] sm:$0xff]
        %v402 = vld [vmem:[#allocation2 + $0xc0] sm:$0xff]
        %v403 = vld [vmem:[#allocation2 + $0xc8] sm:$0xff]
        %v404 = vld [vmem:[#allocation2 + $0xd0] sm:$0xff]
        %v405 = vld [vmem:[#allocation2 + $0xd8] sm:$0xff]
        %v406 = vld [vmem:[#allocation2 + $0xe0] sm:$0xff]
        %v407 = vld [vmem:[#allocation2 + $0xe8] sm:$0xff]
        %v408 = vld [vmem:[#allocation2 + $0xf0] sm:$0xff]
        %v409 = vld [vmem:[#allocation2 + $0xf8] sm:$0xff]
        %v410 = vld [vmem:[%s303] sm:$0xff]
        %v411 = vld [vmem:[%s303 + $0x8] sm:$0xf]
        %v412 = vld [vmem:[%s303 + $0xc] sm:$0xff]
        %v413 = vld [vmem:[%s303 + $0x14] sm:$0xf]
        %v414 = vld [vmem:[%s303 + $0x18] sm:$0xff]
        %v415 = vld [vmem:[%s303 + $0x20] sm:$0xf]
        %v416 = vld [vmem:[%s303 + $0x24] sm:$0xff]
        %v417 = vld [vmem:[%s303 + $0x2c] sm:$0xf]
        %v418 = vld [vmem:[%s303 + $0x30] sm:$0xff]
        %v419 = vld [vmem:[%s303 + $0x38] sm:$0xf]
        %v420 = vld [vmem:[%s303 + $0x3c] sm:$0xff]
        %v421 = vld [vmem:[%s303 + $0x44] sm:$0xf]
        %v422 = vld [vmem:[%s303 + $0x48] sm:$0xff]
        %v423 = vld [vmem:[%s303 + $0x50] sm:$0xf]
        %v424 = vld [vmem:[%s303 + $0x54] sm:$0xff]
        %v425 = vld [vmem:[%s303 + $0x5c] sm:$0xf]
        %v426 = vld [vmem:[%s303 + $0x60] sm:$0xff]
        %v427 = vld [vmem:[%s303 + $0x68] sm:$0xf]
        %v428 = vld [vmem:[%s303 + $0x6c] sm:$0xff]
        %v429 = vld [vmem:[%s303 + $0x74] sm:$0xf]
        %v430 = vld [vmem:[%s303 + $0x78] sm:$0xff]
        %v431 = vld [vmem:[%s303 + $0x80] sm:$0xf]
        %v432 = vld [vmem:[%s303 + $0x84] sm:$0xff]
        %v433 = vld [vmem:[%s303 + $0x8c] sm:$0xf]
        %v434 = vld [vmem:[%s303 + $0x90] sm:$0xff]
        %v435 = vld [vmem:[%s303 + $0x98] sm:$0xf]
        %v436 = vld [vmem:[%s303 + $0x9c] sm:$0xff]
        %v437 = vld [vmem:[%s303 + $0xa4] sm:$0xf]
        %v438 = vld [vmem:[%s303 + $0xa8] sm:$0xff]
        %v439 = vld [vmem:[%s303 + $0xb0] sm:$0xf]
        %v440 = vld [vmem:[%s303 + $0xb4] sm:$0xff]
        %v441 = vld [vmem:[%s303 + $0xbc] sm:$0xf]
        %v442 = vld [vmem:[%s303 + $0xc0] sm:$0xff]
        %v443 = vld [vmem:[%s303 + $0xc8] sm:$0xf]
        %v444 = vld [vmem:[%s303 + $0xcc] sm:$0xff]
        %v445 = vld [vmem:[%s303 + $0xd4] sm:$0xf]
        %v446 = vld [vmem:[%s303 + $0xd8] sm:$0xff]
        %v447 = vld [vmem:[%s303 + $0xe0] sm:$0xf]
        %v448 = vld [vmem:[%s303 + $0xe4] sm:$0xff]
        %v449 = vld [vmem:[%s303 + $0xec] sm:$0xf]
        %v450 = vld [vmem:[%s303 + $0xf0] sm:$0xff]
        %v451 = vld [vmem:[%s303 + $0xf8] sm:$0xf]
        %v452 = vld [vmem:[%s303 + $0xfc] sm:$0xff]
        %v453 = vld [vmem:[%s303 + $0x104] sm:$0xf]
        %v454 = vld [vmem:[%s303 + $0x108] sm:$0xff]
        %v455 = vld [vmem:[%s303 + $0x110] sm:$0xf]
        %v456 = vld [vmem:[%s303 + $0x114] sm:$0xff]
        %v457 = vld [vmem:[%s303 + $0x11c] sm:$0xf]
        %v458 = vld [vmem:[%s303 + $0x120] sm:$0xff]
        %v459 = vld [vmem:[%s303 + $0x128] sm:$0xf]
        %v460 = vld [vmem:[%s303 + $0x12c] sm:$0xff]
        %v461 = vld [vmem:[%s303 + $0x134] sm:$0xf]
        %v462 = vld [vmem:[%s303 + $0x138] sm:$0xff]
        %v463 = vld [vmem:[%s303 + $0x140] sm:$0xf]
        %v464 = vld [vmem:[%s303 + $0x144] sm:$0xff]
        %v465 = vld [vmem:[%s303 + $0x14c] sm:$0xf]
        %v466 = vld [vmem:[%s303 + $0x150] sm:$0xff]
        %v467 = vld [vmem:[%s303 + $0x158] sm:$0xf]
        %v468 = vld [vmem:[%s303 + $0x15c] sm:$0xff]
        %v469 = vld [vmem:[%s303 + $0x164] sm:$0xf]
        %v470 = vld [vmem:[%s303 + $0x168] sm:$0xff]
        %v471 = vld [vmem:[%s303 + $0x170] sm:$0xf]
        %v472 = vld [vmem:[%s303 + $0x174] sm:$0xff]
        %v473 = vld [vmem:[%s303 + $0x17c] sm:$0xf]
        %v474 = vld [vmem:[%s333] sm:$0xf]
        %v475 = vld [vmem:[%s333 + $0x4] sm:$0xf]
        %v476 = vld [vmem:[%s333 + $0x8] sm:$0xf]
        %v477 = vld [vmem:[%s333 + $0xc] sm:$0xf]
        %v478 = vld [vmem:[%s333 + $0x10] sm:$0xf]
        %v479 = vld [vmem:[%s333 + $0x14] sm:$0xf]
        %v480 = vld [vmem:[%s333 + $0x18] sm:$0xf]
        %v481 = vld [vmem:[%s333 + $0x1c] sm:$0xf]
        %v482 = vld [vmem:[%s333 + $0x20] sm:$0xf]
        %v483 = vld [vmem:[%s333 + $0x24] sm:$0xf]
        %v484 = vld [vmem:[%s333 + $0x28] sm:$0xf]
        %v485 = vld [vmem:[%s333 + $0x2c] sm:$0xf]
        %v486 = vld [vmem:[%s333 + $0x30] sm:$0xf]
        %v487 = vld [vmem:[%s333 + $0x34] sm:$0xf]
        %v488 = vld [vmem:[%s333 + $0x38] sm:$0xf]
        %v489 = vld [vmem:[%s333 + $0x3c] sm:$0xf]
        %v490 = vld [vmem:[%s333 + $0x40] sm:$0xf]
        %v491 = vld [vmem:[%s333 + $0x44] sm:$0xf]
        %v492 = vld [vmem:[%s333 + $0x48] sm:$0xf]
        %v493 = vld [vmem:[%s333 + $0x4c] sm:$0xf]
        %v494 = vld [vmem:[%s333 + $0x50] sm:$0xf]
        %v495 = vld [vmem:[%s333 + $0x54] sm:$0xf]
        %v496 = vld [vmem:[%s333 + $0x58] sm:$0xf]
        %v497 = vld [vmem:[%s333 + $0x5c] sm:$0xf]
        %v498 = vld [vmem:[%s333 + $0x60] sm:$0xf]
        %v499 = vld [vmem:[%s333 + $0x64] sm:$0xf]
        %v500 = vld [vmem:[%s333 + $0x68] sm:$0xf]
        %v501 = vld [vmem:[%s333 + $0x6c] sm:$0xf]
        %v502 = vld [vmem:[%s333 + $0x70] sm:$0xf]
        %v503 = vld [vmem:[%s333 + $0x74] sm:$0xf]
        %v504 = vld [vmem:[%s333 + $0x78] sm:$0xf]
        %v505 = vld [vmem:[%s333 + $0x7c] sm:$0xf]
        %v506 = vld [vmem:[%s333 + $0x80] sm:$0xf]
        %v507 = vld [vmem:[%s333 + $0x84] sm:$0xf]
        %v508 = vld [vmem:[%s333 + $0x88] sm:$0xf]
        %v509 = vld [vmem:[%s333 + $0x8c] sm:$0xf]
        %v510 = vld [vmem:[%s333 + $0x90] sm:$0xf]
        %v511 = vld [vmem:[%s333 + $0x94] sm:$0xf]
        %v512 = vld [vmem:[%s333 + $0x98] sm:$0xf]
        %v513 = vld [vmem:[%s333 + $0x9c] sm:$0xf]
        %v514 = vld [vmem:[%s333 + $0xa0] sm:$0xf]
        %v515 = vld [vmem:[%s333 + $0xa4] sm:$0xf]
        %v516 = vld [vmem:[%s333 + $0xa8] sm:$0xf]
        %v517 = vld [vmem:[%s333 + $0xac] sm:$0xf]
        %v518 = vld [vmem:[%s333 + $0xb0] sm:$0xf]
        %v519 = vld [vmem:[%s333 + $0xb4] sm:$0xf]
        %v520 = vld [vmem:[%s333 + $0xb8] sm:$0xf]
        %v521 = vld [vmem:[%s333 + $0xbc] sm:$0xf]
        %v586 = vunpack.c.l.b16 %v410
        %v587 = vunpack.c.h.b16 %v410
        %v588 = vunpack.c.l.b16 %v411
        %v589 = vunpack.c.l.b16 %v412
        %v590 = vunpack.c.h.b16 %v412
        %v591 = vunpack.c.l.b16 %v413
        %v592 = vunpack.c.l.b16 %v414
        %v593 = vunpack.c.h.b16 %v414
        %v594 = vunpack.c.l.b16 %v415
        %v595 = vunpack.c.l.b16 %v416
        %v596 = vunpack.c.h.b16 %v416
        %v597 = vunpack.c.l.b16 %v417
        %v598 = vunpack.c.l.b16 %v418
        %v599 = vunpack.c.h.b16 %v418
        %v600 = vunpack.c.l.b16 %v419
        %v601 = vunpack.c.l.b16 %v420
        %v602 = vunpack.c.h.b16 %v420
        %v603 = vunpack.c.l.b16 %v421
        %v604 = vunpack.c.l.b16 %v422
        %v605 = vunpack.c.h.b16 %v422
        %v606 = vunpack.c.l.b16 %v423
        %v607 = vunpack.c.l.b16 %v424
        %v608 = vunpack.c.h.b16 %v424
        %v609 = vunpack.c.l.b16 %v425
        %v610 = vunpack.c.l.b16 %v426
        %v611 = vunpack.c.h.b16 %v426
        %v612 = vunpack.c.l.b16 %v427
        %v613 = vunpack.c.l.b16 %v428
        %v614 = vunpack.c.h.b16 %v428
        %v615 = vunpack.c.l.b16 %v429
        %v616 = vunpack.c.l.b16 %v430
        %v617 = vunpack.c.h.b16 %v430
        %v618 = vunpack.c.l.b16 %v431
        %v619 = vunpack.c.l.b16 %v432
        %v620 = vunpack.c.h.b16 %v432
        %v621 = vunpack.c.l.b16 %v433
        %v622 = vunpack.c.l.b16 %v434
        %v623 = vunpack.c.h.b16 %v434
        %v624 = vunpack.c.l.b16 %v435
        %v625 = vunpack.c.l.b16 %v436
        %v626 = vunpack.c.h.b16 %v436
        %v627 = vunpack.c.l.b16 %v437
        %v628 = vunpack.c.l.b16 %v438
        %v629 = vunpack.c.h.b16 %v438
        %v630 = vunpack.c.l.b16 %v439
        %v631 = vunpack.c.l.b16 %v440
        %v632 = vunpack.c.h.b16 %v440
        %v633 = vunpack.c.l.b16 %v441
        %v634 = vunpack.c.l.b16 %v442
        %v635 = vunpack.c.h.b16 %v442
        %v636 = vunpack.c.l.b16 %v443
        %v637 = vunpack.c.l.b16 %v444
        %v638 = vunpack.c.h.b16 %v444
        %v639 = vunpack.c.l.b16 %v445
        %v640 = vunpack.c.l.b16 %v446
        %v641 = vunpack.c.h.b16 %v446
        %v642 = vunpack.c.l.b16 %v447
        %v643 = vunpack.c.l.b16 %v448
        %v644 = vunpack.c.h.b16 %v448
        %v645 = vunpack.c.l.b16 %v449
        %v646 = vunpack.c.l.b16 %v450
        %v647 = vunpack.c.h.b16 %v450
        %v648 = vunpack.c.l.b16 %v451
        %v649 = vunpack.c.l.b16 %v452
        %v650 = vunpack.c.h.b16 %v452
        %v651 = vunpack.c.l.b16 %v453
        %v652 = vunpack.c.l.b16 %v454
        %v653 = vunpack.c.h.b16 %v454
        %v654 = vunpack.c.l.b16 %v455
        %v655 = vunpack.c.l.b16 %v456
        %v656 = vunpack.c.h.b16 %v456
        %v657 = vunpack.c.l.b16 %v457
        %v658 = vunpack.c.l.b16 %v458
        %v659 = vunpack.c.h.b16 %v458
        %v660 = vunpack.c.l.b16 %v459
        %v661 = vunpack.c.l.b16 %v460
        %v662 = vunpack.c.h.b16 %v460
        %v663 = vunpack.c.l.b16 %v461
        %v664 = vunpack.c.l.b16 %v462
        %v665 = vunpack.c.h.b16 %v462
        %v666 = vunpack.c.l.b16 %v463
        %v667 = vunpack.c.l.b16 %v464
        %v668 = vunpack.c.h.b16 %v464
        %v669 = vunpack.c.l.b16 %v465
        %v670 = vunpack.c.l.b16 %v466
        %v671 = vunpack.c.h.b16 %v466
        %v672 = vunpack.c.l.b16 %v467
        %v673 = vunpack.c.l.b16 %v468
        %v674 = vunpack.c.h.b16 %v468
        %v675 = vunpack.c.l.b16 %v469
        %v676 = vunpack.c.l.b16 %v470
        %v677 = vunpack.c.h.b16 %v470
        %v678 = vunpack.c.l.b16 %v471
        %v679 = vunpack.c.l.b16 %v472
        %v680 = vunpack.c.h.b16 %v472
        %v681 = vunpack.c.l.b16 %v473
        %v682 = vpack.c.b16 %v589, %v586
        %v683 = vpack.c.b16 %v590, %v587
        %v684 = vpack.c.b16 %v591, %v588
        %v685 = vpack.c.b16 %v595, %v592
        %v686 = vpack.c.b16 %v596, %v593
        %v687 = vpack.c.b16 %v597, %v594
        %v688 = vpack.c.b16 %v601, %v598
        %v689 = vpack.c.b16 %v602, %v599
        %v690 = vpack.c.b16 %v603, %v600
        %v691 = vpack.c.b16 %v607, %v604
        %v692 = vpack.c.b16 %v608, %v605
        %v693 = vpack.c.b16 %v609, %v606
        %v694 = vpack.c.b16 %v613, %v610
        %v695 = vpack.c.b16 %v614, %v611
        %v696 = vpack.c.b16 %v615, %v612
        %v697 = vpack.c.b16 %v619, %v616
        %v698 = vpack.c.b16 %v620, %v617
        %v699 = vpack.c.b16 %v621, %v618
        %v700 = vpack.c.b16 %v625, %v622
        %v701 = vpack.c.b16 %v626, %v623
        %v702 = vpack.c.b16 %v627, %v624
        %v703 = vpack.c.b16 %v631, %v628
        %v704 = vpack.c.b16 %v632, %v629
        %v705 = vpack.c.b16 %v633, %v630
        %v706 = vpack.c.b16 %v637, %v634
        %v707 = vpack.c.b16 %v638, %v635
        %v708 = vpack.c.b16 %v639, %v636
        %v709 = vpack.c.b16 %v643, %v640
        %v710 = vpack.c.b16 %v644, %v641
        %v711 = vpack.c.b16 %v645, %v642
        %v712 = vpack.c.b16 %v649, %v646
        %v713 = vpack.c.b16 %v650, %v647
        %v714 = vpack.c.b16 %v651, %v648
        %v715 = vpack.c.b16 %v655, %v652
        %v716 = vpack.c.b16 %v656, %v653
        %v717 = vpack.c.b16 %v657, %v654
        %v718 = vpack.c.b16 %v661, %v658
        %v719 = vpack.c.b16 %v662, %v659
        %v720 = vpack.c.b16 %v663, %v660
        %v721 = vpack.c.b16 %v667, %v664
        %v722 = vpack.c.b16 %v668, %v665
        %v723 = vpack.c.b16 %v669, %v666
        %v724 = vpack.c.b16 %v673, %v670
        %v725 = vpack.c.b16 %v674, %v671
        %v726 = vpack.c.b16 %v675, %v672
        %v727 = vpack.c.b16 %v679, %v676
        %v728 = vpack.c.b16 %v680, %v677
        %v729 = vpack.c.b16 %v681, %v678
        %v826 = vunpack.c.l.b16 %v474
        %v827 = vunpack.c.l.b16 %v475
        %v828 = vunpack.c.l.b16 %v476
        %v829 = vunpack.c.l.b16 %v477
        %v830 = vunpack.c.l.b16 %v478
        %v831 = vunpack.c.l.b16 %v479
        %v832 = vunpack.c.l.b16 %v480
        %v833 = vunpack.c.l.b16 %v481
        %v834 = vunpack.c.l.b16 %v482
        %v835 = vunpack.c.l.b16 %v483
        %v836 = vunpack.c.l.b16 %v484
        %v837 = vunpack.c.l.b16 %v485
        %v838 = vunpack.c.l.b16 %v486
        %v839 = vunpack.c.l.b16 %v487
        %v840 = vunpack.c.l.b16 %v488
        %v841 = vunpack.c.l.b16 %v489
        %v842 = vunpack.c.l.b16 %v490
        %v843 = vunpack.c.l.b16 %v491
        %v844 = vunpack.c.l.b16 %v492
        %v845 = vunpack.c.l.b16 %v493
        %v846 = vunpack.c.l.b16 %v494
        %v847 = vunpack.c.l.b16 %v495
        %v848 = vunpack.c.l.b16 %v496
        %v849 = vunpack.c.l.b16 %v497
        %v850 = vunpack.c.l.b16 %v498
        %v851 = vunpack.c.l.b16 %v499
        %v852 = vunpack.c.l.b16 %v500
        %v853 = vunpack.c.l.b16 %v501
        %v854 = vunpack.c.l.b16 %v502
        %v855 = vunpack.c.l.b16 %v503
        %v856 = vunpack.c.l.b16 %v504
        %v857 = vunpack.c.l.b16 %v505
        %v858 = vunpack.c.l.b16 %v506
        %v859 = vunpack.c.l.b16 %v507
        %v860 = vunpack.c.l.b16 %v508
        %v861 = vunpack.c.l.b16 %v509
        %v862 = vunpack.c.l.b16 %v510
        %v863 = vunpack.c.l.b16 %v511
        %v864 = vunpack.c.l.b16 %v512
        %v865 = vunpack.c.l.b16 %v513
        %v866 = vunpack.c.l.b16 %v514
        %v867 = vunpack.c.l.b16 %v515
        %v868 = vunpack.c.l.b16 %v516
        %v869 = vunpack.c.l.b16 %v517
        %v870 = vunpack.c.l.b16 %v518
        %v871 = vunpack.c.l.b16 %v519
        %v872 = vunpack.c.l.b16 %v520
        %v873 = vunpack.c.l.b16 %v521
        %v874 = vpack.c.b16 %v827, %v826
        %v875 = vpack.c.b16 %v829, %v828
        %v876 = vpack.c.b16 %v831, %v830
        %v877 = vpack.c.b16 %v833, %v832
        %v878 = vpack.c.b16 %v835, %v834
        %v879 = vpack.c.b16 %v837, %v836
        %v880 = vpack.c.b16 %v839, %v838
        %v881 = vpack.c.b16 %v841, %v840
        %v882 = vpack.c.b16 %v843, %v842
        %v883 = vpack.c.b16 %v845, %v844
        %v884 = vpack.c.b16 %v847, %v846
        %v885 = vpack.c.b16 %v849, %v848
        %v886 = vpack.c.b16 %v851, %v850
        %v887 = vpack.c.b16 %v853, %v852
        %v888 = vpack.c.b16 %v855, %v854
        %v889 = vpack.c.b16 %v857, %v856
        %v890 = vpack.c.b16 %v859, %v858
        %v891 = vpack.c.b16 %v861, %v860
        %v892 = vpack.c.b16 %v863, %v862
        %v893 = vpack.c.b16 %v865, %v864
        %v894 = vpack.c.b16 %v867, %v866
        %v895 = vpack.c.b16 %v869, %v868
        %v896 = vpack.c.b16 %v871, %v870
        %v897 = vpack.c.b16 %v873, %v872
        %922 = vmatprep.subr.bf16.mxu0 0
        %923 = vmatpush1.bf16.msra.mxu0 %v874
        %924 = vmatprep.subr.bf16.mxu0 0
        %925 = vmatpush1.bf16.msra.mxu0 %v875
        %926 = vmatprep.subr.bf16.mxu0 0
        %927 = vmatpush1.bf16.msra.mxu0 %v876
        %928 = vmatprep.subr.bf16.mxu0 0
        %929 = vmatpush1.bf16.msra.mxu0 %v877
        %930 = vmatprep.subr.bf16.mxu0 0
        %931 = vmatpush1.bf16.msra.mxu0 %v878
        %932 = vmatprep.subr.bf16.mxu0 0
        %933 = vmatpush1.bf16.msra.mxu0 %v879
        %934 = vmatprep.subr.bf16.mxu0 0
        %935 = vmatpush1.bf16.msra.mxu0 %v880
        %936 = vmatprep.subr.bf16.mxu0 0
        %937 = vmatpush1.bf16.msra.mxu0 %v881
        %938 = vmatprep.subr.bf16.mxu0 0
        %939 = vmatpush1.bf16.msra.mxu0 %v882
        %940 = vmatprep.subr.bf16.mxu0 0
        %941 = vmatpush1.bf16.msra.mxu0 %v883
        %942 = vmatprep.subr.bf16.mxu0 0
        %943 = vmatpush1.bf16.msra.mxu0 %v884
        %944 = vmatprep.subr.bf16.mxu0 0
        %945 = vmatpush1.bf16.msra.mxu0 %v885
        %946 = vmatprep.subr.bf16.mxu0 0
        %947 = vmatpush1.bf16.msra.mxu0 %v886
        %948 = vmatprep.subr.bf16.mxu0 0
        %949 = vmatpush1.bf16.msra.mxu0 %v887
        %950 = vmatprep.subr.bf16.mxu0 0
        %951 = vmatpush1.bf16.msra.mxu0 %v888
        %952 = vmatprep.subr.bf16.mxu0 0
        %953 = vmatpush1.bf16.msra.mxu0 %v889
        %954 = vmatprep.mubr.bf16.mxu0 %v683
        %955 = vmatmul.mubr.bf16.gmra.mrb[0].mxu0 %v682
        %v956 = vpop.f32.mrb[0].mxu0
        %v957 = vadd.f32 0.0, %v956
        %v958 = vpop.f32.mrb[0].mxu0
        %v959 = vpop.f32.mrb[0].mxu0
        %v960 = vadd.f32 0.0, %v959
        %v961 = vpop.f32.mrb[0].mxu0
        %962 = vmatprep.mubr.bf16.mxu0 %v686
        %963 = vmatmul.mubr.bf16.gmra.mrb[0].mxu0 %v685
        %v964 = vpop.f32.mrb[0].mxu0
        %v965 = vadd.f32 0.0, %v964
        %v966 = vpop.f32.mrb[0].mxu0
        %v967 = vpop.f32.mrb[0].mxu0
        %v968 = vadd.f32 0.0, %v967
        %v969 = vpop.f32.mrb[0].mxu0
        %970 = vmatprep.mubr.bf16.mxu0 %v689
        %971 = vmatmul.mubr.bf16.gmra.mrb[0].mxu0 %v688
        %v972 = vpop.f32.mrb[0].mxu0
        %v973 = vadd.f32 0.0, %v972
        %v974 = vpop.f32.mrb[0].mxu0
        %v975 = vpop.f32.mrb[0].mxu0
        %v976 = vadd.f32 0.0, %v975
        %v977 = vpop.f32.mrb[0].mxu0
        %978 = vmatprep.mubr.bf16.mxu0 %v692
        %979 = vmatmul.mubr.bf16.gmra.mrb[0].mxu0 %v691
        %v980 = vpop.f32.mrb[0].mxu0
        %v981 = vadd.f32 0.0, %v980
        %v982 = vpop.f32.mrb[0].mxu0
        %v983 = vpop.f32.mrb[0].mxu0
        %v984 = vadd.f32 0.0, %v983
        %v985 = vpop.f32.mrb[0].mxu0
        %986 = vmatprep.mubr.bf16.mxu0 %v695
        %987 = vmatmul.mubr.bf16.gmra.mrb[0].mxu0 %v694
        %v988 = vpop.f32.mrb[0].mxu0
        %v989 = vadd.f32 0.0, %v988
        %v990 = vpop.f32.mrb[0].mxu0
        %v991 = vpop.f32.mrb[0].mxu0
        %v992 = vadd.f32 0.0, %v991
        %v993 = vpop.f32.mrb[0].mxu0
        %994 = vmatprep.mubr.bf16.mxu0 %v698
        %995 = vmatmul.mubr.bf16.gmra.mrb[0].mxu0 %v697
        %v996 = vpop.f32.mrb[0].mxu0
        %v997 = vadd.f32 0.0, %v996
        %v998 = vpop.f32.mrb[0].mxu0
        %v999 = vpop.f32.mrb[0].mxu0
        %v1000 = vadd.f32 0.0, %v999
        %v1001 = vpop.f32.mrb[0].mxu0
        %1002 = vmatprep.mubr.bf16.mxu0 %v701
        %1003 = vmatmul.mubr.bf16.gmra.mrb[0].mxu0 %v700
        %v1004 = vpop.f32.mrb[0].mxu0
        %v1005 = vadd.f32 0.0, %v1004
        %v1006 = vpop.f32.mrb[0].mxu0
        %v1007 = vpop.f32.mrb[0].mxu0
        %v1008 = vadd.f32 0.0, %v1007
        %v1009 = vpop.f32.mrb[0].mxu0
        %1010 = vmatprep.mubr.bf16.mxu0 %v704
        %1011 = vmatmul.mubr.bf16.gmra.mrb[0].mxu0 %v703
        %v1012 = vpop.f32.mrb[0].mxu0
        %v1013 = vadd.f32 0.0, %v1012
        %v1014 = vpop.f32.mrb[0].mxu0
        %v1015 = vpop.f32.mrb[0].mxu0
        %v1016 = vadd.f32 0.0, %v1015
        %v1017 = vpop.f32.mrb[0].mxu0
        %1018 = vmatprep.mubr.bf16.mxu0 %v707
        %1019 = vmatmul.mubr.bf16.gmra.mrb[0].mxu0 %v706
        %v1020 = vpop.f32.mrb[0].mxu0
        %v1021 = vadd.f32 0.0, %v1020
        %v1022 = vpop.f32.mrb[0].mxu0
        %v1023 = vpop.f32.mrb[0].mxu0
        %v1024 = vadd.f32 0.0, %v1023
        %v1025 = vpop.f32.mrb[0].mxu0
        %1026 = vmatprep.mubr.bf16.mxu0 %v710
        %1027 = vmatmul.mubr.bf16.gmra.mrb[0].mxu0 %v709
        %v1028 = vpop.f32.mrb[0].mxu0
        %v1029 = vadd.f32 0.0, %v1028
        %v1030 = vpop.f32.mrb[0].mxu0
        %v1031 = vpop.f32.mrb[0].mxu0
        %v1032 = vadd.f32 0.0, %v1031
        %v1033 = vpop.f32.mrb[0].mxu0
        %1034 = vmatprep.mubr.bf16.mxu0 %v713
        %1035 = vmatmul.mubr.bf16.gmra.mrb[0].mxu0 %v712
        %v1036 = vpop.f32.mrb[0].mxu0
        %v1037 = vadd.f32 0.0, %v1036
        %v1038 = vpop.f32.mrb[0].mxu0
        %v1039 = vpop.f32.mrb[0].mxu0
        %v1040 = vadd.f32 0.0, %v1039
        %v1041 = vpop.f32.mrb[0].mxu0
        %1042 = vmatprep.mubr.bf16.mxu0 %v716
        %1043 = vmatmul.mubr.bf16.gmra.mrb[0].mxu0 %v715
        %v1044 = vpop.f32.mrb[0].mxu0
        %v1045 = vadd.f32 0.0, %v1044
        %v1046 = vpop.f32.mrb[0].mxu0
        %v1047 = vpop.f32.mrb[0].mxu0
        %v1048 = vadd.f32 0.0, %v1047
        %v1049 = vpop.f32.mrb[0].mxu0
        %1050 = vmatprep.mubr.bf16.mxu0 %v719
        %1051 = vmatmul.mubr.bf16.gmra.mrb[0].mxu0 %v718
        %v1052 = vpop.f32.mrb[0].mxu0
        %v1053 = vadd.f32 0.0, %v1052
        %v1054 = vpop.f32.mrb[0].mxu0
        %v1055 = vpop.f32.mrb[0].mxu0
        %v1056 = vadd.f32 0.0, %v1055
        %v1057 = vpop.f32.mrb[0].mxu0
        %1058 = vmatprep.mubr.bf16.mxu0 %v722
        %1059 = vmatmul.mubr.bf16.gmra.mrb[0].mxu0 %v721
        %v1060 = vpop.f32.mrb[0].mxu0
        %v1061 = vadd.f32 0.0, %v1060
        %v1062 = vpop.f32.mrb[0].mxu0
        %v1063 = vpop.f32.mrb[0].mxu0
        %v1064 = vadd.f32 0.0, %v1063
        %v1065 = vpop.f32.mrb[0].mxu0
        %1066 = vmatprep.mubr.bf16.mxu0 %v725
        %1067 = vmatmul.mubr.bf16.gmra.mrb[0].mxu0 %v724
        %v1068 = vpop.f32.mrb[0].mxu0
        %v1069 = vadd.f32 0.0, %v1068
        %v1070 = vpop.f32.mrb[0].mxu0
        %v1071 = vpop.f32.mrb[0].mxu0
        %v1072 = vadd.f32 0.0, %v1071
        %v1073 = vpop.f32.mrb[0].mxu0
        %1074 = vmatprep.mubr.bf16.mxu0 %v728
        %1075 = vmatmul.mubr.bf16.gmra.mrb[0].mxu0 %v727
        %v1076 = vpop.f32.mrb[0].mxu0
        %v1077 = vadd.f32 0.0, %v1076
        %v1078 = vpop.f32.mrb[0].mxu0
        %v1079 = vpop.f32.mrb[0].mxu0
        %v1080 = vadd.f32 0.0, %v1079
        %v1081 = vpop.f32.mrb[0].mxu0
        %1082 = vdwg.mxu0
        %1083 = vmatprep.subr.bf16.mxu0 0
        %1084 = vmatpush1.bf16.msra.mxu0 %v890
        %1085 = vmatprep.subr.bf16.mxu0 0
        %1086 = vmatpush1.bf16.msra.mxu0 %v891
        %1087 = vmatprep.subr.bf16.mxu0 0
        %1088 = vmatpush1.bf16.msra.mxu0 %v892
        %1089 = vmatprep.subr.bf16.mxu0 0
        %1090 = vmatpush1.bf16.msra.mxu0 %v893
        %1091 = vmatprep.subr.bf16.mxu0 0
        %1092 = vmatpush1.bf16.msra.mxu0 %v894
        %1093 = vmatprep.subr.bf16.mxu0 0
        %1094 = vmatpush1.bf16.msra.mxu0 %v895
        %1095 = vmatprep.subr.bf16.mxu0 0
        %1096 = vmatpush1.bf16.msra.mxu0 %v896
        %1097 = vmatprep.subr.bf16.mxu0 0
        %1098 = vmatpush1.bf16.msra.mxu0 %v897
        %1099 = vmatprep.subr.bf16.mxu0 0
        %1100 = vmatpush1.bf16.msra.mxu0 0
        %1101 = vmatprep.subr.bf16.mxu0 0
        %1102 = vmatpush1.bf16.msra.mxu0 0
        %1103 = vmatprep.subr.bf16.mxu0 0
        %1104 = vmatpush1.bf16.msra.mxu0 0
        %1105 = vmatprep.subr.bf16.mxu0 0
        %1106 = vmatpush1.bf16.msra.mxu0 0
        %1107 = vmatprep.subr.bf16.mxu0 0
        %1108 = vmatpush1.bf16.msra.mxu0 0
        %1109 = vmatprep.subr.bf16.mxu0 0
        %1110 = vmatpush1.bf16.msra.mxu0 0
        %1111 = vmatprep.subr.bf16.mxu0 0
        %1112 = vmatpush1.bf16.msra.mxu0 0
        %1113 = vmatprep.subr.bf16.mxu0 0
        %1114 = vmatpush1.bf16.msra.mxu0 0
        %1115 = vmatprep.mubr.bf16.mxu0 0
        %1116 = vmatmul.mubr.bf16.gmra.mrb[0].mxu0 %v684
        %v1117 = vpop.f32.mrb[0].mxu0
        %v1118 = vadd.f32 %v957, %v1117
        %v1119 = vpop.f32.mrb[0].mxu0
        %v1120 = vpop.f32.mrb[0].mxu0
        %v1121 = vadd.f32 %v960, %v1120
        %v1122 = vpop.f32.mrb[0].mxu0
        %1123 = vmatprep.mubr.bf16.mxu0 0
        %1124 = vmatmul.mubr.bf16.gmra.mrb[0].mxu0 %v687
        %v1125 = vpop.f32.mrb[0].mxu0
        %v1126 = vadd.f32 %v965, %v1125
        %v1127 = vpop.f32.mrb[0].mxu0
        %v1128 = vpop.f32.mrb[0].mxu0
        %v1129 = vadd.f32 %v968, %v1128
        %v1130 = vpop.f32.mrb[0].mxu0
        %1131 = vmatprep.mubr.bf16.mxu0 0
        %1132 = vmatmul.mubr.bf16.gmra.mrb[0].mxu0 %v690
        %v1133 = vpop.f32.mrb[0].mxu0
        %v1134 = vadd.f32 %v973, %v1133
        %v1135 = vpop.f32.mrb[0].mxu0
        %v1136 = vpop.f32.mrb[0].mxu0
        %v1137 = vadd.f32 %v976, %v1136
        %v1138 = vpop.f32.mrb[0].mxu0
        %1139 = vmatprep.mubr.bf16.mxu0 0
        %1140 = vmatmul.mubr.bf16.gmra.mrb[0].mxu0 %v693
        %v1141 = vpop.f32.mrb[0].mxu0
        %v1142 = vadd.f32 %v981, %v1141
        %v1143 = vpop.f32.mrb[0].mxu0
        %v1144 = vpop.f32.mrb[0].mxu0
        %v1145 = vadd.f32 %v984, %v1144
        %v1146 = vpop.f32.mrb[0].mxu0
        %1147 = vmatprep.mubr.bf16.mxu0 0
        %1148 = vmatmul.mubr.bf16.gmra.mrb[0].mxu0 %v696
        %v1149 = vpop.f32.mrb[0].mxu0
        %v1150 = vadd.f32 %v989, %v1149
        %v1151 = vpop.f32.mrb[0].mxu0
        %v1152 = vpop.f32.mrb[0].mxu0
        %v1153 = vadd.f32 %v992, %v1152
        %v1154 = vpop.f32.mrb[0].mxu0
        %1155 = vmatprep.mubr.bf16.mxu0 0
        %1156 = vmatmul.mubr.bf16.gmra.mrb[0].mxu0 %v699
        %v1157 = vpop.f32.mrb[0].mxu0
        %v1158 = vadd.f32 %v997, %v1157
        %v1159 = vpop.f32.mrb[0].mxu0
        %v1160 = vpop.f32.mrb[0].mxu0
        %v1161 = vadd.f32 %v1000, %v1160
        %v1162 = vpop.f32.mrb[0].mxu0
        %1163 = vmatprep.mubr.bf16.mxu0 0
        %1164 = vmatmul.mubr.bf16.gmra.mrb[0].mxu0 %v702
        %v1165 = vpop.f32.mrb[0].mxu0
        %v1166 = vadd.f32 %v1005, %v1165
        %v1167 = vpop.f32.mrb[0].mxu0
        %v1168 = vpop.f32.mrb[0].mxu0
        %v1169 = vadd.f32 %v1008, %v1168
        %v1170 = vpop.f32.mrb[0].mxu0
        %1171 = vmatprep.mubr.bf16.mxu0 0
        %1172 = vmatmul.mubr.bf16.gmra.mrb[0].mxu0 %v705
        %v1173 = vpop.f32.mrb[0].mxu0
        %v1174 = vadd.f32 %v1013, %v1173
        %v1175 = vpop.f32.mrb[0].mxu0
        %v1176 = vpop.f32.mrb[0].mxu0
        %v1177 = vadd.f32 %v1016, %v1176
        %v1178 = vpop.f32.mrb[0].mxu0
        %1179 = vmatprep.mubr.bf16.mxu0 0
        %1180 = vmatmul.mubr.bf16.gmra.mrb[0].mxu0 %v708
        %v1181 = vpop.f32.mrb[0].mxu0
        %v1182 = vadd.f32 %v1021, %v1181
        %v1183 = vpop.f32.mrb[0].mxu0
        %v1184 = vpop.f32.mrb[0].mxu0
        %v1185 = vadd.f32 %v1024, %v1184
        %v1186 = vpop.f32.mrb[0].mxu0
        %1187 = vmatprep.mubr.bf16.mxu0 0
        %1188 = vmatmul.mubr.bf16.gmra.mrb[0].mxu0 %v711
        %v1189 = vpop.f32.mrb[0].mxu0
        %v1190 = vadd.f32 %v1029, %v1189
        %v1191 = vpop.f32.mrb[0].mxu0
        %v1192 = vpop.f32.mrb[0].mxu0
        %v1193 = vadd.f32 %v1032, %v1192
        %v1194 = vpop.f32.mrb[0].mxu0
        %1195 = vmatprep.mubr.bf16.mxu0 0
        %1196 = vmatmul.mubr.bf16.gmra.mrb[0].mxu0 %v714
        %v1197 = vpop.f32.mrb[0].mxu0
        %v1198 = vadd.f32 %v1037, %v1197
        %v1199 = vpop.f32.mrb[0].mxu0
        %v1200 = vpop.f32.mrb[0].mxu0
        %v1201 = vadd.f32 %v1040, %v1200
        %v1202 = vpop.f32.mrb[0].mxu0
        %1203 = vmatprep.mubr.bf16.mxu0 0
        %1204 = vmatmul.mubr.bf16.gmra.mrb[0].mxu0 %v717
        %v1205 = vpop.f32.mrb[0].mxu0
        %v1206 = vadd.f32 %v1045, %v1205
        %v1207 = vpop.f32.mrb[0].mxu0
        %v1208 = vpop.f32.mrb[0].mxu0
        %v1209 = vadd.f32 %v1048, %v1208
        %v1210 = vpop.f32.mrb[0].mxu0
        %1211 = vmatprep.mubr.bf16.mxu0 0
        %1212 = vmatmul.mubr.bf16.gmra.mrb[0].mxu0 %v720
        %v1213 = vpop.f32.mrb[0].mxu0
        %v1214 = vadd.f32 %v1053, %v1213
        %v1215 = vpop.f32.mrb[0].mxu0
        %v1216 = vpop.f32.mrb[0].mxu0
        %v1217 = vadd.f32 %v1056, %v1216
        %v1218 = vpop.f32.mrb[0].mxu0
        %1219 = vmatprep.mubr.bf16.mxu0 0
        %1220 = vmatmul.mubr.bf16.gmra.mrb[0].mxu0 %v723
        %v1221 = vpop.f32.mrb[0].mxu0
        %v1222 = vadd.f32 %v1061, %v1221
        %v1223 = vpop.f32.mrb[0].mxu0
        %v1224 = vpop.f32.mrb[0].mxu0
        %v1225 = vadd.f32 %v1064, %v1224
        %v1226 = vpop.f32.mrb[0].mxu0
        %1227 = vmatprep.mubr.bf16.mxu0 0
        %1228 = vmatmul.mubr.bf16.gmra.mrb[0].mxu0 %v726
        %v1229 = vpop.f32.mrb[0].mxu0
        %v1230 = vadd.f32 %v1069, %v1229
        %v1231 = vpop.f32.mrb[0].mxu0
        %v1232 = vpop.f32.mrb[0].mxu0
        %v1233 = vadd.f32 %v1072, %v1232
        %v1234 = vpop.f32.mrb[0].mxu0
        %1235 = vmatprep.mubr.bf16.mxu0 0
        %1236 = vmatmul.mubr.bf16.gmra.mrb[0].mxu0 %v729
        %v1237 = vpop.f32.mrb[0].mxu0
        %v1238 = vadd.f32 %v1077, %v1237
        %v1239 = vpop.f32.mrb[0].mxu0
        %v1240 = vpop.f32.mrb[0].mxu0
        %v1241 = vadd.f32 %v1080, %v1240
        %v1242 = vpop.f32.mrb[0].mxu0
        %1243 = vdwg.mxu0
        %v1244 = vadd.f32 %v378, %v1118
        %v1245 = vadd.f32 %v379, %v1121
        %v1246 = vadd.f32 %v380, %v1126
        %v1247 = vadd.f32 %v381, %v1129
        %v1248 = vadd.f32 %v382, %v1134
        %v1249 = vadd.f32 %v383, %v1137
        %v1250 = vadd.f32 %v384, %v1142
        %v1251 = vadd.f32 %v385, %v1145
        %v1252 = vadd.f32 %v386, %v1150
        %v1253 = vadd.f32 %v387, %v1153
        %v1254 = vadd.f32 %v388, %v1158
        %v1255 = vadd.f32 %v389, %v1161
        %v1256 = vadd.f32 %v390, %v1166
        %v1257 = vadd.f32 %v391, %v1169
        %v1258 = vadd.f32 %v392, %v1174
        %v1259 = vadd.f32 %v393, %v1177
        %v1260 = vadd.f32 %v394, %v1182
        %v1261 = vadd.f32 %v395, %v1185
        %v1262 = vadd.f32 %v396, %v1190
        %v1263 = vadd.f32 %v397, %v1193
        %v1264 = vadd.f32 %v398, %v1198
        %v1265 = vadd.f32 %v399, %v1201
        %v1266 = vadd.f32 %v400, %v1206
        %v1267 = vadd.f32 %v401, %v1209
        %v1268 = vadd.f32 %v402, %v1214
        %v1269 = vadd.f32 %v403, %v1217
        %v1270 = vadd.f32 %v404, %v1222
        %v1271 = vadd.f32 %v405, %v1225
        %v1272 = vadd.f32 %v406, %v1230
        %v1273 = vadd.f32 %v407, %v1233
        %v1274 = vadd.f32 %v408, %v1238
        %v1275 = vadd.f32 %v409, %v1241
        %1276 = vst [vmem:[#allocation2] sm:$0xff] %v1244
        %1277 = vst [vmem:[#allocation2 + $0x8] sm:$0xff] %v1245
        %1278 = vst [vmem:[#allocation2 + $0x10] sm:$0xff] %v1246
        %1279 = vst [vmem:[#allocation2 + $0x18] sm:$0xff] %v1247
        %1280 = vst [vmem:[#allocation2 + $0x20] sm:$0xff] %v1248
        %1281 = vst [vmem:[#allocation2 + $0x28] sm:$0xff] %v1249
        %1282 = vst [vmem:[#allocation2 + $0x30] sm:$0xff] %v1250
        %1283 = vst [vmem:[#allocation2 + $0x38] sm:$0xff] %v1251
        %1284 = vst [vmem:[#allocation2 + $0x40] sm:$0xff] %v1252
        %1285 = vst [vmem:[#allocation2 + $0x48] sm:$0xff] %v1253
        %1286 = vst [vmem:[#allocation2 + $0x50] sm:$0xff] %v1254
        %1287 = vst [vmem:[#allocation2 + $0x58] sm:$0xff] %v1255
        %1288 = vst [vmem:[#allocation2 + $0x60] sm:$0xff] %v1256
        %1289 = vst [vmem:[#allocation2 + $0x68] sm:$0xff] %v1257
        %1290 = vst [vmem:[#allocation2 + $0x70] sm:$0xff] %v1258
        %1291 = vst [vmem:[#allocation2 + $0x78] sm:$0xff] %v1259
        %1292 = vst [vmem:[#allocation2 + $0x80] sm:$0xff] %v1260
        %1293 = vst [vmem:[#allocation2 + $0x88] sm:$0xff] %v1261
        %1294 = vst [vmem:[#allocation2 + $0x90] sm:$0xff] %v1262
        %1295 = vst [vmem:[#allocation2 + $0x98] sm:$0xff] %v1263
        %1296 = vst [vmem:[#allocation2 + $0xa0] sm:$0xff] %v1264
        %1297 = vst [vmem:[#allocation2 + $0xa8] sm:$0xff] %v1265
        %1298 = vst [vmem:[#allocation2 + $0xb0] sm:$0xff] %v1266
        %1299 = vst [vmem:[#allocation2 + $0xb8] sm:$0xff] %v1267
        %1300 = vst [vmem:[#allocation2 + $0xc0] sm:$0xff] %v1268
        %1301 = vst [vmem:[#allocation2 + $0xc8] sm:$0xff] %v1269
        %1302 = vst [vmem:[#allocation2 + $0xd0] sm:$0xff] %v1270
        %1303 = vst [vmem:[#allocation2 + $0xd8] sm:$0xff] %v1271
        %1304 = vst [vmem:[#allocation2 + $0xe0] sm:$0xff] %v1272
        %1305 = vst [vmem:[#allocation2 + $0xe8] sm:$0xff] %v1273
        %1306 = vst [vmem:[#allocation2 + $0xf0] sm:$0xff] %v1274
        %1307 = vst [vmem:[#allocation2 + $0xf8] sm:$0xff] %v1275
        %p1308 = scmp.eq.s32.totalorder %s18, 1
        // Predicated region
        $region59: #{genenet_forward.59} parent=49 // pred_check
          %p1309 = pneg %p1308
        $region60: #{genenet_forward.59} parent=49 // pred_check_branch
          %1311 = sbr.rel (%p1309) target = $region62
        $region61: #{genenet_forward.59} parent=49 // pred_region
          %v1312 = vld [vmem:[#allocation2] sm:$0xff]
          %v1313 = vld [vmem:[#allocation2 + $0x8] sm:$0xff]
          %v1314 = vld [vmem:[#allocation2 + $0x10] sm:$0xff]
          %v1315 = vld [vmem:[#allocation2 + $0x18] sm:$0xff]
          %v1316 = vld [vmem:[#allocation2 + $0x20] sm:$0xff]
          %v1317 = vld [vmem:[#allocation2 + $0x28] sm:$0xff]
          %v1318 = vld [vmem:[#allocation2 + $0x30] sm:$0xff]
          %v1319 = vld [vmem:[#allocation2 + $0x38] sm:$0xff]
          %v1320 = vld [vmem:[#allocation2 + $0x40] sm:$0xff]
          %v1321 = vld [vmem:[#allocation2 + $0x48] sm:$0xff]
          %v1322 = vld [vmem:[#allocation2 + $0x50] sm:$0xff]
          %v1323 = vld [vmem:[#allocation2 + $0x58] sm:$0xff]
          %v1324 = vld [vmem:[#allocation2 + $0x60] sm:$0xff]
          %v1325 = vld [vmem:[#allocation2 + $0x68] sm:$0xff]
          %v1326 = vld [vmem:[#allocation2 + $0x70] sm:$0xff]
          %v1327 = vld [vmem:[#allocation2 + $0x78] sm:$0xff]
          %v1328 = vld [vmem:[#allocation2 + $0x80] sm:$0xff]
          %v1329 = vld [vmem:[#allocation2 + $0x88] sm:$0xff]
          %v1330 = vld [vmem:[#allocation2 + $0x90] sm:$0xff]
          %v1331 = vld [vmem:[#allocation2 + $0x98] sm:$0xff]
          %v1332 = vld [vmem:[#allocation2 + $0xa0] sm:$0xff]
          %v1333 = vld [vmem:[#allocation2 + $0xa8] sm:$0xff]
          %v1334 = vld [vmem:[#allocation2 + $0xb0] sm:$0xff]
          %v1335 = vld [vmem:[#allocation2 + $0xb8] sm:$0xff]
          %v1336 = vld [vmem:[#allocation2 + $0xc0] sm:$0xff]
          %v1337 = vld [vmem:[#allocation2 + $0xc8] sm:$0xff]
          %v1338 = vld [vmem:[#allocation2 + $0xd0] sm:$0xff]
          %v1339 = vld [vmem:[#allocation2 + $0xd8] sm:$0xff]
          %v1340 = vld [vmem:[#allocation2 + $0xe0] sm:$0xff]
          %v1341 = vld [vmem:[#allocation2 + $0xe8] sm:$0xff]
          %v1342 = vld [vmem:[#allocation2 + $0xf0] sm:$0xff]
          %v1343 = vld [vmem:[#allocation2 + $0xf8] sm:$0xff]
          %v1344 = vpack.c.bf16 %v1313, %v1312
          %v1345 = vpack.c.bf16 %v1315, %v1314
          %v1346 = vpack.c.bf16 %v1317, %v1316
          %v1347 = vpack.c.bf16 %v1319, %v1318
          %v1348 = vpack.c.bf16 %v1321, %v1320
          %v1349 = vpack.c.bf16 %v1323, %v1322
          %v1350 = vpack.c.bf16 %v1325, %v1324
          %v1351 = vpack.c.bf16 %v1327, %v1326
          %v1352 = vpack.c.bf16 %v1329, %v1328
          %v1353 = vpack.c.bf16 %v1331, %v1330
          %v1354 = vpack.c.bf16 %v1333, %v1332
          %v1355 = vpack.c.bf16 %v1335, %v1334
          %v1356 = vpack.c.bf16 %v1337, %v1336
          %v1357 = vpack.c.bf16 %v1339, %v1338
          %v1358 = vpack.c.bf16 %v1341, %v1340
          %v1359 = vpack.c.bf16 %v1343, %v1342
          %v1376 = vunpack.c.l.b16 %v1344
          %v1377 = vunpack.c.h.b16 %v1344
          %v1378 = vunpack.c.l.b16 %v1345
          %v1379 = vunpack.c.h.b16 %v1345
          %v1380 = vunpack.c.l.b16 %v1346
          %v1381 = vunpack.c.h.b16 %v1346
          %v1382 = vunpack.c.l.b16 %v1347
          %v1383 = vunpack.c.h.b16 %v1347
          %v1384 = vunpack.c.l.b16 %v1348
          %v1385 = vunpack.c.h.b16 %v1348
          %v1386 = vunpack.c.l.b16 %v1349
          %v1387 = vunpack.c.h.b16 %v1349
          %v1388 = vunpack.c.l.b16 %v1350
          %v1389 = vunpack.c.h.b16 %v1350
          %v1390 = vunpack.c.l.b16 %v1351
          %v1391 = vunpack.c.h.b16 %v1351
          %v1392 = vunpack.c.l.b16 %v1352
          %v1393 = vunpack.c.h.b16 %v1352
          %v1394 = vunpack.c.l.b16 %v1353
          %v1395 = vunpack.c.h.b16 %v1353
          %v1396 = vunpack.c.l.b16 %v1354
          %v1397 = vunpack.c.h.b16 %v1354
          %v1398 = vunpack.c.l.b16 %v1355
          %v1399 = vunpack.c.h.b16 %v1355
          %v1400 = vunpack.c.l.b16 %v1356
          %v1401 = vunpack.c.h.b16 %v1356
          %v1402 = vunpack.c.l.b16 %v1357
          %v1403 = vunpack.c.h.b16 %v1357
          %v1404 = vunpack.c.l.b16 %v1358
          %v1405 = vunpack.c.h.b16 %v1358
          %v1406 = vunpack.c.l.b16 %v1359
          %v1407 = vunpack.c.h.b16 %v1359
          %v1408 = vpack.c.b16 %v1376, %v1376
          %v1409 = vpack.c.b16 %v1377, %v1377
          %v1410 = vpack.c.b16 %v1378, %v1378
          %v1411 = vpack.c.b16 %v1379, %v1379
          %v1412 = vpack.c.b16 %v1380, %v1380
          %v1413 = vpack.c.b16 %v1381, %v1381
          %v1414 = vpack.c.b16 %v1382, %v1382
          %v1415 = vpack.c.b16 %v1383, %v1383
          %v1416 = vpack.c.b16 %v1384, %v1384
          %v1417 = vpack.c.b16 %v1385, %v1385
          %v1418 = vpack.c.b16 %v1386, %v1386
          %v1419 = vpack.c.b16 %v1387, %v1387
          %v1420 = vpack.c.b16 %v1388, %v1388
          %v1421 = vpack.c.b16 %v1389, %v1389
          %v1422 = vpack.c.b16 %v1390, %v1390
          %v1423 = vpack.c.b16 %v1391, %v1391
          %v1424 = vpack.c.b16 %v1392, %v1392
          %v1425 = vpack.c.b16 %v1393, %v1393
          %v1426 = vpack.c.b16 %v1394, %v1394
          %v1427 = vpack.c.b16 %v1395, %v1395
          %v1428 = vpack.c.b16 %v1396, %v1396
          %v1429 = vpack.c.b16 %v1397, %v1397
          %v1430 = vpack.c.b16 %v1398, %v1398
          %v1431 = vpack.c.b16 %v1399, %v1399
          %v1432 = vpack.c.b16 %v1400, %v1400
          %v1433 = vpack.c.b16 %v1401, %v1401
          %v1434 = vpack.c.b16 %v1402, %v1402
          %v1435 = vpack.c.b16 %v1403, %v1403
          %v1436 = vpack.c.b16 %v1404, %v1404
          %v1437 = vpack.c.b16 %v1405, %v1405
          %v1438 = vpack.c.b16 %v1406, %v1406
          %v1439 = vpack.c.b16 %v1407, %v1407
          %1472 = vst [vmem:[%s339] sm:$0xf] %v1408
          %1473 = vst [vmem:[%s339 + $0x4] sm:$0xf] %v1409
          %1474 = vst [vmem:[%s339 + $0x8] sm:$0xf] %v1410
          %1475 = vst [vmem:[%s339 + $0xc] sm:$0xf] %v1411
          %1476 = vst [vmem:[%s339 + $0x10] sm:$0xf] %v1412
          %1477 = vst [vmem:[%s339 + $0x14] sm:$0xf] %v1413
          %1478 = vst [vmem:[%s339 + $0x18] sm:$0xf] %v1414
          %1479 = vst [vmem:[%s339 + $0x1c] sm:$0xf] %v1415
          %1480 = vst [vmem:[%s339 + $0x20] sm:$0xf] %v1416
          %1481 = vst [vmem:[%s339 + $0x24] sm:$0xf] %v1417
          %1482 = vst [vmem:[%s339 + $0x28] sm:$0xf] %v1418
          %1483 = vst [vmem:[%s339 + $0x2c] sm:$0xf] %v1419
          %1484 = vst [vmem:[%s339 + $0x30] sm:$0xf] %v1420
          %1485 = vst [vmem:[%s339 + $0x34] sm:$0xf] %v1421
          %1486 = vst [vmem:[%s339 + $0x38] sm:$0xf] %v1422
          %1487 = vst [vmem:[%s339 + $0x3c] sm:$0xf] %v1423
          %1488 = vst [vmem:[%s339 + $0x40] sm:$0xf] %v1424
          %1489 = vst [vmem:[%s339 + $0x44] sm:$0xf] %v1425
          %1490 = vst [vmem:[%s339 + $0x48] sm:$0xf] %v1426
          %1491 = vst [vmem:[%s339 + $0x4c] sm:$0xf] %v1427
          %1492 = vst [vmem:[%s339 + $0x50] sm:$0xf] %v1428
          %1493 = vst [vmem:[%s339 + $0x54] sm:$0xf] %v1429
          %1494 = vst [vmem:[%s339 + $0x58] sm:$0xf] %v1430
          %1495 = vst [vmem:[%s339 + $0x5c] sm:$0xf] %v1431
          %1496 = vst [vmem:[%s339 + $0x60] sm:$0xf] %v1432
          %1497 = vst [vmem:[%s339 + $0x64] sm:$0xf] %v1433
          %1498 = vst [vmem:[%s339 + $0x68] sm:$0xf] %v1434
          %1499 = vst [vmem:[%s339 + $0x6c] sm:$0xf] %v1435
          %1500 = vst [vmem:[%s339 + $0x70] sm:$0xf] %v1436
          %1501 = vst [vmem:[%s339 + $0x74] sm:$0xf] %v1437
          %1502 = vst [vmem:[%s339 + $0x78] sm:$0xf] %v1438
          %1503 = vst [vmem:[%s339 + $0x7c] sm:$0xf] %v1439
        $region62: #{genenet_forward.59} parent=49 // pred_fallthru
          _
        %s1504 = smul.u32 32, %s17
        %p1505 = scmp.lt.s32.totalorder %s1504, 63
        %s1506 = scalar_select %p1505, %s1504, 63
        %s1507 = smul.addr %s1506, 4
        %s1508 = scalar_lea.vmem %s2, %s1507
        // Predicated region
        $region63: #{genenet_forward.59} parent=49 // pred_check
          %p1509 = pneg %p97
        $region64: #{genenet_forward.59} parent=49 // pred_check_branch
          %1511 = sbr.rel (%p1509) target = $region66
        $region65: #{genenet_forward.59} parent=49 // pred_region
          %s1512 = smul.u32 32, %s17
        $region66: #{genenet_forward.59} parent=49 // pred_fallthru
          _
      $region50: #{genenet_forward.59} parent=5 // pred_fallthru
        _
      %p1513 = scmp.le.s32.totalorder 2, %s8
      // Predicated region
      $region67: #{genenet_forward.59} parent=5 // pred_check
        %p1514 = pneg %p1513
      $region68: #{genenet_forward.59} parent=5 // pred_check_branch
        %1516 = sbr.rel (%p1514) target = $region70
      $region69: #{genenet_forward.59} parent=5 // pred_region
        %s1517 = ssub.s32 %s8, 2
        // Predicated region
        $region71: #{genenet_forward.59} parent=69 // pred_check
          %p1518 = pneg %p103
        $region72: #{genenet_forward.59} parent=69 // pred_check_branch
          %1520 = sbr.rel (%p1518) target = $region74
        $region73: #{genenet_forward.59} parent=69 // pred_region
          %s1521 = smul.u32 32, %s19
          %p1522 = scmp.lt.s32.totalorder %s1521, 63
          %s1523 = scalar_select %p1522, %s1521, 63
          %s1524 = smul.addr %s1523, 4
          %s1525 = scalar_lea.vmem %s2, %s1524
        $region74: #{genenet_forward.59} parent=69 // pred_fallthru
          _
      $region70: #{genenet_forward.59} parent=5 // pred_fallthru
        _
    $region6: #{genenet_forward.59} parent=1 // loop_footer
      %s12 = sadd.s32 1, %s8
    $region7: #{genenet_forward.59} parent=1 // loop_footer_branch
      %7 = sbr.rel target = $region3
    $region8: #{genenet_forward.59} parent=1 // loop_exit
      _

// kernel: genenet_forward.61
$region0: #{genenet_forward.61}
  #allocation0 [shape = 'u32[]', space=smem, size = 0x4, offset = 0x4, fixed_abs, tag = 'smem constant byte address 0x4 - core index']
  #allocation1 [shape = 'u32[144,128]{1,0:T(1,128)}', space=vmem, size = 0x12000, scoped, tag = 'internal scratch']
  #allocation2 [shape = 'f32[256,128]{1,0:T(8,128)}', space=vmem, size = 0x20000, scoped, tag = 'scratch operand']
  %s0 = inlined_call_operand.vmem [shape: bf16[512,3072], index: 0, kind: input, shape index: {}]
  %s1 = inlined_call_operand.vmem [shape: bf16[3072,128], index: 1, kind: input, shape index: {}]
  %s2 = inlined_call_operand.vmem [shape: f32[1,128], index: 2, kind: input, shape index: {}]
  %s3 = inlined_call_operand.vmem [shape: f32[512,128], index: 3, kind: output, shape index: {}]
  %s4 = sld [smem:[#allocation0]]
  $region76: #{genenet_forward.61} parent=0
    _
  %s6 = ssub.s32 1, %s4
  %s7 = scalar_select 0, %s6, %s4
  $region1: #{genenet_forward.61} parent=0
    #allocation3 [shape = 'u8[524288]{0}', space=vmem, size = 0x80000, scoped, tag = 'input window, operand 0']
    loop: start=0, step=1, limit=14
    $region2: #{genenet_forward.61} parent=1 // loop_pre_header
      _
    $region3: #{genenet_forward.61} parent=1 // loop_header
      %s9 = sphi 0, %s13
      %p10 = scmp.ge.s32.totalorder %s9, 14
      %s16 = sphi 0, %s28
      %s17 = sphi 0, %s24
      %s18 = sphi 0, %s16
      %s19 = sphi 0, %s17
      %s20 = sphi 0, %s18
      %s21 = sphi 0, %s19
      %s33 = sphi 0, %s35
      %s36 = sphi 0, %s33
      %s37 = sphi 0, %s36
      %s53 = sphi 0, %s37
      %s59 = sphi 0, %s61
      %s62 = sphi 0, %s59
      %s63 = sphi 0, %s62
      %s79 = sphi 0, %s63
      %s83 = sphi 0, %s83
      %s85 = sphi 0, %s83
      %s86 = sphi 0, %s85
      %s100 = sphi 0, %s86
      %s106 = sphi 0, %s108
      %s109 = sphi 0, %s106
      %s110 = sphi 0, %s109
      %s126 = sphi 0, %s110
    $region4: #{genenet_forward.61} parent=1 // loop_header_branch
      %12 = sbr.rel (%p10) target = $region8
    $region5: #{genenet_forward.61} parent=1 // loop_body
      %s14 = ssub.s32 %s9, 1
      %s15 = ssub.s32 %s9, 2
      %s22 = sadd.s32 1, %s17
      %p23 = scmp.ge.s32.totalorder %s22, 6
      %s24 = scalar_select %p23, 0, %s22
      %s25 = sadd.s32 1, %s16
      %s26 = scalar_select %p23, %s25, %s16
      %p27 = scmp.ge.s32.totalorder %s26, 2
      %s28 = scalar_select %p27, 0, %s26
      %s29 = ssub.s32 %s16, %s28
      %s30 = ssub.s32 %s17, %s24
      %s31 = sor.u32 %s29, %s30
      %p32 = scmp.eq.s32.totalorder %s31, 0
      %s34 = sadd.s32 %s33, 1
      %s35 = scalar_select %p32, %s33, %s34
      %p38 = pneg %p32
      %p39 = scmp.eq.s32.totalorder %s9, 11
      %p40 = por %p38, %p39
      %p41 = scmp.ne.s32.totalorder %s33, %s36
      %p42 = scmp.eq.s32.totalorder %s9, 0
      %p43 = por %p41, %p42
      %p44 = scmp.ne.s32.totalorder %s33, %s36
      %p45 = scmp.eq.s32.totalorder %s14, 11
      %p46 = por %p44, %p45
      %p47 = scmp.ne.s32.totalorder %s36, %s37
      %p48 = scmp.eq.s32.totalorder %s14, 0
      %p49 = por %p47, %p48
      %p50 = scmp.ne.s32.totalorder %s36, %s37
      %p51 = scmp.eq.s32.totalorder %s15, 11
      %p52 = por %p50, %p51
      %p54 = scmp.ne.s32.totalorder %s37, %s53
      %p55 = scmp.eq.s32.totalorder %s15, 0
      %p56 = por %p54, %p55
      %s57 = ssub.s32 %s17, %s24
      %p58 = scmp.eq.s32.totalorder %s57, 0
      %s60 = sadd.s32 %s59, 1
      %s61 = scalar_select %p58, %s59, %s60
      %p64 = pneg %p58
      %p65 = scmp.eq.s32.totalorder %s9, 11
      %p66 = por %p64, %p65
      %p67 = scmp.ne.s32.totalorder %s59, %s62
      %p68 = scmp.eq.s32.totalorder %s9, 0
      %p69 = por %p67, %p68
      %p70 = scmp.ne.s32.totalorder %s59, %s62
      %p71 = scmp.eq.s32.totalorder %s14, 11
      %p72 = por %p70, %p71
      %p73 = scmp.ne.s32.totalorder %s62, %s63
      %p74 = scmp.eq.s32.totalorder %s14, 0
      %p75 = por %p73, %p74
      %p76 = scmp.ne.s32.totalorder %s62, %s63
      %p77 = scmp.eq.s32.totalorder %s15, 11
      %p78 = por %p76, %p77
      %p80 = scmp.ne.s32.totalorder %s63, %s79
      %p81 = scmp.eq.s32.totalorder %s15, 0
      %p82 = por %p80, %p81
      %s84 = sadd.s32 %s83, 1
      %p87 = scmp.eq.s32.totalorder %s9, 11
      %p88 = scmp.ne.s32.totalorder %s83, %s85
      %p89 = scmp.eq.s32.totalorder %s9, 0
      %p90 = por %p88, %p89
      %p91 = scmp.ne.s32.totalorder %s83, %s85
      %p92 = scmp.eq.s32.totalorder %s14, 11
      %p93 = por %p91, %p92
      %p94 = scmp.ne.s32.totalorder %s85, %s86
      %p95 = scmp.eq.s32.totalorder %s14, 0
      %p96 = por %p94, %p95
      %p97 = scmp.ne.s32.totalorder %s85, %s86
      %p98 = scmp.eq.s32.totalorder %s15, 11
      %p99 = por %p97, %p98
      %p101 = scmp.ne.s32.totalorder %s86, %s100
      %p102 = scmp.eq.s32.totalorder %s15, 0
      %p103 = por %p101, %p102
      %s104 = ssub.s32 %s16, %s28
      %p105 = scmp.eq.s32.totalorder %s104, 0
      %s107 = sadd.s32 %s106, 1
      %s108 = scalar_select %p105, %s106, %s107
      %p111 = pneg %p105
      %p112 = scmp.eq.s32.totalorder %s9, 11
      %p113 = por %p111, %p112
      %p114 = scmp.ne.s32.totalorder %s106, %s109
      %p115 = scmp.eq.s32.totalorder %s9, 0
      %p116 = por %p114, %p115
      %p117 = scmp.ne.s32.totalorder %s106, %s109
      %p118 = scmp.eq.s32.totalorder %s14, 11
      %p119 = por %p117, %p118
      %p120 = scmp.ne.s32.totalorder %s109, %s110
      %p121 = scmp.eq.s32.totalorder %s14, 0
      %p122 = por %p120, %p121
      %p123 = scmp.ne.s32.totalorder %s109, %s110
      %p124 = scmp.eq.s32.totalorder %s15, 11
      %p125 = por %p123, %p124
      %p127 = scmp.ne.s32.totalorder %s110, %s126
      %p128 = scmp.eq.s32.totalorder %s15, 0
      %p129 = por %p127, %p128
      %p130 = scmp.le.s32.totalorder 1, %s9
      %p131 = scmp.lt.s32.totalorder %s9, 13
      %p132 = pnand %p130, %p131
      %p133 = pneg %p132
      // Predicated region
      $region9: #{genenet_forward.61} parent=5 // pred_check
        _
      $region10: #{genenet_forward.61} parent=5 // pred_check_branch
        %135 = sbr.rel (%p132) target = $region12
      $region11: #{genenet_forward.61} parent=5 // pred_region
        %s136 = ssub.s32 %s9, 1
        // Predicated region
        $region13: #{genenet_forward.61} parent=11 // pred_check
          %p137 = pneg %p96
        $region14: #{genenet_forward.61} parent=11 // pred_check_branch
          %139 = sbr.rel (%p137) target = $region16
        $region15: #{genenet_forward.61} parent=11 // pred_region
          _
        $region16: #{genenet_forward.61} parent=11 // pred_fallthru
          _
      $region12: #{genenet_forward.61} parent=5 // pred_fallthru
        _
      %p140 = scmp.lt.s32.totalorder %s9, 12
      // Predicated region
      $region17: #{genenet_forward.61} parent=5 // pred_check
        %p141 = pneg %p140
      $region18: #{genenet_forward.61} parent=5 // pred_check_branch
        %143 = sbr.rel (%p141) target = $region20
      $region19: #{genenet_forward.61} parent=5 // pred_region
        // Predicated region
        $region21: #{genenet_forward.61} parent=19 // pred_check
          %p144 = pneg %p43
        $region22: #{genenet_forward.61} parent=19 // pred_check_branch
          %146 = sbr.rel (%p144) target = $region24
        $region23: #{genenet_forward.61} parent=19 // pred_region
          %s147 = sand.u32 %s33, 1
          %s148 = sand.u32 %s33, 1
          %s149 = smul.addr %s148, 512
          %s150 = scalar_lea.vmem [#allocation3], %s149
          %s151 = smul.u32 32, %s16
          %s152 = smul.u32 4, %s17
          %s153 = smul.addr %s151, 24
          %s154 = sadd.s32 %s152, %s153
          %s155 = smul.addr %s154, 4
          %s156 = scalar_lea.vmem %s0, %s155
          // Predicated region
          $region25: #{genenet_forward.61} parent=23 // pred_check
            _
          $region26: #{genenet_forward.61} parent=23 // pred_check_branch
            %158 = sbr.rel (0) target = $region28
          $region27: #{genenet_forward.61} parent=23 // pred_region
            // Predicated region
            $region29: #{genenet_forward.61} parent=27 // pred_check
              _
            $region30: #{genenet_forward.61} parent=27 // pred_check_branch
              %160 = sbr.rel (0) target = $region32
            $region31: #{genenet_forward.61} parent=27 // pred_region
              loop: start=0, step=1, limit=1
              $region33: #{genenet_forward.61} parent=31 // loop_pre_header
                _
              $region34: #{genenet_forward.61} parent=31 // loop_header
                %s162 = sphi 0, %s166
                %p163 = scmp.ge.s32.totalorder %s162, 1
                %s167 = sphi %s156, %s156
                %s168 = sphi %s150, %s150
              $region35: #{genenet_forward.61} parent=31 // loop_header_branch
                %165 = sbr.rel (%p163) target = $region39
              $region36: #{genenet_forward.61} parent=31 // loop_body
                %v169 = vld [vmem:[%s167] sm:$0xff]
                %170 = vst [vmem:[%s168] sm:$0xff] %v169
                %v171 = vld [vmem:[%s167 + $0x8] sm:$0xff]
                %172 = vst [vmem:[%s168 + $0x8] sm:$0xff] %v171
                %v173 = vld [vmem:[%s167 + $0x60] sm:$0xff]
                %174 = vst [vmem:[%s168 + $0x10] sm:$0xff] %v173
                %v175 = vld [vmem:[%s167 + $0x68] sm:$0xff]
                %176 = vst [vmem:[%s168 + $0x18] sm:$0xff] %v175
                %v177 = vld [vmem:[%s167 + $0xc0] sm:$0xff]
                %178 = vst [vmem:[%s168 + $0x20] sm:$0xff] %v177
                %v179 = vld [vmem:[%s167 + $0xc8] sm:$0xff]
                %180 = vst [vmem:[%s168 + $0x28] sm:$0xff] %v179
                %v181 = vld [vmem:[%s167 + $0x120] sm:$0xff]
                %182 = vst [vmem:[%s168 + $0x30] sm:$0xff] %v181
                %v183 = vld [vmem:[%s167 + $0x128] sm:$0xff]
                %184 = vst [vmem:[%s168 + $0x38] sm:$0xff] %v183
                %v185 = vld [vmem:[%s167 + $0x180] sm:$0xff]
                %186 = vst [vmem:[%s168 + $0x40] sm:$0xff] %v185
                %v187 = vld [vmem:[%s167 + $0x188] sm:$0xff]
                %188 = vst [vmem:[%s168 + $0x48] sm:$0xff] %v187
                %v189 = vld [vmem:[%s167 + $0x1e0] sm:$0xff]
                %190 = vst [vmem:[%s168 + $0x50] sm:$0xff] %v189
                %v191 = vld [vmem:[%s167 + $0x1e8] sm:$0xff]
                %192 = vst [vmem:[%s168 + $0x58] sm:$0xff] %v191
                %v193 = vld [vmem:[%s167 + $0x240] sm:$0xff]
                %194 = vst [vmem:[%s168 + $0x60] sm:$0xff] %v193
                %v195 = vld [vmem:[%s167 + $0x248] sm:$0xff]
                %196 = vst [vmem:[%s168 + $0x68] sm:$0xff] %v195
                %v197 = vld [vmem:[%s167 + $0x2a0] sm:$0xff]
                %198 = vst [vmem:[%s168 + $0x70] sm:$0xff] %v197
                %v199 = vld [vmem:[%s167 + $0x2a8] sm:$0xff]
                %200 = vst [vmem:[%s168 + $0x78] sm:$0xff] %v199
                %v201 = vld [vmem:[%s167 + $0x300] sm:$0xff]
                %202 = vst [vmem:[%s168 + $0x80] sm:$0xff] %v201
                %v203 = vld [vmem:[%s167 + $0x308] sm:$0xff]
                %204 = vst [vmem:[%s168 + $0x88] sm:$0xff] %v203
                %v205 = vld [vmem:[%s167 + $0x360] sm:$0xff]
                %206 = vst [vmem:[%s168 + $0x90] sm:$0xff] %v205
                %v207 = vld [vmem:[%s167 + $0x368] sm:$0xff]
                %208 = vst [vmem:[%s168 + $0x98] sm:$0xff] %v207
                %v209 = vld [vmem:[%s167 + $0x3c0] sm:$0xff]
                %210 = vst [vmem:[%s168 + $0xa0] sm:$0xff] %v209
                %v211 = vld [vmem:[%s167 + $0x3c8] sm:$0xff]
                %212 = vst [vmem:[%s168 + $0xa8] sm:$0xff] %v211
                %v213 = vld [vmem:[%s167 + $0x420] sm:$0xff]
                %214 = vst [vmem:[%s168 + $0xb0] sm:$0xff] %v213
                %v215 = vld [vmem:[%s167 + $0x428] sm:$0xff]
                %216 = vst [vmem:[%s168 + $0xb8] sm:$0xff] %v215
                %v217 = vld [vmem:[%s167 + $0x480] sm:$0xff]
                %218 = vst [vmem:[%s168 + $0xc0] sm:$0xff] %v217
                %v219 = vld [vmem:[%s167 + $0x488] sm:$0xff]
                %220 = vst [vmem:[%s168 + $0xc8] sm:$0xff] %v219
                %v221 = vld [vmem:[%s167 + $0x4e0] sm:$0xff]
                %222 = vst [vmem:[%s168 + $0xd0] sm:$0xff] %v221
                %v223 = vld [vmem:[%s167 + $0x4e8] sm:$0xff]
                %224 = vst [vmem:[%s168 + $0xd8] sm:$0xff] %v223
                %v225 = vld [vmem:[%s167 + $0x540] sm:$0xff]
                %226 = vst [vmem:[%s168 + $0xe0] sm:$0xff] %v225
                %v227 = vld [vmem:[%s167 + $0x548] sm:$0xff]
                %228 = vst [vmem:[%s168 + $0xe8] sm:$0xff] %v227
                %v229 = vld [vmem:[%s167 + $0x5a0] sm:$0xff]
                %230 = vst [vmem:[%s168 + $0xf0] sm:$0xff] %v229
                %v231 = vld [vmem:[%s167 + $0x5a8] sm:$0xff]
                %232 = vst [vmem:[%s168 + $0xf8] sm:$0xff] %v231
                %v233 = vld [vmem:[%s167 + $0x600] sm:$0xff]
                %234 = vst [vmem:[%s168 + $0x100] sm:$0xff] %v233
                %v235 = vld [vmem:[%s167 + $0x608] sm:$0xff]
                %236 = vst [vmem:[%s168 + $0x108] sm:$0xff] %v235
                %v237 = vld [vmem:[%s167 + $0x660] sm:$0xff]
                %238 = vst [vmem:[%s168 + $0x110] sm:$0xff] %v237
                %v239 = vld [vmem:[%s167 + $0x668] sm:$0xff]
                %240 = vst [vmem:[%s168 + $0x118] sm:$0xff] %v239
                %v241 = vld [vmem:[%s167 + $0x6c0] sm:$0xff]
                %242 = vst [vmem:[%s168 + $0x120] sm:$0xff] %v241
                %v243 = vld [vmem:[%s167 + $0x6c8] sm:$0xff]
                %244 = vst [vmem:[%s168 + $0x128] sm:$0xff] %v243
                %v245 = vld [vmem:[%s167 + $0x720] sm:$0xff]
                %246 = vst [vmem:[%s168 + $0x130] sm:$0xff] %v245
                %v247 = vld [vmem:[%s167 + $0x728] sm:$0xff]
                %248 = vst [vmem:[%s168 + $0x138] sm:$0xff] %v247
                %v249 = vld [vmem:[%s167 + $0x780] sm:$0xff]
                %250 = vst [vmem:[%s168 + $0x140] sm:$0xff] %v249
                %v251 = vld [vmem:[%s167 + $0x788] sm:$0xff]
                %252 = vst [vmem:[%s168 + $0x148] sm:$0xff] %v251
                %v253 = vld [vmem:[%s167 + $0x7e0] sm:$0xff]
                %254 = vst [vmem:[%s168 + $0x150] sm:$0xff] %v253
                %v255 = vld [vmem:[%s167 + $0x7e8] sm:$0xff]
                %256 = vst [vmem:[%s168 + $0x158] sm:$0xff] %v255
                %v257 = vld [vmem:[%s167 + $0x840] sm:$0xff]
                %258 = vst [vmem:[%s168 + $0x160] sm:$0xff] %v257
                %v259 = vld [vmem:[%s167 + $0x848] sm:$0xff]
                %260 = vst [vmem:[%s168 + $0x168] sm:$0xff] %v259
                %v261 = vld [vmem:[%s167 + $0x8a0] sm:$0xff]
                %262 = vst [vmem:[%s168 + $0x170] sm:$0xff] %v261
                %v263 = vld [vmem:[%s167 + $0x8a8] sm:$0xff]
                %264 = vst [vmem:[%s168 + $0x178] sm:$0xff] %v263
                %v265 = vld [vmem:[%s167 + $0x900] sm:$0xff]
                %266 = vst [vmem:[%s168 + $0x180] sm:$0xff] %v265
                %v267 = vld [vmem:[%s167 + $0x908] sm:$0xff]
                %268 = vst [vmem:[%s168 + $0x188] sm:$0xff] %v267
                %v269 = vld [vmem:[%s167 + $0x960] sm:$0xff]
                %270 = vst [vmem:[%s168 + $0x190] sm:$0xff] %v269
                %v271 = vld [vmem:[%s167 + $0x968] sm:$0xff]
                %272 = vst [vmem:[%s168 + $0x198] sm:$0xff] %v271
                %v273 = vld [vmem:[%s167 + $0x9c0] sm:$0xff]
                %274 = vst [vmem:[%s168 + $0x1a0] sm:$0xff] %v273
                %v275 = vld [vmem:[%s167 + $0x9c8] sm:$0xff]
                %276 = vst [vmem:[%s168 + $0x1a8] sm:$0xff] %v275
                %v277 = vld [vmem:[%s167 + $0xa20] sm:$0xff]
                %278 = vst [vmem:[%s168 + $0x1b0] sm:$0xff] %v277
                %v279 = vld [vmem:[%s167 + $0xa28] sm:$0xff]
                %280 = vst [vmem:[%s168 + $0x1b8] sm:$0xff] %v279
                %v281 = vld [vmem:[%s167 + $0xa80] sm:$0xff]
                %282 = vst [vmem:[%s168 + $0x1c0] sm:$0xff] %v281
                %v283 = vld [vmem:[%s167 + $0xa88] sm:$0xff]
                %284 = vst [vmem:[%s168 + $0x1c8] sm:$0xff] %v283
                %v285 = vld [vmem:[%s167 + $0xae0] sm:$0xff]
                %286 = vst [vmem:[%s168 + $0x1d0] sm:$0xff] %v285
                %v287 = vld [vmem:[%s167 + $0xae8] sm:$0xff]
                %288 = vst [vmem:[%s168 + $0x1d8] sm:$0xff] %v287
                %v289 = vld [vmem:[%s167 + $0xb40] sm:$0xff]
                %290 = vst [vmem:[%s168 + $0x1e0] sm:$0xff] %v289
                %v291 = vld [vmem:[%s167 + $0xb48] sm:$0xff]
                %292 = vst [vmem:[%s168 + $0x1e8] sm:$0xff] %v291
                %v293 = vld [vmem:[%s167 + $0xba0] sm:$0xff]
                %294 = vst [vmem:[%s168 + $0x1f0] sm:$0xff] %v293
                %v295 = vld [vmem:[%s167 + $0xba8] sm:$0xff]
                %296 = vst [vmem:[%s168 + $0x1f8] sm:$0xff] %v295
              $region37: #{genenet_forward.61} parent=31 // loop_footer
                %s166 = sadd.s32 1, %s162
              $region38: #{genenet_forward.61} parent=31 // loop_footer_branch
                %161 = sbr.rel target = $region34
              $region39: #{genenet_forward.61} parent=31 // loop_exit
                _
            $region32: #{genenet_forward.61} parent=27 // pred_fallthru
              _
            // Predicated region
            $region40: #{genenet_forward.61} parent=27 // pred_check
              _
            $region41: #{genenet_forward.61} parent=27 // pred_check_branch
              %298 = sbr.rel target = $region43
            $region42: #{genenet_forward.61} parent=27 // pred_region
              _
            $region43: #{genenet_forward.61} parent=27 // pred_fallthru
              _
          $region28: #{genenet_forward.61} parent=23 // pred_fallthru
            _
          %299 = vnop
        $region24: #{genenet_forward.61} parent=19 // pred_fallthru
          _
        // Predicated region
        $region44: #{genenet_forward.61} parent=19 // pred_check
          %p300 = pneg %p69
        $region45: #{genenet_forward.61} parent=19 // pred_check_branch
          %302 = sbr.rel (%p300) target = $region47
        $region46: #{genenet_forward.61} parent=19 // pred_region
          %s303 = smul.u32 64, %s17
          %p304 = scmp.lt.s32.totalorder %s303, 383
          %s305 = scalar_select %p304, %s303, 383
          %s306 = smul.addr %s305, 4
          %s307 = scalar_lea.vmem %s1, %s306
          %s308 = smul.u32 64, %s17
        $region47: #{genenet_forward.61} parent=19 // pred_fallthru
          _
      $region20: #{genenet_forward.61} parent=5 // pred_fallthru
        _
      %p309 = scmp.le.s32.totalorder 1, %s9
      %p310 = scmp.lt.s32.totalorder %s9, 13
      %p311 = pnand %p309, %p310
      %p312 = pneg %p311
      // Predicated region
      $region48: #{genenet_forward.61} parent=5 // pred_check
        _
      $region49: #{genenet_forward.61} parent=5 // pred_check_branch
        %314 = sbr.rel (%p311) target = $region51
      $region50: #{genenet_forward.61} parent=5 // pred_region
        %s315 = ssub.s32 %s9, 1
        %s316 = sand.u32 %s36, 1
        %s317 = sand.u32 %s36, 1
        %s318 = smul.addr %s317, 512
        %s319 = scalar_lea.vmem [#allocation3], %s318
        // Predicated region
        $region52: #{genenet_forward.61} parent=50 // pred_check
          %p320 = pneg %p49
        $region53: #{genenet_forward.61} parent=50 // pred_check_branch
          %322 = sbr.rel (%p320) target = $region55
        $region54: #{genenet_forward.61} parent=50 // pred_region
          _
        $region55: #{genenet_forward.61} parent=50 // pred_fallthru
          _
        %s323 = sand.u32 %s36, 1
        %s324 = sand.u32 %s36, 1
        %s325 = smul.addr %s324, 512
        %s326 = scalar_lea.vmem [#allocation3], %s325
        %p327 = pneg %p49
        %p328 = pneg %p46
        %s329 = smul.u32 64, %s19
        %p330 = scmp.lt.s32.totalorder %s329, 383
        %s331 = scalar_select %p330, %s329, 383
        %s332 = smul.addr %s331, 4
        %s333 = scalar_lea.vmem %s1, %s332
        %p334 = pneg %p75
        %p335 = pneg %p72
        %p336 = pneg %p96
        %p337 = pneg %p93
        %p338 = pneg %p122
        %p339 = pneg %p119
        %s340 = smul.u32 32, %s18
        %p341 = scmp.lt.s32.totalorder %s340, 63
        %s342 = scalar_select %p341, %s340, 63
        %s343 = smul.addr %s342, 8
        %s344 = scalar_lea.vmem %s3, %s343
        %s345 = smul.u32 32, %s18
        %s346 = smul.u32 4, %s19
        %s347 = smul.u32 64, %s19
        %p348 = scmp.lt.s32.totalorder %s347, 383
        %s349 = scalar_select %p348, %s347, 383
        %s350 = smul.addr %s349, 4
        %s351 = scalar_lea.vmem %s1, %s350
        %s352 = smul.u32 64, %s19
        %s353 = smul.u32 32, %s18
        %p354 = scmp.lt.s32.totalorder %s353, 63
        %s355 = scalar_select %p354, %s353, 63
        %s356 = smul.addr %s355, 8
        %s357 = scalar_lea.vmem %s3, %s356
        %s358 = smul.u32 32, %s18
        %p360 = scmp.eq.s32.totalorder %s19, 0
        // Predicated region
        $region56: #{genenet_forward.61} parent=50 // pred_check
          %p361 = pneg %p360
        $region57: #{genenet_forward.61} parent=50 // pred_check_branch
          %363 = sbr.rel (%p361) target = $region59
        $region58: #{genenet_forward.61} parent=50 // pred_region
          %364 = vst [vmem:[#allocation2] sm:$0xff] 0.0
          %365 = vst [vmem:[#allocation2 + $0x8] sm:$0xff] 0.0
          %366 = vst [vmem:[#allocation2 + $0x10] sm:$0xff] 0.0
          %367 = vst [vmem:[#allocation2 + $0x18] sm:$0xff] 0.0
          %368 = vst [vmem:[#allocation2 + $0x20] sm:$0xff] 0.0
          %369 = vst [vmem:[#allocation2 + $0x28] sm:$0xff] 0.0
          %370 = vst [vmem:[#allocation2 + $0x30] sm:$0xff] 0.0
          %371 = vst [vmem:[#allocation2 + $0x38] sm:$0xff] 0.0
          %372 = vst [vmem:[#allocation2 + $0x40] sm:$0xff] 0.0
          %373 = vst [vmem:[#allocation2 + $0x48] sm:$0xff] 0.0
          %374 = vst [vmem:[#allocation2 + $0x50] sm:$0xff] 0.0
          %375 = vst [vmem:[#allocation2 + $0x58] sm:$0xff] 0.0
          %376 = vst [vmem:[#allocation2 + $0x60] sm:$0xff] 0.0
          %377 = vst [vmem:[#allocation2 + $0x68] sm:$0xff] 0.0
          %378 = vst [vmem:[#allocation2 + $0x70] sm:$0xff] 0.0
          %379 = vst [vmem:[#allocation2 + $0x78] sm:$0xff] 0.0
          %380 = vst [vmem:[#allocation2 + $0x80] sm:$0xff] 0.0
          %381 = vst [vmem:[#allocation2 + $0x88] sm:$0xff] 0.0
          %382 = vst [vmem:[#allocation2 + $0x90] sm:$0xff] 0.0
          %383 = vst [vmem:[#allocation2 + $0x98] sm:$0xff] 0.0
          %384 = vst [vmem:[#allocation2 + $0xa0] sm:$0xff] 0.0
          %385 = vst [vmem:[#allocation2 + $0xa8] sm:$0xff] 0.0
          %386 = vst [vmem:[#allocation2 + $0xb0] sm:$0xff] 0.0
          %387 = vst [vmem:[#allocation2 + $0xb8] sm:$0xff] 0.0
          %388 = vst [vmem:[#allocation2 + $0xc0] sm:$0xff] 0.0
          %389 = vst [vmem:[#allocation2 + $0xc8] sm:$0xff] 0.0
          %390 = vst [vmem:[#allocation2 + $0xd0] sm:$0xff] 0.0
          %391 = vst [vmem:[#allocation2 + $0xd8] sm:$0xff] 0.0
          %392 = vst [vmem:[#allocation2 + $0xe0] sm:$0xff] 0.0
          %393 = vst [vmem:[#allocation2 + $0xe8] sm:$0xff] 0.0
          %394 = vst [vmem:[#allocation2 + $0xf0] sm:$0xff] 0.0
          %395 = vst [vmem:[#allocation2 + $0xf8] sm:$0xff] 0.0
        $region59: #{genenet_forward.61} parent=50 // pred_fallthru
          _
        %v396 = vld [vmem:[#allocation2] sm:$0xff]
        %v397 = vld [vmem:[#allocation2 + $0x8] sm:$0xff]
        %v398 = vld [vmem:[#allocation2 + $0x10] sm:$0xff]
        %v399 = vld [vmem:[#allocation2 + $0x18] sm:$0xff]
        %v400 = vld [vmem:[#allocation2 + $0x20] sm:$0xff]
        %v401 = vld [vmem:[#allocation2 + $0x28] sm:$0xff]
        %v402 = vld [vmem:[#allocation2 + $0x30] sm:$0xff]
        %v403 = vld [vmem:[#allocation2 + $0x38] sm:$0xff]
        %v404 = vld [vmem:[#allocation2 + $0x40] sm:$0xff]
        %v405 = vld [vmem:[#allocation2 + $0x48] sm:$0xff]
        %v406 = vld [vmem:[#allocation2 + $0x50] sm:$0xff]
        %v407 = vld [vmem:[#allocation2 + $0x58] sm:$0xff]
        %v408 = vld [vmem:[#allocation2 + $0x60] sm:$0xff]
        %v409 = vld [vmem:[#allocation2 + $0x68] sm:$0xff]
        %v410 = vld [vmem:[#allocation2 + $0x70] sm:$0xff]
        %v411 = vld [vmem:[#allocation2 + $0x78] sm:$0xff]
        %v412 = vld [vmem:[#allocation2 + $0x80] sm:$0xff]
        %v413 = vld [vmem:[#allocation2 + $0x88] sm:$0xff]
        %v414 = vld [vmem:[#allocation2 + $0x90] sm:$0xff]
        %v415 = vld [vmem:[#allocation2 + $0x98] sm:$0xff]
        %v416 = vld [vmem:[#allocation2 + $0xa0] sm:$0xff]
        %v417 = vld [vmem:[#allocation2 + $0xa8] sm:$0xff]
        %v418 = vld [vmem:[#allocation2 + $0xb0] sm:$0xff]
        %v419 = vld [vmem:[#allocation2 + $0xb8] sm:$0xff]
        %v420 = vld [vmem:[#allocation2 + $0xc0] sm:$0xff]
        %v421 = vld [vmem:[#allocation2 + $0xc8] sm:$0xff]
        %v422 = vld [vmem:[#allocation2 + $0xd0] sm:$0xff]
        %v423 = vld [vmem:[#allocation2 + $0xd8] sm:$0xff]
        %v424 = vld [vmem:[#allocation2 + $0xe0] sm:$0xff]
        %v425 = vld [vmem:[#allocation2 + $0xe8] sm:$0xff]
        %v426 = vld [vmem:[#allocation2 + $0xf0] sm:$0xff]
        %v427 = vld [vmem:[#allocation2 + $0xf8] sm:$0xff]
        %v428 = vld [vmem:[%s319] sm:$0xff]
        %v429 = vld [vmem:[%s319 + $0x8] sm:$0xff]
        %v430 = vld [vmem:[%s319 + $0x10] sm:$0xff]
        %v431 = vld [vmem:[%s319 + $0x18] sm:$0xff]
        %v432 = vld [vmem:[%s319 + $0x20] sm:$0xff]
        %v433 = vld [vmem:[%s319 + $0x28] sm:$0xff]
        %v434 = vld [vmem:[%s319 + $0x30] sm:$0xff]
        %v435 = vld [vmem:[%s319 + $0x38] sm:$0xff]
        %v436 = vld [vmem:[%s319 + $0x40] sm:$0xff]
        %v437 = vld [vmem:[%s319 + $0x48] sm:$0xff]
        %v438 = vld [vmem:[%s319 + $0x50] sm:$0xff]
        %v439 = vld [vmem:[%s319 + $0x58] sm:$0xff]
        %v440 = vld [vmem:[%s319 + $0x60] sm:$0xff]
        %v441 = vld [vmem:[%s319 + $0x68] sm:$0xff]
        %v442 = vld [vmem:[%s319 + $0x70] sm:$0xff]
        %v443 = vld [vmem:[%s319 + $0x78] sm:$0xff]
        %v444 = vld [vmem:[%s319 + $0x80] sm:$0xff]
        %v445 = vld [vmem:[%s319 + $0x88] sm:$0xff]
        %v446 = vld [vmem:[%s319 + $0x90] sm:$0xff]
        %v447 = vld [vmem:[%s319 + $0x98] sm:$0xff]
        %v448 = vld [vmem:[%s319 + $0xa0] sm:$0xff]
        %v449 = vld [vmem:[%s319 + $0xa8] sm:$0xff]
        %v450 = vld [vmem:[%s319 + $0xb0] sm:$0xff]
        %v451 = vld [vmem:[%s319 + $0xb8] sm:$0xff]
        %v452 = vld [vmem:[%s319 + $0xc0] sm:$0xff]
        %v453 = vld [vmem:[%s319 + $0xc8] sm:$0xff]
        %v454 = vld [vmem:[%s319 + $0xd0] sm:$0xff]
        %v455 = vld [vmem:[%s319 + $0xd8] sm:$0xff]
        %v456 = vld [vmem:[%s319 + $0xe0] sm:$0xff]
        %v457 = vld [vmem:[%s319 + $0xe8] sm:$0xff]
        %v458 = vld [vmem:[%s319 + $0xf0] sm:$0xff]
        %v459 = vld [vmem:[%s319 + $0xf8] sm:$0xff]
        %v460 = vld [vmem:[%s319 + $0x100] sm:$0xff]
        %v461 = vld [vmem:[%s319 + $0x108] sm:$0xff]
        %v462 = vld [vmem:[%s319 + $0x110] sm:$0xff]
        %v463 = vld [vmem:[%s319 + $0x118] sm:$0xff]
        %v464 = vld [vmem:[%s319 + $0x120] sm:$0xff]
        %v465 = vld [vmem:[%s319 + $0x128] sm:$0xff]
        %v466 = vld [vmem:[%s319 + $0x130] sm:$0xff]
        %v467 = vld [vmem:[%s319 + $0x138] sm:$0xff]
        %v468 = vld [vmem:[%s319 + $0x140] sm:$0xff]
        %v469 = vld [vmem:[%s319 + $0x148] sm:$0xff]
        %v470 = vld [vmem:[%s319 + $0x150] sm:$0xff]
        %v471 = vld [vmem:[%s319 + $0x158] sm:$0xff]
        %v472 = vld [vmem:[%s319 + $0x160] sm:$0xff]
        %v473 = vld [vmem:[%s319 + $0x168] sm:$0xff]
        %v474 = vld [vmem:[%s319 + $0x170] sm:$0xff]
        %v475 = vld [vmem:[%s319 + $0x178] sm:$0xff]
        %v476 = vld [vmem:[%s319 + $0x180] sm:$0xff]
        %v477 = vld [vmem:[%s319 + $0x188] sm:$0xff]
        %v478 = vld [vmem:[%s319 + $0x190] sm:$0xff]
        %v479 = vld [vmem:[%s319 + $0x198] sm:$0xff]
        %v480 = vld [vmem:[%s319 + $0x1a0] sm:$0xff]
        %v481 = vld [vmem:[%s319 + $0x1a8] sm:$0xff]
        %v482 = vld [vmem:[%s319 + $0x1b0] sm:$0xff]
        %v483 = vld [vmem:[%s319 + $0x1b8] sm:$0xff]
        %v484 = vld [vmem:[%s319 + $0x1c0] sm:$0xff]
        %v485 = vld [vmem:[%s319 + $0x1c8] sm:$0xff]
        %v486 = vld [vmem:[%s319 + $0x1d0] sm:$0xff]
        %v487 = vld [vmem:[%s319 + $0x1d8] sm:$0xff]
        %v488 = vld [vmem:[%s319 + $0x1e0] sm:$0xff]
        %v489 = vld [vmem:[%s319 + $0x1e8] sm:$0xff]
        %v490 = vld [vmem:[%s319 + $0x1f0] sm:$0xff]
        %v491 = vld [vmem:[%s319 + $0x1f8] sm:$0xff]
        %v492 = vld [vmem:[%s351] sm:$0xf]
        %v493 = vld [vmem:[%s351 + $0x4] sm:$0xf]
        %v494 = vld [vmem:[%s351 + $0x8] sm:$0xf]
        %v495 = vld [vmem:[%s351 + $0xc] sm:$0xf]
        %v496 = vld [vmem:[%s351 + $0x10] sm:$0xf]
        %v497 = vld [vmem:[%s351 + $0x14] sm:$0xf]
        %v498 = vld [vmem:[%s351 + $0x18] sm:$0xf]
        %v499 = vld [vmem:[%s351 + $0x1c] sm:$0xf]
        %v500 = vld [vmem:[%s351 + $0x20] sm:$0xf]
        %v501 = vld [vmem:[%s351 + $0x24] sm:$0xf]
        %v502 = vld [vmem:[%s351 + $0x28] sm:$0xf]
        %v503 = vld [vmem:[%s351 + $0x2c] sm:$0xf]
        %v504 = vld [vmem:[%s351 + $0x30] sm:$0xf]
        %v505 = vld [vmem:[%s351 + $0x34] sm:$0xf]
        %v506 = vld [vmem:[%s351 + $0x38] sm:$0xf]
        %v507 = vld [vmem:[%s351 + $0x3c] sm:$0xf]
        %v508 = vld [vmem:[%s351 + $0x40] sm:$0xf]
        %v509 = vld [vmem:[%s351 + $0x44] sm:$0xf]
        %v510 = vld [vmem:[%s351 + $0x48] sm:$0xf]
        %v511 = vld [vmem:[%s351 + $0x4c] sm:$0xf]
        %v512 = vld [vmem:[%s351 + $0x50] sm:$0xf]
        %v513 = vld [vmem:[%s351 + $0x54] sm:$0xf]
        %v514 = vld [vmem:[%s351 + $0x58] sm:$0xf]
        %v515 = vld [vmem:[%s351 + $0x5c] sm:$0xf]
        %v516 = vld [vmem:[%s351 + $0x60] sm:$0xf]
        %v517 = vld [vmem:[%s351 + $0x64] sm:$0xf]
        %v518 = vld [vmem:[%s351 + $0x68] sm:$0xf]
        %v519 = vld [vmem:[%s351 + $0x6c] sm:$0xf]
        %v520 = vld [vmem:[%s351 + $0x70] sm:$0xf]
        %v521 = vld [vmem:[%s351 + $0x74] sm:$0xf]
        %v522 = vld [vmem:[%s351 + $0x78] sm:$0xf]
        %v523 = vld [vmem:[%s351 + $0x7c] sm:$0xf]
        %v524 = vld [vmem:[%s351 + $0x80] sm:$0xf]
        %v525 = vld [vmem:[%s351 + $0x84] sm:$0xf]
        %v526 = vld [vmem:[%s351 + $0x88] sm:$0xf]
        %v527 = vld [vmem:[%s351 + $0x8c] sm:$0xf]
        %v528 = vld [vmem:[%s351 + $0x90] sm:$0xf]
        %v529 = vld [vmem:[%s351 + $0x94] sm:$0xf]
        %v530 = vld [vmem:[%s351 + $0x98] sm:$0xf]
        %v531 = vld [vmem:[%s351 + $0x9c] sm:$0xf]
        %v532 = vld [vmem:[%s351 + $0xa0] sm:$0xf]
        %v533 = vld [vmem:[%s351 + $0xa4] sm:$0xf]
        %v534 = vld [vmem:[%s351 + $0xa8] sm:$0xf]
        %v535 = vld [vmem:[%s351 + $0xac] sm:$0xf]
        %v536 = vld [vmem:[%s351 + $0xb0] sm:$0xf]
        %v537 = vld [vmem:[%s351 + $0xb4] sm:$0xf]
        %v538 = vld [vmem:[%s351 + $0xb8] sm:$0xf]
        %v539 = vld [vmem:[%s351 + $0xbc] sm:$0xf]
        %v540 = vld [vmem:[%s351 + $0xc0] sm:$0xf]
        %v541 = vld [vmem:[%s351 + $0xc4] sm:$0xf]
        %v542 = vld [vmem:[%s351 + $0xc8] sm:$0xf]
        %v543 = vld [vmem:[%s351 + $0xcc] sm:$0xf]
        %v544 = vld [vmem:[%s351 + $0xd0] sm:$0xf]
        %v545 = vld [vmem:[%s351 + $0xd4] sm:$0xf]
        %v546 = vld [vmem:[%s351 + $0xd8] sm:$0xf]
        %v547 = vld [vmem:[%s351 + $0xdc] sm:$0xf]
        %v548 = vld [vmem:[%s351 + $0xe0] sm:$0xf]
        %v549 = vld [vmem:[%s351 + $0xe4] sm:$0xf]
        %v550 = vld [vmem:[%s351 + $0xe8] sm:$0xf]
        %v551 = vld [vmem:[%s351 + $0xec] sm:$0xf]
        %v552 = vld [vmem:[%s351 + $0xf0] sm:$0xf]
        %v553 = vld [vmem:[%s351 + $0xf4] sm:$0xf]
        %v554 = vld [vmem:[%s351 + $0xf8] sm:$0xf]
        %v555 = vld [vmem:[%s351 + $0xfc] sm:$0xf]
        %v620 = vunpack.c.l.b16 %v428
        %v621 = vunpack.c.h.b16 %v428
        %v622 = vunpack.c.l.b16 %v429
        %v623 = vunpack.c.h.b16 %v429
        %v624 = vunpack.c.l.b16 %v430
        %v625 = vunpack.c.h.b16 %v430
        %v626 = vunpack.c.l.b16 %v431
        %v627 = vunpack.c.h.b16 %v431
        %v628 = vunpack.c.l.b16 %v432
        %v629 = vunpack.c.h.b16 %v432
        %v630 = vunpack.c.l.b16 %v433
        %v631 = vunpack.c.h.b16 %v433
        %v632 = vunpack.c.l.b16 %v434
        %v633 = vunpack.c.h.b16 %v434
        %v634 = vunpack.c.l.b16 %v435
        %v635 = vunpack.c.h.b16 %v435
        %v636 = vunpack.c.l.b16 %v436
        %v637 = vunpack.c.h.b16 %v436
        %v638 = vunpack.c.l.b16 %v437
        %v639 = vunpack.c.h.b16 %v437
        %v640 = vunpack.c.l.b16 %v438
        %v641 = vunpack.c.h.b16 %v438
        %v642 = vunpack.c.l.b16 %v439
        %v643 = vunpack.c.h.b16 %v439
        %v644 = vunpack.c.l.b16 %v440
        %v645 = vunpack.c.h.b16 %v440
        %v646 = vunpack.c.l.b16 %v441
        %v647 = vunpack.c.h.b16 %v441
        %v648 = vunpack.c.l.b16 %v442
        %v649 = vunpack.c.h.b16 %v442
        %v650 = vunpack.c.l.b16 %v443
        %v651 = vunpack.c.h.b16 %v443
        %v652 = vunpack.c.l.b16 %v444
        %v653 = vunpack.c.h.b16 %v444
        %v654 = vunpack.c.l.b16 %v445
        %v655 = vunpack.c.h.b16 %v445
        %v656 = vunpack.c.l.b16 %v446
        %v657 = vunpack.c.h.b16 %v446
        %v658 = vunpack.c.l.b16 %v447
        %v659 = vunpack.c.h.b16 %v447
        %v660 = vunpack.c.l.b16 %v448
        %v661 = vunpack.c.h.b16 %v448
        %v662 = vunpack.c.l.b16 %v449
        %v663 = vunpack.c.h.b16 %v449
        %v664 = vunpack.c.l.b16 %v450
        %v665 = vunpack.c.h.b16 %v450
        %v666 = vunpack.c.l.b16 %v451
        %v667 = vunpack.c.h.b16 %v451
        %v668 = vunpack.c.l.b16 %v452
        %v669 = vunpack.c.h.b16 %v452
        %v670 = vunpack.c.l.b16 %v453
        %v671 = vunpack.c.h.b16 %v453
        %v672 = vunpack.c.l.b16 %v454
        %v673 = vunpack.c.h.b16 %v454
        %v674 = vunpack.c.l.b16 %v455
        %v675 = vunpack.c.h.b16 %v455
        %v676 = vunpack.c.l.b16 %v456
        %v677 = vunpack.c.h.b16 %v456
        %v678 = vunpack.c.l.b16 %v457
        %v679 = vunpack.c.h.b16 %v457
        %v680 = vunpack.c.l.b16 %v458
        %v681 = vunpack.c.h.b16 %v458
        %v682 = vunpack.c.l.b16 %v459
        %v683 = vunpack.c.h.b16 %v459
        %v684 = vunpack.c.l.b16 %v460
        %v685 = vunpack.c.h.b16 %v460
        %v686 = vunpack.c.l.b16 %v461
        %v687 = vunpack.c.h.b16 %v461
        %v688 = vunpack.c.l.b16 %v462
        %v689 = vunpack.c.h.b16 %v462
        %v690 = vunpack.c.l.b16 %v463
        %v691 = vunpack.c.h.b16 %v463
        %v692 = vunpack.c.l.b16 %v464
        %v693 = vunpack.c.h.b16 %v464
        %v694 = vunpack.c.l.b16 %v465
        %v695 = vunpack.c.h.b16 %v465
        %v696 = vunpack.c.l.b16 %v466
        %v697 = vunpack.c.h.b16 %v466
        %v698 = vunpack.c.l.b16 %v467
        %v699 = vunpack.c.h.b16 %v467
        %v700 = vunpack.c.l.b16 %v468
        %v701 = vunpack.c.h.b16 %v468
        %v702 = vunpack.c.l.b16 %v469
        %v703 = vunpack.c.h.b16 %v469
        %v704 = vunpack.c.l.b16 %v470
        %v705 = vunpack.c.h.b16 %v470
        %v706 = vunpack.c.l.b16 %v471
        %v707 = vunpack.c.h.b16 %v471
        %v708 = vunpack.c.l.b16 %v472
        %v709 = vunpack.c.h.b16 %v472
        %v710 = vunpack.c.l.b16 %v473
        %v711 = vunpack.c.h.b16 %v473
        %v712 = vunpack.c.l.b16 %v474
        %v713 = vunpack.c.h.b16 %v474
        %v714 = vunpack.c.l.b16 %v475
        %v715 = vunpack.c.h.b16 %v475
        %v716 = vunpack.c.l.b16 %v476
        %v717 = vunpack.c.h.b16 %v476
        %v718 = vunpack.c.l.b16 %v477
        %v719 = vunpack.c.h.b16 %v477
        %v720 = vunpack.c.l.b16 %v478
        %v721 = vunpack.c.h.b16 %v478
        %v722 = vunpack.c.l.b16 %v479
        %v723 = vunpack.c.h.b16 %v479
        %v724 = vunpack.c.l.b16 %v480
        %v725 = vunpack.c.h.b16 %v480
        %v726 = vunpack.c.l.b16 %v481
        %v727 = vunpack.c.h.b16 %v481
        %v728 = vunpack.c.l.b16 %v482
        %v729 = vunpack.c.h.b16 %v482
        %v730 = vunpack.c.l.b16 %v483
        %v731 = vunpack.c.h.b16 %v483
        %v732 = vunpack.c.l.b16 %v484
        %v733 = vunpack.c.h.b16 %v484
        %v734 = vunpack.c.l.b16 %v485
        %v735 = vunpack.c.h.b16 %v485
        %v736 = vunpack.c.l.b16 %v486
        %v737 = vunpack.c.h.b16 %v486
        %v738 = vunpack.c.l.b16 %v487
        %v739 = vunpack.c.h.b16 %v487
        %v740 = vunpack.c.l.b16 %v488
        %v741 = vunpack.c.h.b16 %v488
        %v742 = vunpack.c.l.b16 %v489
        %v743 = vunpack.c.h.b16 %v489
        %v744 = vunpack.c.l.b16 %v490
        %v745 = vunpack.c.h.b16 %v490
        %v746 = vunpack.c.l.b16 %v491
        %v747 = vunpack.c.h.b16 %v491
        %v748 = vpack.c.b16 %v624, %v620
        %v749 = vpack.c.b16 %v625, %v621
        %v750 = vpack.c.b16 %v626, %v622
        %v751 = vpack.c.b16 %v627, %v623
        %v752 = vpack.c.b16 %v632, %v628
        %v753 = vpack.c.b16 %v633, %v629
        %v754 = vpack.c.b16 %v634, %v630
        %v755 = vpack.c.b16 %v635, %v631
        %v756 = vpack.c.b16 %v640, %v636
        %v757 = vpack.c.b16 %v641, %v637
        %v758 = vpack.c.b16 %v642, %v638
        %v759 = vpack.c.b16 %v643, %v639
        %v760 = vpack.c.b16 %v648, %v644
        %v761 = vpack.c.b16 %v649, %v645
        %v762 = vpack.c.b16 %v650, %v646
        %v763 = vpack.c.b16 %v651, %v647
        %v764 = vpack.c.b16 %v656, %v652
        %v765 = vpack.c.b16 %v657, %v653
        %v766 = vpack.c.b16 %v658, %v654
        %v767 = vpack.c.b16 %v659, %v655
        %v768 = vpack.c.b16 %v664, %v660
        %v769 = vpack.c.b16 %v665, %v661
        %v770 = vpack.c.b16 %v666, %v662
        %v771 = vpack.c.b16 %v667, %v663
        %v772 = vpack.c.b16 %v672, %v668
        %v773 = vpack.c.b16 %v673, %v669
        %v774 = vpack.c.b16 %v674, %v670
        %v775 = vpack.c.b16 %v675, %v671
        %v776 = vpack.c.b16 %v680, %v676
        %v777 = vpack.c.b16 %v681, %v677
        %v778 = vpack.c.b16 %v682, %v678
        %v779 = vpack.c.b16 %v683, %v679
        %v780 = vpack.c.b16 %v688, %v684
        %v781 = vpack.c.b16 %v689, %v685
        %v782 = vpack.c.b16 %v690, %v686
        %v783 = vpack.c.b16 %v691, %v687
        %v784 = vpack.c.b16 %v696, %v692
        %v785 = vpack.c.b16 %v697, %v693
        %v786 = vpack.c.b16 %v698, %v694
        %v787 = vpack.c.b16 %v699, %v695
        %v788 = vpack.c.b16 %v704, %v700
        %v789 = vpack.c.b16 %v705, %v701
        %v790 = vpack.c.b16 %v706, %v702
        %v791 = vpack.c.b16 %v707, %v703
        %v792 = vpack.c.b16 %v712, %v708
        %v793 = vpack.c.b16 %v713, %v709
        %v794 = vpack.c.b16 %v714, %v710
        %v795 = vpack.c.b16 %v715, %v711
        %v796 = vpack.c.b16 %v720, %v716
        %v797 = vpack.c.b16 %v721, %v717
        %v798 = vpack.c.b16 %v722, %v718
        %v799 = vpack.c.b16 %v723, %v719
        %v800 = vpack.c.b16 %v728, %v724
        %v801 = vpack.c.b16 %v729, %v725
        %v802 = vpack.c.b16 %v730, %v726
        %v803 = vpack.c.b16 %v731, %v727
        %v804 = vpack.c.b16 %v736, %v732
        %v805 = vpack.c.b16 %v737, %v733
        %v806 = vpack.c.b16 %v738, %v734
        %v807 = vpack.c.b16 %v739, %v735
        %v808 = vpack.c.b16 %v744, %v740
        %v809 = vpack.c.b16 %v745, %v741
        %v810 = vpack.c.b16 %v746, %v742
        %v811 = vpack.c.b16 %v747, %v743
        %v940 = vunpack.c.l.b16 %v492
        %v941 = vunpack.c.l.b16 %v493
        %v942 = vunpack.c.l.b16 %v494
        %v943 = vunpack.c.l.b16 %v495
        %v944 = vunpack.c.l.b16 %v496
        %v945 = vunpack.c.l.b16 %v497
        %v946 = vunpack.c.l.b16 %v498
        %v947 = vunpack.c.l.b16 %v499
        %v948 = vunpack.c.l.b16 %v500
        %v949 = vunpack.c.l.b16 %v501
        %v950 = vunpack.c.l.b16 %v502
        %v951 = vunpack.c.l.b16 %v503
        %v952 = vunpack.c.l.b16 %v504
        %v953 = vunpack.c.l.b16 %v505
        %v954 = vunpack.c.l.b16 %v506
        %v955 = vunpack.c.l.b16 %v507
        %v956 = vunpack.c.l.b16 %v508
        %v957 = vunpack.c.l.b16 %v509
        %v958 = vunpack.c.l.b16 %v510
        %v959 = vunpack.c.l.b16 %v511
        %v960 = vunpack.c.l.b16 %v512
        %v961 = vunpack.c.l.b16 %v513
        %v962 = vunpack.c.l.b16 %v514
        %v963 = vunpack.c.l.b16 %v515
        %v964 = vunpack.c.l.b16 %v516
        %v965 = vunpack.c.l.b16 %v517
        %v966 = vunpack.c.l.b16 %v518
        %v967 = vunpack.c.l.b16 %v519
        %v968 = vunpack.c.l.b16 %v520
        %v969 = vunpack.c.l.b16 %v521
        %v970 = vunpack.c.l.b16 %v522
        %v971 = vunpack.c.l.b16 %v523
        %v972 = vunpack.c.l.b16 %v524
        %v973 = vunpack.c.l.b16 %v525
        %v974 = vunpack.c.l.b16 %v526
        %v975 = vunpack.c.l.b16 %v527
        %v976 = vunpack.c.l.b16 %v528
        %v977 = vunpack.c.l.b16 %v529
        %v978 = vunpack.c.l.b16 %v530
        %v979 = vunpack.c.l.b16 %v531
        %v980 = vunpack.c.l.b16 %v532
        %v981 = vunpack.c.l.b16 %v533
        %v982 = vunpack.c.l.b16 %v534
        %v983 = vunpack.c.l.b16 %v535
        %v984 = vunpack.c.l.b16 %v536
        %v985 = vunpack.c.l.b16 %v537
        %v986 = vunpack.c.l.b16 %v538
        %v987 = vunpack.c.l.b16 %v539
        %v988 = vunpack.c.l.b16 %v540
        %v989 = vunpack.c.l.b16 %v541
        %v990 = vunpack.c.l.b16 %v542
        %v991 = vunpack.c.l.b16 %v543
        %v992 = vunpack.c.l.b16 %v544
        %v993 = vunpack.c.l.b16 %v545
        %v994 = vunpack.c.l.b16 %v546
        %v995 = vunpack.c.l.b16 %v547
        %v996 = vunpack.c.l.b16 %v548
        %v997 = vunpack.c.l.b16 %v549
        %v998 = vunpack.c.l.b16 %v550
        %v999 = vunpack.c.l.b16 %v551
        %v1000 = vunpack.c.l.b16 %v552
        %v1001 = vunpack.c.l.b16 %v553
        %v1002 = vunpack.c.l.b16 %v554
        %v1003 = vunpack.c.l.b16 %v555
        %v1004 = vpack.c.b16 %v941, %v940
        %v1005 = vpack.c.b16 %v943, %v942
        %v1006 = vpack.c.b16 %v945, %v944
        %v1007 = vpack.c.b16 %v947, %v946
        %v1008 = vpack.c.b16 %v949, %v948
        %v1009 = vpack.c.b16 %v951, %v950
        %v1010 = vpack.c.b16 %v953, %v952
        %v1011 = vpack.c.b16 %v955, %v954
        %v1012 = vpack.c.b16 %v957, %v956
        %v1013 = vpack.c.b16 %v959, %v958
        %v1014 = vpack.c.b16 %v961, %v960
        %v1015 = vpack.c.b16 %v963, %v962
        %v1016 = vpack.c.b16 %v965, %v964
        %v1017 = vpack.c.b16 %v967, %v966
        %v1018 = vpack.c.b16 %v969, %v968
        %v1019 = vpack.c.b16 %v971, %v970
        %v1020 = vpack.c.b16 %v973, %v972
        %v1021 = vpack.c.b16 %v975, %v974
        %v1022 = vpack.c.b16 %v977, %v976
        %v1023 = vpack.c.b16 %v979, %v978
        %v1024 = vpack.c.b16 %v981, %v980
        %v1025 = vpack.c.b16 %v983, %v982
        %v1026 = vpack.c.b16 %v985, %v984
        %v1027 = vpack.c.b16 %v987, %v986
        %v1028 = vpack.c.b16 %v989, %v988
        %v1029 = vpack.c.b16 %v991, %v990
        %v1030 = vpack.c.b16 %v993, %v992
        %v1031 = vpack.c.b16 %v995, %v994
        %v1032 = vpack.c.b16 %v997, %v996
        %v1033 = vpack.c.b16 %v999, %v998
        %v1034 = vpack.c.b16 %v1001, %v1000
        %v1035 = vpack.c.b16 %v1003, %v1002
        %1068 = vmatprep.subr.bf16.mxu0 0
        %1069 = vmatpush1.bf16.msra.mxu0 %v1004
        %1070 = vmatprep.subr.bf16.mxu0 0
        %1071 = vmatpush1.bf16.msra.mxu0 %v1005
        %1072 = vmatprep.subr.bf16.mxu0 0
        %1073 = vmatpush1.bf16.msra.mxu0 %v1006
        %1074 = vmatprep.subr.bf16.mxu0 0
        %1075 = vmatpush1.bf16.msra.mxu0 %v1007
        %1076 = vmatprep.subr.bf16.mxu0 0
        %1077 = vmatpush1.bf16.msra.mxu0 %v1008
        %1078 = vmatprep.subr.bf16.mxu0 0
        %1079 = vmatpush1.bf16.msra.mxu0 %v1009
        %1080 = vmatprep.subr.bf16.mxu0 0
        %1081 = vmatpush1.bf16.msra.mxu0 %v1010
        %1082 = vmatprep.subr.bf16.mxu0 0
        %1083 = vmatpush1.bf16.msra.mxu0 %v1011
        %1084 = vmatprep.subr.bf16.mxu0 0
        %1085 = vmatpush1.bf16.msra.mxu0 %v1012
        %1086 = vmatprep.subr.bf16.mxu0 0
        %1087 = vmatpush1.bf16.msra.mxu0 %v1013
        %1088 = vmatprep.subr.bf16.mxu0 0
        %1089 = vmatpush1.bf16.msra.mxu0 %v1014
        %1090 = vmatprep.subr.bf16.mxu0 0
        %1091 = vmatpush1.bf16.msra.mxu0 %v1015
        %1092 = vmatprep.subr.bf16.mxu0 0
        %1093 = vmatpush1.bf16.msra.mxu0 %v1016
        %1094 = vmatprep.subr.bf16.mxu0 0
        %1095 = vmatpush1.bf16.msra.mxu0 %v1017
        %1096 = vmatprep.subr.bf16.mxu0 0
        %1097 = vmatpush1.bf16.msra.mxu0 %v1018
        %1098 = vmatprep.subr.bf16.mxu0 0
        %1099 = vmatpush1.bf16.msra.mxu0 %v1019
        %1100 = vmatprep.mubr.bf16.mxu0 %v749
        %1101 = vmatmul.mubr.bf16.gmra.mrb[0].mxu0 %v748
        %v1102 = vpop.f32.mrb[0].mxu0
        %v1103 = vadd.f32 0.0, %v1102
        %v1104 = vpop.f32.mrb[0].mxu0
        %v1105 = vpop.f32.mrb[0].mxu0
        %v1106 = vadd.f32 0.0, %v1105
        %v1107 = vpop.f32.mrb[0].mxu0
        %1108 = vmatprep.mubr.bf16.mxu0 %v753
        %1109 = vmatmul.mubr.bf16.gmra.mrb[0].mxu0 %v752
        %v1110 = vpop.f32.mrb[0].mxu0
        %v1111 = vadd.f32 0.0, %v1110
        %v1112 = vpop.f32.mrb[0].mxu0
        %v1113 = vpop.f32.mrb[0].mxu0
        %v1114 = vadd.f32 0.0, %v1113
        %v1115 = vpop.f32.mrb[0].mxu0
        %1116 = vmatprep.mubr.bf16.mxu0 %v757
        %1117 = vmatmul.mubr.bf16.gmra.mrb[0].mxu0 %v756
        %v1118 = vpop.f32.mrb[0].mxu0
        %v1119 = vadd.f32 0.0, %v1118
        %v1120 = vpop.f32.mrb[0].mxu0
        %v1121 = vpop.f32.mrb[0].mxu0
        %v1122 = vadd.f32 0.0, %v1121
        %v1123 = vpop.f32.mrb[0].mxu0
        %1124 = vmatprep.mubr.bf16.mxu0 %v761
        %1125 = vmatmul.mubr.bf16.gmra.mrb[0].mxu0 %v760
        %v1126 = vpop.f32.mrb[0].mxu0
        %v1127 = vadd.f32 0.0, %v1126
        %v1128 = vpop.f32.mrb[0].mxu0
        %v1129 = vpop.f32.mrb[0].mxu0
        %v1130 = vadd.f32 0.0, %v1129
        %v1131 = vpop.f32.mrb[0].mxu0
        %1132 = vmatprep.mubr.bf16.mxu0 %v765
        %1133 = vmatmul.mubr.bf16.gmra.mrb[0].mxu0 %v764
        %v1134 = vpop.f32.mrb[0].mxu0
        %v1135 = vadd.f32 0.0, %v1134
        %v1136 = vpop.f32.mrb[0].mxu0
        %v1137 = vpop.f32.mrb[0].mxu0
        %v1138 = vadd.f32 0.0, %v1137
        %v1139 = vpop.f32.mrb[0].mxu0
        %1140 = vmatprep.mubr.bf16.mxu0 %v769
        %1141 = vmatmul.mubr.bf16.gmra.mrb[0].mxu0 %v768
        %v1142 = vpop.f32.mrb[0].mxu0
        %v1143 = vadd.f32 0.0, %v1142
        %v1144 = vpop.f32.mrb[0].mxu0
        %v1145 = vpop.f32.mrb[0].mxu0
        %v1146 = vadd.f32 0.0, %v1145
        %v1147 = vpop.f32.mrb[0].mxu0
        %1148 = vmatprep.mubr.bf16.mxu0 %v773
        %1149 = vmatmul.mubr.bf16.gmra.mrb[0].mxu0 %v772
        %v1150 = vpop.f32.mrb[0].mxu0
        %v1151 = vadd.f32 0.0, %v1150
        %v1152 = vpop.f32.mrb[0].mxu0
        %v1153 = vpop.f32.mrb[0].mxu0
        %v1154 = vadd.f32 0.0, %v1153
        %v1155 = vpop.f32.mrb[0].mxu0
        %1156 = vmatprep.mubr.bf16.mxu0 %v777
        %1157 = vmatmul.mubr.bf16.gmra.mrb[0].mxu0 %v776
        %v1158 = vpop.f32.mrb[0].mxu0
        %v1159 = vadd.f32 0.0, %v1158
        %v1160 = vpop.f32.mrb[0].mxu0
        %v1161 = vpop.f32.mrb[0].mxu0
        %v1162 = vadd.f32 0.0, %v1161
        %v1163 = vpop.f32.mrb[0].mxu0
        %1164 = vmatprep.mubr.bf16.mxu0 %v781
        %1165 = vmatmul.mubr.bf16.gmra.mrb[0].mxu0 %v780
        %v1166 = vpop.f32.mrb[0].mxu0
        %v1167 = vadd.f32 0.0, %v1166
        %v1168 = vpop.f32.mrb[0].mxu0
        %v1169 = vpop.f32.mrb[0].mxu0
        %v1170 = vadd.f32 0.0, %v1169
        %v1171 = vpop.f32.mrb[0].mxu0
        %1172 = vmatprep.mubr.bf16.mxu0 %v785
        %1173 = vmatmul.mubr.bf16.gmra.mrb[0].mxu0 %v784
        %v1174 = vpop.f32.mrb[0].mxu0
        %v1175 = vadd.f32 0.0, %v1174
        %v1176 = vpop.f32.mrb[0].mxu0
        %v1177 = vpop.f32.mrb[0].mxu0
        %v1178 = vadd.f32 0.0, %v1177
        %v1179 = vpop.f32.mrb[0].mxu0
        %1180 = vmatprep.mubr.bf16.mxu0 %v789
        %1181 = vmatmul.mubr.bf16.gmra.mrb[0].mxu0 %v788
        %v1182 = vpop.f32.mrb[0].mxu0
        %v1183 = vadd.f32 0.0, %v1182
        %v1184 = vpop.f32.mrb[0].mxu0
        %v1185 = vpop.f32.mrb[0].mxu0
        %v1186 = vadd.f32 0.0, %v1185
        %v1187 = vpop.f32.mrb[0].mxu0
        %1188 = vmatprep.mubr.bf16.mxu0 %v793
        %1189 = vmatmul.mubr.bf16.gmra.mrb[0].mxu0 %v792
        %v1190 = vpop.f32.mrb[0].mxu0
        %v1191 = vadd.f32 0.0, %v1190
        %v1192 = vpop.f32.mrb[0].mxu0
        %v1193 = vpop.f32.mrb[0].mxu0
        %v1194 = vadd.f32 0.0, %v1193
        %v1195 = vpop.f32.mrb[0].mxu0
        %1196 = vmatprep.mubr.bf16.mxu0 %v797
        %1197 = vmatmul.mubr.bf16.gmra.mrb[0].mxu0 %v796
        %v1198 = vpop.f32.mrb[0].mxu0
        %v1199 = vadd.f32 0.0, %v1198
        %v1200 = vpop.f32.mrb[0].mxu0
        %v1201 = vpop.f32.mrb[0].mxu0
        %v1202 = vadd.f32 0.0, %v1201
        %v1203 = vpop.f32.mrb[0].mxu0
        %1204 = vmatprep.mubr.bf16.mxu0 %v801
        %1205 = vmatmul.mubr.bf16.gmra.mrb[0].mxu0 %v800
        %v1206 = vpop.f32.mrb[0].mxu0
        %v1207 = vadd.f32 0.0, %v1206
        %v1208 = vpop.f32.mrb[0].mxu0
        %v1209 = vpop.f32.mrb[0].mxu0
        %v1210 = vadd.f32 0.0, %v1209
        %v1211 = vpop.f32.mrb[0].mxu0
        %1212 = vmatprep.mubr.bf16.mxu0 %v805
        %1213 = vmatmul.mubr.bf16.gmra.mrb[0].mxu0 %v804
        %v1214 = vpop.f32.mrb[0].mxu0
        %v1215 = vadd.f32 0.0, %v1214
        %v1216 = vpop.f32.mrb[0].mxu0
        %v1217 = vpop.f32.mrb[0].mxu0
        %v1218 = vadd.f32 0.0, %v1217
        %v1219 = vpop.f32.mrb[0].mxu0
        %1220 = vmatprep.mubr.bf16.mxu0 %v809
        %1221 = vmatmul.mubr.bf16.gmra.mrb[0].mxu0 %v808
        %v1222 = vpop.f32.mrb[0].mxu0
        %v1223 = vadd.f32 0.0, %v1222
        %v1224 = vpop.f32.mrb[0].mxu0
        %v1225 = vpop.f32.mrb[0].mxu0
        %v1226 = vadd.f32 0.0, %v1225
        %v1227 = vpop.f32.mrb[0].mxu0
        %1228 = vdwg.mxu0
        %1229 = vmatprep.subr.bf16.mxu0 0
        %1230 = vmatpush1.bf16.msra.mxu0 %v1020
        %1231 = vmatprep.subr.bf16.mxu0 0
        %1232 = vmatpush1.bf16.msra.mxu0 %v1021
        %1233 = vmatprep.subr.bf16.mxu0 0
        %1234 = vmatpush1.bf16.msra.mxu0 %v1022
        %1235 = vmatprep.subr.bf16.mxu0 0
        %1236 = vmatpush1.bf16.msra.mxu0 %v1023
        %1237 = vmatprep.subr.bf16.mxu0 0
        %1238 = vmatpush1.bf16.msra.mxu0 %v1024
        %1239 = vmatprep.subr.bf16.mxu0 0
        %1240 = vmatpush1.bf16.msra.mxu0 %v1025
        %1241 = vmatprep.subr.bf16.mxu0 0
        %1242 = vmatpush1.bf16.msra.mxu0 %v1026
        %1243 = vmatprep.subr.bf16.mxu0 0
        %1244 = vmatpush1.bf16.msra.mxu0 %v1027
        %1245 = vmatprep.subr.bf16.mxu0 0
        %1246 = vmatpush1.bf16.msra.mxu0 %v1028
        %1247 = vmatprep.subr.bf16.mxu0 0
        %1248 = vmatpush1.bf16.msra.mxu0 %v1029
        %1249 = vmatprep.subr.bf16.mxu0 0
        %1250 = vmatpush1.bf16.msra.mxu0 %v1030
        %1251 = vmatprep.subr.bf16.mxu0 0
        %1252 = vmatpush1.bf16.msra.mxu0 %v1031
        %1253 = vmatprep.subr.bf16.mxu0 0
        %1254 = vmatpush1.bf16.msra.mxu0 %v1032
        %1255 = vmatprep.subr.bf16.mxu0 0
        %1256 = vmatpush1.bf16.msra.mxu0 %v1033
        %1257 = vmatprep.subr.bf16.mxu0 0
        %1258 = vmatpush1.bf16.msra.mxu0 %v1034
        %1259 = vmatprep.subr.bf16.mxu0 0
        %1260 = vmatpush1.bf16.msra.mxu0 %v1035
        %1261 = vmatprep.mubr.bf16.mxu0 %v751
        %1262 = vmatmul.mubr.bf16.gmra.mrb[0].mxu0 %v750
        %v1263 = vpop.f32.mrb[0].mxu0
        %v1264 = vadd.f32 %v1103, %v1263
        %v1265 = vpop.f32.mrb[0].mxu0
        %v1266 = vpop.f32.mrb[0].mxu0
        %v1267 = vadd.f32 %v1106, %v1266
        %v1268 = vpop.f32.mrb[0].mxu0
        %1269 = vmatprep.mubr.bf16.mxu0 %v755
        %1270 = vmatmul.mubr.bf16.gmra.mrb[0].mxu0 %v754
        %v1271 = vpop.f32.mrb[0].mxu0
        %v1272 = vadd.f32 %v1111, %v1271
        %v1273 = vpop.f32.mrb[0].mxu0
        %v1274 = vpop.f32.mrb[0].mxu0
        %v1275 = vadd.f32 %v1114, %v1274
        %v1276 = vpop.f32.mrb[0].mxu0
        %1277 = vmatprep.mubr.bf16.mxu0 %v759
        %1278 = vmatmul.mubr.bf16.gmra.mrb[0].mxu0 %v758
        %v1279 = vpop.f32.mrb[0].mxu0
        %v1280 = vadd.f32 %v1119, %v1279
        %v1281 = vpop.f32.mrb[0].mxu0
        %v1282 = vpop.f32.mrb[0].mxu0
        %v1283 = vadd.f32 %v1122, %v1282
        %v1284 = vpop.f32.mrb[0].mxu0
        %1285 = vmatprep.mubr.bf16.mxu0 %v763
        %1286 = vmatmul.mubr.bf16.gmra.mrb[0].mxu0 %v762
        %v1287 = vpop.f32.mrb[0].mxu0
        %v1288 = vadd.f32 %v1127, %v1287
        %v1289 = vpop.f32.mrb[0].mxu0
        %v1290 = vpop.f32.mrb[0].mxu0
        %v1291 = vadd.f32 %v1130, %v1290
        %v1292 = vpop.f32.mrb[0].mxu0
        %1293 = vmatprep.mubr.bf16.mxu0 %v767
        %1294 = vmatmul.mubr.bf16.gmra.mrb[0].mxu0 %v766
        %v1295 = vpop.f32.mrb[0].mxu0
        %v1296 = vadd.f32 %v1135, %v1295
        %v1297 = vpop.f32.mrb[0].mxu0
        %v1298 = vpop.f32.mrb[0].mxu0
        %v1299 = vadd.f32 %v1138, %v1298
        %v1300 = vpop.f32.mrb[0].mxu0
        %1301 = vmatprep.mubr.bf16.mxu0 %v771
        %1302 = vmatmul.mubr.bf16.gmra.mrb[0].mxu0 %v770
        %v1303 = vpop.f32.mrb[0].mxu0
        %v1304 = vadd.f32 %v1143, %v1303
        %v1305 = vpop.f32.mrb[0].mxu0
        %v1306 = vpop.f32.mrb[0].mxu0
        %v1307 = vadd.f32 %v1146, %v1306
        %v1308 = vpop.f32.mrb[0].mxu0
        %1309 = vmatprep.mubr.bf16.mxu0 %v775
        %1310 = vmatmul.mubr.bf16.gmra.mrb[0].mxu0 %v774
        %v1311 = vpop.f32.mrb[0].mxu0
        %v1312 = vadd.f32 %v1151, %v1311
        %v1313 = vpop.f32.mrb[0].mxu0
        %v1314 = vpop.f32.mrb[0].mxu0
        %v1315 = vadd.f32 %v1154, %v1314
        %v1316 = vpop.f32.mrb[0].mxu0
        %1317 = vmatprep.mubr.bf16.mxu0 %v779
        %1318 = vmatmul.mubr.bf16.gmra.mrb[0].mxu0 %v778
        %v1319 = vpop.f32.mrb[0].mxu0
        %v1320 = vadd.f32 %v1159, %v1319
        %v1321 = vpop.f32.mrb[0].mxu0
        %v1322 = vpop.f32.mrb[0].mxu0
        %v1323 = vadd.f32 %v1162, %v1322
        %v1324 = vpop.f32.mrb[0].mxu0
        %1325 = vmatprep.mubr.bf16.mxu0 %v783
        %1326 = vmatmul.mubr.bf16.gmra.mrb[0].mxu0 %v782
        %v1327 = vpop.f32.mrb[0].mxu0
        %v1328 = vadd.f32 %v1167, %v1327
        %v1329 = vpop.f32.mrb[0].mxu0
        %v1330 = vpop.f32.mrb[0].mxu0
        %v1331 = vadd.f32 %v1170, %v1330
        %v1332 = vpop.f32.mrb[0].mxu0
        %1333 = vmatprep.mubr.bf16.mxu0 %v787
        %1334 = vmatmul.mubr.bf16.gmra.mrb[0].mxu0 %v786
        %v1335 = vpop.f32.mrb[0].mxu0
        %v1336 = vadd.f32 %v1175, %v1335
        %v1337 = vpop.f32.mrb[0].mxu0
        %v1338 = vpop.f32.mrb[0].mxu0
        %v1339 = vadd.f32 %v1178, %v1338
        %v1340 = vpop.f32.mrb[0].mxu0
        %1341 = vmatprep.mubr.bf16.mxu0 %v791
        %1342 = vmatmul.mubr.bf16.gmra.mrb[0].mxu0 %v790
        %v1343 = vpop.f32.mrb[0].mxu0
        %v1344 = vadd.f32 %v1183, %v1343
        %v1345 = vpop.f32.mrb[0].mxu0
        %v1346 = vpop.f32.mrb[0].mxu0
        %v1347 = vadd.f32 %v1186, %v1346
        %v1348 = vpop.f32.mrb[0].mxu0
        %1349 = vmatprep.mubr.bf16.mxu0 %v795
        %1350 = vmatmul.mubr.bf16.gmra.mrb[0].mxu0 %v794
        %v1351 = vpop.f32.mrb[0].mxu0
        %v1352 = vadd.f32 %v1191, %v1351
        %v1353 = vpop.f32.mrb[0].mxu0
        %v1354 = vpop.f32.mrb[0].mxu0
        %v1355 = vadd.f32 %v1194, %v1354
        %v1356 = vpop.f32.mrb[0].mxu0
        %1357 = vmatprep.mubr.bf16.mxu0 %v799
        %1358 = vmatmul.mubr.bf16.gmra.mrb[0].mxu0 %v798
        %v1359 = vpop.f32.mrb[0].mxu0
        %v1360 = vadd.f32 %v1199, %v1359
        %v1361 = vpop.f32.mrb[0].mxu0
        %v1362 = vpop.f32.mrb[0].mxu0
        %v1363 = vadd.f32 %v1202, %v1362
        %v1364 = vpop.f32.mrb[0].mxu0
        %1365 = vmatprep.mubr.bf16.mxu0 %v803
        %1366 = vmatmul.mubr.bf16.gmra.mrb[0].mxu0 %v802
        %v1367 = vpop.f32.mrb[0].mxu0
        %v1368 = vadd.f32 %v1207, %v1367
        %v1369 = vpop.f32.mrb[0].mxu0
        %v1370 = vpop.f32.mrb[0].mxu0
        %v1371 = vadd.f32 %v1210, %v1370
        %v1372 = vpop.f32.mrb[0].mxu0
        %1373 = vmatprep.mubr.bf16.mxu0 %v807
        %1374 = vmatmul.mubr.bf16.gmra.mrb[0].mxu0 %v806
        %v1375 = vpop.f32.mrb[0].mxu0
        %v1376 = vadd.f32 %v1215, %v1375
        %v1377 = vpop.f32.mrb[0].mxu0
        %v1378 = vpop.f32.mrb[0].mxu0
        %v1379 = vadd.f32 %v1218, %v1378
        %v1380 = vpop.f32.mrb[0].mxu0
        %1381 = vmatprep.mubr.bf16.mxu0 %v811
        %1382 = vmatmul.mubr.bf16.gmra.mrb[0].mxu0 %v810
        %v1383 = vpop.f32.mrb[0].mxu0
        %v1384 = vadd.f32 %v1223, %v1383
        %v1385 = vpop.f32.mrb[0].mxu0
        %v1386 = vpop.f32.mrb[0].mxu0
        %v1387 = vadd.f32 %v1226, %v1386
        %v1388 = vpop.f32.mrb[0].mxu0
        %1389 = vdwg.mxu0
        %v1390 = vadd.f32 %v396, %v1264
        %v1391 = vadd.f32 %v397, %v1267
        %v1392 = vadd.f32 %v398, %v1272
        %v1393 = vadd.f32 %v399, %v1275
        %v1394 = vadd.f32 %v400, %v1280
        %v1395 = vadd.f32 %v401, %v1283
        %v1396 = vadd.f32 %v402, %v1288
        %v1397 = vadd.f32 %v403, %v1291
        %v1398 = vadd.f32 %v404, %v1296
        %v1399 = vadd.f32 %v405, %v1299
        %v1400 = vadd.f32 %v406, %v1304
        %v1401 = vadd.f32 %v407, %v1307
        %v1402 = vadd.f32 %v408, %v1312
        %v1403 = vadd.f32 %v409, %v1315
        %v1404 = vadd.f32 %v410, %v1320
        %v1405 = vadd.f32 %v411, %v1323
        %v1406 = vadd.f32 %v412, %v1328
        %v1407 = vadd.f32 %v413, %v1331
        %v1408 = vadd.f32 %v414, %v1336
        %v1409 = vadd.f32 %v415, %v1339
        %v1410 = vadd.f32 %v416, %v1344
        %v1411 = vadd.f32 %v417, %v1347
        %v1412 = vadd.f32 %v418, %v1352
        %v1413 = vadd.f32 %v419, %v1355
        %v1414 = vadd.f32 %v420, %v1360
        %v1415 = vadd.f32 %v421, %v1363
        %v1416 = vadd.f32 %v422, %v1368
        %v1417 = vadd.f32 %v423, %v1371
        %v1418 = vadd.f32 %v424, %v1376
        %v1419 = vadd.f32 %v425, %v1379
        %v1420 = vadd.f32 %v426, %v1384
        %v1421 = vadd.f32 %v427, %v1387
        %1422 = vst [vmem:[#allocation2] sm:$0xff] %v1390
        %1423 = vst [vmem:[#allocation2 + $0x8] sm:$0xff] %v1391
        %1424 = vst [vmem:[#allocation2 + $0x10] sm:$0xff] %v1392
        %1425 = vst [vmem:[#allocation2 + $0x18] sm:$0xff] %v1393
        %1426 = vst [vmem:[#allocation2 + $0x20] sm:$0xff] %v1394
        %1427 = vst [vmem:[#allocation2 + $0x28] sm:$0xff] %v1395
        %1428 = vst [vmem:[#allocation2 + $0x30] sm:$0xff] %v1396
        %1429 = vst [vmem:[#allocation2 + $0x38] sm:$0xff] %v1397
        %1430 = vst [vmem:[#allocation2 + $0x40] sm:$0xff] %v1398
        %1431 = vst [vmem:[#allocation2 + $0x48] sm:$0xff] %v1399
        %1432 = vst [vmem:[#allocation2 + $0x50] sm:$0xff] %v1400
        %1433 = vst [vmem:[#allocation2 + $0x58] sm:$0xff] %v1401
        %1434 = vst [vmem:[#allocation2 + $0x60] sm:$0xff] %v1402
        %1435 = vst [vmem:[#allocation2 + $0x68] sm:$0xff] %v1403
        %1436 = vst [vmem:[#allocation2 + $0x70] sm:$0xff] %v1404
        %1437 = vst [vmem:[#allocation2 + $0x78] sm:$0xff] %v1405
        %1438 = vst [vmem:[#allocation2 + $0x80] sm:$0xff] %v1406
        %1439 = vst [vmem:[#allocation2 + $0x88] sm:$0xff] %v1407
        %1440 = vst [vmem:[#allocation2 + $0x90] sm:$0xff] %v1408
        %1441 = vst [vmem:[#allocation2 + $0x98] sm:$0xff] %v1409
        %1442 = vst [vmem:[#allocation2 + $0xa0] sm:$0xff] %v1410
        %1443 = vst [vmem:[#allocation2 + $0xa8] sm:$0xff] %v1411
        %1444 = vst [vmem:[#allocation2 + $0xb0] sm:$0xff] %v1412
        %1445 = vst [vmem:[#allocation2 + $0xb8] sm:$0xff] %v1413
        %1446 = vst [vmem:[#allocation2 + $0xc0] sm:$0xff] %v1414
        %1447 = vst [vmem:[#allocation2 + $0xc8] sm:$0xff] %v1415
        %1448 = vst [vmem:[#allocation2 + $0xd0] sm:$0xff] %v1416
        %1449 = vst [vmem:[#allocation2 + $0xd8] sm:$0xff] %v1417
        %1450 = vst [vmem:[#allocation2 + $0xe0] sm:$0xff] %v1418
        %1451 = vst [vmem:[#allocation2 + $0xe8] sm:$0xff] %v1419
        %1452 = vst [vmem:[#allocation2 + $0xf0] sm:$0xff] %v1420
        %1453 = vst [vmem:[#allocation2 + $0xf8] sm:$0xff] %v1421
        %p1454 = scmp.eq.s32.totalorder %s19, 5
        // Predicated region
        $region60: #{genenet_forward.61} parent=50 // pred_check
          %p1455 = pneg %p1454
        $region61: #{genenet_forward.61} parent=50 // pred_check_branch
          %1457 = sbr.rel (%p1455) target = $region63
        $region62: #{genenet_forward.61} parent=50 // pred_region
          %v1458 = vld [vmem:[#allocation2] sm:$0xff]
          %v1459 = vld [vmem:[#allocation2 + $0x8] sm:$0xff]
          %v1460 = vld [vmem:[#allocation2 + $0x10] sm:$0xff]
          %v1461 = vld [vmem:[#allocation2 + $0x18] sm:$0xff]
          %v1462 = vld [vmem:[#allocation2 + $0x20] sm:$0xff]
          %v1463 = vld [vmem:[#allocation2 + $0x28] sm:$0xff]
          %v1464 = vld [vmem:[#allocation2 + $0x30] sm:$0xff]
          %v1465 = vld [vmem:[#allocation2 + $0x38] sm:$0xff]
          %v1466 = vld [vmem:[#allocation2 + $0x40] sm:$0xff]
          %v1467 = vld [vmem:[#allocation2 + $0x48] sm:$0xff]
          %v1468 = vld [vmem:[#allocation2 + $0x50] sm:$0xff]
          %v1469 = vld [vmem:[#allocation2 + $0x58] sm:$0xff]
          %v1470 = vld [vmem:[#allocation2 + $0x60] sm:$0xff]
          %v1471 = vld [vmem:[#allocation2 + $0x68] sm:$0xff]
          %v1472 = vld [vmem:[#allocation2 + $0x70] sm:$0xff]
          %v1473 = vld [vmem:[#allocation2 + $0x78] sm:$0xff]
          %v1474 = vld [vmem:[#allocation2 + $0x80] sm:$0xff]
          %v1475 = vld [vmem:[#allocation2 + $0x88] sm:$0xff]
          %v1476 = vld [vmem:[#allocation2 + $0x90] sm:$0xff]
          %v1477 = vld [vmem:[#allocation2 + $0x98] sm:$0xff]
          %v1478 = vld [vmem:[#allocation2 + $0xa0] sm:$0xff]
          %v1479 = vld [vmem:[#allocation2 + $0xa8] sm:$0xff]
          %v1480 = vld [vmem:[#allocation2 + $0xb0] sm:$0xff]
          %v1481 = vld [vmem:[#allocation2 + $0xb8] sm:$0xff]
          %v1482 = vld [vmem:[#allocation2 + $0xc0] sm:$0xff]
          %v1483 = vld [vmem:[#allocation2 + $0xc8] sm:$0xff]
          %v1484 = vld [vmem:[#allocation2 + $0xd0] sm:$0xff]
          %v1485 = vld [vmem:[#allocation2 + $0xd8] sm:$0xff]
          %v1486 = vld [vmem:[#allocation2 + $0xe0] sm:$0xff]
          %v1487 = vld [vmem:[#allocation2 + $0xe8] sm:$0xff]
          %v1488 = vld [vmem:[#allocation2 + $0xf0] sm:$0xff]
          %v1489 = vld [vmem:[#allocation2 + $0xf8] sm:$0xff]
          %v1490 = vld [vmem:[%s2] sm:$0x1]
          %v1492 = vlaneseq
          %v1493 = vshrl.u32 %v1492, 7
          %v1494 = vsub.s32 0, %v1493
          %v1495 = vrot.slane %v1490, %v1494
          %v1497 = vadd.f32 %v1458, %v1495
          %v1498 = vadd.f32 %v1459, %v1495
          %v1499 = vadd.f32 %v1460, %v1495
          %v1500 = vadd.f32 %v1461, %v1495
          %v1501 = vadd.f32 %v1462, %v1495
          %v1502 = vadd.f32 %v1463, %v1495
          %v1503 = vadd.f32 %v1464, %v1495
          %v1504 = vadd.f32 %v1465, %v1495
          %v1505 = vadd.f32 %v1466, %v1495
          %v1506 = vadd.f32 %v1467, %v1495
          %v1507 = vadd.f32 %v1468, %v1495
          %v1508 = vadd.f32 %v1469, %v1495
          %v1509 = vadd.f32 %v1470, %v1495
          %v1510 = vadd.f32 %v1471, %v1495
          %v1511 = vadd.f32 %v1472, %v1495
          %v1512 = vadd.f32 %v1473, %v1495
          %v1513 = vadd.f32 %v1474, %v1495
          %v1514 = vadd.f32 %v1475, %v1495
          %v1515 = vadd.f32 %v1476, %v1495
          %v1516 = vadd.f32 %v1477, %v1495
          %v1517 = vadd.f32 %v1478, %v1495
          %v1518 = vadd.f32 %v1479, %v1495
          %v1519 = vadd.f32 %v1480, %v1495
          %v1520 = vadd.f32 %v1481, %v1495
          %v1521 = vadd.f32 %v1482, %v1495
          %v1522 = vadd.f32 %v1483, %v1495
          %v1523 = vadd.f32 %v1484, %v1495
          %v1524 = vadd.f32 %v1485, %v1495
          %v1525 = vadd.f32 %v1486, %v1495
          %v1526 = vadd.f32 %v1487, %v1495
          %v1527 = vadd.f32 %v1488, %v1495
          %v1528 = vadd.f32 %v1489, %v1495
          %1529 = vst [vmem:[%s357] sm:$0xff] %v1497
          %1530 = vst [vmem:[%s357 + $0x8] sm:$0xff] %v1498
          %1531 = vst [vmem:[%s357 + $0x10] sm:$0xff] %v1499
          %1532 = vst [vmem:[%s357 + $0x18] sm:$0xff] %v1500
          %1533 = vst [vmem:[%s357 + $0x20] sm:$0xff] %v1501
          %1534 = vst [vmem:[%s357 + $0x28] sm:$0xff] %v1502
          %1535 = vst [vmem:[%s357 + $0x30] sm:$0xff] %v1503
          %1536 = vst [vmem:[%s357 + $0x38] sm:$0xff] %v1504
          %1537 = vst [vmem:[%s357 + $0x40] sm:$0xff] %v1505
          %1538 = vst [vmem:[%s357 + $0x48] sm:$0xff] %v1506
          %1539 = vst [vmem:[%s357 + $0x50] sm:$0xff] %v1507
          %1540 = vst [vmem:[%s357 + $0x58] sm:$0xff] %v1508
          %1541 = vst [vmem:[%s357 + $0x60] sm:$0xff] %v1509
          %1542 = vst [vmem:[%s357 + $0x68] sm:$0xff] %v1510
          %1543 = vst [vmem:[%s357 + $0x70] sm:$0xff] %v1511
          %1544 = vst [vmem:[%s357 + $0x78] sm:$0xff] %v1512
          %1545 = vst [vmem:[%s357 + $0x80] sm:$0xff] %v1513
          %1546 = vst [vmem:[%s357 + $0x88] sm:$0xff] %v1514
          %1547 = vst [vmem:[%s357 + $0x90] sm:$0xff] %v1515
          %1548 = vst [vmem:[%s357 + $0x98] sm:$0xff] %v1516
          %1549 = vst [vmem:[%s357 + $0xa0] sm:$0xff] %v1517
          %1550 = vst [vmem:[%s357 + $0xa8] sm:$0xff] %v1518
          %1551 = vst [vmem:[%s357 + $0xb0] sm:$0xff] %v1519
          %1552 = vst [vmem:[%s357 + $0xb8] sm:$0xff] %v1520
          %1553 = vst [vmem:[%s357 + $0xc0] sm:$0xff] %v1521
          %1554 = vst [vmem:[%s357 + $0xc8] sm:$0xff] %v1522
          %1555 = vst [vmem:[%s357 + $0xd0] sm:$0xff] %v1523
          %1556 = vst [vmem:[%s357 + $0xd8] sm:$0xff] %v1524
          %1557 = vst [vmem:[%s357 + $0xe0] sm:$0xff] %v1525
          %1558 = vst [vmem:[%s357 + $0xe8] sm:$0xff] %v1526
          %1559 = vst [vmem:[%s357 + $0xf0] sm:$0xff] %v1527
          %1560 = vst [vmem:[%s357 + $0xf8] sm:$0xff] %v1528
        $region63: #{genenet_forward.61} parent=50 // pred_fallthru
          _
        %s1561 = smul.u32 32, %s18
        %p1562 = scmp.lt.s32.totalorder %s1561, 63
        %s1563 = scalar_select %p1562, %s1561, 63
        %s1564 = smul.addr %s1563, 8
        %s1565 = scalar_lea.vmem %s3, %s1564
        // Predicated region
        $region64: #{genenet_forward.61} parent=50 // pred_check
          %p1566 = pneg %p119
        $region65: #{genenet_forward.61} parent=50 // pred_check_branch
          %1568 = sbr.rel (%p1566) target = $region67
        $region66: #{genenet_forward.61} parent=50 // pred_region
          %s1569 = smul.u32 32, %s18
        $region67: #{genenet_forward.61} parent=50 // pred_fallthru
          _
      $region51: #{genenet_forward.61} parent=5 // pred_fallthru
        _
      %p1570 = scmp.le.s32.totalorder 2, %s9
      // Predicated region
      $region68: #{genenet_forward.61} parent=5 // pred_check
        %p1571 = pneg %p1570
      $region69: #{genenet_forward.61} parent=5 // pred_check_branch
        %1573 = sbr.rel (%p1571) target = $region71
      $region70: #{genenet_forward.61} parent=5 // pred_region
        %s1574 = ssub.s32 %s9, 2
        // Predicated region
        $region72: #{genenet_forward.61} parent=70 // pred_check
          %p1575 = pneg %p125
        $region73: #{genenet_forward.61} parent=70 // pred_check_branch
          %1577 = sbr.rel (%p1575) target = $region75
        $region74: #{genenet_forward.61} parent=70 // pred_region
          %s1578 = smul.u32 32, %s20
          %p1579 = scmp.lt.s32.totalorder %s1578, 63
          %s1580 = scalar_select %p1579, %s1578, 63
          %s1581 = smul.addr %s1580, 8
          %s1582 = scalar_lea.vmem %s3, %s1581
        $region75: #{genenet_forward.61} parent=70 // pred_fallthru
          _
      $region71: #{genenet_forward.61} parent=5 // pred_fallthru
        _
    $region6: #{genenet_forward.61} parent=1 // loop_footer
      %s13 = sadd.s32 1, %s9
    $region7: #{genenet_forward.61} parent=1 // loop_footer_branch
      %8 = sbr.rel target = $region3
    $region8: #{genenet_forward.61} parent=1 // loop_exit
      _

</llo_original>
